<compile_context>
chip_gen: v7x
topology: tpu7x:2x2x1
jax: 0.10.0
libtpu: 0.0.40
codegen_flags: <defaults>
</compile_context>

<pallas_src>
import functools
import math

import jax
import jax.numpy as jnp
from jax import lax
from jax.experimental import pallas as pl
from jax.experimental.pallas import tpu as pltpu

U_DIM = 100            # utterance feature dim
G_DIM = 200            # SeqContext output dim (node features)
HC_DIM = 100           # classifier hidden dim
TAG_SIZE = 6           # IEMOCAP-style tag size
HIDDEN = 80            # logical RGT hidden size (spec)
HID_PAD = 128          # lane-dense padded hidden; cols 80..127 are structurally zero
POS_ENC = 2            # positional-encoding size
N_LAYERS = 3           # RGT layers
N_HEADS = 8            # RGT heads
HEAD_DIM = HIDDEN // N_HEADS    # 10 (logical per-head width)
DK_PAD = HID_PAD // N_HEADS     # 16 (padded per-head lane slot)
NEG_INF = -1e9


# ----------------------------------------------------------------------------
# Fused per-dialogue kernel
# ----------------------------------------------------------------------------
def _dialogue_gcn_kernel(
    len_ref, rel_ref,                               # SMEM: [B] int32, [NL*n_rel*NH] f32
    x_ref, etype_ref,                               # per-dialogue VMEM blocks
    w_rnn_ref, b_rnn_ref, w_att_ref,
    w_in_ref, b_in_ref,
    wqkv_ref, wo_ref,
    w_cf_ref, w_cg_ref, b_c1_ref, w_c2_ref, b_c2_ref,
    o_ref,
    *, wp, wf, n_rel):
    f32 = jnp.float32
    bf16 = jnp.bfloat16
    b = pl.program_id(0)
    L = x_ref.shape[1]
    ln = len_ref[b]                                  # dialogue length (scalar, SMEM)

    # --- masks built in-kernel (no [B,L,L] f32 mask in HBM) -------------------
    jj = lax.broadcasted_iota(jnp.int32, (L, L), 0)
    kk = lax.broadcasted_iota(jnp.int32, (L, L), 1)
    adj = (kk >= jj - wp) & (kk <= jj + wf) & (jj < ln) & (kk < ln)
    add_mask = jnp.where(adj, 0.0, NEG_INF).astype(f32)           # [L, L]
    valid_col = (lax.broadcasted_iota(jnp.int32, (L, 1), 0) < ln).astype(f32)

    # --- SeqContext stand-in --------------------------------------------------
    nf = jnp.tanh(
        jnp.dot(x_ref[0], w_rnn_ref[...], preferred_element_type=f32)
        + b_rnn_ref[...])                                          # [L, G] f32
    nf_bf = nf.astype(bf16)

    # --- EdgeAtt: masked softmax over the [j-wp, j+wf] window ----------------
    s1 = jnp.dot(nf_bf, w_att_ref[...], preferred_element_type=f32)
    scores = lax.dot_general(s1.astype(bf16), nf_bf,
                             (((1,), (1,)), ((), ())),
                             preferred_element_type=f32) + add_mask
    m = jnp.max(scores, axis=-1, keepdims=True)
    e = jnp.exp(scores - m)
    edge_norm = e * pl.reciprocal(jnp.sum(e, axis=-1, keepdims=True), approx=True)

    # --- relation-type equality planes (hoisted; reused by all layers/heads) --
    et = etype_ref[0]                                              # [L, L] int32
    eqs = [(et == r) for r in range(1, n_rel)]                     # n_rel-1 bool planes

    def rel_val(l, r, hd):                                         # scalar SMEM read
        return rel_ref[(l * n_rel + r) * N_HEADS + hd]

    # --- RGT input projection (PE @ W_pe + b folded into b_in_ref) ----------
    h = jnp.dot(nf_bf, w_in_ref[...], preferred_element_type=f32) + b_in_ref[...]

    for l in range(N_LAYERS):                                      # weights VMEM-resident
        hb = h.astype(bf16)
        # Fused QKV projection; 1/sqrt(d_k) was folded into the packed Wq.
        qkv = jnp.dot(hb, wqkv_ref[l], preferred_element_type=f32).astype(bf16)
        q = qkv[:, 0 * HID_PAD:1 * HID_PAD]
        k = qkv[:, 1 * HID_PAD:2 * HID_PAD]
        v = qkv[:, 2 * HID_PAD:3 * HID_PAD]
        msgs = []
        for hd in range(N_HEADS):
            lo = hd * DK_PAD
            # relation-type bias for (layer l, head hd) via a select chain over
            # the precomputed equality planes; window/validity mask added once.
            rb = rel_val(l, 0, hd)
            for r in range(1, n_rel):
                rb = jnp.where(eqs[r - 1], rel_val(l, r, hd), rb)
            biasm = add_mask + rb
            logits = lax.dot_general(
                q[:, lo:lo + DK_PAD], k[:, lo:lo + DK_PAD],
                (((1,), (1,)), ((), ())),
                preferred_element_type=f32) + biasm
            mm = jnp.max(logits, axis=-1, keepdims=True)
            ee = jnp.exp(logits - mm)
            attn = ee * pl.reciprocal(jnp.sum(ee, axis=-1, keepdims=True), approx=True)
            attn = attn * edge_norm                                # edge_norm gating
            msgs.append(jnp.dot(attn.astype(bf16), v[:, lo:lo + DK_PAD],
                                preferred_element_type=f32))       # [L, DK_PAD]
        msg = jnp.concatenate(msgs, axis=1).astype(bf16)           # [L, HID_PAD]
        h = jnp.maximum(h + jnp.dot(msg, wo_ref[l], preferred_element_type=f32), 0.0)

    # --- Classifier: concat avoided, W1 split into feature/graph halves -----
    # NOTE: fully padded rows (all positions masked) yield uniform-softmax garbage
    # upstream; they are zeroed here via valid_col and callers ignore rows >= length.
    feats = (nf * valid_col).astype(bf16)
    gout = (h * valid_col).astype(bf16)
    h1 = jnp.maximum(
        jnp.dot(feats, w_cf_ref[...], preferred_element_type=f32)
        + jnp.dot(gout, w_cg_ref[...], preferred_element_type=f32)
        + b_c1_ref[...], 0.0)
    logits2 = (jnp.dot(h1.astype(bf16), w_c2_ref[...], preferred_element_type=f32)
               + b_c2_ref[...])
    m2 = jnp.max(logits2, axis=-1, keepdims=True)
    lse = m2 + jnp.log(jnp.sum(jnp.exp(logits2 - m2), axis=-1, keepdims=True))
    o_ref[0] = logits2 - lse


# ----------------------------------------------------------------------------
# Forward wrapper (glue only: lengths, speakers -> etype, then one pallas_call)
# ----------------------------------------------------------------------------
def dialogue_gcn_forward(packed, textf, qmask, umask, wp, wf, n_speakers):
    B, L, _ = textf.shape
    n_rel = n_speakers * n_speakers * 2
    lengths = jnp.sum((umask > 0).astype(jnp.int32), axis=1).astype(jnp.int32)  # [B]

    # edge types from speakers + direction (tiny int32 map; bias gathered in-kernel)
    spk = jnp.argmax(qmask, axis=-1).astype(jnp.int32)                          # [B, L]
    jj = jnp.arange(L)[:, None]
    kk = jnp.arange(L)[None, :]
    direction = (kk > jj).astype(jnp.int32)
    etype = (spk[:, :, None] * (2 * n_speakers) + spk[:, None, :] * 2
             + direction[None]).astype(jnp.int32)                               # [B, L, L]

    kern = functools.partial(_dialogue_gcn_kernel, wp=wp, wf=wf, n_rel=n_rel)
    smem = pl.BlockSpec(memory_space=pltpu.MemorySpace.SMEM)
    full2 = lambda shape: pl.BlockSpec(shape, lambda b: (0, 0))
    full3 = lambda shape: pl.BlockSpec(shape, lambda b: (0, 0, 0))

    out = pl.pallas_call(
        kern,
        grid=(B,),
        in_specs=[
            smem,                                                # lengths [B] int32
            smem,                                                # rel_flat [NL*n_rel*NH] f32
            pl.BlockSpec((1, L, U_DIM), lambda b: (b, 0, 0)),    # textf (bf16)
            pl.BlockSpec((1, L, L), lambda b: (b, 0, 0)),        # etype (int32)
            full2((U_DIM, G_DIM)),                               # w_rnn
            full2((1, G_DIM)),                                   # b_rnn
            full2((G_DIM, G_DIM)),                               # w_att
            full2((G_DIM, HID_PAD)),                             # w_in (padded)
            full2((L, HID_PAD)),                                 # b_in_pos (PE folded)
            full3((N_LAYERS, HID_PAD, 3 * HID_PAD)),             # wqkv (fused heads+QKV)
            full3((N_LAYERS, HID_PAD, HID_PAD)),                 # wo
            full2((G_DIM, HC_DIM)),                              # w_clf (features half)
            full2((HID_PAD, HC_DIM)),                            # w_clf (graph half, padded)
            full2((1, HC_DIM)),                                  # b_clf1
            full2((HC_DIM, TAG_SIZE)),                           # w_clf2
            full2((1, TAG_SIZE)),                                # b_clf2
        ],
        out_specs=pl.BlockSpec((1, L, TAG_SIZE), lambda b: (b, 0, 0)),
        out_shape=jax.ShapeDtypeStruct((B, L, TAG_SIZE), jnp.float32),
        compiler_params=pltpu.CompilerParams(
            dimension_semantics=("parallel",),
            vmem_limit_bytes=48 * 1024 * 1024),   # fits v7x's 64 MiB with headroom
    )(lengths, packed["rel_flat"], textf.astype(jnp.bfloat16), etype,
      packed["w_rnn"], packed["b_rnn"], packed["w_att"],
      packed["w_in"], packed["b_in_pos"],
      packed["wqkv"], packed["wo"],
      packed["w_clf_f"], packed["w_clf_g"], packed["b_clf1"],
      packed["w_clf2"], packed["b_clf2"])
    # Log-probabilities per utterance; rows with index >= length are padding.
    return out


# ----------------------------------------------------------------------------
# Deterministic parameter init (logical layout) + packing (fused/padded, bf16)
# ----------------------------------------------------------------------------
def init_params(key, n_speakers):
    n_rel = n_speakers * n_speakers * 2
    ks = iter(jax.random.split(key, 32))

    def nrm(shape, fan_in):
        return jax.random.normal(next(ks), shape, jnp.float32) / jnp.sqrt(float(fan_in))

    p = {
        "w_rnn": nrm((U_DIM, G_DIM), U_DIM),
        "b_rnn": jnp.zeros((1, G_DIM), jnp.float32),
        "w_att": nrm((G_DIM, G_DIM), G_DIM),
        "w_in": nrm((G_DIM, HIDDEN), G_DIM),
        "w_pe": nrm((POS_ENC, HIDDEN), POS_ENC),
        "b_in": jnp.zeros((1, HIDDEN), jnp.float32),
        "w_clf1": nrm((G_DIM + HIDDEN, HC_DIM), G_DIM + HIDDEN),
        "b_clf1": jnp.zeros((1, HC_DIM), jnp.float32),
        "w_clf2": nrm((HC_DIM, TAG_SIZE), HC_DIM),
        "b_clf2": jnp.zeros((1, TAG_SIZE), jnp.float32),
        "wq": [], "wk": [], "wv": [], "wo": [], "rel_emb": [],
    }
    for _ in range(N_LAYERS):
        p["wq"].append(nrm((N_HEADS, HIDDEN, HEAD_DIM), HIDDEN))
        p["wk"].append(nrm((N_HEADS, HIDDEN, HEAD_DIM), HIDDEN))
        p["wv"].append(nrm((N_HEADS, HIDDEN, HEAD_DIM), HIDDEN))
        p["wo"].append(nrm((N_HEADS, HEAD_DIM, HIDDEN), HEAD_DIM))
        p["rel_emb"].append(nrm((n_rel, N_HEADS), 1))
    return p


def pack_params(p, L):
    """Fuse per-head weights into lane-dense [128,*] blocks; cast matmul weights to bf16.

    Wq / Wk / Wv are concatenated into one [128, 384] block per layer (fused QKV
    projection) and Wq is pre-scaled by 1/sqrt(d_k) so the kernel adds no extra
    scale on the [L,L] logits.
    """
    bf16 = jnp.bfloat16
    inv_sqrt_dk = 1.0 / math.sqrt(float(HEAD_DIM))
    wq = jnp.zeros((N_LAYERS, HID_PAD, HID_PAD), jnp.float32)
    wk = jnp.zeros((N_LAYERS, HID_PAD, HID_PAD), jnp.float32)
    wv = jnp.zeros((N_LAYERS, HID_PAD, HID_PAD), jnp.float32)
    wo = jnp.zeros((N_LAYERS, HID_PAD, HID_PAD), jnp.float32)
    for l in range(N_LAYERS):
        for hd in range(N_HEADS):
            c0 = hd * DK_PAD
            wq = wq.at[l, :HIDDEN, c0:c0 + HEAD_DIM].set(p["wq"][l][hd] * inv_sqrt_dk)
            wk = wk.at[l, :HIDDEN, c0:c0 + HEAD_DIM].set(p["wk"][l][hd])
            wv = wv.at[l, :HIDDEN, c0:c0 + HEAD_DIM].set(p["wv"][l][hd])
            wo = wo.at[l, c0:c0 + HEAD_DIM, :HIDDEN].set(p["wo"][l][hd])
    wqkv = jnp.concatenate([wq, wk, wv], axis=2)                         # [NL, 128, 384]
    w_in = jnp.pad(p["w_in"], ((0, 0), (0, HID_PAD - HIDDEN)))
    # TODO(synk): Laplacian PE stand-in — sinusoidal PE folded with W_pe + b_in.
    t = jnp.arange(L, dtype=jnp.float32)
    pe = jnp.stack([jnp.sin(t / 10.0), jnp.cos(t / 10.0)], axis=-1)      # [L, 2]
    b_in_pos = jnp.pad(pe @ p["w_pe"] + p["b_in"], ((0, 0), (0, HID_PAD - HIDDEN)))
    rel_flat = jnp.stack(p["rel_emb"], axis=0).reshape(-1).astype(jnp.float32)
    return {
        "w_rnn": p["w_rnn"].astype(bf16),
        "b_rnn": p["b_rnn"],
        "w_att": p["w_att"].astype(bf16),
        "w_in": w_in.astype(bf16),
        "b_in_pos": b_in_pos.astype(jnp.float32),
        "wqkv": wqkv.astype(bf16),
        "wo": wo.astype(bf16),
        "w_clf_f": p["w_clf1"][:G_DIM].astype(bf16),
        "w_clf_g": jnp.pad(p["w_clf1"][G_DIM:],
                           ((0, HID_PAD - HIDDEN), (0, 0))).astype(bf16),
        "b_clf1": p["b_clf1"],
        "w_clf2": p["w_clf2"].astype(bf16),
        "b_clf2": p["b_clf2"],
        "rel_flat": rel_flat,
    }


if __name__ == "__main__":
    B, L = 2, 8
    n_speakers = 2
    wp, wf = 2, 2          # args.wp / args.wf

    key = jax.random.PRNGKey(0)
    kp, kt, kq = jax.random.split(key, 3)
    params = init_params(kp, n_speakers)
    packed = pack_params(params, L)

    textf = jax.random.normal(kt, (B, L, U_DIM), jnp.float32)            # utterance feats
    spk = jax.random.randint(kq, (B, L), 0, n_speakers)
    qmask = jax.nn.one_hot(spk, n_speakers, dtype=jnp.float32)           # speaker one-hot
    lengths = jnp.array([L, L - 2], jnp.int32)
    umask = (jnp.arange(L)[None, :] < lengths[:, None]).astype(jnp.float32)

    out = dialogue_gcn_forward(packed, textf, qmask, umask, wp, wf, n_speakers)
    out = jax.block_until_ready(out)
    assert out.shape == (B, L, TAG_SIZE)
    assert bool(jnp.all(jnp.isfinite(out)))
    print("KERNEL_OK")
</pallas_src>

<mosaic_0001>
module attributes {stable_mosaic.version = 11 : i64} {
  func.func @_dialogue_gcn_kernel(%arg0: i32, %arg1: memref<2xi32, #tpu.memory_space<smem>>, %arg2: memref<192xf32, #tpu.memory_space<smem>>, %arg3: memref<1x8x100xbf16, #tpu.memory_space<vmem>>, %arg4: memref<1x8x8xi32, #tpu.memory_space<vmem>>, %arg5: memref<100x200xbf16, #tpu.memory_space<vmem>>, %arg6: memref<1x200xf32, #tpu.memory_space<vmem>>, %arg7: memref<200x200xbf16, #tpu.memory_space<vmem>>, %arg8: memref<200x128xbf16, #tpu.memory_space<vmem>>, %arg9: memref<8x128xf32, #tpu.memory_space<vmem>>, %arg10: memref<3x128x384xbf16, #tpu.memory_space<vmem>>, %arg11: memref<3x128x128xbf16, #tpu.memory_space<vmem>>, %arg12: memref<200x100xbf16, #tpu.memory_space<vmem>>, %arg13: memref<128x100xbf16, #tpu.memory_space<vmem>>, %arg14: memref<1x100xf32, #tpu.memory_space<vmem>>, %arg15: memref<100x6xbf16, #tpu.memory_space<vmem>>, %arg16: memref<1x6xf32, #tpu.memory_space<vmem>>, %arg17: memref<1x8x6xf32, #tpu.memory_space<vmem>>) attributes {dimension_semantics = [#tpu.dimension_semantics<parallel>], iteration_bounds = array<i64: 2>, scalar_prefetch = 0 : i64, scratch_operands = 0 : i64, tpu.core_type = #tpu.core_type<tc>, window_params = [{transform_indices = @transform_0, window_bounds = array<i64: 2>}, {transform_indices = @transform_1, window_bounds = array<i64: 192>}, {transform_indices = @transform_2, window_bounds = array<i64: 1, 8, 100>}, {transform_indices = @transform_3, window_bounds = array<i64: 1, 8, 8>}, {pipeline_mode = #tpu.pipeline_mode<synchronous>, transform_indices = @transform_4, window_bounds = array<i64: 100, 200>}, {pipeline_mode = #tpu.pipeline_mode<synchronous>, transform_indices = @transform_5, window_bounds = array<i64: 1, 200>}, {pipeline_mode = #tpu.pipeline_mode<synchronous>, transform_indices = @transform_6, window_bounds = array<i64: 200, 200>}, {pipeline_mode = #tpu.pipeline_mode<synchronous>, transform_indices = @transform_7, window_bounds = array<i64: 200, 128>}, {pipeline_mode = #tpu.pipeline_mode<synchronous>, transform_indices = @transform_8, window_bounds = array<i64: 8, 128>}, {pipeline_mode = #tpu.pipeline_mode<synchronous>, transform_indices = @transform_9, window_bounds = array<i64: 3, 128, 384>}, {pipeline_mode = #tpu.pipeline_mode<synchronous>, transform_indices = @transform_10, window_bounds = array<i64: 3, 128, 128>}, {pipeline_mode = #tpu.pipeline_mode<synchronous>, transform_indices = @transform_11, window_bounds = array<i64: 200, 100>}, {pipeline_mode = #tpu.pipeline_mode<synchronous>, transform_indices = @transform_12, window_bounds = array<i64: 128, 100>}, {pipeline_mode = #tpu.pipeline_mode<synchronous>, transform_indices = @transform_13, window_bounds = array<i64: 1, 100>}, {pipeline_mode = #tpu.pipeline_mode<synchronous>, transform_indices = @transform_14, window_bounds = array<i64: 100, 6>}, {pipeline_mode = #tpu.pipeline_mode<synchronous>, transform_indices = @transform_15, window_bounds = array<i64: 1, 6>}, {transform_indices = @transform_16, window_bounds = array<i64: 1, 8, 6>}]} {
    %0 = arith.index_cast %arg0 : i32 to index
    %1 = memref.load %arg1[%0] : memref<2xi32, #tpu.memory_space<smem>>
    %2 = tpu.iota {dimensions = array<i32: 0>} : vector<8x8xi32>
    %3 = tpu.iota {dimensions = array<i32: 1>} : vector<8x8xi32>
    %c2_i32 = arith.constant 2 : i32
    %4 = vector.broadcast %c2_i32 : i32 to vector<8x8xi32>
    %5 = arith.subi %2, %4 : vector<8x8xi32>
    %6 = arith.cmpi sge, %3, %5 : vector<8x8xi32>
    %c2_i32_0 = arith.constant 2 : i32
    %7 = vector.broadcast %c2_i32_0 : i32 to vector<8x8xi32>
    %8 = arith.addi %2, %7 : vector<8x8xi32>
    %9 = arith.cmpi sle, %3, %8 : vector<8x8xi32>
    %10 = arith.andi %6, %9 : vector<8x8xi1>
    %11 = vector.broadcast %1 : i32 to vector<8x8xi32>
    %12 = arith.cmpi slt, %2, %11 : vector<8x8xi32>
    %13 = arith.andi %10, %12 : vector<8x8xi1>
    %14 = vector.broadcast %1 : i32 to vector<8x8xi32>
    %15 = arith.cmpi slt, %3, %14 : vector<8x8xi32>
    %16 = arith.andi %13, %15 : vector<8x8xi1>
    %cst = arith.constant 0.000000e+00 : f32
    %cst_1 = arith.constant -1.000000e+09 : f32
    %17 = vector.broadcast %cst : f32 to vector<8x8xf32>
    %18 = vector.broadcast %cst_1 : f32 to vector<8x8xf32>
    %19 = arith.select %16, %17, %18 : vector<8x8xi1>, vector<8x8xf32>
    %20 = tpu.iota {dimensions = array<i32: 0>} : vector<8x1xi32>
    %21 = vector.broadcast %1 : i32 to vector<8x1xi32>
    %22 = arith.cmpi slt, %20, %21 : vector<8x1xi32>
    %23 = arith.extui %22 : vector<8x1xi1> to vector<8x1xi32>
    %24 = arith.sitofp %23 : vector<8x1xi32> to vector<8x1xf32>
    %c0 = arith.constant 0 : index
    %c0_2 = arith.constant 0 : index
    %c0_3 = arith.constant 0 : index
    %25 = vector.load %arg3[%c0, %c0_2, %c0_3] : memref<1x8x100xbf16, #tpu.memory_space<vmem>>, vector<1x8x100xbf16>
    %26 = vector.shape_cast %25 : vector<1x8x100xbf16> to vector<8x100xbf16>
    %c0_4 = arith.constant 0 : index
    %c0_5 = arith.constant 0 : index
    %27 = vector.load %arg5[%c0_4, %c0_5] : memref<100x200xbf16, #tpu.memory_space<vmem>>, vector<100x200xbf16>
    %cst_6 = arith.constant dense<0.000000e+00> : vector<8x200xf32>
    %28 = tpu.matmul %26, %27, %cst_6 {dimension_numbers = #tpu.dot_dimension_numbers<[1], [0], [0], [1], [0, 0, 1, 1], [], []>} : vector<8x100xbf16>, vector<100x200xbf16>, vector<8x200xf32> -> vector<8x200xf32>
    %c0_7 = arith.constant 0 : index
    %c0_8 = arith.constant 0 : index
    %29 = vector.load %arg6[%c0_7, %c0_8] : memref<1x200xf32, #tpu.memory_space<vmem>>, vector<1x200xf32>
    %30 = vector.broadcast %29 : vector<1x200xf32> to vector<8x200xf32>
    %31 = arith.addf %28, %30 : vector<8x200xf32>
    %32 = math.tanh %31 : vector<8x200xf32>
    %33 = arith.truncf %32 : vector<8x200xf32> to vector<8x200xbf16>
    %c0_9 = arith.constant 0 : index
    %c0_10 = arith.constant 0 : index
    %34 = vector.load %arg7[%c0_9, %c0_10] : memref<200x200xbf16, #tpu.memory_space<vmem>>, vector<200x200xbf16>
    %cst_11 = arith.constant dense<0.000000e+00> : vector<8x200xf32>
    %35 = tpu.matmul %33, %34, %cst_11 {dimension_numbers = #tpu.dot_dimension_numbers<[1], [0], [0], [1], [0, 0, 1, 1], [], []>} : vector<8x200xbf16>, vector<200x200xbf16>, vector<8x200xf32> -> vector<8x200xf32>
    %36 = arith.truncf %35 : vector<8x200xf32> to vector<8x200xbf16>
    %cst_12 = arith.constant dense<0.000000e+00> : vector<8x8xf32>
    %37 = tpu.matmul %36, %33, %cst_12 {dimension_numbers = #tpu.dot_dimension_numbers<[1], [1], [0], [0], [0, 0, 1, 0], [], []>} : vector<8x200xbf16>, vector<8x200xbf16>, vector<8x8xf32> -> vector<8x8xf32>
    %38 = arith.addf %37, %19 : vector<8x8xf32>
    %cst_13 = arith.constant dense<0xFF800000> : vector<8xf32>
    %39 = vector.multi_reduction <maximumf>, %38, %cst_13 [1] : vector<8x8xf32> to vector<8xf32>
    %40 = vector.shape_cast %39 : vector<8xf32> to vector<8x1xf32>
    %41 = vector.broadcast %40 : vector<8x1xf32> to vector<8x8xf32>
    %42 = arith.subf %38, %41 : vector<8x8xf32>
    %43 = math.exp %42 : vector<8x8xf32>
    %cst_14 = arith.constant dense<0.000000e+00> : vector<8xf32>
    %44 = vector.multi_reduction <add>, %43, %cst_14 [1] : vector<8x8xf32> to vector<8xf32>
    %45 = vector.shape_cast %44 : vector<8xf32> to vector<8x1xf32>
    %46 = tpu.reciprocal %45 {approx = true} : vector<8x1xf32> -> vector<8x1xf32>
    %47 = vector.broadcast %46 : vector<8x1xf32> to vector<8x8xf32>
    %48 = arith.mulf %43, %47 : vector<8x8xf32>
    %c0_15 = arith.constant 0 : index
    %c0_16 = arith.constant 0 : index
    %c0_17 = arith.constant 0 : index
    %49 = vector.load %arg4[%c0_15, %c0_16, %c0_17] : memref<1x8x8xi32, #tpu.memory_space<vmem>>, vector<1x8x8xi32>
    %50 = vector.shape_cast %49 : vector<1x8x8xi32> to vector<8x8xi32>
    %c1_i32 = arith.constant 1 : i32
    %51 = vector.broadcast %c1_i32 : i32 to vector<8x8xi32>
    %52 = arith.cmpi eq, %50, %51 : vector<8x8xi32>
    %c2_i32_18 = arith.constant 2 : i32
    %53 = vector.broadcast %c2_i32_18 : i32 to vector<8x8xi32>
    %54 = arith.cmpi eq, %50, %53 : vector<8x8xi32>
    %c3_i32 = arith.constant 3 : i32
    %55 = vector.broadcast %c3_i32 : i32 to vector<8x8xi32>
    %56 = arith.cmpi eq, %50, %55 : vector<8x8xi32>
    %c4_i32 = arith.constant 4 : i32
    %57 = vector.broadcast %c4_i32 : i32 to vector<8x8xi32>
    %58 = arith.cmpi eq, %50, %57 : vector<8x8xi32>
    %c5_i32 = arith.constant 5 : i32
    %59 = vector.broadcast %c5_i32 : i32 to vector<8x8xi32>
    %60 = arith.cmpi eq, %50, %59 : vector<8x8xi32>
    %c6_i32 = arith.constant 6 : i32
    %61 = vector.broadcast %c6_i32 : i32 to vector<8x8xi32>
    %62 = arith.cmpi eq, %50, %61 : vector<8x8xi32>
    %c7_i32 = arith.constant 7 : i32
    %63 = vector.broadcast %c7_i32 : i32 to vector<8x8xi32>
    %64 = arith.cmpi eq, %50, %63 : vector<8x8xi32>
    %c0_19 = arith.constant 0 : index
    %c0_20 = arith.constant 0 : index
    %65 = vector.load %arg8[%c0_19, %c0_20] : memref<200x128xbf16, #tpu.memory_space<vmem>>, vector<200x128xbf16>
    %cst_21 = arith.constant dense<0.000000e+00> : vector<8x128xf32>
    %66 = tpu.matmul %33, %65, %cst_21 {dimension_numbers = #tpu.dot_dimension_numbers<[1], [0], [0], [1], [0, 0, 1, 1], [], []>} : vector<8x200xbf16>, vector<200x128xbf16>, vector<8x128xf32> -> vector<8x128xf32>
    %c0_22 = arith.constant 0 : index
    %c0_23 = arith.constant 0 : index
    %67 = vector.load %arg9[%c0_22, %c0_23] : memref<8x128xf32, #tpu.memory_space<vmem>>, vector<8x128xf32>
    %68 = arith.addf %66, %67 : vector<8x128xf32>
    %69 = arith.truncf %68 : vector<8x128xf32> to vector<8x128xbf16>
    %c0_24 = arith.constant 0 : index
    %c0_25 = arith.constant 0 : index
    %c0_26 = arith.constant 0 : index
    %70 = vector.load %arg10[%c0_24, %c0_25, %c0_26] : memref<3x128x384xbf16, #tpu.memory_space<vmem>>, vector<1x128x384xbf16>
    %71 = vector.shape_cast %70 : vector<1x128x384xbf16> to vector<128x384xbf16>
    %cst_27 = arith.constant dense<0.000000e+00> : vector<8x384xf32>
    %72 = tpu.matmul %69, %71, %cst_27 {dimension_numbers = #tpu.dot_dimension_numbers<[1], [0], [0], [1], [0, 0, 1, 1], [], []>} : vector<8x128xbf16>, vector<128x384xbf16>, vector<8x384xf32> -> vector<8x384xf32>
    %73 = arith.truncf %72 : vector<8x384xf32> to vector<8x384xbf16>
    %74 = vector.extract_strided_slice %73 {offsets = [0, 0], sizes = [8, 128], strides = [1, 1]} : vector<8x384xbf16> to vector<8x128xbf16>
    %75 = vector.extract_strided_slice %73 {offsets = [0, 128], sizes = [8, 128], strides = [1, 1]} : vector<8x384xbf16> to vector<8x128xbf16>
    %76 = vector.extract_strided_slice %73 {offsets = [0, 256], sizes = [8, 128], strides = [1, 1]} : vector<8x384xbf16> to vector<8x128xbf16>
    %c0_28 = arith.constant 0 : index
    %77 = memref.load %arg2[%c0_28] : memref<192xf32, #tpu.memory_space<smem>>
    %c8 = arith.constant 8 : index
    %78 = memref.load %arg2[%c8] : memref<192xf32, #tpu.memory_space<smem>>
    %79 = vector.broadcast %78 : f32 to vector<8x8xf32>
    %80 = vector.broadcast %77 : f32 to vector<8x8xf32>
    %81 = arith.select %52, %79, %80 : vector<8x8xi1>, vector<8x8xf32>
    %c16 = arith.constant 16 : index
    %82 = memref.load %arg2[%c16] : memref<192xf32, #tpu.memory_space<smem>>
    %83 = vector.broadcast %82 : f32 to vector<8x8xf32>
    %84 = arith.select %54, %83, %81 : vector<8x8xi1>, vector<8x8xf32>
    %c24 = arith.constant 24 : index
    %85 = memref.load %arg2[%c24] : memref<192xf32, #tpu.memory_space<smem>>
    %86 = vector.broadcast %85 : f32 to vector<8x8xf32>
    %87 = arith.select %56, %86, %84 : vector<8x8xi1>, vector<8x8xf32>
    %c32 = arith.constant 32 : index
    %88 = memref.load %arg2[%c32] : memref<192xf32, #tpu.memory_space<smem>>
    %89 = vector.broadcast %88 : f32 to vector<8x8xf32>
    %90 = arith.select %58, %89, %87 : vector<8x8xi1>, vector<8x8xf32>
    %c40 = arith.constant 40 : index
    %91 = memref.load %arg2[%c40] : memref<192xf32, #tpu.memory_space<smem>>
    %92 = vector.broadcast %91 : f32 to vector<8x8xf32>
    %93 = arith.select %60, %92, %90 : vector<8x8xi1>, vector<8x8xf32>
    %c48 = arith.constant 48 : index
    %94 = memref.load %arg2[%c48] : memref<192xf32, #tpu.memory_space<smem>>
    %95 = vector.broadcast %94 : f32 to vector<8x8xf32>
    %96 = arith.select %62, %95, %93 : vector<8x8xi1>, vector<8x8xf32>
    %c56 = arith.constant 56 : index
    %97 = memref.load %arg2[%c56] : memref<192xf32, #tpu.memory_space<smem>>
    %98 = vector.broadcast %97 : f32 to vector<8x8xf32>
    %99 = arith.select %64, %98, %96 : vector<8x8xi1>, vector<8x8xf32>
    %100 = arith.addf %19, %99 : vector<8x8xf32>
    %101 = vector.extract_strided_slice %74 {offsets = [0, 0], sizes = [8, 16], strides = [1, 1]} : vector<8x128xbf16> to vector<8x16xbf16>
    %102 = vector.extract_strided_slice %75 {offsets = [0, 0], sizes = [8, 16], strides = [1, 1]} : vector<8x128xbf16> to vector<8x16xbf16>
    %cst_29 = arith.constant dense<0.000000e+00> : vector<8x8xf32>
    %103 = tpu.matmul %101, %102, %cst_29 {dimension_numbers = #tpu.dot_dimension_numbers<[1], [1], [0], [0], [0, 0, 1, 0], [], []>} : vector<8x16xbf16>, vector<8x16xbf16>, vector<8x8xf32> -> vector<8x8xf32>
    %104 = arith.addf %103, %100 : vector<8x8xf32>
    %cst_30 = arith.constant dense<0xFF800000> : vector<8xf32>
    %105 = vector.multi_reduction <maximumf>, %104, %cst_30 [1] : vector<8x8xf32> to vector<8xf32>
    %106 = vector.shape_cast %105 : vector<8xf32> to vector<8x1xf32>
    %107 = vector.broadcast %106 : vector<8x1xf32> to vector<8x8xf32>
    %108 = arith.subf %104, %107 : vector<8x8xf32>
    %109 = math.exp %108 : vector<8x8xf32>
    %cst_31 = arith.constant dense<0.000000e+00> : vector<8xf32>
    %110 = vector.multi_reduction <add>, %109, %cst_31 [1] : vector<8x8xf32> to vector<8xf32>
    %111 = vector.shape_cast %110 : vector<8xf32> to vector<8x1xf32>
    %112 = tpu.reciprocal %111 {approx = true} : vector<8x1xf32> -> vector<8x1xf32>
    %113 = vector.broadcast %112 : vector<8x1xf32> to vector<8x8xf32>
    %114 = arith.mulf %109, %113 : vector<8x8xf32>
    %115 = arith.mulf %114, %48 : vector<8x8xf32>
    %116 = arith.truncf %115 : vector<8x8xf32> to vector<8x8xbf16>
    %117 = vector.extract_strided_slice %76 {offsets = [0, 0], sizes = [8, 16], strides = [1, 1]} : vector<8x128xbf16> to vector<8x16xbf16>
    %cst_32 = arith.constant dense<0.000000e+00> : vector<8x16xf32>
    %118 = tpu.matmul %116, %117, %cst_32 {dimension_numbers = #tpu.dot_dimension_numbers<[1], [0], [0], [1], [0, 0, 1, 1], [], []>} : vector<8x8xbf16>, vector<8x16xbf16>, vector<8x16xf32> -> vector<8x16xf32>
    %c1 = arith.constant 1 : index
    %119 = memref.load %arg2[%c1] : memref<192xf32, #tpu.memory_space<smem>>
    %c9 = arith.constant 9 : index
    %120 = memref.load %arg2[%c9] : memref<192xf32, #tpu.memory_space<smem>>
    %121 = vector.broadcast %120 : f32 to vector<8x8xf32>
    %122 = vector.broadcast %119 : f32 to vector<8x8xf32>
    %123 = arith.select %52, %121, %122 : vector<8x8xi1>, vector<8x8xf32>
    %c17 = arith.constant 17 : index
    %124 = memref.load %arg2[%c17] : memref<192xf32, #tpu.memory_space<smem>>
    %125 = vector.broadcast %124 : f32 to vector<8x8xf32>
    %126 = arith.select %54, %125, %123 : vector<8x8xi1>, vector<8x8xf32>
    %c25 = arith.constant 25 : index
    %127 = memref.load %arg2[%c25] : memref<192xf32, #tpu.memory_space<smem>>
    %128 = vector.broadcast %127 : f32 to vector<8x8xf32>
    %129 = arith.select %56, %128, %126 : vector<8x8xi1>, vector<8x8xf32>
    %c33 = arith.constant 33 : index
    %130 = memref.load %arg2[%c33] : memref<192xf32, #tpu.memory_space<smem>>
    %131 = vector.broadcast %130 : f32 to vector<8x8xf32>
    %132 = arith.select %58, %131, %129 : vector<8x8xi1>, vector<8x8xf32>
    %c41 = arith.constant 41 : index
    %133 = memref.load %arg2[%c41] : memref<192xf32, #tpu.memory_space<smem>>
    %134 = vector.broadcast %133 : f32 to vector<8x8xf32>
    %135 = arith.select %60, %134, %132 : vector<8x8xi1>, vector<8x8xf32>
    %c49 = arith.constant 49 : index
    %136 = memref.load %arg2[%c49] : memref<192xf32, #tpu.memory_space<smem>>
    %137 = vector.broadcast %136 : f32 to vector<8x8xf32>
    %138 = arith.select %62, %137, %135 : vector<8x8xi1>, vector<8x8xf32>
    %c57 = arith.constant 57 : index
    %139 = memref.load %arg2[%c57] : memref<192xf32, #tpu.memory_space<smem>>
    %140 = vector.broadcast %139 : f32 to vector<8x8xf32>
    %141 = arith.select %64, %140, %138 : vector<8x8xi1>, vector<8x8xf32>
    %142 = arith.addf %19, %141 : vector<8x8xf32>
    %143 = vector.extract_strided_slice %74 {offsets = [0, 16], sizes = [8, 16], strides = [1, 1]} : vector<8x128xbf16> to vector<8x16xbf16>
    %144 = vector.extract_strided_slice %75 {offsets = [0, 16], sizes = [8, 16], strides = [1, 1]} : vector<8x128xbf16> to vector<8x16xbf16>
    %cst_33 = arith.constant dense<0.000000e+00> : vector<8x8xf32>
    %145 = tpu.matmul %143, %144, %cst_33 {dimension_numbers = #tpu.dot_dimension_numbers<[1], [1], [0], [0], [0, 0, 1, 0], [], []>} : vector<8x16xbf16>, vector<8x16xbf16>, vector<8x8xf32> -> vector<8x8xf32>
    %146 = arith.addf %145, %142 : vector<8x8xf32>
    %cst_34 = arith.constant dense<0xFF800000> : vector<8xf32>
    %147 = vector.multi_reduction <maximumf>, %146, %cst_34 [1] : vector<8x8xf32> to vector<8xf32>
    %148 = vector.shape_cast %147 : vector<8xf32> to vector<8x1xf32>
    %149 = vector.broadcast %148 : vector<8x1xf32> to vector<8x8xf32>
    %150 = arith.subf %146, %149 : vector<8x8xf32>
    %151 = math.exp %150 : vector<8x8xf32>
    %cst_35 = arith.constant dense<0.000000e+00> : vector<8xf32>
    %152 = vector.multi_reduction <add>, %151, %cst_35 [1] : vector<8x8xf32> to vector<8xf32>
    %153 = vector.shape_cast %152 : vector<8xf32> to vector<8x1xf32>
    %154 = tpu.reciprocal %153 {approx = true} : vector<8x1xf32> -> vector<8x1xf32>
    %155 = vector.broadcast %154 : vector<8x1xf32> to vector<8x8xf32>
    %156 = arith.mulf %151, %155 : vector<8x8xf32>
    %157 = arith.mulf %156, %48 : vector<8x8xf32>
    %158 = arith.truncf %157 : vector<8x8xf32> to vector<8x8xbf16>
    %159 = vector.extract_strided_slice %76 {offsets = [0, 16], sizes = [8, 16], strides = [1, 1]} : vector<8x128xbf16> to vector<8x16xbf16>
    %cst_36 = arith.constant dense<0.000000e+00> : vector<8x16xf32>
    %160 = tpu.matmul %158, %159, %cst_36 {dimension_numbers = #tpu.dot_dimension_numbers<[1], [0], [0], [1], [0, 0, 1, 1], [], []>} : vector<8x8xbf16>, vector<8x16xbf16>, vector<8x16xf32> -> vector<8x16xf32>
    %c2 = arith.constant 2 : index
    %161 = memref.load %arg2[%c2] : memref<192xf32, #tpu.memory_space<smem>>
    %c10 = arith.constant 10 : index
    %162 = memref.load %arg2[%c10] : memref<192xf32, #tpu.memory_space<smem>>
    %163 = vector.broadcast %162 : f32 to vector<8x8xf32>
    %164 = vector.broadcast %161 : f32 to vector<8x8xf32>
    %165 = arith.select %52, %163, %164 : vector<8x8xi1>, vector<8x8xf32>
    %c18 = arith.constant 18 : index
    %166 = memref.load %arg2[%c18] : memref<192xf32, #tpu.memory_space<smem>>
    %167 = vector.broadcast %166 : f32 to vector<8x8xf32>
    %168 = arith.select %54, %167, %165 : vector<8x8xi1>, vector<8x8xf32>
    %c26 = arith.constant 26 : index
    %169 = memref.load %arg2[%c26] : memref<192xf32, #tpu.memory_space<smem>>
    %170 = vector.broadcast %169 : f32 to vector<8x8xf32>
    %171 = arith.select %56, %170, %168 : vector<8x8xi1>, vector<8x8xf32>
    %c34 = arith.constant 34 : index
    %172 = memref.load %arg2[%c34] : memref<192xf32, #tpu.memory_space<smem>>
    %173 = vector.broadcast %172 : f32 to vector<8x8xf32>
    %174 = arith.select %58, %173, %171 : vector<8x8xi1>, vector<8x8xf32>
    %c42 = arith.constant 42 : index
    %175 = memref.load %arg2[%c42] : memref<192xf32, #tpu.memory_space<smem>>
    %176 = vector.broadcast %175 : f32 to vector<8x8xf32>
    %177 = arith.select %60, %176, %174 : vector<8x8xi1>, vector<8x8xf32>
    %c50 = arith.constant 50 : index
    %178 = memref.load %arg2[%c50] : memref<192xf32, #tpu.memory_space<smem>>
    %179 = vector.broadcast %178 : f32 to vector<8x8xf32>
    %180 = arith.select %62, %179, %177 : vector<8x8xi1>, vector<8x8xf32>
    %c58 = arith.constant 58 : index
    %181 = memref.load %arg2[%c58] : memref<192xf32, #tpu.memory_space<smem>>
    %182 = vector.broadcast %181 : f32 to vector<8x8xf32>
    %183 = arith.select %64, %182, %180 : vector<8x8xi1>, vector<8x8xf32>
    %184 = arith.addf %19, %183 : vector<8x8xf32>
    %185 = vector.extract_strided_slice %74 {offsets = [0, 32], sizes = [8, 16], strides = [1, 1]} : vector<8x128xbf16> to vector<8x16xbf16>
    %186 = vector.extract_strided_slice %75 {offsets = [0, 32], sizes = [8, 16], strides = [1, 1]} : vector<8x128xbf16> to vector<8x16xbf16>
    %cst_37 = arith.constant dense<0.000000e+00> : vector<8x8xf32>
    %187 = tpu.matmul %185, %186, %cst_37 {dimension_numbers = #tpu.dot_dimension_numbers<[1], [1], [0], [0], [0, 0, 1, 0], [], []>} : vector<8x16xbf16>, vector<8x16xbf16>, vector<8x8xf32> -> vector<8x8xf32>
    %188 = arith.addf %187, %184 : vector<8x8xf32>
    %cst_38 = arith.constant dense<0xFF800000> : vector<8xf32>
    %189 = vector.multi_reduction <maximumf>, %188, %cst_38 [1] : vector<8x8xf32> to vector<8xf32>
    %190 = vector.shape_cast %189 : vector<8xf32> to vector<8x1xf32>
    %191 = vector.broadcast %190 : vector<8x1xf32> to vector<8x8xf32>
    %192 = arith.subf %188, %191 : vector<8x8xf32>
    %193 = math.exp %192 : vector<8x8xf32>
    %cst_39 = arith.constant dense<0.000000e+00> : vector<8xf32>
    %194 = vector.multi_reduction <add>, %193, %cst_39 [1] : vector<8x8xf32> to vector<8xf32>
    %195 = vector.shape_cast %194 : vector<8xf32> to vector<8x1xf32>
    %196 = tpu.reciprocal %195 {approx = true} : vector<8x1xf32> -> vector<8x1xf32>
    %197 = vector.broadcast %196 : vector<8x1xf32> to vector<8x8xf32>
    %198 = arith.mulf %193, %197 : vector<8x8xf32>
    %199 = arith.mulf %198, %48 : vector<8x8xf32>
    %200 = arith.truncf %199 : vector<8x8xf32> to vector<8x8xbf16>
    %201 = vector.extract_strided_slice %76 {offsets = [0, 32], sizes = [8, 16], strides = [1, 1]} : vector<8x128xbf16> to vector<8x16xbf16>
    %cst_40 = arith.constant dense<0.000000e+00> : vector<8x16xf32>
    %202 = tpu.matmul %200, %201, %cst_40 {dimension_numbers = #tpu.dot_dimension_numbers<[1], [0], [0], [1], [0, 0, 1, 1], [], []>} : vector<8x8xbf16>, vector<8x16xbf16>, vector<8x16xf32> -> vector<8x16xf32>
    %c3 = arith.constant 3 : index
    %203 = memref.load %arg2[%c3] : memref<192xf32, #tpu.memory_space<smem>>
    %c11 = arith.constant 11 : index
    %204 = memref.load %arg2[%c11] : memref<192xf32, #tpu.memory_space<smem>>
    %205 = vector.broadcast %204 : f32 to vector<8x8xf32>
    %206 = vector.broadcast %203 : f32 to vector<8x8xf32>
    %207 = arith.select %52, %205, %206 : vector<8x8xi1>, vector<8x8xf32>
    %c19 = arith.constant 19 : index
    %208 = memref.load %arg2[%c19] : memref<192xf32, #tpu.memory_space<smem>>
    %209 = vector.broadcast %208 : f32 to vector<8x8xf32>
    %210 = arith.select %54, %209, %207 : vector<8x8xi1>, vector<8x8xf32>
    %c27 = arith.constant 27 : index
    %211 = memref.load %arg2[%c27] : memref<192xf32, #tpu.memory_space<smem>>
    %212 = vector.broadcast %211 : f32 to vector<8x8xf32>
    %213 = arith.select %56, %212, %210 : vector<8x8xi1>, vector<8x8xf32>
    %c35 = arith.constant 35 : index
    %214 = memref.load %arg2[%c35] : memref<192xf32, #tpu.memory_space<smem>>
    %215 = vector.broadcast %214 : f32 to vector<8x8xf32>
    %216 = arith.select %58, %215, %213 : vector<8x8xi1>, vector<8x8xf32>
    %c43 = arith.constant 43 : index
    %217 = memref.load %arg2[%c43] : memref<192xf32, #tpu.memory_space<smem>>
    %218 = vector.broadcast %217 : f32 to vector<8x8xf32>
    %219 = arith.select %60, %218, %216 : vector<8x8xi1>, vector<8x8xf32>
    %c51 = arith.constant 51 : index
    %220 = memref.load %arg2[%c51] : memref<192xf32, #tpu.memory_space<smem>>
    %221 = vector.broadcast %220 : f32 to vector<8x8xf32>
    %222 = arith.select %62, %221, %219 : vector<8x8xi1>, vector<8x8xf32>
    %c59 = arith.constant 59 : index
    %223 = memref.load %arg2[%c59] : memref<192xf32, #tpu.memory_space<smem>>
    %224 = vector.broadcast %223 : f32 to vector<8x8xf32>
    %225 = arith.select %64, %224, %222 : vector<8x8xi1>, vector<8x8xf32>
    %226 = arith.addf %19, %225 : vector<8x8xf32>
    %227 = vector.extract_strided_slice %74 {offsets = [0, 48], sizes = [8, 16], strides = [1, 1]} : vector<8x128xbf16> to vector<8x16xbf16>
    %228 = vector.extract_strided_slice %75 {offsets = [0, 48], sizes = [8, 16], strides = [1, 1]} : vector<8x128xbf16> to vector<8x16xbf16>
    %cst_41 = arith.constant dense<0.000000e+00> : vector<8x8xf32>
    %229 = tpu.matmul %227, %228, %cst_41 {dimension_numbers = #tpu.dot_dimension_numbers<[1], [1], [0], [0], [0, 0, 1, 0], [], []>} : vector<8x16xbf16>, vector<8x16xbf16>, vector<8x8xf32> -> vector<8x8xf32>
    %230 = arith.addf %229, %226 : vector<8x8xf32>
    %cst_42 = arith.constant dense<0xFF800000> : vector<8xf32>
    %231 = vector.multi_reduction <maximumf>, %230, %cst_42 [1] : vector<8x8xf32> to vector<8xf32>
    %232 = vector.shape_cast %231 : vector<8xf32> to vector<8x1xf32>
    %233 = vector.broadcast %232 : vector<8x1xf32> to vector<8x8xf32>
    %234 = arith.subf %230, %233 : vector<8x8xf32>
    %235 = math.exp %234 : vector<8x8xf32>
    %cst_43 = arith.constant dense<0.000000e+00> : vector<8xf32>
    %236 = vector.multi_reduction <add>, %235, %cst_43 [1] : vector<8x8xf32> to vector<8xf32>
    %237 = vector.shape_cast %236 : vector<8xf32> to vector<8x1xf32>
    %238 = tpu.reciprocal %237 {approx = true} : vector<8x1xf32> -> vector<8x1xf32>
    %239 = vector.broadcast %238 : vector<8x1xf32> to vector<8x8xf32>
    %240 = arith.mulf %235, %239 : vector<8x8xf32>
    %241 = arith.mulf %240, %48 : vector<8x8xf32>
    %242 = arith.truncf %241 : vector<8x8xf32> to vector<8x8xbf16>
    %243 = vector.extract_strided_slice %76 {offsets = [0, 48], sizes = [8, 16], strides = [1, 1]} : vector<8x128xbf16> to vector<8x16xbf16>
    %cst_44 = arith.constant dense<0.000000e+00> : vector<8x16xf32>
    %244 = tpu.matmul %242, %243, %cst_44 {dimension_numbers = #tpu.dot_dimension_numbers<[1], [0], [0], [1], [0, 0, 1, 1], [], []>} : vector<8x8xbf16>, vector<8x16xbf16>, vector<8x16xf32> -> vector<8x16xf32>
    %c4 = arith.constant 4 : index
    %245 = memref.load %arg2[%c4] : memref<192xf32, #tpu.memory_space<smem>>
    %c12 = arith.constant 12 : index
    %246 = memref.load %arg2[%c12] : memref<192xf32, #tpu.memory_space<smem>>
    %247 = vector.broadcast %246 : f32 to vector<8x8xf32>
    %248 = vector.broadcast %245 : f32 to vector<8x8xf32>
    %249 = arith.select %52, %247, %248 : vector<8x8xi1>, vector<8x8xf32>
    %c20 = arith.constant 20 : index
    %250 = memref.load %arg2[%c20] : memref<192xf32, #tpu.memory_space<smem>>
    %251 = vector.broadcast %250 : f32 to vector<8x8xf32>
    %252 = arith.select %54, %251, %249 : vector<8x8xi1>, vector<8x8xf32>
    %c28 = arith.constant 28 : index
    %253 = memref.load %arg2[%c28] : memref<192xf32, #tpu.memory_space<smem>>
    %254 = vector.broadcast %253 : f32 to vector<8x8xf32>
    %255 = arith.select %56, %254, %252 : vector<8x8xi1>, vector<8x8xf32>
    %c36 = arith.constant 36 : index
    %256 = memref.load %arg2[%c36] : memref<192xf32, #tpu.memory_space<smem>>
    %257 = vector.broadcast %256 : f32 to vector<8x8xf32>
    %258 = arith.select %58, %257, %255 : vector<8x8xi1>, vector<8x8xf32>
    %c44 = arith.constant 44 : index
    %259 = memref.load %arg2[%c44] : memref<192xf32, #tpu.memory_space<smem>>
    %260 = vector.broadcast %259 : f32 to vector<8x8xf32>
    %261 = arith.select %60, %260, %258 : vector<8x8xi1>, vector<8x8xf32>
    %c52 = arith.constant 52 : index
    %262 = memref.load %arg2[%c52] : memref<192xf32, #tpu.memory_space<smem>>
    %263 = vector.broadcast %262 : f32 to vector<8x8xf32>
    %264 = arith.select %62, %263, %261 : vector<8x8xi1>, vector<8x8xf32>
    %c60 = arith.constant 60 : index
    %265 = memref.load %arg2[%c60] : memref<192xf32, #tpu.memory_space<smem>>
    %266 = vector.broadcast %265 : f32 to vector<8x8xf32>
    %267 = arith.select %64, %266, %264 : vector<8x8xi1>, vector<8x8xf32>
    %268 = arith.addf %19, %267 : vector<8x8xf32>
    %269 = vector.extract_strided_slice %74 {offsets = [0, 64], sizes = [8, 16], strides = [1, 1]} : vector<8x128xbf16> to vector<8x16xbf16>
    %270 = vector.extract_strided_slice %75 {offsets = [0, 64], sizes = [8, 16], strides = [1, 1]} : vector<8x128xbf16> to vector<8x16xbf16>
    %cst_45 = arith.constant dense<0.000000e+00> : vector<8x8xf32>
    %271 = tpu.matmul %269, %270, %cst_45 {dimension_numbers = #tpu.dot_dimension_numbers<[1], [1], [0], [0], [0, 0, 1, 0], [], []>} : vector<8x16xbf16>, vector<8x16xbf16>, vector<8x8xf32> -> vector<8x8xf32>
    %272 = arith.addf %271, %268 : vector<8x8xf32>
    %cst_46 = arith.constant dense<0xFF800000> : vector<8xf32>
    %273 = vector.multi_reduction <maximumf>, %272, %cst_46 [1] : vector<8x8xf32> to vector<8xf32>
    %274 = vector.shape_cast %273 : vector<8xf32> to vector<8x1xf32>
    %275 = vector.broadcast %274 : vector<8x1xf32> to vector<8x8xf32>
    %276 = arith.subf %272, %275 : vector<8x8xf32>
    %277 = math.exp %276 : vector<8x8xf32>
    %cst_47 = arith.constant dense<0.000000e+00> : vector<8xf32>
    %278 = vector.multi_reduction <add>, %277, %cst_47 [1] : vector<8x8xf32> to vector<8xf32>
    %279 = vector.shape_cast %278 : vector<8xf32> to vector<8x1xf32>
    %280 = tpu.reciprocal %279 {approx = true} : vector<8x1xf32> -> vector<8x1xf32>
    %281 = vector.broadcast %280 : vector<8x1xf32> to vector<8x8xf32>
    %282 = arith.mulf %277, %281 : vector<8x8xf32>
    %283 = arith.mulf %282, %48 : vector<8x8xf32>
    %284 = arith.truncf %283 : vector<8x8xf32> to vector<8x8xbf16>
    %285 = vector.extract_strided_slice %76 {offsets = [0, 64], sizes = [8, 16], strides = [1, 1]} : vector<8x128xbf16> to vector<8x16xbf16>
    %cst_48 = arith.constant dense<0.000000e+00> : vector<8x16xf32>
    %286 = tpu.matmul %284, %285, %cst_48 {dimension_numbers = #tpu.dot_dimension_numbers<[1], [0], [0], [1], [0, 0, 1, 1], [], []>} : vector<8x8xbf16>, vector<8x16xbf16>, vector<8x16xf32> -> vector<8x16xf32>
    %c5 = arith.constant 5 : index
    %287 = memref.load %arg2[%c5] : memref<192xf32, #tpu.memory_space<smem>>
    %c13 = arith.constant 13 : index
    %288 = memref.load %arg2[%c13] : memref<192xf32, #tpu.memory_space<smem>>
    %289 = vector.broadcast %288 : f32 to vector<8x8xf32>
    %290 = vector.broadcast %287 : f32 to vector<8x8xf32>
    %291 = arith.select %52, %289, %290 : vector<8x8xi1>, vector<8x8xf32>
    %c21 = arith.constant 21 : index
    %292 = memref.load %arg2[%c21] : memref<192xf32, #tpu.memory_space<smem>>
    %293 = vector.broadcast %292 : f32 to vector<8x8xf32>
    %294 = arith.select %54, %293, %291 : vector<8x8xi1>, vector<8x8xf32>
    %c29 = arith.constant 29 : index
    %295 = memref.load %arg2[%c29] : memref<192xf32, #tpu.memory_space<smem>>
    %296 = vector.broadcast %295 : f32 to vector<8x8xf32>
    %297 = arith.select %56, %296, %294 : vector<8x8xi1>, vector<8x8xf32>
    %c37 = arith.constant 37 : index
    %298 = memref.load %arg2[%c37] : memref<192xf32, #tpu.memory_space<smem>>
    %299 = vector.broadcast %298 : f32 to vector<8x8xf32>
    %300 = arith.select %58, %299, %297 : vector<8x8xi1>, vector<8x8xf32>
    %c45 = arith.constant 45 : index
    %301 = memref.load %arg2[%c45] : memref<192xf32, #tpu.memory_space<smem>>
    %302 = vector.broadcast %301 : f32 to vector<8x8xf32>
    %303 = arith.select %60, %302, %300 : vector<8x8xi1>, vector<8x8xf32>
    %c53 = arith.constant 53 : index
    %304 = memref.load %arg2[%c53] : memref<192xf32, #tpu.memory_space<smem>>
    %305 = vector.broadcast %304 : f32 to vector<8x8xf32>
    %306 = arith.select %62, %305, %303 : vector<8x8xi1>, vector<8x8xf32>
    %c61 = arith.constant 61 : index
    %307 = memref.load %arg2[%c61] : memref<192xf32, #tpu.memory_space<smem>>
    %308 = vector.broadcast %307 : f32 to vector<8x8xf32>
    %309 = arith.select %64, %308, %306 : vector<8x8xi1>, vector<8x8xf32>
    %310 = arith.addf %19, %309 : vector<8x8xf32>
    %311 = vector.extract_strided_slice %74 {offsets = [0, 80], sizes = [8, 16], strides = [1, 1]} : vector<8x128xbf16> to vector<8x16xbf16>
    %312 = vector.extract_strided_slice %75 {offsets = [0, 80], sizes = [8, 16], strides = [1, 1]} : vector<8x128xbf16> to vector<8x16xbf16>
    %cst_49 = arith.constant dense<0.000000e+00> : vector<8x8xf32>
    %313 = tpu.matmul %311, %312, %cst_49 {dimension_numbers = #tpu.dot_dimension_numbers<[1], [1], [0], [0], [0, 0, 1, 0], [], []>} : vector<8x16xbf16>, vector<8x16xbf16>, vector<8x8xf32> -> vector<8x8xf32>
    %314 = arith.addf %313, %310 : vector<8x8xf32>
    %cst_50 = arith.constant dense<0xFF800000> : vector<8xf32>
    %315 = vector.multi_reduction <maximumf>, %314, %cst_50 [1] : vector<8x8xf32> to vector<8xf32>
    %316 = vector.shape_cast %315 : vector<8xf32> to vector<8x1xf32>
    %317 = vector.broadcast %316 : vector<8x1xf32> to vector<8x8xf32>
    %318 = arith.subf %314, %317 : vector<8x8xf32>
    %319 = math.exp %318 : vector<8x8xf32>
    %cst_51 = arith.constant dense<0.000000e+00> : vector<8xf32>
    %320 = vector.multi_reduction <add>, %319, %cst_51 [1] : vector<8x8xf32> to vector<8xf32>
    %321 = vector.shape_cast %320 : vector<8xf32> to vector<8x1xf32>
    %322 = tpu.reciprocal %321 {approx = true} : vector<8x1xf32> -> vector<8x1xf32>
    %323 = vector.broadcast %322 : vector<8x1xf32> to vector<8x8xf32>
    %324 = arith.mulf %319, %323 : vector<8x8xf32>
    %325 = arith.mulf %324, %48 : vector<8x8xf32>
    %326 = arith.truncf %325 : vector<8x8xf32> to vector<8x8xbf16>
    %327 = vector.extract_strided_slice %76 {offsets = [0, 80], sizes = [8, 16], strides = [1, 1]} : vector<8x128xbf16> to vector<8x16xbf16>
    %cst_52 = arith.constant dense<0.000000e+00> : vector<8x16xf32>
    %328 = tpu.matmul %326, %327, %cst_52 {dimension_numbers = #tpu.dot_dimension_numbers<[1], [0], [0], [1], [0, 0, 1, 1], [], []>} : vector<8x8xbf16>, vector<8x16xbf16>, vector<8x16xf32> -> vector<8x16xf32>
    %c6 = arith.constant 6 : index
    %329 = memref.load %arg2[%c6] : memref<192xf32, #tpu.memory_space<smem>>
    %c14 = arith.constant 14 : index
    %330 = memref.load %arg2[%c14] : memref<192xf32, #tpu.memory_space<smem>>
    %331 = vector.broadcast %330 : f32 to vector<8x8xf32>
    %332 = vector.broadcast %329 : f32 to vector<8x8xf32>
    %333 = arith.select %52, %331, %332 : vector<8x8xi1>, vector<8x8xf32>
    %c22 = arith.constant 22 : index
    %334 = memref.load %arg2[%c22] : memref<192xf32, #tpu.memory_space<smem>>
    %335 = vector.broadcast %334 : f32 to vector<8x8xf32>
    %336 = arith.select %54, %335, %333 : vector<8x8xi1>, vector<8x8xf32>
    %c30 = arith.constant 30 : index
    %337 = memref.load %arg2[%c30] : memref<192xf32, #tpu.memory_space<smem>>
    %338 = vector.broadcast %337 : f32 to vector<8x8xf32>
    %339 = arith.select %56, %338, %336 : vector<8x8xi1>, vector<8x8xf32>
    %c38 = arith.constant 38 : index
    %340 = memref.load %arg2[%c38] : memref<192xf32, #tpu.memory_space<smem>>
    %341 = vector.broadcast %340 : f32 to vector<8x8xf32>
    %342 = arith.select %58, %341, %339 : vector<8x8xi1>, vector<8x8xf32>
    %c46 = arith.constant 46 : index
    %343 = memref.load %arg2[%c46] : memref<192xf32, #tpu.memory_space<smem>>
    %344 = vector.broadcast %343 : f32 to vector<8x8xf32>
    %345 = arith.select %60, %344, %342 : vector<8x8xi1>, vector<8x8xf32>
    %c54 = arith.constant 54 : index
    %346 = memref.load %arg2[%c54] : memref<192xf32, #tpu.memory_space<smem>>
    %347 = vector.broadcast %346 : f32 to vector<8x8xf32>
    %348 = arith.select %62, %347, %345 : vector<8x8xi1>, vector<8x8xf32>
    %c62 = arith.constant 62 : index
    %349 = memref.load %arg2[%c62] : memref<192xf32, #tpu.memory_space<smem>>
    %350 = vector.broadcast %349 : f32 to vector<8x8xf32>
    %351 = arith.select %64, %350, %348 : vector<8x8xi1>, vector<8x8xf32>
    %352 = arith.addf %19, %351 : vector<8x8xf32>
    %353 = vector.extract_strided_slice %74 {offsets = [0, 96], sizes = [8, 16], strides = [1, 1]} : vector<8x128xbf16> to vector<8x16xbf16>
    %354 = vector.extract_strided_slice %75 {offsets = [0, 96], sizes = [8, 16], strides = [1, 1]} : vector<8x128xbf16> to vector<8x16xbf16>
    %cst_53 = arith.constant dense<0.000000e+00> : vector<8x8xf32>
    %355 = tpu.matmul %353, %354, %cst_53 {dimension_numbers = #tpu.dot_dimension_numbers<[1], [1], [0], [0], [0, 0, 1, 0], [], []>} : vector<8x16xbf16>, vector<8x16xbf16>, vector<8x8xf32> -> vector<8x8xf32>
    %356 = arith.addf %355, %352 : vector<8x8xf32>
    %cst_54 = arith.constant dense<0xFF800000> : vector<8xf32>
    %357 = vector.multi_reduction <maximumf>, %356, %cst_54 [1] : vector<8x8xf32> to vector<8xf32>
    %358 = vector.shape_cast %357 : vector<8xf32> to vector<8x1xf32>
    %359 = vector.broadcast %358 : vector<8x1xf32> to vector<8x8xf32>
    %360 = arith.subf %356, %359 : vector<8x8xf32>
    %361 = math.exp %360 : vector<8x8xf32>
    %cst_55 = arith.constant dense<0.000000e+00> : vector<8xf32>
    %362 = vector.multi_reduction <add>, %361, %cst_55 [1] : vector<8x8xf32> to vector<8xf32>
    %363 = vector.shape_cast %362 : vector<8xf32> to vector<8x1xf32>
    %364 = tpu.reciprocal %363 {approx = true} : vector<8x1xf32> -> vector<8x1xf32>
    %365 = vector.broadcast %364 : vector<8x1xf32> to vector<8x8xf32>
    %366 = arith.mulf %361, %365 : vector<8x8xf32>
    %367 = arith.mulf %366, %48 : vector<8x8xf32>
    %368 = arith.truncf %367 : vector<8x8xf32> to vector<8x8xbf16>
    %369 = vector.extract_strided_slice %76 {offsets = [0, 96], sizes = [8, 16], strides = [1, 1]} : vector<8x128xbf16> to vector<8x16xbf16>
    %cst_56 = arith.constant dense<0.000000e+00> : vector<8x16xf32>
    %370 = tpu.matmul %368, %369, %cst_56 {dimension_numbers = #tpu.dot_dimension_numbers<[1], [0], [0], [1], [0, 0, 1, 1], [], []>} : vector<8x8xbf16>, vector<8x16xbf16>, vector<8x16xf32> -> vector<8x16xf32>
    %c7 = arith.constant 7 : index
    %371 = memref.load %arg2[%c7] : memref<192xf32, #tpu.memory_space<smem>>
    %c15 = arith.constant 15 : index
    %372 = memref.load %arg2[%c15] : memref<192xf32, #tpu.memory_space<smem>>
    %373 = vector.broadcast %372 : f32 to vector<8x8xf32>
    %374 = vector.broadcast %371 : f32 to vector<8x8xf32>
    %375 = arith.select %52, %373, %374 : vector<8x8xi1>, vector<8x8xf32>
    %c23 = arith.constant 23 : index
    %376 = memref.load %arg2[%c23] : memref<192xf32, #tpu.memory_space<smem>>
    %377 = vector.broadcast %376 : f32 to vector<8x8xf32>
    %378 = arith.select %54, %377, %375 : vector<8x8xi1>, vector<8x8xf32>
    %c31 = arith.constant 31 : index
    %379 = memref.load %arg2[%c31] : memref<192xf32, #tpu.memory_space<smem>>
    %380 = vector.broadcast %379 : f32 to vector<8x8xf32>
    %381 = arith.select %56, %380, %378 : vector<8x8xi1>, vector<8x8xf32>
    %c39 = arith.constant 39 : index
    %382 = memref.load %arg2[%c39] : memref<192xf32, #tpu.memory_space<smem>>
    %383 = vector.broadcast %382 : f32 to vector<8x8xf32>
    %384 = arith.select %58, %383, %381 : vector<8x8xi1>, vector<8x8xf32>
    %c47 = arith.constant 47 : index
    %385 = memref.load %arg2[%c47] : memref<192xf32, #tpu.memory_space<smem>>
    %386 = vector.broadcast %385 : f32 to vector<8x8xf32>
    %387 = arith.select %60, %386, %384 : vector<8x8xi1>, vector<8x8xf32>
    %c55 = arith.constant 55 : index
    %388 = memref.load %arg2[%c55] : memref<192xf32, #tpu.memory_space<smem>>
    %389 = vector.broadcast %388 : f32 to vector<8x8xf32>
    %390 = arith.select %62, %389, %387 : vector<8x8xi1>, vector<8x8xf32>
    %c63 = arith.constant 63 : index
    %391 = memref.load %arg2[%c63] : memref<192xf32, #tpu.memory_space<smem>>
    %392 = vector.broadcast %391 : f32 to vector<8x8xf32>
    %393 = arith.select %64, %392, %390 : vector<8x8xi1>, vector<8x8xf32>
    %394 = arith.addf %19, %393 : vector<8x8xf32>
    %395 = vector.extract_strided_slice %74 {offsets = [0, 112], sizes = [8, 16], strides = [1, 1]} : vector<8x128xbf16> to vector<8x16xbf16>
    %396 = vector.extract_strided_slice %75 {offsets = [0, 112], sizes = [8, 16], strides = [1, 1]} : vector<8x128xbf16> to vector<8x16xbf16>
    %cst_57 = arith.constant dense<0.000000e+00> : vector<8x8xf32>
    %397 = tpu.matmul %395, %396, %cst_57 {dimension_numbers = #tpu.dot_dimension_numbers<[1], [1], [0], [0], [0, 0, 1, 0], [], []>} : vector<8x16xbf16>, vector<8x16xbf16>, vector<8x8xf32> -> vector<8x8xf32>
    %398 = arith.addf %397, %394 : vector<8x8xf32>
    %cst_58 = arith.constant dense<0xFF800000> : vector<8xf32>
    %399 = vector.multi_reduction <maximumf>, %398, %cst_58 [1] : vector<8x8xf32> to vector<8xf32>
    %400 = vector.shape_cast %399 : vector<8xf32> to vector<8x1xf32>
    %401 = vector.broadcast %400 : vector<8x1xf32> to vector<8x8xf32>
    %402 = arith.subf %398, %401 : vector<8x8xf32>
    %403 = math.exp %402 : vector<8x8xf32>
    %cst_59 = arith.constant dense<0.000000e+00> : vector<8xf32>
    %404 = vector.multi_reduction <add>, %403, %cst_59 [1] : vector<8x8xf32> to vector<8xf32>
    %405 = vector.shape_cast %404 : vector<8xf32> to vector<8x1xf32>
    %406 = tpu.reciprocal %405 {approx = true} : vector<8x1xf32> -> vector<8x1xf32>
    %407 = vector.broadcast %406 : vector<8x1xf32> to vector<8x8xf32>
    %408 = arith.mulf %403, %407 : vector<8x8xf32>
    %409 = arith.mulf %408, %48 : vector<8x8xf32>
    %410 = arith.truncf %409 : vector<8x8xf32> to vector<8x8xbf16>
    %411 = vector.extract_strided_slice %76 {offsets = [0, 112], sizes = [8, 16], strides = [1, 1]} : vector<8x128xbf16> to vector<8x16xbf16>
    %cst_60 = arith.constant dense<0.000000e+00> : vector<8x16xf32>
    %412 = tpu.matmul %410, %411, %cst_60 {dimension_numbers = #tpu.dot_dimension_numbers<[1], [0], [0], [1], [0, 0, 1, 1], [], []>} : vector<8x8xbf16>, vector<8x16xbf16>, vector<8x16xf32> -> vector<8x16xf32>
    %413 = tpu.concatenate %118, %160, %202, %244, %286, %328, %370, %412 in 1 : vector<8x16xf32>, vector<8x16xf32>, vector<8x16xf32>, vector<8x16xf32>, vector<8x16xf32>, vector<8x16xf32>, vector<8x16xf32>, vector<8x16xf32> -> vector<8x128xf32>
    %414 = arith.truncf %413 : vector<8x128xf32> to vector<8x128xbf16>
    %c0_61 = arith.constant 0 : index
    %c0_62 = arith.constant 0 : index
    %c0_63 = arith.constant 0 : index
    %415 = vector.load %arg11[%c0_61, %c0_62, %c0_63] : memref<3x128x128xbf16, #tpu.memory_space<vmem>>, vector<1x128x128xbf16>
    %416 = vector.shape_cast %415 : vector<1x128x128xbf16> to vector<128x128xbf16>
    %cst_64 = arith.constant dense<0.000000e+00> : vector<8x128xf32>
    %417 = tpu.matmul %414, %416, %cst_64 {dimension_numbers = #tpu.dot_dimension_numbers<[1], [0], [0], [1], [0, 0, 1, 1], [], []>} : vector<8x128xbf16>, vector<128x128xbf16>, vector<8x128xf32> -> vector<8x128xf32>
    %418 = arith.addf %68, %417 : vector<8x128xf32>
    %cst_65 = arith.constant 0.000000e+00 : f32
    %419 = vector.broadcast %cst_65 : f32 to vector<8x128xf32>
    %420 = arith.maximumf %418, %419 : vector<8x128xf32>
    %421 = arith.truncf %420 : vector<8x128xf32> to vector<8x128xbf16>
    %c1_66 = arith.constant 1 : index
    %c0_67 = arith.constant 0 : index
    %c0_68 = arith.constant 0 : index
    %422 = vector.load %arg10[%c1_66, %c0_67, %c0_68] : memref<3x128x384xbf16, #tpu.memory_space<vmem>>, vector<1x128x384xbf16>
    %423 = vector.shape_cast %422 : vector<1x128x384xbf16> to vector<128x384xbf16>
    %cst_69 = arith.constant dense<0.000000e+00> : vector<8x384xf32>
    %424 = tpu.matmul %421, %423, %cst_69 {dimension_numbers = #tpu.dot_dimension_numbers<[1], [0], [0], [1], [0, 0, 1, 1], [], []>} : vector<8x128xbf16>, vector<128x384xbf16>, vector<8x384xf32> -> vector<8x384xf32>
    %425 = arith.truncf %424 : vector<8x384xf32> to vector<8x384xbf16>
    %426 = vector.extract_strided_slice %425 {offsets = [0, 0], sizes = [8, 128], strides = [1, 1]} : vector<8x384xbf16> to vector<8x128xbf16>
    %427 = vector.extract_strided_slice %425 {offsets = [0, 128], sizes = [8, 128], strides = [1, 1]} : vector<8x384xbf16> to vector<8x128xbf16>
    %428 = vector.extract_strided_slice %425 {offsets = [0, 256], sizes = [8, 128], strides = [1, 1]} : vector<8x384xbf16> to vector<8x128xbf16>
    %c64 = arith.constant 64 : index
    %429 = memref.load %arg2[%c64] : memref<192xf32, #tpu.memory_space<smem>>
    %c72 = arith.constant 72 : index
    %430 = memref.load %arg2[%c72] : memref<192xf32, #tpu.memory_space<smem>>
    %431 = vector.broadcast %430 : f32 to vector<8x8xf32>
    %432 = vector.broadcast %429 : f32 to vector<8x8xf32>
    %433 = arith.select %52, %431, %432 : vector<8x8xi1>, vector<8x8xf32>
    %c80 = arith.constant 80 : index
    %434 = memref.load %arg2[%c80] : memref<192xf32, #tpu.memory_space<smem>>
    %435 = vector.broadcast %434 : f32 to vector<8x8xf32>
    %436 = arith.select %54, %435, %433 : vector<8x8xi1>, vector<8x8xf32>
    %c88 = arith.constant 88 : index
    %437 = memref.load %arg2[%c88] : memref<192xf32, #tpu.memory_space<smem>>
    %438 = vector.broadcast %437 : f32 to vector<8x8xf32>
    %439 = arith.select %56, %438, %436 : vector<8x8xi1>, vector<8x8xf32>
    %c96 = arith.constant 96 : index
    %440 = memref.load %arg2[%c96] : memref<192xf32, #tpu.memory_space<smem>>
    %441 = vector.broadcast %440 : f32 to vector<8x8xf32>
    %442 = arith.select %58, %441, %439 : vector<8x8xi1>, vector<8x8xf32>
    %c104 = arith.constant 104 : index
    %443 = memref.load %arg2[%c104] : memref<192xf32, #tpu.memory_space<smem>>
    %444 = vector.broadcast %443 : f32 to vector<8x8xf32>
    %445 = arith.select %60, %444, %442 : vector<8x8xi1>, vector<8x8xf32>
    %c112 = arith.constant 112 : index
    %446 = memref.load %arg2[%c112] : memref<192xf32, #tpu.memory_space<smem>>
    %447 = vector.broadcast %446 : f32 to vector<8x8xf32>
    %448 = arith.select %62, %447, %445 : vector<8x8xi1>, vector<8x8xf32>
    %c120 = arith.constant 120 : index
    %449 = memref.load %arg2[%c120] : memref<192xf32, #tpu.memory_space<smem>>
    %450 = vector.broadcast %449 : f32 to vector<8x8xf32>
    %451 = arith.select %64, %450, %448 : vector<8x8xi1>, vector<8x8xf32>
    %452 = arith.addf %19, %451 : vector<8x8xf32>
    %453 = vector.extract_strided_slice %426 {offsets = [0, 0], sizes = [8, 16], strides = [1, 1]} : vector<8x128xbf16> to vector<8x16xbf16>
    %454 = vector.extract_strided_slice %427 {offsets = [0, 0], sizes = [8, 16], strides = [1, 1]} : vector<8x128xbf16> to vector<8x16xbf16>
    %cst_70 = arith.constant dense<0.000000e+00> : vector<8x8xf32>
    %455 = tpu.matmul %453, %454, %cst_70 {dimension_numbers = #tpu.dot_dimension_numbers<[1], [1], [0], [0], [0, 0, 1, 0], [], []>} : vector<8x16xbf16>, vector<8x16xbf16>, vector<8x8xf32> -> vector<8x8xf32>
    %456 = arith.addf %455, %452 : vector<8x8xf32>
    %cst_71 = arith.constant dense<0xFF800000> : vector<8xf32>
    %457 = vector.multi_reduction <maximumf>, %456, %cst_71 [1] : vector<8x8xf32> to vector<8xf32>
    %458 = vector.shape_cast %457 : vector<8xf32> to vector<8x1xf32>
    %459 = vector.broadcast %458 : vector<8x1xf32> to vector<8x8xf32>
    %460 = arith.subf %456, %459 : vector<8x8xf32>
    %461 = math.exp %460 : vector<8x8xf32>
    %cst_72 = arith.constant dense<0.000000e+00> : vector<8xf32>
    %462 = vector.multi_reduction <add>, %461, %cst_72 [1] : vector<8x8xf32> to vector<8xf32>
    %463 = vector.shape_cast %462 : vector<8xf32> to vector<8x1xf32>
    %464 = tpu.reciprocal %463 {approx = true} : vector<8x1xf32> -> vector<8x1xf32>
    %465 = vector.broadcast %464 : vector<8x1xf32> to vector<8x8xf32>
    %466 = arith.mulf %461, %465 : vector<8x8xf32>
    %467 = arith.mulf %466, %48 : vector<8x8xf32>
    %468 = arith.truncf %467 : vector<8x8xf32> to vector<8x8xbf16>
    %469 = vector.extract_strided_slice %428 {offsets = [0, 0], sizes = [8, 16], strides = [1, 1]} : vector<8x128xbf16> to vector<8x16xbf16>
    %cst_73 = arith.constant dense<0.000000e+00> : vector<8x16xf32>
    %470 = tpu.matmul %468, %469, %cst_73 {dimension_numbers = #tpu.dot_dimension_numbers<[1], [0], [0], [1], [0, 0, 1, 1], [], []>} : vector<8x8xbf16>, vector<8x16xbf16>, vector<8x16xf32> -> vector<8x16xf32>
    %c65 = arith.constant 65 : index
    %471 = memref.load %arg2[%c65] : memref<192xf32, #tpu.memory_space<smem>>
    %c73 = arith.constant 73 : index
    %472 = memref.load %arg2[%c73] : memref<192xf32, #tpu.memory_space<smem>>
    %473 = vector.broadcast %472 : f32 to vector<8x8xf32>
    %474 = vector.broadcast %471 : f32 to vector<8x8xf32>
    %475 = arith.select %52, %473, %474 : vector<8x8xi1>, vector<8x8xf32>
    %c81 = arith.constant 81 : index
    %476 = memref.load %arg2[%c81] : memref<192xf32, #tpu.memory_space<smem>>
    %477 = vector.broadcast %476 : f32 to vector<8x8xf32>
    %478 = arith.select %54, %477, %475 : vector<8x8xi1>, vector<8x8xf32>
    %c89 = arith.constant 89 : index
    %479 = memref.load %arg2[%c89] : memref<192xf32, #tpu.memory_space<smem>>
    %480 = vector.broadcast %479 : f32 to vector<8x8xf32>
    %481 = arith.select %56, %480, %478 : vector<8x8xi1>, vector<8x8xf32>
    %c97 = arith.constant 97 : index
    %482 = memref.load %arg2[%c97] : memref<192xf32, #tpu.memory_space<smem>>
    %483 = vector.broadcast %482 : f32 to vector<8x8xf32>
    %484 = arith.select %58, %483, %481 : vector<8x8xi1>, vector<8x8xf32>
    %c105 = arith.constant 105 : index
    %485 = memref.load %arg2[%c105] : memref<192xf32, #tpu.memory_space<smem>>
    %486 = vector.broadcast %485 : f32 to vector<8x8xf32>
    %487 = arith.select %60, %486, %484 : vector<8x8xi1>, vector<8x8xf32>
    %c113 = arith.constant 113 : index
    %488 = memref.load %arg2[%c113] : memref<192xf32, #tpu.memory_space<smem>>
    %489 = vector.broadcast %488 : f32 to vector<8x8xf32>
    %490 = arith.select %62, %489, %487 : vector<8x8xi1>, vector<8x8xf32>
    %c121 = arith.constant 121 : index
    %491 = memref.load %arg2[%c121] : memref<192xf32, #tpu.memory_space<smem>>
    %492 = vector.broadcast %491 : f32 to vector<8x8xf32>
    %493 = arith.select %64, %492, %490 : vector<8x8xi1>, vector<8x8xf32>
    %494 = arith.addf %19, %493 : vector<8x8xf32>
    %495 = vector.extract_strided_slice %426 {offsets = [0, 16], sizes = [8, 16], strides = [1, 1]} : vector<8x128xbf16> to vector<8x16xbf16>
    %496 = vector.extract_strided_slice %427 {offsets = [0, 16], sizes = [8, 16], strides = [1, 1]} : vector<8x128xbf16> to vector<8x16xbf16>
    %cst_74 = arith.constant dense<0.000000e+00> : vector<8x8xf32>
    %497 = tpu.matmul %495, %496, %cst_74 {dimension_numbers = #tpu.dot_dimension_numbers<[1], [1], [0], [0], [0, 0, 1, 0], [], []>} : vector<8x16xbf16>, vector<8x16xbf16>, vector<8x8xf32> -> vector<8x8xf32>
    %498 = arith.addf %497, %494 : vector<8x8xf32>
    %cst_75 = arith.constant dense<0xFF800000> : vector<8xf32>
    %499 = vector.multi_reduction <maximumf>, %498, %cst_75 [1] : vector<8x8xf32> to vector<8xf32>
    %500 = vector.shape_cast %499 : vector<8xf32> to vector<8x1xf32>
    %501 = vector.broadcast %500 : vector<8x1xf32> to vector<8x8xf32>
    %502 = arith.subf %498, %501 : vector<8x8xf32>
    %503 = math.exp %502 : vector<8x8xf32>
    %cst_76 = arith.constant dense<0.000000e+00> : vector<8xf32>
    %504 = vector.multi_reduction <add>, %503, %cst_76 [1] : vector<8x8xf32> to vector<8xf32>
    %505 = vector.shape_cast %504 : vector<8xf32> to vector<8x1xf32>
    %506 = tpu.reciprocal %505 {approx = true} : vector<8x1xf32> -> vector<8x1xf32>
    %507 = vector.broadcast %506 : vector<8x1xf32> to vector<8x8xf32>
    %508 = arith.mulf %503, %507 : vector<8x8xf32>
    %509 = arith.mulf %508, %48 : vector<8x8xf32>
    %510 = arith.truncf %509 : vector<8x8xf32> to vector<8x8xbf16>
    %511 = vector.extract_strided_slice %428 {offsets = [0, 16], sizes = [8, 16], strides = [1, 1]} : vector<8x128xbf16> to vector<8x16xbf16>
    %cst_77 = arith.constant dense<0.000000e+00> : vector<8x16xf32>
    %512 = tpu.matmul %510, %511, %cst_77 {dimension_numbers = #tpu.dot_dimension_numbers<[1], [0], [0], [1], [0, 0, 1, 1], [], []>} : vector<8x8xbf16>, vector<8x16xbf16>, vector<8x16xf32> -> vector<8x16xf32>
    %c66 = arith.constant 66 : index
    %513 = memref.load %arg2[%c66] : memref<192xf32, #tpu.memory_space<smem>>
    %c74 = arith.constant 74 : index
    %514 = memref.load %arg2[%c74] : memref<192xf32, #tpu.memory_space<smem>>
    %515 = vector.broadcast %514 : f32 to vector<8x8xf32>
    %516 = vector.broadcast %513 : f32 to vector<8x8xf32>
    %517 = arith.select %52, %515, %516 : vector<8x8xi1>, vector<8x8xf32>
    %c82 = arith.constant 82 : index
    %518 = memref.load %arg2[%c82] : memref<192xf32, #tpu.memory_space<smem>>
    %519 = vector.broadcast %518 : f32 to vector<8x8xf32>
    %520 = arith.select %54, %519, %517 : vector<8x8xi1>, vector<8x8xf32>
    %c90 = arith.constant 90 : index
    %521 = memref.load %arg2[%c90] : memref<192xf32, #tpu.memory_space<smem>>
    %522 = vector.broadcast %521 : f32 to vector<8x8xf32>
    %523 = arith.select %56, %522, %520 : vector<8x8xi1>, vector<8x8xf32>
    %c98 = arith.constant 98 : index
    %524 = memref.load %arg2[%c98] : memref<192xf32, #tpu.memory_space<smem>>
    %525 = vector.broadcast %524 : f32 to vector<8x8xf32>
    %526 = arith.select %58, %525, %523 : vector<8x8xi1>, vector<8x8xf32>
    %c106 = arith.constant 106 : index
    %527 = memref.load %arg2[%c106] : memref<192xf32, #tpu.memory_space<smem>>
    %528 = vector.broadcast %527 : f32 to vector<8x8xf32>
    %529 = arith.select %60, %528, %526 : vector<8x8xi1>, vector<8x8xf32>
    %c114 = arith.constant 114 : index
    %530 = memref.load %arg2[%c114] : memref<192xf32, #tpu.memory_space<smem>>
    %531 = vector.broadcast %530 : f32 to vector<8x8xf32>
    %532 = arith.select %62, %531, %529 : vector<8x8xi1>, vector<8x8xf32>
    %c122 = arith.constant 122 : index
    %533 = memref.load %arg2[%c122] : memref<192xf32, #tpu.memory_space<smem>>
    %534 = vector.broadcast %533 : f32 to vector<8x8xf32>
    %535 = arith.select %64, %534, %532 : vector<8x8xi1>, vector<8x8xf32>
    %536 = arith.addf %19, %535 : vector<8x8xf32>
    %537 = vector.extract_strided_slice %426 {offsets = [0, 32], sizes = [8, 16], strides = [1, 1]} : vector<8x128xbf16> to vector<8x16xbf16>
    %538 = vector.extract_strided_slice %427 {offsets = [0, 32], sizes = [8, 16], strides = [1, 1]} : vector<8x128xbf16> to vector<8x16xbf16>
    %cst_78 = arith.constant dense<0.000000e+00> : vector<8x8xf32>
    %539 = tpu.matmul %537, %538, %cst_78 {dimension_numbers = #tpu.dot_dimension_numbers<[1], [1], [0], [0], [0, 0, 1, 0], [], []>} : vector<8x16xbf16>, vector<8x16xbf16>, vector<8x8xf32> -> vector<8x8xf32>
    %540 = arith.addf %539, %536 : vector<8x8xf32>
    %cst_79 = arith.constant dense<0xFF800000> : vector<8xf32>
    %541 = vector.multi_reduction <maximumf>, %540, %cst_79 [1] : vector<8x8xf32> to vector<8xf32>
    %542 = vector.shape_cast %541 : vector<8xf32> to vector<8x1xf32>
    %543 = vector.broadcast %542 : vector<8x1xf32> to vector<8x8xf32>
    %544 = arith.subf %540, %543 : vector<8x8xf32>
    %545 = math.exp %544 : vector<8x8xf32>
    %cst_80 = arith.constant dense<0.000000e+00> : vector<8xf32>
    %546 = vector.multi_reduction <add>, %545, %cst_80 [1] : vector<8x8xf32> to vector<8xf32>
    %547 = vector.shape_cast %546 : vector<8xf32> to vector<8x1xf32>
    %548 = tpu.reciprocal %547 {approx = true} : vector<8x1xf32> -> vector<8x1xf32>
    %549 = vector.broadcast %548 : vector<8x1xf32> to vector<8x8xf32>
    %550 = arith.mulf %545, %549 : vector<8x8xf32>
    %551 = arith.mulf %550, %48 : vector<8x8xf32>
    %552 = arith.truncf %551 : vector<8x8xf32> to vector<8x8xbf16>
    %553 = vector.extract_strided_slice %428 {offsets = [0, 32], sizes = [8, 16], strides = [1, 1]} : vector<8x128xbf16> to vector<8x16xbf16>
    %cst_81 = arith.constant dense<0.000000e+00> : vector<8x16xf32>
    %554 = tpu.matmul %552, %553, %cst_81 {dimension_numbers = #tpu.dot_dimension_numbers<[1], [0], [0], [1], [0, 0, 1, 1], [], []>} : vector<8x8xbf16>, vector<8x16xbf16>, vector<8x16xf32> -> vector<8x16xf32>
    %c67 = arith.constant 67 : index
    %555 = memref.load %arg2[%c67] : memref<192xf32, #tpu.memory_space<smem>>
    %c75 = arith.constant 75 : index
    %556 = memref.load %arg2[%c75] : memref<192xf32, #tpu.memory_space<smem>>
    %557 = vector.broadcast %556 : f32 to vector<8x8xf32>
    %558 = vector.broadcast %555 : f32 to vector<8x8xf32>
    %559 = arith.select %52, %557, %558 : vector<8x8xi1>, vector<8x8xf32>
    %c83 = arith.constant 83 : index
    %560 = memref.load %arg2[%c83] : memref<192xf32, #tpu.memory_space<smem>>
    %561 = vector.broadcast %560 : f32 to vector<8x8xf32>
    %562 = arith.select %54, %561, %559 : vector<8x8xi1>, vector<8x8xf32>
    %c91 = arith.constant 91 : index
    %563 = memref.load %arg2[%c91] : memref<192xf32, #tpu.memory_space<smem>>
    %564 = vector.broadcast %563 : f32 to vector<8x8xf32>
    %565 = arith.select %56, %564, %562 : vector<8x8xi1>, vector<8x8xf32>
    %c99 = arith.constant 99 : index
    %566 = memref.load %arg2[%c99] : memref<192xf32, #tpu.memory_space<smem>>
    %567 = vector.broadcast %566 : f32 to vector<8x8xf32>
    %568 = arith.select %58, %567, %565 : vector<8x8xi1>, vector<8x8xf32>
    %c107 = arith.constant 107 : index
    %569 = memref.load %arg2[%c107] : memref<192xf32, #tpu.memory_space<smem>>
    %570 = vector.broadcast %569 : f32 to vector<8x8xf32>
    %571 = arith.select %60, %570, %568 : vector<8x8xi1>, vector<8x8xf32>
    %c115 = arith.constant 115 : index
    %572 = memref.load %arg2[%c115] : memref<192xf32, #tpu.memory_space<smem>>
    %573 = vector.broadcast %572 : f32 to vector<8x8xf32>
    %574 = arith.select %62, %573, %571 : vector<8x8xi1>, vector<8x8xf32>
    %c123 = arith.constant 123 : index
    %575 = memref.load %arg2[%c123] : memref<192xf32, #tpu.memory_space<smem>>
    %576 = vector.broadcast %575 : f32 to vector<8x8xf32>
    %577 = arith.select %64, %576, %574 : vector<8x8xi1>, vector<8x8xf32>
    %578 = arith.addf %19, %577 : vector<8x8xf32>
    %579 = vector.extract_strided_slice %426 {offsets = [0, 48], sizes = [8, 16], strides = [1, 1]} : vector<8x128xbf16> to vector<8x16xbf16>
    %580 = vector.extract_strided_slice %427 {offsets = [0, 48], sizes = [8, 16], strides = [1, 1]} : vector<8x128xbf16> to vector<8x16xbf16>
    %cst_82 = arith.constant dense<0.000000e+00> : vector<8x8xf32>
    %581 = tpu.matmul %579, %580, %cst_82 {dimension_numbers = #tpu.dot_dimension_numbers<[1], [1], [0], [0], [0, 0, 1, 0], [], []>} : vector<8x16xbf16>, vector<8x16xbf16>, vector<8x8xf32> -> vector<8x8xf32>
    %582 = arith.addf %581, %578 : vector<8x8xf32>
    %cst_83 = arith.constant dense<0xFF800000> : vector<8xf32>
    %583 = vector.multi_reduction <maximumf>, %582, %cst_83 [1] : vector<8x8xf32> to vector<8xf32>
    %584 = vector.shape_cast %583 : vector<8xf32> to vector<8x1xf32>
    %585 = vector.broadcast %584 : vector<8x1xf32> to vector<8x8xf32>
    %586 = arith.subf %582, %585 : vector<8x8xf32>
    %587 = math.exp %586 : vector<8x8xf32>
    %cst_84 = arith.constant dense<0.000000e+00> : vector<8xf32>
    %588 = vector.multi_reduction <add>, %587, %cst_84 [1] : vector<8x8xf32> to vector<8xf32>
    %589 = vector.shape_cast %588 : vector<8xf32> to vector<8x1xf32>
    %590 = tpu.reciprocal %589 {approx = true} : vector<8x1xf32> -> vector<8x1xf32>
    %591 = vector.broadcast %590 : vector<8x1xf32> to vector<8x8xf32>
    %592 = arith.mulf %587, %591 : vector<8x8xf32>
    %593 = arith.mulf %592, %48 : vector<8x8xf32>
    %594 = arith.truncf %593 : vector<8x8xf32> to vector<8x8xbf16>
    %595 = vector.extract_strided_slice %428 {offsets = [0, 48], sizes = [8, 16], strides = [1, 1]} : vector<8x128xbf16> to vector<8x16xbf16>
    %cst_85 = arith.constant dense<0.000000e+00> : vector<8x16xf32>
    %596 = tpu.matmul %594, %595, %cst_85 {dimension_numbers = #tpu.dot_dimension_numbers<[1], [0], [0], [1], [0, 0, 1, 1], [], []>} : vector<8x8xbf16>, vector<8x16xbf16>, vector<8x16xf32> -> vector<8x16xf32>
    %c68 = arith.constant 68 : index
    %597 = memref.load %arg2[%c68] : memref<192xf32, #tpu.memory_space<smem>>
    %c76 = arith.constant 76 : index
    %598 = memref.load %arg2[%c76] : memref<192xf32, #tpu.memory_space<smem>>
    %599 = vector.broadcast %598 : f32 to vector<8x8xf32>
    %600 = vector.broadcast %597 : f32 to vector<8x8xf32>
    %601 = arith.select %52, %599, %600 : vector<8x8xi1>, vector<8x8xf32>
    %c84 = arith.constant 84 : index
    %602 = memref.load %arg2[%c84] : memref<192xf32, #tpu.memory_space<smem>>
    %603 = vector.broadcast %602 : f32 to vector<8x8xf32>
    %604 = arith.select %54, %603, %601 : vector<8x8xi1>, vector<8x8xf32>
    %c92 = arith.constant 92 : index
    %605 = memref.load %arg2[%c92] : memref<192xf32, #tpu.memory_space<smem>>
    %606 = vector.broadcast %605 : f32 to vector<8x8xf32>
    %607 = arith.select %56, %606, %604 : vector<8x8xi1>, vector<8x8xf32>
    %c100 = arith.constant 100 : index
    %608 = memref.load %arg2[%c100] : memref<192xf32, #tpu.memory_space<smem>>
    %609 = vector.broadcast %608 : f32 to vector<8x8xf32>
    %610 = arith.select %58, %609, %607 : vector<8x8xi1>, vector<8x8xf32>
    %c108 = arith.constant 108 : index
    %611 = memref.load %arg2[%c108] : memref<192xf32, #tpu.memory_space<smem>>
    %612 = vector.broadcast %611 : f32 to vector<8x8xf32>
    %613 = arith.select %60, %612, %610 : vector<8x8xi1>, vector<8x8xf32>
    %c116 = arith.constant 116 : index
    %614 = memref.load %arg2[%c116] : memref<192xf32, #tpu.memory_space<smem>>
    %615 = vector.broadcast %614 : f32 to vector<8x8xf32>
    %616 = arith.select %62, %615, %613 : vector<8x8xi1>, vector<8x8xf32>
    %c124 = arith.constant 124 : index
    %617 = memref.load %arg2[%c124] : memref<192xf32, #tpu.memory_space<smem>>
    %618 = vector.broadcast %617 : f32 to vector<8x8xf32>
    %619 = arith.select %64, %618, %616 : vector<8x8xi1>, vector<8x8xf32>
    %620 = arith.addf %19, %619 : vector<8x8xf32>
    %621 = vector.extract_strided_slice %426 {offsets = [0, 64], sizes = [8, 16], strides = [1, 1]} : vector<8x128xbf16> to vector<8x16xbf16>
    %622 = vector.extract_strided_slice %427 {offsets = [0, 64], sizes = [8, 16], strides = [1, 1]} : vector<8x128xbf16> to vector<8x16xbf16>
    %cst_86 = arith.constant dense<0.000000e+00> : vector<8x8xf32>
    %623 = tpu.matmul %621, %622, %cst_86 {dimension_numbers = #tpu.dot_dimension_numbers<[1], [1], [0], [0], [0, 0, 1, 0], [], []>} : vector<8x16xbf16>, vector<8x16xbf16>, vector<8x8xf32> -> vector<8x8xf32>
    %624 = arith.addf %623, %620 : vector<8x8xf32>
    %cst_87 = arith.constant dense<0xFF800000> : vector<8xf32>
    %625 = vector.multi_reduction <maximumf>, %624, %cst_87 [1] : vector<8x8xf32> to vector<8xf32>
    %626 = vector.shape_cast %625 : vector<8xf32> to vector<8x1xf32>
    %627 = vector.broadcast %626 : vector<8x1xf32> to vector<8x8xf32>
    %628 = arith.subf %624, %627 : vector<8x8xf32>
    %629 = math.exp %628 : vector<8x8xf32>
    %cst_88 = arith.constant dense<0.000000e+00> : vector<8xf32>
    %630 = vector.multi_reduction <add>, %629, %cst_88 [1] : vector<8x8xf32> to vector<8xf32>
    %631 = vector.shape_cast %630 : vector<8xf32> to vector<8x1xf32>
    %632 = tpu.reciprocal %631 {approx = true} : vector<8x1xf32> -> vector<8x1xf32>
    %633 = vector.broadcast %632 : vector<8x1xf32> to vector<8x8xf32>
    %634 = arith.mulf %629, %633 : vector<8x8xf32>
    %635 = arith.mulf %634, %48 : vector<8x8xf32>
    %636 = arith.truncf %635 : vector<8x8xf32> to vector<8x8xbf16>
    %637 = vector.extract_strided_slice %428 {offsets = [0, 64], sizes = [8, 16], strides = [1, 1]} : vector<8x128xbf16> to vector<8x16xbf16>
    %cst_89 = arith.constant dense<0.000000e+00> : vector<8x16xf32>
    %638 = tpu.matmul %636, %637, %cst_89 {dimension_numbers = #tpu.dot_dimension_numbers<[1], [0], [0], [1], [0, 0, 1, 1], [], []>} : vector<8x8xbf16>, vector<8x16xbf16>, vector<8x16xf32> -> vector<8x16xf32>
    %c69 = arith.constant 69 : index
    %639 = memref.load %arg2[%c69] : memref<192xf32, #tpu.memory_space<smem>>
    %c77 = arith.constant 77 : index
    %640 = memref.load %arg2[%c77] : memref<192xf32, #tpu.memory_space<smem>>
    %641 = vector.broadcast %640 : f32 to vector<8x8xf32>
    %642 = vector.broadcast %639 : f32 to vector<8x8xf32>
    %643 = arith.select %52, %641, %642 : vector<8x8xi1>, vector<8x8xf32>
    %c85 = arith.constant 85 : index
    %644 = memref.load %arg2[%c85] : memref<192xf32, #tpu.memory_space<smem>>
    %645 = vector.broadcast %644 : f32 to vector<8x8xf32>
    %646 = arith.select %54, %645, %643 : vector<8x8xi1>, vector<8x8xf32>
    %c93 = arith.constant 93 : index
    %647 = memref.load %arg2[%c93] : memref<192xf32, #tpu.memory_space<smem>>
    %648 = vector.broadcast %647 : f32 to vector<8x8xf32>
    %649 = arith.select %56, %648, %646 : vector<8x8xi1>, vector<8x8xf32>
    %c101 = arith.constant 101 : index
    %650 = memref.load %arg2[%c101] : memref<192xf32, #tpu.memory_space<smem>>
    %651 = vector.broadcast %650 : f32 to vector<8x8xf32>
    %652 = arith.select %58, %651, %649 : vector<8x8xi1>, vector<8x8xf32>
    %c109 = arith.constant 109 : index
    %653 = memref.load %arg2[%c109] : memref<192xf32, #tpu.memory_space<smem>>
    %654 = vector.broadcast %653 : f32 to vector<8x8xf32>
    %655 = arith.select %60, %654, %652 : vector<8x8xi1>, vector<8x8xf32>
    %c117 = arith.constant 117 : index
    %656 = memref.load %arg2[%c117] : memref<192xf32, #tpu.memory_space<smem>>
    %657 = vector.broadcast %656 : f32 to vector<8x8xf32>
    %658 = arith.select %62, %657, %655 : vector<8x8xi1>, vector<8x8xf32>
    %c125 = arith.constant 125 : index
    %659 = memref.load %arg2[%c125] : memref<192xf32, #tpu.memory_space<smem>>
    %660 = vector.broadcast %659 : f32 to vector<8x8xf32>
    %661 = arith.select %64, %660, %658 : vector<8x8xi1>, vector<8x8xf32>
    %662 = arith.addf %19, %661 : vector<8x8xf32>
    %663 = vector.extract_strided_slice %426 {offsets = [0, 80], sizes = [8, 16], strides = [1, 1]} : vector<8x128xbf16> to vector<8x16xbf16>
    %664 = vector.extract_strided_slice %427 {offsets = [0, 80], sizes = [8, 16], strides = [1, 1]} : vector<8x128xbf16> to vector<8x16xbf16>
    %cst_90 = arith.constant dense<0.000000e+00> : vector<8x8xf32>
    %665 = tpu.matmul %663, %664, %cst_90 {dimension_numbers = #tpu.dot_dimension_numbers<[1], [1], [0], [0], [0, 0, 1, 0], [], []>} : vector<8x16xbf16>, vector<8x16xbf16>, vector<8x8xf32> -> vector<8x8xf32>
    %666 = arith.addf %665, %662 : vector<8x8xf32>
    %cst_91 = arith.constant dense<0xFF800000> : vector<8xf32>
    %667 = vector.multi_reduction <maximumf>, %666, %cst_91 [1] : vector<8x8xf32> to vector<8xf32>
    %668 = vector.shape_cast %667 : vector<8xf32> to vector<8x1xf32>
    %669 = vector.broadcast %668 : vector<8x1xf32> to vector<8x8xf32>
    %670 = arith.subf %666, %669 : vector<8x8xf32>
    %671 = math.exp %670 : vector<8x8xf32>
    %cst_92 = arith.constant dense<0.000000e+00> : vector<8xf32>
    %672 = vector.multi_reduction <add>, %671, %cst_92 [1] : vector<8x8xf32> to vector<8xf32>
    %673 = vector.shape_cast %672 : vector<8xf32> to vector<8x1xf32>
    %674 = tpu.reciprocal %673 {approx = true} : vector<8x1xf32> -> vector<8x1xf32>
    %675 = vector.broadcast %674 : vector<8x1xf32> to vector<8x8xf32>
    %676 = arith.mulf %671, %675 : vector<8x8xf32>
    %677 = arith.mulf %676, %48 : vector<8x8xf32>
    %678 = arith.truncf %677 : vector<8x8xf32> to vector<8x8xbf16>
    %679 = vector.extract_strided_slice %428 {offsets = [0, 80], sizes = [8, 16], strides = [1, 1]} : vector<8x128xbf16> to vector<8x16xbf16>
    %cst_93 = arith.constant dense<0.000000e+00> : vector<8x16xf32>
    %680 = tpu.matmul %678, %679, %cst_93 {dimension_numbers = #tpu.dot_dimension_numbers<[1], [0], [0], [1], [0, 0, 1, 1], [], []>} : vector<8x8xbf16>, vector<8x16xbf16>, vector<8x16xf32> -> vector<8x16xf32>
    %c70 = arith.constant 70 : index
    %681 = memref.load %arg2[%c70] : memref<192xf32, #tpu.memory_space<smem>>
    %c78 = arith.constant 78 : index
    %682 = memref.load %arg2[%c78] : memref<192xf32, #tpu.memory_space<smem>>
    %683 = vector.broadcast %682 : f32 to vector<8x8xf32>
    %684 = vector.broadcast %681 : f32 to vector<8x8xf32>
    %685 = arith.select %52, %683, %684 : vector<8x8xi1>, vector<8x8xf32>
    %c86 = arith.constant 86 : index
    %686 = memref.load %arg2[%c86] : memref<192xf32, #tpu.memory_space<smem>>
    %687 = vector.broadcast %686 : f32 to vector<8x8xf32>
    %688 = arith.select %54, %687, %685 : vector<8x8xi1>, vector<8x8xf32>
    %c94 = arith.constant 94 : index
    %689 = memref.load %arg2[%c94] : memref<192xf32, #tpu.memory_space<smem>>
    %690 = vector.broadcast %689 : f32 to vector<8x8xf32>
    %691 = arith.select %56, %690, %688 : vector<8x8xi1>, vector<8x8xf32>
    %c102 = arith.constant 102 : index
    %692 = memref.load %arg2[%c102] : memref<192xf32, #tpu.memory_space<smem>>
    %693 = vector.broadcast %692 : f32 to vector<8x8xf32>
    %694 = arith.select %58, %693, %691 : vector<8x8xi1>, vector<8x8xf32>
    %c110 = arith.constant 110 : index
    %695 = memref.load %arg2[%c110] : memref<192xf32, #tpu.memory_space<smem>>
    %696 = vector.broadcast %695 : f32 to vector<8x8xf32>
    %697 = arith.select %60, %696, %694 : vector<8x8xi1>, vector<8x8xf32>
    %c118 = arith.constant 118 : index
    %698 = memref.load %arg2[%c118] : memref<192xf32, #tpu.memory_space<smem>>
    %699 = vector.broadcast %698 : f32 to vector<8x8xf32>
    %700 = arith.select %62, %699, %697 : vector<8x8xi1>, vector<8x8xf32>
    %c126 = arith.constant 126 : index
    %701 = memref.load %arg2[%c126] : memref<192xf32, #tpu.memory_space<smem>>
    %702 = vector.broadcast %701 : f32 to vector<8x8xf32>
    %703 = arith.select %64, %702, %700 : vector<8x8xi1>, vector<8x8xf32>
    %704 = arith.addf %19, %703 : vector<8x8xf32>
    %705 = vector.extract_strided_slice %426 {offsets = [0, 96], sizes = [8, 16], strides = [1, 1]} : vector<8x128xbf16> to vector<8x16xbf16>
    %706 = vector.extract_strided_slice %427 {offsets = [0, 96], sizes = [8, 16], strides = [1, 1]} : vector<8x128xbf16> to vector<8x16xbf16>
    %cst_94 = arith.constant dense<0.000000e+00> : vector<8x8xf32>
    %707 = tpu.matmul %705, %706, %cst_94 {dimension_numbers = #tpu.dot_dimension_numbers<[1], [1], [0], [0], [0, 0, 1, 0], [], []>} : vector<8x16xbf16>, vector<8x16xbf16>, vector<8x8xf32> -> vector<8x8xf32>
    %708 = arith.addf %707, %704 : vector<8x8xf32>
    %cst_95 = arith.constant dense<0xFF800000> : vector<8xf32>
    %709 = vector.multi_reduction <maximumf>, %708, %cst_95 [1] : vector<8x8xf32> to vector<8xf32>
    %710 = vector.shape_cast %709 : vector<8xf32> to vector<8x1xf32>
    %711 = vector.broadcast %710 : vector<8x1xf32> to vector<8x8xf32>
    %712 = arith.subf %708, %711 : vector<8x8xf32>
    %713 = math.exp %712 : vector<8x8xf32>
    %cst_96 = arith.constant dense<0.000000e+00> : vector<8xf32>
    %714 = vector.multi_reduction <add>, %713, %cst_96 [1] : vector<8x8xf32> to vector<8xf32>
    %715 = vector.shape_cast %714 : vector<8xf32> to vector<8x1xf32>
    %716 = tpu.reciprocal %715 {approx = true} : vector<8x1xf32> -> vector<8x1xf32>
    %717 = vector.broadcast %716 : vector<8x1xf32> to vector<8x8xf32>
    %718 = arith.mulf %713, %717 : vector<8x8xf32>
    %719 = arith.mulf %718, %48 : vector<8x8xf32>
    %720 = arith.truncf %719 : vector<8x8xf32> to vector<8x8xbf16>
    %721 = vector.extract_strided_slice %428 {offsets = [0, 96], sizes = [8, 16], strides = [1, 1]} : vector<8x128xbf16> to vector<8x16xbf16>
    %cst_97 = arith.constant dense<0.000000e+00> : vector<8x16xf32>
    %722 = tpu.matmul %720, %721, %cst_97 {dimension_numbers = #tpu.dot_dimension_numbers<[1], [0], [0], [1], [0, 0, 1, 1], [], []>} : vector<8x8xbf16>, vector<8x16xbf16>, vector<8x16xf32> -> vector<8x16xf32>
    %c71 = arith.constant 71 : index
    %723 = memref.load %arg2[%c71] : memref<192xf32, #tpu.memory_space<smem>>
    %c79 = arith.constant 79 : index
    %724 = memref.load %arg2[%c79] : memref<192xf32, #tpu.memory_space<smem>>
    %725 = vector.broadcast %724 : f32 to vector<8x8xf32>
    %726 = vector.broadcast %723 : f32 to vector<8x8xf32>
    %727 = arith.select %52, %725, %726 : vector<8x8xi1>, vector<8x8xf32>
    %c87 = arith.constant 87 : index
    %728 = memref.load %arg2[%c87] : memref<192xf32, #tpu.memory_space<smem>>
    %729 = vector.broadcast %728 : f32 to vector<8x8xf32>
    %730 = arith.select %54, %729, %727 : vector<8x8xi1>, vector<8x8xf32>
    %c95 = arith.constant 95 : index
    %731 = memref.load %arg2[%c95] : memref<192xf32, #tpu.memory_space<smem>>
    %732 = vector.broadcast %731 : f32 to vector<8x8xf32>
    %733 = arith.select %56, %732, %730 : vector<8x8xi1>, vector<8x8xf32>
    %c103 = arith.constant 103 : index
    %734 = memref.load %arg2[%c103] : memref<192xf32, #tpu.memory_space<smem>>
    %735 = vector.broadcast %734 : f32 to vector<8x8xf32>
    %736 = arith.select %58, %735, %733 : vector<8x8xi1>, vector<8x8xf32>
    %c111 = arith.constant 111 : index
    %737 = memref.load %arg2[%c111] : memref<192xf32, #tpu.memory_space<smem>>
    %738 = vector.broadcast %737 : f32 to vector<8x8xf32>
    %739 = arith.select %60, %738, %736 : vector<8x8xi1>, vector<8x8xf32>
    %c119 = arith.constant 119 : index
    %740 = memref.load %arg2[%c119] : memref<192xf32, #tpu.memory_space<smem>>
    %741 = vector.broadcast %740 : f32 to vector<8x8xf32>
    %742 = arith.select %62, %741, %739 : vector<8x8xi1>, vector<8x8xf32>
    %c127 = arith.constant 127 : index
    %743 = memref.load %arg2[%c127] : memref<192xf32, #tpu.memory_space<smem>>
    %744 = vector.broadcast %743 : f32 to vector<8x8xf32>
    %745 = arith.select %64, %744, %742 : vector<8x8xi1>, vector<8x8xf32>
    %746 = arith.addf %19, %745 : vector<8x8xf32>
    %747 = vector.extract_strided_slice %426 {offsets = [0, 112], sizes = [8, 16], strides = [1, 1]} : vector<8x128xbf16> to vector<8x16xbf16>
    %748 = vector.extract_strided_slice %427 {offsets = [0, 112], sizes = [8, 16], strides = [1, 1]} : vector<8x128xbf16> to vector<8x16xbf16>
    %cst_98 = arith.constant dense<0.000000e+00> : vector<8x8xf32>
    %749 = tpu.matmul %747, %748, %cst_98 {dimension_numbers = #tpu.dot_dimension_numbers<[1], [1], [0], [0], [0, 0, 1, 0], [], []>} : vector<8x16xbf16>, vector<8x16xbf16>, vector<8x8xf32> -> vector<8x8xf32>
    %750 = arith.addf %749, %746 : vector<8x8xf32>
    %cst_99 = arith.constant dense<0xFF800000> : vector<8xf32>
    %751 = vector.multi_reduction <maximumf>, %750, %cst_99 [1] : vector<8x8xf32> to vector<8xf32>
    %752 = vector.shape_cast %751 : vector<8xf32> to vector<8x1xf32>
    %753 = vector.broadcast %752 : vector<8x1xf32> to vector<8x8xf32>
    %754 = arith.subf %750, %753 : vector<8x8xf32>
    %755 = math.exp %754 : vector<8x8xf32>
    %cst_100 = arith.constant dense<0.000000e+00> : vector<8xf32>
    %756 = vector.multi_reduction <add>, %755, %cst_100 [1] : vector<8x8xf32> to vector<8xf32>
    %757 = vector.shape_cast %756 : vector<8xf32> to vector<8x1xf32>
    %758 = tpu.reciprocal %757 {approx = true} : vector<8x1xf32> -> vector<8x1xf32>
    %759 = vector.broadcast %758 : vector<8x1xf32> to vector<8x8xf32>
    %760 = arith.mulf %755, %759 : vector<8x8xf32>
    %761 = arith.mulf %760, %48 : vector<8x8xf32>
    %762 = arith.truncf %761 : vector<8x8xf32> to vector<8x8xbf16>
    %763 = vector.extract_strided_slice %428 {offsets = [0, 112], sizes = [8, 16], strides = [1, 1]} : vector<8x128xbf16> to vector<8x16xbf16>
    %cst_101 = arith.constant dense<0.000000e+00> : vector<8x16xf32>
    %764 = tpu.matmul %762, %763, %cst_101 {dimension_numbers = #tpu.dot_dimension_numbers<[1], [0], [0], [1], [0, 0, 1, 1], [], []>} : vector<8x8xbf16>, vector<8x16xbf16>, vector<8x16xf32> -> vector<8x16xf32>
    %765 = tpu.concatenate %470, %512, %554, %596, %638, %680, %722, %764 in 1 : vector<8x16xf32>, vector<8x16xf32>, vector<8x16xf32>, vector<8x16xf32>, vector<8x16xf32>, vector<8x16xf32>, vector<8x16xf32>, vector<8x16xf32> -> vector<8x128xf32>
    %766 = arith.truncf %765 : vector<8x128xf32> to vector<8x128xbf16>
    %c1_102 = arith.constant 1 : index
    %c0_103 = arith.constant 0 : index
    %c0_104 = arith.constant 0 : index
    %767 = vector.load %arg11[%c1_102, %c0_103, %c0_104] : memref<3x128x128xbf16, #tpu.memory_space<vmem>>, vector<1x128x128xbf16>
    %768 = vector.shape_cast %767 : vector<1x128x128xbf16> to vector<128x128xbf16>
    %cst_105 = arith.constant dense<0.000000e+00> : vector<8x128xf32>
    %769 = tpu.matmul %766, %768, %cst_105 {dimension_numbers = #tpu.dot_dimension_numbers<[1], [0], [0], [1], [0, 0, 1, 1], [], []>} : vector<8x128xbf16>, vector<128x128xbf16>, vector<8x128xf32> -> vector<8x128xf32>
    %770 = arith.addf %420, %769 : vector<8x128xf32>
    %cst_106 = arith.constant 0.000000e+00 : f32
    %771 = vector.broadcast %cst_106 : f32 to vector<8x128xf32>
    %772 = arith.maximumf %770, %771 : vector<8x128xf32>
    %773 = arith.truncf %772 : vector<8x128xf32> to vector<8x128xbf16>
    %c2_107 = arith.constant 2 : index
    %c0_108 = arith.constant 0 : index
    %c0_109 = arith.constant 0 : index
    %774 = vector.load %arg10[%c2_107, %c0_108, %c0_109] : memref<3x128x384xbf16, #tpu.memory_space<vmem>>, vector<1x128x384xbf16>
    %775 = vector.shape_cast %774 : vector<1x128x384xbf16> to vector<128x384xbf16>
    %cst_110 = arith.constant dense<0.000000e+00> : vector<8x384xf32>
    %776 = tpu.matmul %773, %775, %cst_110 {dimension_numbers = #tpu.dot_dimension_numbers<[1], [0], [0], [1], [0, 0, 1, 1], [], []>} : vector<8x128xbf16>, vector<128x384xbf16>, vector<8x384xf32> -> vector<8x384xf32>
    %777 = arith.truncf %776 : vector<8x384xf32> to vector<8x384xbf16>
    %778 = vector.extract_strided_slice %777 {offsets = [0, 0], sizes = [8, 128], strides = [1, 1]} : vector<8x384xbf16> to vector<8x128xbf16>
    %779 = vector.extract_strided_slice %777 {offsets = [0, 128], sizes = [8, 128], strides = [1, 1]} : vector<8x384xbf16> to vector<8x128xbf16>
    %780 = vector.extract_strided_slice %777 {offsets = [0, 256], sizes = [8, 128], strides = [1, 1]} : vector<8x384xbf16> to vector<8x128xbf16>
    %c128 = arith.constant 128 : index
    %781 = memref.load %arg2[%c128] : memref<192xf32, #tpu.memory_space<smem>>
    %c136 = arith.constant 136 : index
    %782 = memref.load %arg2[%c136] : memref<192xf32, #tpu.memory_space<smem>>
    %783 = vector.broadcast %782 : f32 to vector<8x8xf32>
    %784 = vector.broadcast %781 : f32 to vector<8x8xf32>
    %785 = arith.select %52, %783, %784 : vector<8x8xi1>, vector<8x8xf32>
    %c144 = arith.constant 144 : index
    %786 = memref.load %arg2[%c144] : memref<192xf32, #tpu.memory_space<smem>>
    %787 = vector.broadcast %786 : f32 to vector<8x8xf32>
    %788 = arith.select %54, %787, %785 : vector<8x8xi1>, vector<8x8xf32>
    %c152 = arith.constant 152 : index
    %789 = memref.load %arg2[%c152] : memref<192xf32, #tpu.memory_space<smem>>
    %790 = vector.broadcast %789 : f32 to vector<8x8xf32>
    %791 = arith.select %56, %790, %788 : vector<8x8xi1>, vector<8x8xf32>
    %c160 = arith.constant 160 : index
    %792 = memref.load %arg2[%c160] : memref<192xf32, #tpu.memory_space<smem>>
    %793 = vector.broadcast %792 : f32 to vector<8x8xf32>
    %794 = arith.select %58, %793, %791 : vector<8x8xi1>, vector<8x8xf32>
    %c168 = arith.constant 168 : index
    %795 = memref.load %arg2[%c168] : memref<192xf32, #tpu.memory_space<smem>>
    %796 = vector.broadcast %795 : f32 to vector<8x8xf32>
    %797 = arith.select %60, %796, %794 : vector<8x8xi1>, vector<8x8xf32>
    %c176 = arith.constant 176 : index
    %798 = memref.load %arg2[%c176] : memref<192xf32, #tpu.memory_space<smem>>
    %799 = vector.broadcast %798 : f32 to vector<8x8xf32>
    %800 = arith.select %62, %799, %797 : vector<8x8xi1>, vector<8x8xf32>
    %c184 = arith.constant 184 : index
    %801 = memref.load %arg2[%c184] : memref<192xf32, #tpu.memory_space<smem>>
    %802 = vector.broadcast %801 : f32 to vector<8x8xf32>
    %803 = arith.select %64, %802, %800 : vector<8x8xi1>, vector<8x8xf32>
    %804 = arith.addf %19, %803 : vector<8x8xf32>
    %805 = vector.extract_strided_slice %778 {offsets = [0, 0], sizes = [8, 16], strides = [1, 1]} : vector<8x128xbf16> to vector<8x16xbf16>
    %806 = vector.extract_strided_slice %779 {offsets = [0, 0], sizes = [8, 16], strides = [1, 1]} : vector<8x128xbf16> to vector<8x16xbf16>
    %cst_111 = arith.constant dense<0.000000e+00> : vector<8x8xf32>
    %807 = tpu.matmul %805, %806, %cst_111 {dimension_numbers = #tpu.dot_dimension_numbers<[1], [1], [0], [0], [0, 0, 1, 0], [], []>} : vector<8x16xbf16>, vector<8x16xbf16>, vector<8x8xf32> -> vector<8x8xf32>
    %808 = arith.addf %807, %804 : vector<8x8xf32>
    %cst_112 = arith.constant dense<0xFF800000> : vector<8xf32>
    %809 = vector.multi_reduction <maximumf>, %808, %cst_112 [1] : vector<8x8xf32> to vector<8xf32>
    %810 = vector.shape_cast %809 : vector<8xf32> to vector<8x1xf32>
    %811 = vector.broadcast %810 : vector<8x1xf32> to vector<8x8xf32>
    %812 = arith.subf %808, %811 : vector<8x8xf32>
    %813 = math.exp %812 : vector<8x8xf32>
    %cst_113 = arith.constant dense<0.000000e+00> : vector<8xf32>
    %814 = vector.multi_reduction <add>, %813, %cst_113 [1] : vector<8x8xf32> to vector<8xf32>
    %815 = vector.shape_cast %814 : vector<8xf32> to vector<8x1xf32>
    %816 = tpu.reciprocal %815 {approx = true} : vector<8x1xf32> -> vector<8x1xf32>
    %817 = vector.broadcast %816 : vector<8x1xf32> to vector<8x8xf32>
    %818 = arith.mulf %813, %817 : vector<8x8xf32>
    %819 = arith.mulf %818, %48 : vector<8x8xf32>
    %820 = arith.truncf %819 : vector<8x8xf32> to vector<8x8xbf16>
    %821 = vector.extract_strided_slice %780 {offsets = [0, 0], sizes = [8, 16], strides = [1, 1]} : vector<8x128xbf16> to vector<8x16xbf16>
    %cst_114 = arith.constant dense<0.000000e+00> : vector<8x16xf32>
    %822 = tpu.matmul %820, %821, %cst_114 {dimension_numbers = #tpu.dot_dimension_numbers<[1], [0], [0], [1], [0, 0, 1, 1], [], []>} : vector<8x8xbf16>, vector<8x16xbf16>, vector<8x16xf32> -> vector<8x16xf32>
    %c129 = arith.constant 129 : index
    %823 = memref.load %arg2[%c129] : memref<192xf32, #tpu.memory_space<smem>>
    %c137 = arith.constant 137 : index
    %824 = memref.load %arg2[%c137] : memref<192xf32, #tpu.memory_space<smem>>
    %825 = vector.broadcast %824 : f32 to vector<8x8xf32>
    %826 = vector.broadcast %823 : f32 to vector<8x8xf32>
    %827 = arith.select %52, %825, %826 : vector<8x8xi1>, vector<8x8xf32>
    %c145 = arith.constant 145 : index
    %828 = memref.load %arg2[%c145] : memref<192xf32, #tpu.memory_space<smem>>
    %829 = vector.broadcast %828 : f32 to vector<8x8xf32>
    %830 = arith.select %54, %829, %827 : vector<8x8xi1>, vector<8x8xf32>
    %c153 = arith.constant 153 : index
    %831 = memref.load %arg2[%c153] : memref<192xf32, #tpu.memory_space<smem>>
    %832 = vector.broadcast %831 : f32 to vector<8x8xf32>
    %833 = arith.select %56, %832, %830 : vector<8x8xi1>, vector<8x8xf32>
    %c161 = arith.constant 161 : index
    %834 = memref.load %arg2[%c161] : memref<192xf32, #tpu.memory_space<smem>>
    %835 = vector.broadcast %834 : f32 to vector<8x8xf32>
    %836 = arith.select %58, %835, %833 : vector<8x8xi1>, vector<8x8xf32>
    %c169 = arith.constant 169 : index
    %837 = memref.load %arg2[%c169] : memref<192xf32, #tpu.memory_space<smem>>
    %838 = vector.broadcast %837 : f32 to vector<8x8xf32>
    %839 = arith.select %60, %838, %836 : vector<8x8xi1>, vector<8x8xf32>
    %c177 = arith.constant 177 : index
    %840 = memref.load %arg2[%c177] : memref<192xf32, #tpu.memory_space<smem>>
    %841 = vector.broadcast %840 : f32 to vector<8x8xf32>
    %842 = arith.select %62, %841, %839 : vector<8x8xi1>, vector<8x8xf32>
    %c185 = arith.constant 185 : index
    %843 = memref.load %arg2[%c185] : memref<192xf32, #tpu.memory_space<smem>>
    %844 = vector.broadcast %843 : f32 to vector<8x8xf32>
    %845 = arith.select %64, %844, %842 : vector<8x8xi1>, vector<8x8xf32>
    %846 = arith.addf %19, %845 : vector<8x8xf32>
    %847 = vector.extract_strided_slice %778 {offsets = [0, 16], sizes = [8, 16], strides = [1, 1]} : vector<8x128xbf16> to vector<8x16xbf16>
    %848 = vector.extract_strided_slice %779 {offsets = [0, 16], sizes = [8, 16], strides = [1, 1]} : vector<8x128xbf16> to vector<8x16xbf16>
    %cst_115 = arith.constant dense<0.000000e+00> : vector<8x8xf32>
    %849 = tpu.matmul %847, %848, %cst_115 {dimension_numbers = #tpu.dot_dimension_numbers<[1], [1], [0], [0], [0, 0, 1, 0], [], []>} : vector<8x16xbf16>, vector<8x16xbf16>, vector<8x8xf32> -> vector<8x8xf32>
    %850 = arith.addf %849, %846 : vector<8x8xf32>
    %cst_116 = arith.constant dense<0xFF800000> : vector<8xf32>
    %851 = vector.multi_reduction <maximumf>, %850, %cst_116 [1] : vector<8x8xf32> to vector<8xf32>
    %852 = vector.shape_cast %851 : vector<8xf32> to vector<8x1xf32>
    %853 = vector.broadcast %852 : vector<8x1xf32> to vector<8x8xf32>
    %854 = arith.subf %850, %853 : vector<8x8xf32>
    %855 = math.exp %854 : vector<8x8xf32>
    %cst_117 = arith.constant dense<0.000000e+00> : vector<8xf32>
    %856 = vector.multi_reduction <add>, %855, %cst_117 [1] : vector<8x8xf32> to vector<8xf32>
    %857 = vector.shape_cast %856 : vector<8xf32> to vector<8x1xf32>
    %858 = tpu.reciprocal %857 {approx = true} : vector<8x1xf32> -> vector<8x1xf32>
    %859 = vector.broadcast %858 : vector<8x1xf32> to vector<8x8xf32>
    %860 = arith.mulf %855, %859 : vector<8x8xf32>
    %861 = arith.mulf %860, %48 : vector<8x8xf32>
    %862 = arith.truncf %861 : vector<8x8xf32> to vector<8x8xbf16>
    %863 = vector.extract_strided_slice %780 {offsets = [0, 16], sizes = [8, 16], strides = [1, 1]} : vector<8x128xbf16> to vector<8x16xbf16>
    %cst_118 = arith.constant dense<0.000000e+00> : vector<8x16xf32>
    %864 = tpu.matmul %862, %863, %cst_118 {dimension_numbers = #tpu.dot_dimension_numbers<[1], [0], [0], [1], [0, 0, 1, 1], [], []>} : vector<8x8xbf16>, vector<8x16xbf16>, vector<8x16xf32> -> vector<8x16xf32>
    %c130 = arith.constant 130 : index
    %865 = memref.load %arg2[%c130] : memref<192xf32, #tpu.memory_space<smem>>
    %c138 = arith.constant 138 : index
    %866 = memref.load %arg2[%c138] : memref<192xf32, #tpu.memory_space<smem>>
    %867 = vector.broadcast %866 : f32 to vector<8x8xf32>
    %868 = vector.broadcast %865 : f32 to vector<8x8xf32>
    %869 = arith.select %52, %867, %868 : vector<8x8xi1>, vector<8x8xf32>
    %c146 = arith.constant 146 : index
    %870 = memref.load %arg2[%c146] : memref<192xf32, #tpu.memory_space<smem>>
    %871 = vector.broadcast %870 : f32 to vector<8x8xf32>
    %872 = arith.select %54, %871, %869 : vector<8x8xi1>, vector<8x8xf32>
    %c154 = arith.constant 154 : index
    %873 = memref.load %arg2[%c154] : memref<192xf32, #tpu.memory_space<smem>>
    %874 = vector.broadcast %873 : f32 to vector<8x8xf32>
    %875 = arith.select %56, %874, %872 : vector<8x8xi1>, vector<8x8xf32>
    %c162 = arith.constant 162 : index
    %876 = memref.load %arg2[%c162] : memref<192xf32, #tpu.memory_space<smem>>
    %877 = vector.broadcast %876 : f32 to vector<8x8xf32>
    %878 = arith.select %58, %877, %875 : vector<8x8xi1>, vector<8x8xf32>
    %c170 = arith.constant 170 : index
    %879 = memref.load %arg2[%c170] : memref<192xf32, #tpu.memory_space<smem>>
    %880 = vector.broadcast %879 : f32 to vector<8x8xf32>
    %881 = arith.select %60, %880, %878 : vector<8x8xi1>, vector<8x8xf32>
    %c178 = arith.constant 178 : index
    %882 = memref.load %arg2[%c178] : memref<192xf32, #tpu.memory_space<smem>>
    %883 = vector.broadcast %882 : f32 to vector<8x8xf32>
    %884 = arith.select %62, %883, %881 : vector<8x8xi1>, vector<8x8xf32>
    %c186 = arith.constant 186 : index
    %885 = memref.load %arg2[%c186] : memref<192xf32, #tpu.memory_space<smem>>
    %886 = vector.broadcast %885 : f32 to vector<8x8xf32>
    %887 = arith.select %64, %886, %884 : vector<8x8xi1>, vector<8x8xf32>
    %888 = arith.addf %19, %887 : vector<8x8xf32>
    %889 = vector.extract_strided_slice %778 {offsets = [0, 32], sizes = [8, 16], strides = [1, 1]} : vector<8x128xbf16> to vector<8x16xbf16>
    %890 = vector.extract_strided_slice %779 {offsets = [0, 32], sizes = [8, 16], strides = [1, 1]} : vector<8x128xbf16> to vector<8x16xbf16>
    %cst_119 = arith.constant dense<0.000000e+00> : vector<8x8xf32>
    %891 = tpu.matmul %889, %890, %cst_119 {dimension_numbers = #tpu.dot_dimension_numbers<[1], [1], [0], [0], [0, 0, 1, 0], [], []>} : vector<8x16xbf16>, vector<8x16xbf16>, vector<8x8xf32> -> vector<8x8xf32>
    %892 = arith.addf %891, %888 : vector<8x8xf32>
    %cst_120 = arith.constant dense<0xFF800000> : vector<8xf32>
    %893 = vector.multi_reduction <maximumf>, %892, %cst_120 [1] : vector<8x8xf32> to vector<8xf32>
    %894 = vector.shape_cast %893 : vector<8xf32> to vector<8x1xf32>
    %895 = vector.broadcast %894 : vector<8x1xf32> to vector<8x8xf32>
    %896 = arith.subf %892, %895 : vector<8x8xf32>
    %897 = math.exp %896 : vector<8x8xf32>
    %cst_121 = arith.constant dense<0.000000e+00> : vector<8xf32>
    %898 = vector.multi_reduction <add>, %897, %cst_121 [1] : vector<8x8xf32> to vector<8xf32>
    %899 = vector.shape_cast %898 : vector<8xf32> to vector<8x1xf32>
    %900 = tpu.reciprocal %899 {approx = true} : vector<8x1xf32> -> vector<8x1xf32>
    %901 = vector.broadcast %900 : vector<8x1xf32> to vector<8x8xf32>
    %902 = arith.mulf %897, %901 : vector<8x8xf32>
    %903 = arith.mulf %902, %48 : vector<8x8xf32>
    %904 = arith.truncf %903 : vector<8x8xf32> to vector<8x8xbf16>
    %905 = vector.extract_strided_slice %780 {offsets = [0, 32], sizes = [8, 16], strides = [1, 1]} : vector<8x128xbf16> to vector<8x16xbf16>
    %cst_122 = arith.constant dense<0.000000e+00> : vector<8x16xf32>
    %906 = tpu.matmul %904, %905, %cst_122 {dimension_numbers = #tpu.dot_dimension_numbers<[1], [0], [0], [1], [0, 0, 1, 1], [], []>} : vector<8x8xbf16>, vector<8x16xbf16>, vector<8x16xf32> -> vector<8x16xf32>
    %c131 = arith.constant 131 : index
    %907 = memref.load %arg2[%c131] : memref<192xf32, #tpu.memory_space<smem>>
    %c139 = arith.constant 139 : index
    %908 = memref.load %arg2[%c139] : memref<192xf32, #tpu.memory_space<smem>>
    %909 = vector.broadcast %908 : f32 to vector<8x8xf32>
    %910 = vector.broadcast %907 : f32 to vector<8x8xf32>
    %911 = arith.select %52, %909, %910 : vector<8x8xi1>, vector<8x8xf32>
    %c147 = arith.constant 147 : index
    %912 = memref.load %arg2[%c147] : memref<192xf32, #tpu.memory_space<smem>>
    %913 = vector.broadcast %912 : f32 to vector<8x8xf32>
    %914 = arith.select %54, %913, %911 : vector<8x8xi1>, vector<8x8xf32>
    %c155 = arith.constant 155 : index
    %915 = memref.load %arg2[%c155] : memref<192xf32, #tpu.memory_space<smem>>
    %916 = vector.broadcast %915 : f32 to vector<8x8xf32>
    %917 = arith.select %56, %916, %914 : vector<8x8xi1>, vector<8x8xf32>
    %c163 = arith.constant 163 : index
    %918 = memref.load %arg2[%c163] : memref<192xf32, #tpu.memory_space<smem>>
    %919 = vector.broadcast %918 : f32 to vector<8x8xf32>
    %920 = arith.select %58, %919, %917 : vector<8x8xi1>, vector<8x8xf32>
    %c171 = arith.constant 171 : index
    %921 = memref.load %arg2[%c171] : memref<192xf32, #tpu.memory_space<smem>>
    %922 = vector.broadcast %921 : f32 to vector<8x8xf32>
    %923 = arith.select %60, %922, %920 : vector<8x8xi1>, vector<8x8xf32>
    %c179 = arith.constant 179 : index
    %924 = memref.load %arg2[%c179] : memref<192xf32, #tpu.memory_space<smem>>
    %925 = vector.broadcast %924 : f32 to vector<8x8xf32>
    %926 = arith.select %62, %925, %923 : vector<8x8xi1>, vector<8x8xf32>
    %c187 = arith.constant 187 : index
    %927 = memref.load %arg2[%c187] : memref<192xf32, #tpu.memory_space<smem>>
    %928 = vector.broadcast %927 : f32 to vector<8x8xf32>
    %929 = arith.select %64, %928, %926 : vector<8x8xi1>, vector<8x8xf32>
    %930 = arith.addf %19, %929 : vector<8x8xf32>
    %931 = vector.extract_strided_slice %778 {offsets = [0, 48], sizes = [8, 16], strides = [1, 1]} : vector<8x128xbf16> to vector<8x16xbf16>
    %932 = vector.extract_strided_slice %779 {offsets = [0, 48], sizes = [8, 16], strides = [1, 1]} : vector<8x128xbf16> to vector<8x16xbf16>
    %cst_123 = arith.constant dense<0.000000e+00> : vector<8x8xf32>
    %933 = tpu.matmul %931, %932, %cst_123 {dimension_numbers = #tpu.dot_dimension_numbers<[1], [1], [0], [0], [0, 0, 1, 0], [], []>} : vector<8x16xbf16>, vector<8x16xbf16>, vector<8x8xf32> -> vector<8x8xf32>
    %934 = arith.addf %933, %930 : vector<8x8xf32>
    %cst_124 = arith.constant dense<0xFF800000> : vector<8xf32>
    %935 = vector.multi_reduction <maximumf>, %934, %cst_124 [1] : vector<8x8xf32> to vector<8xf32>
    %936 = vector.shape_cast %935 : vector<8xf32> to vector<8x1xf32>
    %937 = vector.broadcast %936 : vector<8x1xf32> to vector<8x8xf32>
    %938 = arith.subf %934, %937 : vector<8x8xf32>
    %939 = math.exp %938 : vector<8x8xf32>
    %cst_125 = arith.constant dense<0.000000e+00> : vector<8xf32>
    %940 = vector.multi_reduction <add>, %939, %cst_125 [1] : vector<8x8xf32> to vector<8xf32>
    %941 = vector.shape_cast %940 : vector<8xf32> to vector<8x1xf32>
    %942 = tpu.reciprocal %941 {approx = true} : vector<8x1xf32> -> vector<8x1xf32>
    %943 = vector.broadcast %942 : vector<8x1xf32> to vector<8x8xf32>
    %944 = arith.mulf %939, %943 : vector<8x8xf32>
    %945 = arith.mulf %944, %48 : vector<8x8xf32>
    %946 = arith.truncf %945 : vector<8x8xf32> to vector<8x8xbf16>
    %947 = vector.extract_strided_slice %780 {offsets = [0, 48], sizes = [8, 16], strides = [1, 1]} : vector<8x128xbf16> to vector<8x16xbf16>
    %cst_126 = arith.constant dense<0.000000e+00> : vector<8x16xf32>
    %948 = tpu.matmul %946, %947, %cst_126 {dimension_numbers = #tpu.dot_dimension_numbers<[1], [0], [0], [1], [0, 0, 1, 1], [], []>} : vector<8x8xbf16>, vector<8x16xbf16>, vector<8x16xf32> -> vector<8x16xf32>
    %c132 = arith.constant 132 : index
    %949 = memref.load %arg2[%c132] : memref<192xf32, #tpu.memory_space<smem>>
    %c140 = arith.constant 140 : index
    %950 = memref.load %arg2[%c140] : memref<192xf32, #tpu.memory_space<smem>>
    %951 = vector.broadcast %950 : f32 to vector<8x8xf32>
    %952 = vector.broadcast %949 : f32 to vector<8x8xf32>
    %953 = arith.select %52, %951, %952 : vector<8x8xi1>, vector<8x8xf32>
    %c148 = arith.constant 148 : index
    %954 = memref.load %arg2[%c148] : memref<192xf32, #tpu.memory_space<smem>>
    %955 = vector.broadcast %954 : f32 to vector<8x8xf32>
    %956 = arith.select %54, %955, %953 : vector<8x8xi1>, vector<8x8xf32>
    %c156 = arith.constant 156 : index
    %957 = memref.load %arg2[%c156] : memref<192xf32, #tpu.memory_space<smem>>
    %958 = vector.broadcast %957 : f32 to vector<8x8xf32>
    %959 = arith.select %56, %958, %956 : vector<8x8xi1>, vector<8x8xf32>
    %c164 = arith.constant 164 : index
    %960 = memref.load %arg2[%c164] : memref<192xf32, #tpu.memory_space<smem>>
    %961 = vector.broadcast %960 : f32 to vector<8x8xf32>
    %962 = arith.select %58, %961, %959 : vector<8x8xi1>, vector<8x8xf32>
    %c172 = arith.constant 172 : index
    %963 = memref.load %arg2[%c172] : memref<192xf32, #tpu.memory_space<smem>>
    %964 = vector.broadcast %963 : f32 to vector<8x8xf32>
    %965 = arith.select %60, %964, %962 : vector<8x8xi1>, vector<8x8xf32>
    %c180 = arith.constant 180 : index
    %966 = memref.load %arg2[%c180] : memref<192xf32, #tpu.memory_space<smem>>
    %967 = vector.broadcast %966 : f32 to vector<8x8xf32>
    %968 = arith.select %62, %967, %965 : vector<8x8xi1>, vector<8x8xf32>
    %c188 = arith.constant 188 : index
    %969 = memref.load %arg2[%c188] : memref<192xf32, #tpu.memory_space<smem>>
    %970 = vector.broadcast %969 : f32 to vector<8x8xf32>
    %971 = arith.select %64, %970, %968 : vector<8x8xi1>, vector<8x8xf32>
    %972 = arith.addf %19, %971 : vector<8x8xf32>
    %973 = vector.extract_strided_slice %778 {offsets = [0, 64], sizes = [8, 16], strides = [1, 1]} : vector<8x128xbf16> to vector<8x16xbf16>
    %974 = vector.extract_strided_slice %779 {offsets = [0, 64], sizes = [8, 16], strides = [1, 1]} : vector<8x128xbf16> to vector<8x16xbf16>
    %cst_127 = arith.constant dense<0.000000e+00> : vector<8x8xf32>
    %975 = tpu.matmul %973, %974, %cst_127 {dimension_numbers = #tpu.dot_dimension_numbers<[1], [1], [0], [0], [0, 0, 1, 0], [], []>} : vector<8x16xbf16>, vector<8x16xbf16>, vector<8x8xf32> -> vector<8x8xf32>
    %976 = arith.addf %975, %972 : vector<8x8xf32>
    %cst_128 = arith.constant dense<0xFF800000> : vector<8xf32>
    %977 = vector.multi_reduction <maximumf>, %976, %cst_128 [1] : vector<8x8xf32> to vector<8xf32>
    %978 = vector.shape_cast %977 : vector<8xf32> to vector<8x1xf32>
    %979 = vector.broadcast %978 : vector<8x1xf32> to vector<8x8xf32>
    %980 = arith.subf %976, %979 : vector<8x8xf32>
    %981 = math.exp %980 : vector<8x8xf32>
    %cst_129 = arith.constant dense<0.000000e+00> : vector<8xf32>
    %982 = vector.multi_reduction <add>, %981, %cst_129 [1] : vector<8x8xf32> to vector<8xf32>
    %983 = vector.shape_cast %982 : vector<8xf32> to vector<8x1xf32>
    %984 = tpu.reciprocal %983 {approx = true} : vector<8x1xf32> -> vector<8x1xf32>
    %985 = vector.broadcast %984 : vector<8x1xf32> to vector<8x8xf32>
    %986 = arith.mulf %981, %985 : vector<8x8xf32>
    %987 = arith.mulf %986, %48 : vector<8x8xf32>
    %988 = arith.truncf %987 : vector<8x8xf32> to vector<8x8xbf16>
    %989 = vector.extract_strided_slice %780 {offsets = [0, 64], sizes = [8, 16], strides = [1, 1]} : vector<8x128xbf16> to vector<8x16xbf16>
    %cst_130 = arith.constant dense<0.000000e+00> : vector<8x16xf32>
    %990 = tpu.matmul %988, %989, %cst_130 {dimension_numbers = #tpu.dot_dimension_numbers<[1], [0], [0], [1], [0, 0, 1, 1], [], []>} : vector<8x8xbf16>, vector<8x16xbf16>, vector<8x16xf32> -> vector<8x16xf32>
    %c133 = arith.constant 133 : index
    %991 = memref.load %arg2[%c133] : memref<192xf32, #tpu.memory_space<smem>>
    %c141 = arith.constant 141 : index
    %992 = memref.load %arg2[%c141] : memref<192xf32, #tpu.memory_space<smem>>
    %993 = vector.broadcast %992 : f32 to vector<8x8xf32>
    %994 = vector.broadcast %991 : f32 to vector<8x8xf32>
    %995 = arith.select %52, %993, %994 : vector<8x8xi1>, vector<8x8xf32>
    %c149 = arith.constant 149 : index
    %996 = memref.load %arg2[%c149] : memref<192xf32, #tpu.memory_space<smem>>
    %997 = vector.broadcast %996 : f32 to vector<8x8xf32>
    %998 = arith.select %54, %997, %995 : vector<8x8xi1>, vector<8x8xf32>
    %c157 = arith.constant 157 : index
    %999 = memref.load %arg2[%c157] : memref<192xf32, #tpu.memory_space<smem>>
    %1000 = vector.broadcast %999 : f32 to vector<8x8xf32>
    %1001 = arith.select %56, %1000, %998 : vector<8x8xi1>, vector<8x8xf32>
    %c165 = arith.constant 165 : index
    %1002 = memref.load %arg2[%c165] : memref<192xf32, #tpu.memory_space<smem>>
    %1003 = vector.broadcast %1002 : f32 to vector<8x8xf32>
    %1004 = arith.select %58, %1003, %1001 : vector<8x8xi1>, vector<8x8xf32>
    %c173 = arith.constant 173 : index
    %1005 = memref.load %arg2[%c173] : memref<192xf32, #tpu.memory_space<smem>>
    %1006 = vector.broadcast %1005 : f32 to vector<8x8xf32>
    %1007 = arith.select %60, %1006, %1004 : vector<8x8xi1>, vector<8x8xf32>
    %c181 = arith.constant 181 : index
    %1008 = memref.load %arg2[%c181] : memref<192xf32, #tpu.memory_space<smem>>
    %1009 = vector.broadcast %1008 : f32 to vector<8x8xf32>
    %1010 = arith.select %62, %1009, %1007 : vector<8x8xi1>, vector<8x8xf32>
    %c189 = arith.constant 189 : index
    %1011 = memref.load %arg2[%c189] : memref<192xf32, #tpu.memory_space<smem>>
    %1012 = vector.broadcast %1011 : f32 to vector<8x8xf32>
    %1013 = arith.select %64, %1012, %1010 : vector<8x8xi1>, vector<8x8xf32>
    %1014 = arith.addf %19, %1013 : vector<8x8xf32>
    %1015 = vector.extract_strided_slice %778 {offsets = [0, 80], sizes = [8, 16], strides = [1, 1]} : vector<8x128xbf16> to vector<8x16xbf16>
    %1016 = vector.extract_strided_slice %779 {offsets = [0, 80], sizes = [8, 16], strides = [1, 1]} : vector<8x128xbf16> to vector<8x16xbf16>
    %cst_131 = arith.constant dense<0.000000e+00> : vector<8x8xf32>
    %1017 = tpu.matmul %1015, %1016, %cst_131 {dimension_numbers = #tpu.dot_dimension_numbers<[1], [1], [0], [0], [0, 0, 1, 0], [], []>} : vector<8x16xbf16>, vector<8x16xbf16>, vector<8x8xf32> -> vector<8x8xf32>
    %1018 = arith.addf %1017, %1014 : vector<8x8xf32>
    %cst_132 = arith.constant dense<0xFF800000> : vector<8xf32>
    %1019 = vector.multi_reduction <maximumf>, %1018, %cst_132 [1] : vector<8x8xf32> to vector<8xf32>
    %1020 = vector.shape_cast %1019 : vector<8xf32> to vector<8x1xf32>
    %1021 = vector.broadcast %1020 : vector<8x1xf32> to vector<8x8xf32>
    %1022 = arith.subf %1018, %1021 : vector<8x8xf32>
    %1023 = math.exp %1022 : vector<8x8xf32>
    %cst_133 = arith.constant dense<0.000000e+00> : vector<8xf32>
    %1024 = vector.multi_reduction <add>, %1023, %cst_133 [1] : vector<8x8xf32> to vector<8xf32>
    %1025 = vector.shape_cast %1024 : vector<8xf32> to vector<8x1xf32>
    %1026 = tpu.reciprocal %1025 {approx = true} : vector<8x1xf32> -> vector<8x1xf32>
    %1027 = vector.broadcast %1026 : vector<8x1xf32> to vector<8x8xf32>
    %1028 = arith.mulf %1023, %1027 : vector<8x8xf32>
    %1029 = arith.mulf %1028, %48 : vector<8x8xf32>
    %1030 = arith.truncf %1029 : vector<8x8xf32> to vector<8x8xbf16>
    %1031 = vector.extract_strided_slice %780 {offsets = [0, 80], sizes = [8, 16], strides = [1, 1]} : vector<8x128xbf16> to vector<8x16xbf16>
    %cst_134 = arith.constant dense<0.000000e+00> : vector<8x16xf32>
    %1032 = tpu.matmul %1030, %1031, %cst_134 {dimension_numbers = #tpu.dot_dimension_numbers<[1], [0], [0], [1], [0, 0, 1, 1], [], []>} : vector<8x8xbf16>, vector<8x16xbf16>, vector<8x16xf32> -> vector<8x16xf32>
    %c134 = arith.constant 134 : index
    %1033 = memref.load %arg2[%c134] : memref<192xf32, #tpu.memory_space<smem>>
    %c142 = arith.constant 142 : index
    %1034 = memref.load %arg2[%c142] : memref<192xf32, #tpu.memory_space<smem>>
    %1035 = vector.broadcast %1034 : f32 to vector<8x8xf32>
    %1036 = vector.broadcast %1033 : f32 to vector<8x8xf32>
    %1037 = arith.select %52, %1035, %1036 : vector<8x8xi1>, vector<8x8xf32>
    %c150 = arith.constant 150 : index
    %1038 = memref.load %arg2[%c150] : memref<192xf32, #tpu.memory_space<smem>>
    %1039 = vector.broadcast %1038 : f32 to vector<8x8xf32>
    %1040 = arith.select %54, %1039, %1037 : vector<8x8xi1>, vector<8x8xf32>
    %c158 = arith.constant 158 : index
    %1041 = memref.load %arg2[%c158] : memref<192xf32, #tpu.memory_space<smem>>
    %1042 = vector.broadcast %1041 : f32 to vector<8x8xf32>
    %1043 = arith.select %56, %1042, %1040 : vector<8x8xi1>, vector<8x8xf32>
    %c166 = arith.constant 166 : index
    %1044 = memref.load %arg2[%c166] : memref<192xf32, #tpu.memory_space<smem>>
    %1045 = vector.broadcast %1044 : f32 to vector<8x8xf32>
    %1046 = arith.select %58, %1045, %1043 : vector<8x8xi1>, vector<8x8xf32>
    %c174 = arith.constant 174 : index
    %1047 = memref.load %arg2[%c174] : memref<192xf32, #tpu.memory_space<smem>>
    %1048 = vector.broadcast %1047 : f32 to vector<8x8xf32>
    %1049 = arith.select %60, %1048, %1046 : vector<8x8xi1>, vector<8x8xf32>
    %c182 = arith.constant 182 : index
    %1050 = memref.load %arg2[%c182] : memref<192xf32, #tpu.memory_space<smem>>
    %1051 = vector.broadcast %1050 : f32 to vector<8x8xf32>
    %1052 = arith.select %62, %1051, %1049 : vector<8x8xi1>, vector<8x8xf32>
    %c190 = arith.constant 190 : index
    %1053 = memref.load %arg2[%c190] : memref<192xf32, #tpu.memory_space<smem>>
    %1054 = vector.broadcast %1053 : f32 to vector<8x8xf32>
    %1055 = arith.select %64, %1054, %1052 : vector<8x8xi1>, vector<8x8xf32>
    %1056 = arith.addf %19, %1055 : vector<8x8xf32>
    %1057 = vector.extract_strided_slice %778 {offsets = [0, 96], sizes = [8, 16], strides = [1, 1]} : vector<8x128xbf16> to vector<8x16xbf16>
    %1058 = vector.extract_strided_slice %779 {offsets = [0, 96], sizes = [8, 16], strides = [1, 1]} : vector<8x128xbf16> to vector<8x16xbf16>
    %cst_135 = arith.constant dense<0.000000e+00> : vector<8x8xf32>
    %1059 = tpu.matmul %1057, %1058, %cst_135 {dimension_numbers = #tpu.dot_dimension_numbers<[1], [1], [0], [0], [0, 0, 1, 0], [], []>} : vector<8x16xbf16>, vector<8x16xbf16>, vector<8x8xf32> -> vector<8x8xf32>
    %1060 = arith.addf %1059, %1056 : vector<8x8xf32>
    %cst_136 = arith.constant dense<0xFF800000> : vector<8xf32>
    %1061 = vector.multi_reduction <maximumf>, %1060, %cst_136 [1] : vector<8x8xf32> to vector<8xf32>
    %1062 = vector.shape_cast %1061 : vector<8xf32> to vector<8x1xf32>
    %1063 = vector.broadcast %1062 : vector<8x1xf32> to vector<8x8xf32>
    %1064 = arith.subf %1060, %1063 : vector<8x8xf32>
    %1065 = math.exp %1064 : vector<8x8xf32>
    %cst_137 = arith.constant dense<0.000000e+00> : vector<8xf32>
    %1066 = vector.multi_reduction <add>, %1065, %cst_137 [1] : vector<8x8xf32> to vector<8xf32>
    %1067 = vector.shape_cast %1066 : vector<8xf32> to vector<8x1xf32>
    %1068 = tpu.reciprocal %1067 {approx = true} : vector<8x1xf32> -> vector<8x1xf32>
    %1069 = vector.broadcast %1068 : vector<8x1xf32> to vector<8x8xf32>
    %1070 = arith.mulf %1065, %1069 : vector<8x8xf32>
    %1071 = arith.mulf %1070, %48 : vector<8x8xf32>
    %1072 = arith.truncf %1071 : vector<8x8xf32> to vector<8x8xbf16>
    %1073 = vector.extract_strided_slice %780 {offsets = [0, 96], sizes = [8, 16], strides = [1, 1]} : vector<8x128xbf16> to vector<8x16xbf16>
    %cst_138 = arith.constant dense<0.000000e+00> : vector<8x16xf32>
    %1074 = tpu.matmul %1072, %1073, %cst_138 {dimension_numbers = #tpu.dot_dimension_numbers<[1], [0], [0], [1], [0, 0, 1, 1], [], []>} : vector<8x8xbf16>, vector<8x16xbf16>, vector<8x16xf32> -> vector<8x16xf32>
    %c135 = arith.constant 135 : index
    %1075 = memref.load %arg2[%c135] : memref<192xf32, #tpu.memory_space<smem>>
    %c143 = arith.constant 143 : index
    %1076 = memref.load %arg2[%c143] : memref<192xf32, #tpu.memory_space<smem>>
    %1077 = vector.broadcast %1076 : f32 to vector<8x8xf32>
    %1078 = vector.broadcast %1075 : f32 to vector<8x8xf32>
    %1079 = arith.select %52, %1077, %1078 : vector<8x8xi1>, vector<8x8xf32>
    %c151 = arith.constant 151 : index
    %1080 = memref.load %arg2[%c151] : memref<192xf32, #tpu.memory_space<smem>>
    %1081 = vector.broadcast %1080 : f32 to vector<8x8xf32>
    %1082 = arith.select %54, %1081, %1079 : vector<8x8xi1>, vector<8x8xf32>
    %c159 = arith.constant 159 : index
    %1083 = memref.load %arg2[%c159] : memref<192xf32, #tpu.memory_space<smem>>
    %1084 = vector.broadcast %1083 : f32 to vector<8x8xf32>
    %1085 = arith.select %56, %1084, %1082 : vector<8x8xi1>, vector<8x8xf32>
    %c167 = arith.constant 167 : index
    %1086 = memref.load %arg2[%c167] : memref<192xf32, #tpu.memory_space<smem>>
    %1087 = vector.broadcast %1086 : f32 to vector<8x8xf32>
    %1088 = arith.select %58, %1087, %1085 : vector<8x8xi1>, vector<8x8xf32>
    %c175 = arith.constant 175 : index
    %1089 = memref.load %arg2[%c175] : memref<192xf32, #tpu.memory_space<smem>>
    %1090 = vector.broadcast %1089 : f32 to vector<8x8xf32>
    %1091 = arith.select %60, %1090, %1088 : vector<8x8xi1>, vector<8x8xf32>
    %c183 = arith.constant 183 : index
    %1092 = memref.load %arg2[%c183] : memref<192xf32, #tpu.memory_space<smem>>
    %1093 = vector.broadcast %1092 : f32 to vector<8x8xf32>
    %1094 = arith.select %62, %1093, %1091 : vector<8x8xi1>, vector<8x8xf32>
    %c191 = arith.constant 191 : index
    %1095 = memref.load %arg2[%c191] : memref<192xf32, #tpu.memory_space<smem>>
    %1096 = vector.broadcast %1095 : f32 to vector<8x8xf32>
    %1097 = arith.select %64, %1096, %1094 : vector<8x8xi1>, vector<8x8xf32>
    %1098 = arith.addf %19, %1097 : vector<8x8xf32>
    %1099 = vector.extract_strided_slice %778 {offsets = [0, 112], sizes = [8, 16], strides = [1, 1]} : vector<8x128xbf16> to vector<8x16xbf16>
    %1100 = vector.extract_strided_slice %779 {offsets = [0, 112], sizes = [8, 16], strides = [1, 1]} : vector<8x128xbf16> to vector<8x16xbf16>
    %cst_139 = arith.constant dense<0.000000e+00> : vector<8x8xf32>
    %1101 = tpu.matmul %1099, %1100, %cst_139 {dimension_numbers = #tpu.dot_dimension_numbers<[1], [1], [0], [0], [0, 0, 1, 0], [], []>} : vector<8x16xbf16>, vector<8x16xbf16>, vector<8x8xf32> -> vector<8x8xf32>
    %1102 = arith.addf %1101, %1098 : vector<8x8xf32>
    %cst_140 = arith.constant dense<0xFF800000> : vector<8xf32>
    %1103 = vector.multi_reduction <maximumf>, %1102, %cst_140 [1] : vector<8x8xf32> to vector<8xf32>
    %1104 = vector.shape_cast %1103 : vector<8xf32> to vector<8x1xf32>
    %1105 = vector.broadcast %1104 : vector<8x1xf32> to vector<8x8xf32>
    %1106 = arith.subf %1102, %1105 : vector<8x8xf32>
    %1107 = math.exp %1106 : vector<8x8xf32>
    %cst_141 = arith.constant dense<0.000000e+00> : vector<8xf32>
    %1108 = vector.multi_reduction <add>, %1107, %cst_141 [1] : vector<8x8xf32> to vector<8xf32>
    %1109 = vector.shape_cast %1108 : vector<8xf32> to vector<8x1xf32>
    %1110 = tpu.reciprocal %1109 {approx = true} : vector<8x1xf32> -> vector<8x1xf32>
    %1111 = vector.broadcast %1110 : vector<8x1xf32> to vector<8x8xf32>
    %1112 = arith.mulf %1107, %1111 : vector<8x8xf32>
    %1113 = arith.mulf %1112, %48 : vector<8x8xf32>
    %1114 = arith.truncf %1113 : vector<8x8xf32> to vector<8x8xbf16>
    %1115 = vector.extract_strided_slice %780 {offsets = [0, 112], sizes = [8, 16], strides = [1, 1]} : vector<8x128xbf16> to vector<8x16xbf16>
    %cst_142 = arith.constant dense<0.000000e+00> : vector<8x16xf32>
    %1116 = tpu.matmul %1114, %1115, %cst_142 {dimension_numbers = #tpu.dot_dimension_numbers<[1], [0], [0], [1], [0, 0, 1, 1], [], []>} : vector<8x8xbf16>, vector<8x16xbf16>, vector<8x16xf32> -> vector<8x16xf32>
    %1117 = tpu.concatenate %822, %864, %906, %948, %990, %1032, %1074, %1116 in 1 : vector<8x16xf32>, vector<8x16xf32>, vector<8x16xf32>, vector<8x16xf32>, vector<8x16xf32>, vector<8x16xf32>, vector<8x16xf32>, vector<8x16xf32> -> vector<8x128xf32>
    %1118 = arith.truncf %1117 : vector<8x128xf32> to vector<8x128xbf16>
    %c2_143 = arith.constant 2 : index
    %c0_144 = arith.constant 0 : index
    %c0_145 = arith.constant 0 : index
    %1119 = vector.load %arg11[%c2_143, %c0_144, %c0_145] : memref<3x128x128xbf16, #tpu.memory_space<vmem>>, vector<1x128x128xbf16>
    %1120 = vector.shape_cast %1119 : vector<1x128x128xbf16> to vector<128x128xbf16>
    %cst_146 = arith.constant dense<0.000000e+00> : vector<8x128xf32>
    %1121 = tpu.matmul %1118, %1120, %cst_146 {dimension_numbers = #tpu.dot_dimension_numbers<[1], [0], [0], [1], [0, 0, 1, 1], [], []>} : vector<8x128xbf16>, vector<128x128xbf16>, vector<8x128xf32> -> vector<8x128xf32>
    %1122 = arith.addf %772, %1121 : vector<8x128xf32>
    %cst_147 = arith.constant 0.000000e+00 : f32
    %1123 = vector.broadcast %cst_147 : f32 to vector<8x128xf32>
    %1124 = arith.maximumf %1122, %1123 : vector<8x128xf32>
    %1125 = vector.broadcast %24 : vector<8x1xf32> to vector<8x200xf32>
    %1126 = arith.mulf %32, %1125 : vector<8x200xf32>
    %1127 = arith.truncf %1126 : vector<8x200xf32> to vector<8x200xbf16>
    %1128 = vector.broadcast %24 : vector<8x1xf32> to vector<8x128xf32>
    %1129 = arith.mulf %1124, %1128 : vector<8x128xf32>
    %1130 = arith.truncf %1129 : vector<8x128xf32> to vector<8x128xbf16>
    %c0_148 = arith.constant 0 : index
    %c0_149 = arith.constant 0 : index
    %1131 = vector.load %arg12[%c0_148, %c0_149] : memref<200x100xbf16, #tpu.memory_space<vmem>>, vector<200x100xbf16>
    %cst_150 = arith.constant dense<0.000000e+00> : vector<8x100xf32>
    %1132 = tpu.matmul %1127, %1131, %cst_150 {dimension_numbers = #tpu.dot_dimension_numbers<[1], [0], [0], [1], [0, 0, 1, 1], [], []>} : vector<8x200xbf16>, vector<200x100xbf16>, vector<8x100xf32> -> vector<8x100xf32>
    %c0_151 = arith.constant 0 : index
    %c0_152 = arith.constant 0 : index
    %1133 = vector.load %arg13[%c0_151, %c0_152] : memref<128x100xbf16, #tpu.memory_space<vmem>>, vector<128x100xbf16>
    %cst_153 = arith.constant dense<0.000000e+00> : vector<8x100xf32>
    %1134 = tpu.matmul %1130, %1133, %cst_153 {dimension_numbers = #tpu.dot_dimension_numbers<[1], [0], [0], [1], [0, 0, 1, 1], [], []>} : vector<8x128xbf16>, vector<128x100xbf16>, vector<8x100xf32> -> vector<8x100xf32>
    %1135 = arith.addf %1132, %1134 : vector<8x100xf32>
    %c0_154 = arith.constant 0 : index
    %c0_155 = arith.constant 0 : index
    %1136 = vector.load %arg14[%c0_154, %c0_155] : memref<1x100xf32, #tpu.memory_space<vmem>>, vector<1x100xf32>
    %1137 = vector.broadcast %1136 : vector<1x100xf32> to vector<8x100xf32>
    %1138 = arith.addf %1135, %1137 : vector<8x100xf32>
    %cst_156 = arith.constant 0.000000e+00 : f32
    %1139 = vector.broadcast %cst_156 : f32 to vector<8x100xf32>
    %1140 = arith.maximumf %1138, %1139 : vector<8x100xf32>
    %1141 = arith.truncf %1140 : vector<8x100xf32> to vector<8x100xbf16>
    %c0_157 = arith.constant 0 : index
    %c0_158 = arith.constant 0 : index
    %1142 = vector.load %arg15[%c0_157, %c0_158] : memref<100x6xbf16, #tpu.memory_space<vmem>>, vector<100x6xbf16>
    %cst_159 = arith.constant dense<0.000000e+00> : vector<8x6xf32>
    %1143 = tpu.matmul %1141, %1142, %cst_159 {dimension_numbers = #tpu.dot_dimension_numbers<[1], [0], [0], [1], [0, 0, 1, 1], [], []>} : vector<8x100xbf16>, vector<100x6xbf16>, vector<8x6xf32> -> vector<8x6xf32>
    %c0_160 = arith.constant 0 : index
    %c0_161 = arith.constant 0 : index
    %1144 = vector.load %arg16[%c0_160, %c0_161] : memref<1x6xf32, #tpu.memory_space<vmem>>, vector<1x6xf32>
    %1145 = vector.broadcast %1144 : vector<1x6xf32> to vector<8x6xf32>
    %1146 = arith.addf %1143, %1145 : vector<8x6xf32>
    %cst_162 = arith.constant dense<0xFF800000> : vector<8xf32>
    %1147 = vector.multi_reduction <maximumf>, %1146, %cst_162 [1] : vector<8x6xf32> to vector<8xf32>
    %1148 = vector.shape_cast %1147 : vector<8xf32> to vector<8x1xf32>
    %1149 = vector.broadcast %1148 : vector<8x1xf32> to vector<8x6xf32>
    %1150 = arith.subf %1146, %1149 : vector<8x6xf32>
    %1151 = math.exp %1150 : vector<8x6xf32>
    %cst_163 = arith.constant dense<0.000000e+00> : vector<8xf32>
    %1152 = vector.multi_reduction <add>, %1151, %cst_163 [1] : vector<8x6xf32> to vector<8xf32>
    %1153 = vector.shape_cast %1152 : vector<8xf32> to vector<8x1xf32>
    %1154 = math.log %1153 : vector<8x1xf32>
    %1155 = arith.addf %1148, %1154 : vector<8x1xf32>
    %1156 = vector.broadcast %1155 : vector<8x1xf32> to vector<8x6xf32>
    %1157 = arith.subf %1146, %1156 : vector<8x6xf32>
    %c0_164 = arith.constant 0 : index
    %c0_165 = arith.constant 0 : index
    %c0_166 = arith.constant 0 : index
    %1158 = vector.load %arg17[%c0_164, %c0_165, %c0_166] : memref<1x8x6xf32, #tpu.memory_space<vmem>>, vector<1x8x6xf32>
    %1159 = vector.shape_cast %1158 : vector<1x8x6xf32> to vector<8x6xf32>
    %1160 = vector.shape_cast %1157 : vector<8x6xf32> to vector<1x8x6xf32>
    tpu.vector_store %arg17[%c0_164, %c0_165, %c0_166], %1160 {strides = array<i32>} : memref<1x8x6xf32, #tpu.memory_space<vmem>>, vector<1x8x6xf32>,
    return
  }
  func.func @transform_0(%arg0: i32) -> i32 {
    %c0_i32 = arith.constant 0 : i32
    %c0_i32_0 = arith.constant 0 : i32
    return %c0_i32 : i32
  }
  func.func @transform_1(%arg0: i32) -> i32 {
    %c0_i32 = arith.constant 0 : i32
    %c0_i32_0 = arith.constant 0 : i32
    return %c0_i32 : i32
  }
  func.func @transform_2(%arg0: i32) -> (i32, i32, i32) {
    %c0_i32 = arith.constant 0 : i32
    %c0_i32_0 = arith.constant 0 : i32
    %c0_i32_1 = arith.constant 0 : i32
    return %arg0, %c0_i32, %c0_i32_0 : i32, i32, i32
  }
  func.func @transform_3(%arg0: i32) -> (i32, i32, i32) {
    %c0_i32 = arith.constant 0 : i32
    %c0_i32_0 = arith.constant 0 : i32
    %c0_i32_1 = arith.constant 0 : i32
    return %arg0, %c0_i32, %c0_i32_0 : i32, i32, i32
  }
  func.func @transform_4(%arg0: i32) -> (i32, i32) {
    %c0_i32 = arith.constant 0 : i32
    %c0_i32_0 = arith.constant 0 : i32
    %c0_i32_1 = arith.constant 0 : i32
    return %c0_i32, %c0_i32_0 : i32, i32
  }
  func.func @transform_5(%arg0: i32) -> (i32, i32) {
    %c0_i32 = arith.constant 0 : i32
    %c0_i32_0 = arith.constant 0 : i32
    %c0_i32_1 = arith.constant 0 : i32
    return %c0_i32, %c0_i32_0 : i32, i32
  }
  func.func @transform_6(%arg0: i32) -> (i32, i32) {
    %c0_i32 = arith.constant 0 : i32
    %c0_i32_0 = arith.constant 0 : i32
    %c0_i32_1 = arith.constant 0 : i32
    return %c0_i32, %c0_i32_0 : i32, i32
  }
  func.func @transform_7(%arg0: i32) -> (i32, i32) {
    %c0_i32 = arith.constant 0 : i32
    %c0_i32_0 = arith.constant 0 : i32
    %c0_i32_1 = arith.constant 0 : i32
    return %c0_i32, %c0_i32_0 : i32, i32
  }
  func.func @transform_8(%arg0: i32) -> (i32, i32) {
    %c0_i32 = arith.constant 0 : i32
    %c0_i32_0 = arith.constant 0 : i32
    %c0_i32_1 = arith.constant 0 : i32
    return %c0_i32, %c0_i32_0 : i32, i32
  }
  func.func @transform_9(%arg0: i32) -> (i32, i32, i32) {
    %c0_i32 = arith.constant 0 : i32
    %c0_i32_0 = arith.constant 0 : i32
    %c0_i32_1 = arith.constant 0 : i32
    %c0_i32_2 = arith.constant 0 : i32
    return %c0_i32, %c0_i32_0, %c0_i32_1 : i32, i32, i32
  }
  func.func @transform_10(%arg0: i32) -> (i32, i32, i32) {
    %c0_i32 = arith.constant 0 : i32
    %c0_i32_0 = arith.constant 0 : i32
    %c0_i32_1 = arith.constant 0 : i32
    %c0_i32_2 = arith.constant 0 : i32
    return %c0_i32, %c0_i32_0, %c0_i32_1 : i32, i32, i32
  }
  func.func @transform_11(%arg0: i32) -> (i32, i32) {
    %c0_i32 = arith.constant 0 : i32
    %c0_i32_0 = arith.constant 0 : i32
    %c0_i32_1 = arith.constant 0 : i32
    return %c0_i32, %c0_i32_0 : i32, i32
  }
  func.func @transform_12(%arg0: i32) -> (i32, i32) {
    %c0_i32 = arith.constant 0 : i32
    %c0_i32_0 = arith.constant 0 : i32
    %c0_i32_1 = arith.constant 0 : i32
    return %c0_i32, %c0_i32_0 : i32, i32
  }
  func.func @transform_13(%arg0: i32) -> (i32, i32) {
    %c0_i32 = arith.constant 0 : i32
    %c0_i32_0 = arith.constant 0 : i32
    %c0_i32_1 = arith.constant 0 : i32
    return %c0_i32, %c0_i32_0 : i32, i32
  }
  func.func @transform_14(%arg0: i32) -> (i32, i32) {
    %c0_i32 = arith.constant 0 : i32
    %c0_i32_0 = arith.constant 0 : i32
    %c0_i32_1 = arith.constant 0 : i32
    return %c0_i32, %c0_i32_0 : i32, i32
  }
  func.func @transform_15(%arg0: i32) -> (i32, i32) {
    %c0_i32 = arith.constant 0 : i32
    %c0_i32_0 = arith.constant 0 : i32
    %c0_i32_1 = arith.constant 0 : i32
    return %c0_i32, %c0_i32_0 : i32, i32
  }
  func.func @transform_16(%arg0: i32) -> (i32, i32, i32) {
    %c0_i32 = arith.constant 0 : i32
    %c0_i32_0 = arith.constant 0 : i32
    %c0_i32_1 = arith.constant 0 : i32
    return %arg0, %c0_i32, %c0_i32_0 : i32, i32, i32
  }
}

</mosaic_0001>

<llo_original>
// kernel: tpu_custom_call.1
$region0: #{tpu_custom_call.1}
  #allocation0 [shape = 'u32[]', space=smem, size = 0x4, offset = 0x4, fixed_abs, tag = 'smem constant byte address 0x4 - core index']
  #allocation1 [shape = 'u32[144,128]{1,0:T(1,128)}', space=vmem, size = 0x12000, scoped, tag = 'internal scratch']
  %s0 = inlined_call_operand.hbm [shape: s32[2], index: 0, kind: input, shape index: {}]
  %s1 = inlined_call_operand.vmem [shape: f32[192], index: 1, kind: input, shape index: {}]
  %s2 = inlined_call_operand.hbm [shape: bf16[2,8,100], index: 2, kind: input, shape index: {}]
  %s3 = inlined_call_operand.hbm [shape: s32[2,8,8], index: 3, kind: input, shape index: {}]
  %s4 = inlined_call_operand.vmem [shape: bf16[100,200], index: 4, kind: input, shape index: {}]
  %s5 = inlined_call_operand.hbm [shape: f32[1,200], index: 5, kind: input, shape index: {}]
  %s6 = inlined_call_operand.vmem [shape: bf16[200,200], index: 6, kind: input, shape index: {}]
  %s7 = inlined_call_operand.hbm [shape: bf16[200,128], index: 7, kind: input, shape index: {}]
  %s8 = inlined_call_operand.vmem [shape: f32[8,128], index: 8, kind: input, shape index: {}]
  %s9 = inlined_call_operand.hbm [shape: bf16[3,128,384], index: 9, kind: input, shape index: {}]
  %s10 = inlined_call_operand.vmem [shape: bf16[3,128,128], index: 10, kind: input, shape index: {}]
  %s11 = inlined_call_operand.hbm [shape: bf16[200,100], index: 11, kind: input, shape index: {}]
  %s12 = inlined_call_operand.vmem [shape: bf16[128,100], index: 12, kind: input, shape index: {}]
  %s13 = inlined_call_operand.vmem [shape: f32[1,100], index: 13, kind: input, shape index: {}]
  %s14 = inlined_call_operand.vmem [shape: bf16[100,6], index: 14, kind: input, shape index: {}]
  %s15 = inlined_call_operand.vmem [shape: f32[1,6], index: 15, kind: input, shape index: {}]
  %s16 = inlined_call_operand.vmem [shape: f32[2,8,6], index: 16, kind: output, shape index: {}]
  %s17 = sld [smem:[#allocation0]]
  $region129: #{tpu_custom_call.1} parent=0
    _
  %s19 = ssub.s32 1, %s17
  %s20 = scalar_select 0, %s19, %s17
  $region1: #{tpu_custom_call.1} parent=0
    #allocation2 [shape = 'u8[512]{0}', space=smem, size = 0x200, scoped, tag = 'input window, operand 0, single buffered']
    #allocation3 [shape = 's32[2]{0}', space=sflag, size = 0x8, scoped, tag = 'scoped memory for tpu_custom_call.1']
    #allocation4 [shape = 's32[2]{0}', space=sflag, size = 0x8, scoped, tag = 'scoped memory for tpu_custom_call.1']
    #allocation5 [shape = 's32[2]{0}', space=sflag, size = 0x8, scoped, tag = 'scoped memory for tpu_custom_call.1']
    #allocation6 [shape = 'u8[1024]{0}', space=smem, size = 0x400, scoped, tag = 'input window, operand 1, single buffered']
    #allocation7 [shape = 'u8[4096]{0}', space=vmem, size = 0x1000, scoped, tag = 'input window, operand 2']
    #allocation8 [shape = 'u8[8192]{0}', space=vmem, size = 0x2000, scoped, tag = 'input window, operand 3']
    #allocation9 [shape = 's32[2]{0}', space=sflag, size = 0x8, scoped, tag = 'scoped memory for tpu_custom_call.1']
    #allocation10 [shape = 'u8[1024]{0}', space=vmem, size = 0x400, scoped, tag = 'input window, operand 5, single buffered']
    #allocation11 [shape = 'u8[51200]{0}', space=vmem, size = 0xc800, scoped, tag = 'input window, operand 7, single buffered']
    #allocation12 [shape = 's32[1]{0}', space=sflag, size = 0x4, scoped, tag = 'scoped memory for tpu_custom_call.1']
    #allocation13 [shape = 'u8[294912]{0}', space=vmem, size = 0x48000, scoped, tag = 'input window, operand 9, single buffered']
    #allocation14 [shape = 'u8[51200]{0}', space=vmem, size = 0xc800, scoped, tag = 'input window, operand 11, single buffered']
    #allocation15 [shape = 's32[1]{0}', space=sflag, size = 0x4, scoped, tag = 'scoped memory for tpu_custom_call.1']
    %21 = vsyncpa [#allocation4], 0
    %22 = vsyncpa [#allocation5], 0
    %23 = vsyncpa [#allocation3], 0
    %s24 = scalar_lea.sflag [#allocation3], 1
    %25 = vsyncpa %s24, 0
    %26 = vsyncpa [#allocation9], 0
    %s27 = scalar_lea.sflag [#allocation9], 1
    %28 = vsyncpa %s27, 0
    %29 = vsyncpa [#allocation12], 0
    %30 = vsyncpa [#allocation15], 0
    loop: start=0, step=1, limit=4
    $region2: #{tpu_custom_call.1} parent=1 // loop_pre_header
      _
    $region3: #{tpu_custom_call.1} parent=1 // loop_header
      %s32 = sphi 0, %s36
      %p33 = scmp.ge.s32.totalorder %s32, 4
      %s40 = sphi 0, %s40
      %s42 = sphi 0, %s40
      %s43 = sphi 0, %s42
      %s57 = sphi 0, %s43
      %s61 = sphi 0, %s61
      %s63 = sphi 0, %s61
      %s64 = sphi 0, %s63
      %s78 = sphi 0, %s64
      %s84 = sphi 0, %s86
      %s87 = sphi 0, %s84
      %s88 = sphi 0, %s87
      %s104 = sphi 0, %s88
      %s110 = sphi 0, %s112
      %s113 = sphi 0, %s110
      %s114 = sphi 0, %s113
      %s130 = sphi 0, %s114
      %s134 = sphi 0, %s134
      %s136 = sphi 0, %s134
      %s137 = sphi 0, %s136
      %s151 = sphi 0, %s137
      %s155 = sphi 0, %s155
      %s157 = sphi 0, %s155
      %s158 = sphi 0, %s157
      %s172 = sphi 0, %s158
      %s176 = sphi 0, %s176
      %s178 = sphi 0, %s176
      %s179 = sphi 0, %s178
      %s193 = sphi 0, %s179
      %s197 = sphi 0, %s197
      %s199 = sphi 0, %s197
      %s200 = sphi 0, %s199
      %s214 = sphi 0, %s200
      %s218 = sphi 0, %s218
      %s220 = sphi 0, %s218
      %s221 = sphi 0, %s220
      %s235 = sphi 0, %s221
      %s239 = sphi 0, %s239
      %s241 = sphi 0, %s239
      %s242 = sphi 0, %s241
      %s256 = sphi 0, %s242
      %s260 = sphi 0, %s260
      %s262 = sphi 0, %s260
      %s263 = sphi 0, %s262
      %s277 = sphi 0, %s263
      %s281 = sphi 0, %s281
      %s283 = sphi 0, %s281
      %s284 = sphi 0, %s283
      %s298 = sphi 0, %s284
      %s302 = sphi 0, %s302
      %s304 = sphi 0, %s302
      %s305 = sphi 0, %s304
      %s319 = sphi 0, %s305
      %s323 = sphi 0, %s323
      %s325 = sphi 0, %s323
      %s326 = sphi 0, %s325
      %s340 = sphi 0, %s326
      %s344 = sphi 0, %s344
      %s346 = sphi 0, %s344
      %s347 = sphi 0, %s346
      %s361 = sphi 0, %s347
      %s365 = sphi 0, %s365
      %s367 = sphi 0, %s365
      %s368 = sphi 0, %s367
      %s382 = sphi 0, %s368
      %s388 = sphi 0, %s390
      %s391 = sphi 0, %s388
      %s392 = sphi 0, %s391
      %s408 = sphi 0, %s392
    $region4: #{tpu_custom_call.1} parent=1 // loop_header_branch
      %35 = sbr.rel (%p33) target = $region8
    $region5: #{tpu_custom_call.1} parent=1 // loop_body
      %s37 = ssub.s32 %s32, 1
      %s38 = ssub.s32 %s32, 2
      %s39 = sadd.s32 %s32, 1
      %s41 = sadd.s32 %s40, 1
      %p44 = scmp.eq.s32.totalorder %s32, 1
      %p45 = scmp.ne.s32.totalorder %s40, %s42
      %p46 = scmp.eq.s32.totalorder %s32, 0
      %p47 = por %p45, %p46
      %p48 = scmp.ne.s32.totalorder %s40, %s42
      %p49 = scmp.eq.s32.totalorder %s37, 1
      %p50 = por %p48, %p49
      %p51 = scmp.ne.s32.totalorder %s42, %s43
      %p52 = scmp.eq.s32.totalorder %s37, 0
      %p53 = por %p51, %p52
      %p54 = scmp.ne.s32.totalorder %s42, %s43
      %p55 = scmp.eq.s32.totalorder %s38, 1
      %p56 = por %p54, %p55
      %p58 = scmp.ne.s32.totalorder %s43, %s57
      %p59 = scmp.eq.s32.totalorder %s38, 0
      %p60 = por %p58, %p59
      %s62 = sadd.s32 %s61, 1
      %p65 = scmp.eq.s32.totalorder %s32, 1
      %p66 = scmp.ne.s32.totalorder %s61, %s63
      %p67 = scmp.eq.s32.totalorder %s32, 0
      %p68 = por %p66, %p67
      %p69 = scmp.ne.s32.totalorder %s61, %s63
      %p70 = scmp.eq.s32.totalorder %s37, 1
      %p71 = por %p69, %p70
      %p72 = scmp.ne.s32.totalorder %s63, %s64
      %p73 = scmp.eq.s32.totalorder %s37, 0
      %p74 = por %p72, %p73
      %p75 = scmp.ne.s32.totalorder %s63, %s64
      %p76 = scmp.eq.s32.totalorder %s38, 1
      %p77 = por %p75, %p76
      %p79 = scmp.ne.s32.totalorder %s64, %s78
      %p80 = scmp.eq.s32.totalorder %s38, 0
      %p81 = por %p79, %p80
      %s82 = ssub.s32 %s32, %s39
      %p83 = scmp.eq.s32.totalorder %s82, 0
      %s85 = sadd.s32 %s84, 1
      %s86 = scalar_select %p83, %s84, %s85
      %p89 = pneg %p83
      %p90 = scmp.eq.s32.totalorder %s32, 1
      %p91 = por %p89, %p90
      %p92 = scmp.ne.s32.totalorder %s84, %s87
      %p93 = scmp.eq.s32.totalorder %s32, 0
      %p94 = por %p92, %p93
      %p95 = scmp.ne.s32.totalorder %s84, %s87
      %p96 = scmp.eq.s32.totalorder %s37, 1
      %p97 = por %p95, %p96
      %p98 = scmp.ne.s32.totalorder %s87, %s88
      %p99 = scmp.eq.s32.totalorder %s37, 0
      %p100 = por %p98, %p99
      %p101 = scmp.ne.s32.totalorder %s87, %s88
      %p102 = scmp.eq.s32.totalorder %s38, 1
      %p103 = por %p101, %p102
      %p105 = scmp.ne.s32.totalorder %s88, %s104
      %p106 = scmp.eq.s32.totalorder %s38, 0
      %p107 = por %p105, %p106
      %s108 = ssub.s32 %s32, %s39
      %p109 = scmp.eq.s32.totalorder %s108, 0
      %s111 = sadd.s32 %s110, 1
      %s112 = scalar_select %p109, %s110, %s111
      %p115 = pneg %p109
      %p116 = scmp.eq.s32.totalorder %s32, 1
      %p117 = por %p115, %p116
      %p118 = scmp.ne.s32.totalorder %s110, %s113
      %p119 = scmp.eq.s32.totalorder %s32, 0
      %p120 = por %p118, %p119
      %p121 = scmp.ne.s32.totalorder %s110, %s113
      %p122 = scmp.eq.s32.totalorder %s37, 1
      %p123 = por %p121, %p122
      %p124 = scmp.ne.s32.totalorder %s113, %s114
      %p125 = scmp.eq.s32.totalorder %s37, 0
      %p126 = por %p124, %p125
      %p127 = scmp.ne.s32.totalorder %s113, %s114
      %p128 = scmp.eq.s32.totalorder %s38, 1
      %p129 = por %p127, %p128
      %p131 = scmp.ne.s32.totalorder %s114, %s130
      %p132 = scmp.eq.s32.totalorder %s38, 0
      %p133 = por %p131, %p132
      %s135 = sadd.s32 %s134, 1
      %p138 = scmp.eq.s32.totalorder %s32, 1
      %p139 = scmp.ne.s32.totalorder %s134, %s136
      %p140 = scmp.eq.s32.totalorder %s32, 0
      %p141 = por %p139, %p140
      %p142 = scmp.ne.s32.totalorder %s134, %s136
      %p143 = scmp.eq.s32.totalorder %s37, 1
      %p144 = por %p142, %p143
      %p145 = scmp.ne.s32.totalorder %s136, %s137
      %p146 = scmp.eq.s32.totalorder %s37, 0
      %p147 = por %p145, %p146
      %p148 = scmp.ne.s32.totalorder %s136, %s137
      %p149 = scmp.eq.s32.totalorder %s38, 1
      %p150 = por %p148, %p149
      %p152 = scmp.ne.s32.totalorder %s137, %s151
      %p153 = scmp.eq.s32.totalorder %s38, 0
      %p154 = por %p152, %p153
      %s156 = sadd.s32 %s155, 1
      %p159 = scmp.eq.s32.totalorder %s32, 1
      %p160 = scmp.ne.s32.totalorder %s155, %s157
      %p161 = scmp.eq.s32.totalorder %s32, 0
      %p162 = por %p160, %p161
      %p163 = scmp.ne.s32.totalorder %s155, %s157
      %p164 = scmp.eq.s32.totalorder %s37, 1
      %p165 = por %p163, %p164
      %p166 = scmp.ne.s32.totalorder %s157, %s158
      %p167 = scmp.eq.s32.totalorder %s37, 0
      %p168 = por %p166, %p167
      %p169 = scmp.ne.s32.totalorder %s157, %s158
      %p170 = scmp.eq.s32.totalorder %s38, 1
      %p171 = por %p169, %p170
      %p173 = scmp.ne.s32.totalorder %s158, %s172
      %p174 = scmp.eq.s32.totalorder %s38, 0
      %p175 = por %p173, %p174
      %s177 = sadd.s32 %s176, 1
      %p180 = scmp.eq.s32.totalorder %s32, 1
      %p181 = scmp.ne.s32.totalorder %s176, %s178
      %p182 = scmp.eq.s32.totalorder %s32, 0
      %p183 = por %p181, %p182
      %p184 = scmp.ne.s32.totalorder %s176, %s178
      %p185 = scmp.eq.s32.totalorder %s37, 1
      %p186 = por %p184, %p185
      %p187 = scmp.ne.s32.totalorder %s178, %s179
      %p188 = scmp.eq.s32.totalorder %s37, 0
      %p189 = por %p187, %p188
      %p190 = scmp.ne.s32.totalorder %s178, %s179
      %p191 = scmp.eq.s32.totalorder %s38, 1
      %p192 = por %p190, %p191
      %p194 = scmp.ne.s32.totalorder %s179, %s193
      %p195 = scmp.eq.s32.totalorder %s38, 0
      %p196 = por %p194, %p195
      %s198 = sadd.s32 %s197, 1
      %p201 = scmp.eq.s32.totalorder %s32, 1
      %p202 = scmp.ne.s32.totalorder %s197, %s199
      %p203 = scmp.eq.s32.totalorder %s32, 0
      %p204 = por %p202, %p203
      %p205 = scmp.ne.s32.totalorder %s197, %s199
      %p206 = scmp.eq.s32.totalorder %s37, 1
      %p207 = por %p205, %p206
      %p208 = scmp.ne.s32.totalorder %s199, %s200
      %p209 = scmp.eq.s32.totalorder %s37, 0
      %p210 = por %p208, %p209
      %p211 = scmp.ne.s32.totalorder %s199, %s200
      %p212 = scmp.eq.s32.totalorder %s38, 1
      %p213 = por %p211, %p212
      %p215 = scmp.ne.s32.totalorder %s200, %s214
      %p216 = scmp.eq.s32.totalorder %s38, 0
      %p217 = por %p215, %p216
      %s219 = sadd.s32 %s218, 1
      %p222 = scmp.eq.s32.totalorder %s32, 1
      %p223 = scmp.ne.s32.totalorder %s218, %s220
      %p224 = scmp.eq.s32.totalorder %s32, 0
      %p225 = por %p223, %p224
      %p226 = scmp.ne.s32.totalorder %s218, %s220
      %p227 = scmp.eq.s32.totalorder %s37, 1
      %p228 = por %p226, %p227
      %p229 = scmp.ne.s32.totalorder %s220, %s221
      %p230 = scmp.eq.s32.totalorder %s37, 0
      %p231 = por %p229, %p230
      %p232 = scmp.ne.s32.totalorder %s220, %s221
      %p233 = scmp.eq.s32.totalorder %s38, 1
      %p234 = por %p232, %p233
      %p236 = scmp.ne.s32.totalorder %s221, %s235
      %p237 = scmp.eq.s32.totalorder %s38, 0
      %p238 = por %p236, %p237
      %s240 = sadd.s32 %s239, 1
      %p243 = scmp.eq.s32.totalorder %s32, 1
      %p244 = scmp.ne.s32.totalorder %s239, %s241
      %p245 = scmp.eq.s32.totalorder %s32, 0
      %p246 = por %p244, %p245
      %p247 = scmp.ne.s32.totalorder %s239, %s241
      %p248 = scmp.eq.s32.totalorder %s37, 1
      %p249 = por %p247, %p248
      %p250 = scmp.ne.s32.totalorder %s241, %s242
      %p251 = scmp.eq.s32.totalorder %s37, 0
      %p252 = por %p250, %p251
      %p253 = scmp.ne.s32.totalorder %s241, %s242
      %p254 = scmp.eq.s32.totalorder %s38, 1
      %p255 = por %p253, %p254
      %p257 = scmp.ne.s32.totalorder %s242, %s256
      %p258 = scmp.eq.s32.totalorder %s38, 0
      %p259 = por %p257, %p258
      %s261 = sadd.s32 %s260, 1
      %p264 = scmp.eq.s32.totalorder %s32, 1
      %p265 = scmp.ne.s32.totalorder %s260, %s262
      %p266 = scmp.eq.s32.totalorder %s32, 0
      %p267 = por %p265, %p266
      %p268 = scmp.ne.s32.totalorder %s260, %s262
      %p269 = scmp.eq.s32.totalorder %s37, 1
      %p270 = por %p268, %p269
      %p271 = scmp.ne.s32.totalorder %s262, %s263
      %p272 = scmp.eq.s32.totalorder %s37, 0
      %p273 = por %p271, %p272
      %p274 = scmp.ne.s32.totalorder %s262, %s263
      %p275 = scmp.eq.s32.totalorder %s38, 1
      %p276 = por %p274, %p275
      %p278 = scmp.ne.s32.totalorder %s263, %s277
      %p279 = scmp.eq.s32.totalorder %s38, 0
      %p280 = por %p278, %p279
      %s282 = sadd.s32 %s281, 1
      %p285 = scmp.eq.s32.totalorder %s32, 1
      %p286 = scmp.ne.s32.totalorder %s281, %s283
      %p287 = scmp.eq.s32.totalorder %s32, 0
      %p288 = por %p286, %p287
      %p289 = scmp.ne.s32.totalorder %s281, %s283
      %p290 = scmp.eq.s32.totalorder %s37, 1
      %p291 = por %p289, %p290
      %p292 = scmp.ne.s32.totalorder %s283, %s284
      %p293 = scmp.eq.s32.totalorder %s37, 0
      %p294 = por %p292, %p293
      %p295 = scmp.ne.s32.totalorder %s283, %s284
      %p296 = scmp.eq.s32.totalorder %s38, 1
      %p297 = por %p295, %p296
      %p299 = scmp.ne.s32.totalorder %s284, %s298
      %p300 = scmp.eq.s32.totalorder %s38, 0
      %p301 = por %p299, %p300
      %s303 = sadd.s32 %s302, 1
      %p306 = scmp.eq.s32.totalorder %s32, 1
      %p307 = scmp.ne.s32.totalorder %s302, %s304
      %p308 = scmp.eq.s32.totalorder %s32, 0
      %p309 = por %p307, %p308
      %p310 = scmp.ne.s32.totalorder %s302, %s304
      %p311 = scmp.eq.s32.totalorder %s37, 1
      %p312 = por %p310, %p311
      %p313 = scmp.ne.s32.totalorder %s304, %s305
      %p314 = scmp.eq.s32.totalorder %s37, 0
      %p315 = por %p313, %p314
      %p316 = scmp.ne.s32.totalorder %s304, %s305
      %p317 = scmp.eq.s32.totalorder %s38, 1
      %p318 = por %p316, %p317
      %p320 = scmp.ne.s32.totalorder %s305, %s319
      %p321 = scmp.eq.s32.totalorder %s38, 0
      %p322 = por %p320, %p321
      %s324 = sadd.s32 %s323, 1
      %p327 = scmp.eq.s32.totalorder %s32, 1
      %p328 = scmp.ne.s32.totalorder %s323, %s325
      %p329 = scmp.eq.s32.totalorder %s32, 0
      %p330 = por %p328, %p329
      %p331 = scmp.ne.s32.totalorder %s323, %s325
      %p332 = scmp.eq.s32.totalorder %s37, 1
      %p333 = por %p331, %p332
      %p334 = scmp.ne.s32.totalorder %s325, %s326
      %p335 = scmp.eq.s32.totalorder %s37, 0
      %p336 = por %p334, %p335
      %p337 = scmp.ne.s32.totalorder %s325, %s326
      %p338 = scmp.eq.s32.totalorder %s38, 1
      %p339 = por %p337, %p338
      %p341 = scmp.ne.s32.totalorder %s326, %s340
      %p342 = scmp.eq.s32.totalorder %s38, 0
      %p343 = por %p341, %p342
      %s345 = sadd.s32 %s344, 1
      %p348 = scmp.eq.s32.totalorder %s32, 1
      %p349 = scmp.ne.s32.totalorder %s344, %s346
      %p350 = scmp.eq.s32.totalorder %s32, 0
      %p351 = por %p349, %p350
      %p352 = scmp.ne.s32.totalorder %s344, %s346
      %p353 = scmp.eq.s32.totalorder %s37, 1
      %p354 = por %p352, %p353
      %p355 = scmp.ne.s32.totalorder %s346, %s347
      %p356 = scmp.eq.s32.totalorder %s37, 0
      %p357 = por %p355, %p356
      %p358 = scmp.ne.s32.totalorder %s346, %s347
      %p359 = scmp.eq.s32.totalorder %s38, 1
      %p360 = por %p358, %p359
      %p362 = scmp.ne.s32.totalorder %s347, %s361
      %p363 = scmp.eq.s32.totalorder %s38, 0
      %p364 = por %p362, %p363
      %s366 = sadd.s32 %s365, 1
      %p369 = scmp.eq.s32.totalorder %s32, 1
      %p370 = scmp.ne.s32.totalorder %s365, %s367
      %p371 = scmp.eq.s32.totalorder %s32, 0
      %p372 = por %p370, %p371
      %p373 = scmp.ne.s32.totalorder %s365, %s367
      %p374 = scmp.eq.s32.totalorder %s37, 1
      %p375 = por %p373, %p374
      %p376 = scmp.ne.s32.totalorder %s367, %s368
      %p377 = scmp.eq.s32.totalorder %s37, 0
      %p378 = por %p376, %p377
      %p379 = scmp.ne.s32.totalorder %s367, %s368
      %p380 = scmp.eq.s32.totalorder %s38, 1
      %p381 = por %p379, %p380
      %p383 = scmp.ne.s32.totalorder %s368, %s382
      %p384 = scmp.eq.s32.totalorder %s38, 0
      %p385 = por %p383, %p384
      %s386 = ssub.s32 %s32, %s39
      %p387 = scmp.eq.s32.totalorder %s386, 0
      %s389 = sadd.s32 %s388, 1
      %s390 = scalar_select %p387, %s388, %s389
      %p393 = pneg %p387
      %p394 = scmp.eq.s32.totalorder %s32, 1
      %p395 = por %p393, %p394
      %p396 = scmp.ne.s32.totalorder %s388, %s391
      %p397 = scmp.eq.s32.totalorder %s32, 0
      %p398 = por %p396, %p397
      %p399 = scmp.ne.s32.totalorder %s388, %s391
      %p400 = scmp.eq.s32.totalorder %s37, 1
      %p401 = por %p399, %p400
      %p402 = scmp.ne.s32.totalorder %s391, %s392
      %p403 = scmp.eq.s32.totalorder %s37, 0
      %p404 = por %p402, %p403
      %p405 = scmp.ne.s32.totalorder %s391, %s392
      %p406 = scmp.eq.s32.totalorder %s38, 1
      %p407 = por %p405, %p406
      %p409 = scmp.ne.s32.totalorder %s392, %s408
      %p410 = scmp.eq.s32.totalorder %s38, 0
      %p411 = por %p409, %p410
      %p412 = scmp.le.s32.totalorder 1, %s32
      %p413 = scmp.lt.s32.totalorder %s32, 3
      %p414 = pnand %p412, %p413
      %p415 = pneg %p414
      // Predicated region
      $region9: #{tpu_custom_call.1} parent=5 // pred_check
        _
      $region10: #{tpu_custom_call.1} parent=5 // pred_check_branch
        %417 = sbr.rel (%p414) target = $region12
      $region11: #{tpu_custom_call.1} parent=5 // pred_region
        %s418 = ssub.s32 %s32, 1
        // Predicated region
        $region13: #{tpu_custom_call.1} parent=11 // pred_check
          %p419 = pneg %p53
        $region14: #{tpu_custom_call.1} parent=11 // pred_check_branch
          %421 = sbr.rel (%p419) target = $region16
        $region15: #{tpu_custom_call.1} parent=11 // pred_region
          %s423 = ssub.s32 16, 16
          %424 = vsyncadd [#allocation4], %s423
          %427 = dma.hbm_to_smem %s0, 16, [#allocation2], [#allocation4]
        $region16: #{tpu_custom_call.1} parent=11 // pred_fallthru
          _
        // Predicated region
        $region17: #{tpu_custom_call.1} parent=11 // pred_check
          %p428 = pneg %p74
        $region18: #{tpu_custom_call.1} parent=11 // pred_check_branch
          %430 = sbr.rel (%p428) target = $region20
        $region19: #{tpu_custom_call.1} parent=11 // pred_region
          %s432 = ssub.s32 32, 32
          %433 = vsyncadd [#allocation5], %s432
          %s435 = sshll.u32 %s1, 4
          %s436 = int_to_ptr.vmem [resolvable:$true] %s435
          %438 = dma.vmem_to_smem %s436, 32, [#allocation6], [#allocation5]
        $region20: #{tpu_custom_call.1} parent=11 // pred_fallthru
          _
        // Predicated region
        $region21: #{tpu_custom_call.1} parent=11 // pred_check
          %p439 = pneg %p147
        $region22: #{tpu_custom_call.1} parent=11 // pred_check_branch
          %441 = sbr.rel (%p439) target = $region24
        $region23: #{tpu_custom_call.1} parent=11 // pred_region
          _
        $region24: #{tpu_custom_call.1} parent=11 // pred_fallthru
          _
        // Predicated region
        $region25: #{tpu_custom_call.1} parent=11 // pred_check
          %p442 = pneg %p168
        $region26: #{tpu_custom_call.1} parent=11 // pred_check_branch
          %444 = sbr.rel (%p442) target = $region28
        $region27: #{tpu_custom_call.1} parent=11 // pred_region
          %s446 = ssub.s32 32, 32
          %447 = vsyncadd [#allocation9], %s446
          %s449 = sshll.u32 [#allocation10], 4
          %s450 = int_to_ptr.vmem [resolvable:$true] %s449
          %452 = dma.hbm_to_vmem [thread:$0]  %s5, 32, %s450, [#allocation9]
        $region28: #{tpu_custom_call.1} parent=11 // pred_fallthru
          _
        // Predicated region
        $region29: #{tpu_custom_call.1} parent=11 // pred_check
          %p453 = pneg %p189
        $region30: #{tpu_custom_call.1} parent=11 // pred_check_branch
          %455 = sbr.rel (%p453) target = $region32
        $region31: #{tpu_custom_call.1} parent=11 // pred_region
          _
        $region32: #{tpu_custom_call.1} parent=11 // pred_fallthru
          _
        // Predicated region
        $region33: #{tpu_custom_call.1} parent=11 // pred_check
          %p456 = pneg %p210
        $region34: #{tpu_custom_call.1} parent=11 // pred_check_branch
          %458 = sbr.rel (%p456) target = $region36
        $region35: #{tpu_custom_call.1} parent=11 // pred_region
          %s460 = ssub.s32 1600, 1600
          %461 = vsyncadd [#allocation12], %s460
          %s462 = sshll.u32 [#allocation11], 4
          %s463 = int_to_ptr.vmem [resolvable:$true] %s462
          %468 = dma.hbm_to_vmem [thread:$0]  %s7, 1600, %s463, [#allocation12], 64, 64, 4
        $region36: #{tpu_custom_call.1} parent=11 // pred_fallthru
          _
        // Predicated region
        $region37: #{tpu_custom_call.1} parent=11 // pred_check
          %p469 = pneg %p231
        $region38: #{tpu_custom_call.1} parent=11 // pred_check_branch
          %471 = sbr.rel (%p469) target = $region40
        $region39: #{tpu_custom_call.1} parent=11 // pred_region
          _
        $region40: #{tpu_custom_call.1} parent=11 // pred_fallthru
          _
        // Predicated region
        $region41: #{tpu_custom_call.1} parent=11 // pred_check
          %p472 = pneg %p252
        $region42: #{tpu_custom_call.1} parent=11 // pred_check_branch
          %474 = sbr.rel (%p472) target = $region44
        $region43: #{tpu_custom_call.1} parent=11 // pred_region
          %s476 = ssub.s32 9216, 9216
          %477 = vsyncadd [#allocation12], %s476
          %s478 = sshll.u32 [#allocation13], 4
          %s479 = int_to_ptr.vmem [resolvable:$true] %s478
          %484 = dma.hbm_to_vmem [thread:$0]  %s9, 9216, %s479, [#allocation12], 192, 192, 12
        $region44: #{tpu_custom_call.1} parent=11 // pred_fallthru
          _
        // Predicated region
        $region45: #{tpu_custom_call.1} parent=11 // pred_check
          %p485 = pneg %p273
        $region46: #{tpu_custom_call.1} parent=11 // pred_check_branch
          %487 = sbr.rel (%p485) target = $region48
        $region47: #{tpu_custom_call.1} parent=11 // pred_region
          _
        $region48: #{tpu_custom_call.1} parent=11 // pred_fallthru
          _
        // Predicated region
        $region49: #{tpu_custom_call.1} parent=11 // pred_check
          %p488 = pneg %p294
        $region50: #{tpu_custom_call.1} parent=11 // pred_check_branch
          %490 = sbr.rel (%p488) target = $region52
        $region51: #{tpu_custom_call.1} parent=11 // pred_region
          %s492 = ssub.s32 1600, 1600
          %493 = vsyncadd [#allocation15], %s492
          %s494 = sshll.u32 [#allocation14], 4
          %s495 = int_to_ptr.vmem [resolvable:$true] %s494
          %500 = dma.hbm_to_vmem [thread:$0]  %s11, 1600, %s495, [#allocation15], 64, 64, 4
        $region52: #{tpu_custom_call.1} parent=11 // pred_fallthru
          _
        // Predicated region
        $region53: #{tpu_custom_call.1} parent=11 // pred_check
          %p501 = pneg %p315
        $region54: #{tpu_custom_call.1} parent=11 // pred_check_branch
          %503 = sbr.rel (%p501) target = $region56
        $region55: #{tpu_custom_call.1} parent=11 // pred_region
          _
        $region56: #{tpu_custom_call.1} parent=11 // pred_fallthru
          _
        // Predicated region
        $region57: #{tpu_custom_call.1} parent=11 // pred_check
          %p504 = pneg %p336
        $region58: #{tpu_custom_call.1} parent=11 // pred_check_branch
          %506 = sbr.rel (%p504) target = $region60
        $region59: #{tpu_custom_call.1} parent=11 // pred_region
          _
        $region60: #{tpu_custom_call.1} parent=11 // pred_fallthru
          _
        // Predicated region
        $region61: #{tpu_custom_call.1} parent=11 // pred_check
          %p507 = pneg %p357
        $region62: #{tpu_custom_call.1} parent=11 // pred_check_branch
          %509 = sbr.rel (%p507) target = $region64
        $region63: #{tpu_custom_call.1} parent=11 // pred_region
          _
        $region64: #{tpu_custom_call.1} parent=11 // pred_fallthru
          _
        // Predicated region
        $region65: #{tpu_custom_call.1} parent=11 // pred_check
          %p510 = pneg %p378
        $region66: #{tpu_custom_call.1} parent=11 // pred_check_branch
          %512 = sbr.rel (%p510) target = $region68
        $region67: #{tpu_custom_call.1} parent=11 // pred_region
          _
        $region68: #{tpu_custom_call.1} parent=11 // pred_fallthru
          _
      $region12: #{tpu_custom_call.1} parent=5 // pred_fallthru
        _
      %p513 = scmp.lt.s32.totalorder %s32, 2
      // Predicated region
      $region69: #{tpu_custom_call.1} parent=5 // pred_check
        %p514 = pneg %p513
      $region70: #{tpu_custom_call.1} parent=5 // pred_check_branch
        %516 = sbr.rel (%p514) target = $region72
      $region71: #{tpu_custom_call.1} parent=5 // pred_region
        // Predicated region
        $region73: #{tpu_custom_call.1} parent=71 // pred_check
          %p517 = pneg %p94
        $region74: #{tpu_custom_call.1} parent=71 // pred_check_branch
          %519 = sbr.rel (%p517) target = $region76
        $region75: #{tpu_custom_call.1} parent=71 // pred_region
          %s520 = sand.u32 %s84, 1
          %s521 = scalar_lea.sflag [#allocation3], %s520
          %s522 = sand.u32 %s84, 1
          %s523 = smul.addr %s522, 4
          %s524 = scalar_lea.vmem [#allocation7], %s523
          %s526 = ssub.s32 64, 64
          %527 = vsyncadd %s521, %s526
          %s528 = smul.addr %s32, 64
          %s529 = scalar_lea.hbm %s2, %s528
          %s531 = sshll.u32 %s524, 4
          %s532 = int_to_ptr.vmem [resolvable:$true] %s531
          %534 = dma.hbm_to_vmem [thread:$0]  %s529, 64, %s532, %s521
        $region76: #{tpu_custom_call.1} parent=71 // pred_fallthru
          _
        // Predicated region
        $region77: #{tpu_custom_call.1} parent=71 // pred_check
          %p535 = pneg %p120
        $region78: #{tpu_custom_call.1} parent=71 // pred_check_branch
          %537 = sbr.rel (%p535) target = $region80
        $region79: #{tpu_custom_call.1} parent=71 // pred_region
          %s538 = sand.u32 %s32, 1
          %s539 = scalar_lea.sflag [#allocation9], %s538
          %s540 = sand.u32 %s110, 1
          %s541 = smul.addr %s540, 8
          %s542 = scalar_lea.vmem [#allocation8], %s541
          %s544 = ssub.s32 128, 128
          %545 = vsyncadd %s539, %s544
          %s546 = smul.addr %s32, 128
          %s547 = scalar_lea.hbm %s3, %s546
          %s549 = sshll.u32 %s542, 4
          %s550 = int_to_ptr.vmem [resolvable:$true] %s549
          %552 = dma.hbm_to_vmem [thread:$0]  %s547, 128, %s550, %s539
        $region80: #{tpu_custom_call.1} parent=71 // pred_fallthru
          _
      $region72: #{tpu_custom_call.1} parent=5 // pred_fallthru
        _
      %p553 = scmp.le.s32.totalorder 1, %s32
      %p554 = scmp.lt.s32.totalorder %s32, 3
      %p555 = pnand %p553, %p554
      %p556 = pneg %p555
      // Predicated region
      $region81: #{tpu_custom_call.1} parent=5 // pred_check
        _
      $region82: #{tpu_custom_call.1} parent=5 // pred_check_branch
        %558 = sbr.rel (%p555) target = $region84
      $region83: #{tpu_custom_call.1} parent=5 // pred_region
        %s559 = ssub.s32 %s32, 1
        // Predicated region
        $region85: #{tpu_custom_call.1} parent=83 // pred_check
          %p560 = pneg %p53
        $region86: #{tpu_custom_call.1} parent=83 // pred_check_branch
          %562 = sbr.rel (%p560) target = $region88
        $region87: #{tpu_custom_call.1} parent=83 // pred_region
          %563 = dma.done [#allocation4], 16
        $region88: #{tpu_custom_call.1} parent=83 // pred_fallthru
          _
        // Predicated region
        $region89: #{tpu_custom_call.1} parent=83 // pred_check
          %p564 = pneg %p74
        $region90: #{tpu_custom_call.1} parent=83 // pred_check_branch
          %566 = sbr.rel (%p564) target = $region92
        $region91: #{tpu_custom_call.1} parent=83 // pred_region
          %567 = dma.done [#allocation5], 32
        $region92: #{tpu_custom_call.1} parent=83 // pred_fallthru
          _
        %s568 = sand.u32 %s87, 1
        %s569 = scalar_lea.sflag [#allocation3], %s568
        %s570 = sand.u32 %s87, 1
        %s571 = smul.addr %s570, 4
        %s572 = scalar_lea.vmem [#allocation7], %s571
        // Predicated region
        $region93: #{tpu_custom_call.1} parent=83 // pred_check
          %p573 = pneg %p100
        $region94: #{tpu_custom_call.1} parent=83 // pred_check_branch
          %575 = sbr.rel (%p573) target = $region96
        $region95: #{tpu_custom_call.1} parent=83 // pred_region
          %576 = dma.done %s569, 64
        $region96: #{tpu_custom_call.1} parent=83 // pred_fallthru
          _
        %s577 = sand.u32 %s37, 1
        %s578 = scalar_lea.sflag [#allocation9], %s577
        %s579 = sand.u32 %s113, 1
        %s580 = smul.addr %s579, 8
        %s581 = scalar_lea.vmem [#allocation8], %s580
        // Predicated region
        $region97: #{tpu_custom_call.1} parent=83 // pred_check
          %p582 = pneg %p126
        $region98: #{tpu_custom_call.1} parent=83 // pred_check_branch
          %584 = sbr.rel (%p582) target = $region100
        $region99: #{tpu_custom_call.1} parent=83 // pred_region
          %585 = dma.done %s578, 128
        $region100: #{tpu_custom_call.1} parent=83 // pred_fallthru
          _
        // Predicated region
        $region101: #{tpu_custom_call.1} parent=83 // pred_check
          %p586 = pneg %p168
        $region102: #{tpu_custom_call.1} parent=83 // pred_check_branch
          %588 = sbr.rel (%p586) target = $region104
        $region103: #{tpu_custom_call.1} parent=83 // pred_region
          %589 = dma.done [#allocation9], 32
        $region104: #{tpu_custom_call.1} parent=83 // pred_fallthru
          _
        // Predicated region
        $region105: #{tpu_custom_call.1} parent=83 // pred_check
          %p590 = pneg %p210
        $region106: #{tpu_custom_call.1} parent=83 // pred_check_branch
          %592 = sbr.rel (%p590) target = $region108
        $region107: #{tpu_custom_call.1} parent=83 // pred_region
          %593 = dma.done [#allocation12], 1600
        $region108: #{tpu_custom_call.1} parent=83 // pred_fallthru
          _
        // Predicated region
        $region109: #{tpu_custom_call.1} parent=83 // pred_check
          %p594 = pneg %p252
        $region110: #{tpu_custom_call.1} parent=83 // pred_check_branch
          %596 = sbr.rel (%p594) target = $region112
        $region111: #{tpu_custom_call.1} parent=83 // pred_region
          %597 = dma.done [#allocation12], 9216
        $region112: #{tpu_custom_call.1} parent=83 // pred_fallthru
          _
        // Predicated region
        $region113: #{tpu_custom_call.1} parent=83 // pred_check
          %p598 = pneg %p294
        $region114: #{tpu_custom_call.1} parent=83 // pred_check_branch
          %600 = sbr.rel (%p598) target = $region116
        $region115: #{tpu_custom_call.1} parent=83 // pred_region
          %601 = dma.done [#allocation15], 1600
        $region116: #{tpu_custom_call.1} parent=83 // pred_fallthru
          _
        %602 = sfence
        %p603 = pneg %p53
        %p604 = pneg %p50
        %p605 = pneg %p74
        %p606 = pneg %p71
        %s607 = sand.u32 %s87, 1
        %s608 = scalar_lea.sflag [#allocation3], %s607
        %s609 = sand.u32 %s87, 1
        %s610 = smul.addr %s609, 4
        %s611 = scalar_lea.vmem [#allocation7], %s610
        %p612 = pneg %p100
        %p613 = pneg %p97
        %s614 = sand.u32 %s37, 1
        %s615 = scalar_lea.sflag [#allocation9], %s614
        %s616 = sand.u32 %s113, 1
        %s617 = smul.addr %s616, 8
        %s618 = scalar_lea.vmem [#allocation8], %s617
        %p619 = pneg %p126
        %p620 = pneg %p123
        %p621 = pneg %p147
        %p622 = pneg %p144
        %p623 = pneg %p168
        %p624 = pneg %p165
        %p625 = pneg %p189
        %p626 = pneg %p186
        %p627 = pneg %p210
        %p628 = pneg %p207
        %p629 = pneg %p231
        %p630 = pneg %p228
        %p631 = pneg %p252
        %p632 = pneg %p249
        %p633 = pneg %p273
        %p634 = pneg %p270
        %p635 = pneg %p294
        %p636 = pneg %p291
        %p637 = pneg %p315
        %p638 = pneg %p312
        %p639 = pneg %p336
        %p640 = pneg %p333
        %p641 = pneg %p357
        %p642 = pneg %p354
        %p643 = pneg %p378
        %p644 = pneg %p375
        %p645 = pneg %p404
        %p646 = pneg %p401
        %p647 = scmp.lt.s32.totalorder %s37, 1
        %s648 = scalar_select %p647, %s37, 1
        %s649 = smul.addr %s648, 8
        %s650 = scalar_lea.vmem %s16, %s649
        %p651 = scmp.lt.s32.totalorder %s37, 1
        %s652 = scalar_select %p651, %s37, 1
        %s653 = smul.addr %s652, 8
        %s654 = scalar_lea.vmem %s16, %s653
        %s656 = sld [smem:[#allocation2 + %s37]]
        %v657 = vlaneseq
        %v658 = vshrl.u32 %v657, 7
        %v659 = vlaneseq
        %v660 = vand.u32 %v659, 127
        %v661 = vsub.s32 %v658, 2
        %vm662 = vcmp.ge.s32.totalorder %v660, %v661
        %v663 = vadd.s32 %v658, 2
        %vm664 = vcmp.le.s32.totalorder %v660, %v663
        %vm665 = vmand %vm662, %vm664
        %v666 = vstv %s656
        %vm667 = vcmp.lt.s32.totalorder %v658, %v666
        %vm668 = vmand %vm665, %vm667
        %vm669 = vcmp.lt.s32.totalorder %v660, %v666
        %vm670 = vmand %vm668, %vm669
        %v671 = vsel %vm670, 0.0, -1e+09
        %v672 = vsel %vm667, 1, 0
        %v673 = vcvt.s32.f32 %v672
        %v674 = vld [vmem:[%s572] sm:$0xf]
        %v675 = vld [vmem:[%s4] sm:$0xff]
        %v676 = vld [vmem:[%s4 + $0x8] sm:$0xff]
        %v677 = vld [vmem:[%s4 + $0x10] sm:$0xff]
        %v678 = vld [vmem:[%s4 + $0x18] sm:$0xff]
        %v679 = vld [vmem:[%s4 + $0x20] sm:$0xff]
        %v680 = vld [vmem:[%s4 + $0x28] sm:$0xff]
        %v681 = vld [vmem:[%s4 + $0x30] sm:$0xff]
        %v682 = vld [vmem:[%s4 + $0x38] sm:$0xff]
        %v683 = vld [vmem:[%s4 + $0x40] sm:$0xff]
        %v684 = vld [vmem:[%s4 + $0x48] sm:$0xff]
        %v685 = vld [vmem:[%s4 + $0x50] sm:$0xff]
        %v686 = vld [vmem:[%s4 + $0x58] sm:$0xff]
        %v687 = vld [vmem:[%s4 + $0x60] sm:$0x33]
        %v688 = vld [vmem:[#allocation10] sm:$0x3]
        %v690 = vlaneseq
        %v691 = vshrl.u32 %v690, 7
        %v692 = vsub.s32 0, %v691
        %v693 = vrot.slane %v688, %v692
        %v694 = vlaneseq
        %v695 = vshrl.u32 %v694, 7
        %v696 = vsub.s32 1, %v695
        %v697 = vrot.slane %v688, %v696
        %v713 = vunpack.c.l.b16 %v675
        %v714 = vunpack.c.h.b16 %v675
        %v715 = vunpack.c.l.b16 %v676
        %v716 = vunpack.c.h.b16 %v676
        %v717 = vunpack.c.l.b16 %v677
        %v718 = vunpack.c.h.b16 %v677
        %v719 = vunpack.c.l.b16 %v678
        %v720 = vunpack.c.h.b16 %v678
        %v721 = vunpack.c.l.b16 %v679
        %v722 = vunpack.c.h.b16 %v679
        %v723 = vunpack.c.l.b16 %v680
        %v724 = vunpack.c.h.b16 %v680
        %v725 = vunpack.c.l.b16 %v681
        %v726 = vunpack.c.h.b16 %v681
        %v727 = vunpack.c.l.b16 %v682
        %v728 = vunpack.c.h.b16 %v682
        %v729 = vunpack.c.l.b16 %v683
        %v730 = vunpack.c.h.b16 %v683
        %v731 = vunpack.c.l.b16 %v684
        %v732 = vunpack.c.h.b16 %v684
        %v733 = vunpack.c.l.b16 %v685
        %v734 = vunpack.c.h.b16 %v685
        %v735 = vunpack.c.l.b16 %v686
        %v736 = vunpack.c.h.b16 %v686
        %v737 = vunpack.c.l.b16 %v687
        %v738 = vunpack.c.h.b16 %v687
        %v739 = vpack.c.b16 %v715, %v713
        %v740 = vpack.c.b16 %v716, %v714
        %v741 = vpack.c.b16 %v719, %v717
        %v742 = vpack.c.b16 %v720, %v718
        %v743 = vpack.c.b16 %v723, %v721
        %v744 = vpack.c.b16 %v724, %v722
        %v745 = vpack.c.b16 %v727, %v725
        %v746 = vpack.c.b16 %v728, %v726
        %v747 = vpack.c.b16 %v731, %v729
        %v748 = vpack.c.b16 %v732, %v730
        %v749 = vpack.c.b16 %v735, %v733
        %v750 = vpack.c.b16 %v736, %v734
        %v751 = vpack.c.b16 %v737, %v737
        %v752 = vpack.c.b16 %v738, %v738
        %vm765 = vcmask 818176
        %v767 = vsel %vm765, %v674, 0
        %vm769 = vcmask 1041408
        %v771 = vsel %vm769, %v751, 0
        %v774 = vsel %vm769, %v752, 0
        %776 = vmatprep.subr.bf16.mxu0 %v740
        %777 = vmatpush1.bf16.msra.mxu0 %v739
        %778 = vmatprep.subr.bf16.mxu0 %v742
        %779 = vmatpush1.bf16.msra.mxu0 %v741
        %780 = vmatprep.subr.bf16.mxu0 %v744
        %781 = vmatpush1.bf16.msra.mxu0 %v743
        %782 = vmatprep.subr.bf16.mxu0 %v746
        %783 = vmatpush1.bf16.msra.mxu0 %v745
        %784 = vmatprep.subr.bf16.mxu0 %v748
        %785 = vmatpush1.bf16.msra.mxu0 %v747
        %786 = vmatprep.subr.bf16.mxu0 %v750
        %787 = vmatpush1.bf16.msra.mxu0 %v749
        %788 = vmatprep.subr.bf16.mxu0 %v774
        %789 = vmatpush1.bf16.msra.mxu0 %v771
        %790 = vmatprep.subr.bf16.mxu0 0
        %791 = vmatpush1.bf16.msra.mxu0 0
        %792 = vmatprep.subr.bf16.mxu0 0
        %793 = vmatpush1.bf16.msra.mxu0 0
        %794 = vmatprep.subr.bf16.mxu0 0
        %795 = vmatpush1.bf16.msra.mxu0 0
        %796 = vmatprep.subr.bf16.mxu0 0
        %797 = vmatpush1.bf16.msra.mxu0 0
        %798 = vmatprep.subr.bf16.mxu0 0
        %799 = vmatpush1.bf16.msra.mxu0 0
        %800 = vmatprep.subr.bf16.mxu0 0
        %801 = vmatpush1.bf16.msra.mxu0 0
        %802 = vmatprep.subr.bf16.mxu0 0
        %803 = vmatpush1.bf16.msra.mxu0 0
        %804 = vmatprep.subr.bf16.mxu0 0
        %805 = vmatpush1.bf16.msra.mxu0 0
        %806 = vmatprep.subr.bf16.mxu0 0
        %807 = vmatpush1.bf16.msra.mxu0 0
        %808 = vmatprep.mubr.bf16.mxu0 0
        %809 = vmatmul.mubr.bf16.gmra.mrb[0].mxu0 %v767
        %v810 = vpop.f32.mrb[0].mxu0
        %v811 = vadd.f32 %v693, %v810
        %v812 = vpop.f32.mrb[0].mxu0
        %v813 = vadd.f32 %v697, %v812
        %v814 = vpop.f32.mrb[0].mxu0
        %v815 = vpop.f32.mrb[0].mxu0
        %816 = vdwg.mxu0
        %v817 = vtanh.pop %v811
        %v818 = vtanh.pop %v813
        %v819 = vpack.c.bf16 %v817, %v817
        %v820 = vpack.c.bf16 %v818, %v818
        %v821 = vld [vmem:[%s6] sm:$0xff]
        %v822 = vld [vmem:[%s6 + $0x8] sm:$0xff]
        %v823 = vld [vmem:[%s6 + $0x10] sm:$0xff]
        %v824 = vld [vmem:[%s6 + $0x18] sm:$0xff]
        %v825 = vld [vmem:[%s6 + $0x20] sm:$0xff]
        %v826 = vld [vmem:[%s6 + $0x28] sm:$0xff]
        %v827 = vld [vmem:[%s6 + $0x30] sm:$0xff]
        %v828 = vld [vmem:[%s6 + $0x38] sm:$0xff]
        %v829 = vld [vmem:[%s6 + $0x40] sm:$0xff]
        %v830 = vld [vmem:[%s6 + $0x48] sm:$0xff]
        %v831 = vld [vmem:[%s6 + $0x50] sm:$0xff]
        %v832 = vld [vmem:[%s6 + $0x58] sm:$0xff]
        %v833 = vld [vmem:[%s6 + $0x60] sm:$0xff]
        %v834 = vld [vmem:[%s6 + $0x68] sm:$0xff]
        %v835 = vld [vmem:[%s6 + $0x70] sm:$0xff]
        %v836 = vld [vmem:[%s6 + $0x78] sm:$0xff]
        %v837 = vld [vmem:[%s6 + $0x80] sm:$0xff]
        %v838 = vld [vmem:[%s6 + $0x88] sm:$0xff]
        %v839 = vld [vmem:[%s6 + $0x90] sm:$0xff]
        %v840 = vld [vmem:[%s6 + $0x98] sm:$0xff]
        %v841 = vld [vmem:[%s6 + $0xa0] sm:$0xff]
        %v842 = vld [vmem:[%s6 + $0xa8] sm:$0xff]
        %v843 = vld [vmem:[%s6 + $0xb0] sm:$0xff]
        %v844 = vld [vmem:[%s6 + $0xb8] sm:$0xff]
        %v845 = vld [vmem:[%s6 + $0xc0] sm:$0xff]
        %v871 = vunpack.c.l.b16 %v821
        %v872 = vunpack.c.h.b16 %v821
        %v873 = vunpack.c.l.b16 %v822
        %v874 = vunpack.c.h.b16 %v822
        %v875 = vunpack.c.l.b16 %v823
        %v876 = vunpack.c.h.b16 %v823
        %v877 = vunpack.c.l.b16 %v824
        %v878 = vunpack.c.h.b16 %v824
        %v879 = vunpack.c.l.b16 %v825
        %v880 = vunpack.c.h.b16 %v825
        %v881 = vunpack.c.l.b16 %v826
        %v882 = vunpack.c.h.b16 %v826
        %v883 = vunpack.c.l.b16 %v827
        %v884 = vunpack.c.h.b16 %v827
        %v885 = vunpack.c.l.b16 %v828
        %v886 = vunpack.c.h.b16 %v828
        %v887 = vunpack.c.l.b16 %v829
        %v888 = vunpack.c.h.b16 %v829
        %v889 = vunpack.c.l.b16 %v830
        %v890 = vunpack.c.h.b16 %v830
        %v891 = vunpack.c.l.b16 %v831
        %v892 = vunpack.c.h.b16 %v831
        %v893 = vunpack.c.l.b16 %v832
        %v894 = vunpack.c.h.b16 %v832
        %v895 = vunpack.c.l.b16 %v833
        %v896 = vunpack.c.h.b16 %v833
        %v897 = vunpack.c.l.b16 %v834
        %v898 = vunpack.c.h.b16 %v834
        %v899 = vunpack.c.l.b16 %v835
        %v900 = vunpack.c.h.b16 %v835
        %v901 = vunpack.c.l.b16 %v836
        %v902 = vunpack.c.h.b16 %v836
        %v903 = vunpack.c.l.b16 %v837
        %v904 = vunpack.c.h.b16 %v837
        %v905 = vunpack.c.l.b16 %v838
        %v906 = vunpack.c.h.b16 %v838
        %v907 = vunpack.c.l.b16 %v839
        %v908 = vunpack.c.h.b16 %v839
        %v909 = vunpack.c.l.b16 %v840
        %v910 = vunpack.c.h.b16 %v840
        %v911 = vunpack.c.l.b16 %v841
        %v912 = vunpack.c.h.b16 %v841
        %v913 = vunpack.c.l.b16 %v842
        %v914 = vunpack.c.h.b16 %v842
        %v915 = vunpack.c.l.b16 %v843
        %v916 = vunpack.c.h.b16 %v843
        %v917 = vunpack.c.l.b16 %v844
        %v918 = vunpack.c.h.b16 %v844
        %v919 = vunpack.c.l.b16 %v845
        %v920 = vunpack.c.h.b16 %v845
        %v921 = vpack.c.b16 %v873, %v871
        %v922 = vpack.c.b16 %v874, %v872
        %v923 = vpack.c.b16 %v877, %v875
        %v924 = vpack.c.b16 %v878, %v876
        %v925 = vpack.c.b16 %v881, %v879
        %v926 = vpack.c.b16 %v882, %v880
        %v927 = vpack.c.b16 %v885, %v883
        %v928 = vpack.c.b16 %v886, %v884
        %v929 = vpack.c.b16 %v889, %v887
        %v930 = vpack.c.b16 %v890, %v888
        %v931 = vpack.c.b16 %v893, %v891
        %v932 = vpack.c.b16 %v894, %v892
        %v933 = vpack.c.b16 %v897, %v895
        %v934 = vpack.c.b16 %v898, %v896
        %v935 = vpack.c.b16 %v901, %v899
        %v936 = vpack.c.b16 %v902, %v900
        %v937 = vpack.c.b16 %v905, %v903
        %v938 = vpack.c.b16 %v906, %v904
        %v939 = vpack.c.b16 %v909, %v907
        %v940 = vpack.c.b16 %v910, %v908
        %v941 = vpack.c.b16 %v913, %v911
        %v942 = vpack.c.b16 %v914, %v912
        %v943 = vpack.c.b16 %v917, %v915
        %v944 = vpack.c.b16 %v918, %v916
        %v945 = vpack.c.b16 %v919, %v919
        %v946 = vpack.c.b16 %v920, %v920
        %vm971 = vcmask 588800
        %v973 = vsel %vm971, %v820, 0
        %vm975 = vcmask 1043456
        %v977 = vsel %vm975, %v945, 0
        %v980 = vsel %vm975, %v946, 0
        %982 = vmatprep.subr.bf16.mxu0 %v922
        %983 = vmatpush1.bf16.msra.mxu0 %v921
        %984 = vmatprep.subr.bf16.mxu0 %v924
        %985 = vmatpush1.bf16.msra.mxu0 %v923
        %986 = vmatprep.subr.bf16.mxu0 %v926
        %987 = vmatpush1.bf16.msra.mxu0 %v925
        %988 = vmatprep.subr.bf16.mxu0 %v928
        %989 = vmatpush1.bf16.msra.mxu0 %v927
        %990 = vmatprep.subr.bf16.mxu0 %v930
        %991 = vmatpush1.bf16.msra.mxu0 %v929
        %992 = vmatprep.subr.bf16.mxu0 %v932
        %993 = vmatpush1.bf16.msra.mxu0 %v931
        %994 = vmatprep.subr.bf16.mxu0 %v934
        %995 = vmatpush1.bf16.msra.mxu0 %v933
        %996 = vmatprep.subr.bf16.mxu0 %v936
        %997 = vmatpush1.bf16.msra.mxu0 %v935
        %998 = vmatprep.subr.bf16.mxu0 %v938
        %999 = vmatpush1.bf16.msra.mxu0 %v937
        %1000 = vmatprep.subr.bf16.mxu0 %v940
        %1001 = vmatpush1.bf16.msra.mxu0 %v939
        %1002 = vmatprep.subr.bf16.mxu0 %v942
        %1003 = vmatpush1.bf16.msra.mxu0 %v941
        %1004 = vmatprep.subr.bf16.mxu0 %v944
        %1005 = vmatpush1.bf16.msra.mxu0 %v943
        %1006 = vmatprep.subr.bf16.mxu0 %v980
        %1007 = vmatpush1.bf16.msra.mxu0 %v977
        %1008 = vmatprep.subr.bf16.mxu0 0
        %1009 = vmatpush1.bf16.msra.mxu0 0
        %1010 = vmatprep.subr.bf16.mxu0 0
        %1011 = vmatpush1.bf16.msra.mxu0 0
        %1012 = vmatprep.subr.bf16.mxu0 0
        %1013 = vmatpush1.bf16.msra.mxu0 0
        %1014 = vmatprep.mubr.bf16.mxu0 %v973
        %1015 = vmatmul.mubr.bf16.gmra.mrb[0].mxu0 %v819
        %v1016 = vpop.f32.mrb[0].mxu0
        %v1017 = vadd.f32 0.0, %v1016
        %v1018 = vpop.f32.mrb[0].mxu0
        %v1019 = vadd.f32 0.0, %v1018
        %v1020 = vpop.f32.mrb[0].mxu0
        %v1021 = vpop.f32.mrb[0].mxu0
        %1022 = vdwg.mxu0
        %v1023 = vpack.c.bf16 %v1017, %v1017
        %v1024 = vpack.c.bf16 %v1019, %v1019
        %v1026 = vsel %vm971, %v1024, 0
        %1028 = vmatprep.subr.bf16.mxu0 %v973
        %1029 = vmatpush1.bf16.xpose.msra.mxu0 %v819
        %1030 = vmatprep.subr.bf16.mxu0 0
        %1031 = vmatpush1.bf16.xpose.msra.mxu0 0
        %1032 = vmatprep.subr.bf16.mxu0 0
        %1033 = vmatpush1.bf16.xpose.msra.mxu0 0
        %1034 = vmatprep.subr.bf16.mxu0 0
        %1035 = vmatpush1.bf16.xpose.msra.mxu0 0
        %1036 = vmatprep.subr.bf16.mxu0 0
        %1037 = vmatpush1.bf16.xpose.msra.mxu0 0
        %1038 = vmatprep.subr.bf16.mxu0 0
        %1039 = vmatpush1.bf16.xpose.msra.mxu0 0
        %1040 = vmatprep.subr.bf16.mxu0 0
        %1041 = vmatpush1.bf16.xpose.msra.mxu0 0
        %1042 = vmatprep.subr.bf16.mxu0 0
        %1043 = vmatpush1.bf16.xpose.msra.mxu0 0
        %1044 = vmatprep.subr.bf16.mxu0 0
        %1045 = vmatpush1.bf16.xpose.msra.mxu0 0
        %1046 = vmatprep.subr.bf16.mxu0 0
        %1047 = vmatpush1.bf16.xpose.msra.mxu0 0
        %1048 = vmatprep.subr.bf16.mxu0 0
        %1049 = vmatpush1.bf16.xpose.msra.mxu0 0
        %1050 = vmatprep.subr.bf16.mxu0 0
        %1051 = vmatpush1.bf16.xpose.msra.mxu0 0
        %1052 = vmatprep.subr.bf16.mxu0 0
        %1053 = vmatpush1.bf16.xpose.msra.mxu0 0
        %1054 = vmatprep.subr.bf16.mxu0 0
        %1055 = vmatpush1.bf16.xpose.msra.mxu0 0
        %1056 = vmatprep.subr.bf16.mxu0 0
        %1057 = vmatpush1.bf16.xpose.msra.mxu0 0
        %1058 = vmatprep.subr.bf16.mxu0 0
        %1059 = vmatpush1.bf16.xpose.msra.mxu0 0
        %1060 = vmatprep.mubr.bf16.mxu0 %v1026
        %1061 = vmatmul.mubr.bf16.gmra.mrb[0].mxu0 %v1023
        %v1062 = vpop.f32.mrb[0].mxu0
        %v1063 = vadd.f32 %v671, %v1062
        %v1064 = vpop.f32.mrb[0].mxu0
        %v1065 = vpop.f32.mrb[0].mxu0
        %v1066 = vpop.f32.mrb[0].mxu0
        %1067 = vdwg.mxu0
        %vm1068 = vcmask 64512
        %v1069 = vsel %vm1068, %v1063, -inf
        %1070 = vmax.xlane.f32.xlu0 %v1069
        %v1071 = vpop.xlane.xlu0 %1070
        %v1072 = vsub.f32 %v1063, %v1071
        %v1073 = vmul.f32 %v1072, 1.442695
        %v1074 = vpow.pop %v1073
        %v1075 = vsel %vm1068, %v1074, 0.0
        %1076 = vadd.xlane.f32.xlu0 %v1075
        %v1077 = vpop.xlane.xlu0 %1076
        %v1078 = vrcp.pop %v1077
        %v1079 = vmul.f32 %v1074, %v1078
        %v1080 = vld [vmem:[%s581] sm:$0xff]
        %vm1081 = vcmp.eq.s32.totalorder %v1080, 1
        %vm1082 = vcmp.eq.s32.totalorder %v1080, 2
        %vm1083 = vcmp.eq.s32.totalorder %v1080, 3
        %vm1084 = vcmp.eq.s32.totalorder %v1080, 4
        %vm1085 = vcmp.eq.s32.totalorder %v1080, 5
        %vm1086 = vcmp.eq.s32.totalorder %v1080, 6
        %vm1087 = vcmp.eq.s32.totalorder %v1080, 7
        %v1088 = vld [vmem:[#allocation11] sm:$0xf]
        %v1089 = vld [vmem:[#allocation11 + $0x4] sm:$0xf]
        %v1090 = vld [vmem:[#allocation11 + $0x8] sm:$0xf]
        %v1091 = vld [vmem:[#allocation11 + $0xc] sm:$0xf]
        %v1092 = vld [vmem:[#allocation11 + $0x10] sm:$0xf]
        %v1093 = vld [vmem:[#allocation11 + $0x14] sm:$0xf]
        %v1094 = vld [vmem:[#allocation11 + $0x18] sm:$0xf]
        %v1095 = vld [vmem:[#allocation11 + $0x1c] sm:$0xf]
        %v1096 = vld [vmem:[#allocation11 + $0x20] sm:$0xf]
        %v1097 = vld [vmem:[#allocation11 + $0x24] sm:$0xf]
        %v1098 = vld [vmem:[#allocation11 + $0x28] sm:$0xf]
        %v1099 = vld [vmem:[#allocation11 + $0x2c] sm:$0xf]
        %v1100 = vld [vmem:[#allocation11 + $0x30] sm:$0xf]
        %v1101 = vld [vmem:[#allocation11 + $0x34] sm:$0xf]
        %v1102 = vld [vmem:[#allocation11 + $0x38] sm:$0xf]
        %v1103 = vld [vmem:[#allocation11 + $0x3c] sm:$0xf]
        %v1104 = vld [vmem:[#allocation11 + $0x40] sm:$0xf]
        %v1105 = vld [vmem:[#allocation11 + $0x44] sm:$0xf]
        %v1106 = vld [vmem:[#allocation11 + $0x48] sm:$0xf]
        %v1107 = vld [vmem:[#allocation11 + $0x4c] sm:$0xf]
        %v1108 = vld [vmem:[#allocation11 + $0x50] sm:$0xf]
        %v1109 = vld [vmem:[#allocation11 + $0x54] sm:$0xf]
        %v1110 = vld [vmem:[#allocation11 + $0x58] sm:$0xf]
        %v1111 = vld [vmem:[#allocation11 + $0x5c] sm:$0xf]
        %v1112 = vld [vmem:[#allocation11 + $0x60] sm:$0xf]
        %v1113 = vld [vmem:[%s8] sm:$0xff]
        %v1139 = vunpack.c.l.b16 %v1088
        %v1140 = vunpack.c.l.b16 %v1089
        %v1141 = vunpack.c.l.b16 %v1090
        %v1142 = vunpack.c.l.b16 %v1091
        %v1143 = vunpack.c.l.b16 %v1092
        %v1144 = vunpack.c.l.b16 %v1093
        %v1145 = vunpack.c.l.b16 %v1094
        %v1146 = vunpack.c.l.b16 %v1095
        %v1147 = vunpack.c.l.b16 %v1096
        %v1148 = vunpack.c.l.b16 %v1097
        %v1149 = vunpack.c.l.b16 %v1098
        %v1150 = vunpack.c.l.b16 %v1099
        %v1151 = vunpack.c.l.b16 %v1100
        %v1152 = vunpack.c.l.b16 %v1101
        %v1153 = vunpack.c.l.b16 %v1102
        %v1154 = vunpack.c.l.b16 %v1103
        %v1155 = vunpack.c.l.b16 %v1104
        %v1156 = vunpack.c.l.b16 %v1105
        %v1157 = vunpack.c.l.b16 %v1106
        %v1158 = vunpack.c.l.b16 %v1107
        %v1159 = vunpack.c.l.b16 %v1108
        %v1160 = vunpack.c.l.b16 %v1109
        %v1161 = vunpack.c.l.b16 %v1110
        %v1162 = vunpack.c.l.b16 %v1111
        %v1163 = vunpack.c.l.b16 %v1112
        %v1164 = vpack.c.b16 %v1140, %v1139
        %v1165 = vpack.c.b16 %v1142, %v1141
        %v1166 = vpack.c.b16 %v1144, %v1143
        %v1167 = vpack.c.b16 %v1146, %v1145
        %v1168 = vpack.c.b16 %v1148, %v1147
        %v1169 = vpack.c.b16 %v1150, %v1149
        %v1170 = vpack.c.b16 %v1152, %v1151
        %v1171 = vpack.c.b16 %v1154, %v1153
        %v1172 = vpack.c.b16 %v1156, %v1155
        %v1173 = vpack.c.b16 %v1158, %v1157
        %v1174 = vpack.c.b16 %v1160, %v1159
        %v1175 = vpack.c.b16 %v1162, %v1161
        %v1176 = vpack.c.b16 %v1163, %v1163
        %v1190 = vsel %vm975, %v1176, 0
        %1192 = vmatprep.subr.bf16.mxu0 0
        %1193 = vmatpush1.bf16.msra.mxu0 %v1164
        %1194 = vmatprep.subr.bf16.mxu0 0
        %1195 = vmatpush1.bf16.msra.mxu0 %v1165
        %1196 = vmatprep.subr.bf16.mxu0 0
        %1197 = vmatpush1.bf16.msra.mxu0 %v1166
        %1198 = vmatprep.subr.bf16.mxu0 0
        %1199 = vmatpush1.bf16.msra.mxu0 %v1167
        %1200 = vmatprep.subr.bf16.mxu0 0
        %1201 = vmatpush1.bf16.msra.mxu0 %v1168
        %1202 = vmatprep.subr.bf16.mxu0 0
        %1203 = vmatpush1.bf16.msra.mxu0 %v1169
        %1204 = vmatprep.subr.bf16.mxu0 0
        %1205 = vmatpush1.bf16.msra.mxu0 %v1170
        %1206 = vmatprep.subr.bf16.mxu0 0
        %1207 = vmatpush1.bf16.msra.mxu0 %v1171
        %1208 = vmatprep.subr.bf16.mxu0 0
        %1209 = vmatpush1.bf16.msra.mxu0 %v1172
        %1210 = vmatprep.subr.bf16.mxu0 0
        %1211 = vmatpush1.bf16.msra.mxu0 %v1173
        %1212 = vmatprep.subr.bf16.mxu0 0
        %1213 = vmatpush1.bf16.msra.mxu0 %v1174
        %1214 = vmatprep.subr.bf16.mxu0 0
        %1215 = vmatpush1.bf16.msra.mxu0 %v1175
        %1216 = vmatprep.subr.bf16.mxu0 0
        %1217 = vmatpush1.bf16.msra.mxu0 %v1190
        %1218 = vmatprep.subr.bf16.mxu0 0
        %1219 = vmatpush1.bf16.msra.mxu0 0
        %1220 = vmatprep.subr.bf16.mxu0 0
        %1221 = vmatpush1.bf16.msra.mxu0 0
        %1222 = vmatprep.subr.bf16.mxu0 0
        %1223 = vmatpush1.bf16.msra.mxu0 0
        %1224 = vmatprep.mubr.bf16.mxu0 %v973
        %1225 = vmatmul.mubr.bf16.gmra.mrb[0].mxu0 %v819
        %v1226 = vpop.f32.mrb[0].mxu0
        %v1227 = vadd.f32 %v1113, %v1226
        %v1228 = vpop.f32.mrb[0].mxu0
        %v1229 = vpop.f32.mrb[0].mxu0
        %v1230 = vpop.f32.mrb[0].mxu0
        %1231 = vdwg.mxu0
        %v1232 = vpack.c.bf16 %v1227, %v1227
        %v1233 = vld [vmem:[#allocation13] sm:$0xff]
        %v1234 = vld [vmem:[#allocation13 + $0x8] sm:$0xf]
        %v1235 = vld [vmem:[#allocation13 + $0xc] sm:$0xff]
        %v1236 = vld [vmem:[#allocation13 + $0x14] sm:$0xf]
        %v1237 = vld [vmem:[#allocation13 + $0x18] sm:$0xff]
        %v1238 = vld [vmem:[#allocation13 + $0x20] sm:$0xf]
        %v1239 = vld [vmem:[#allocation13 + $0x24] sm:$0xff]
        %v1240 = vld [vmem:[#allocation13 + $0x2c] sm:$0xf]
        %v1241 = vld [vmem:[#allocation13 + $0x30] sm:$0xff]
        %v1242 = vld [vmem:[#allocation13 + $0x38] sm:$0xf]
        %v1243 = vld [vmem:[#allocation13 + $0x3c] sm:$0xff]
        %v1244 = vld [vmem:[#allocation13 + $0x44] sm:$0xf]
        %v1245 = vld [vmem:[#allocation13 + $0x48] sm:$0xff]
        %v1246 = vld [vmem:[#allocation13 + $0x50] sm:$0xf]
        %v1247 = vld [vmem:[#allocation13 + $0x54] sm:$0xff]
        %v1248 = vld [vmem:[#allocation13 + $0x5c] sm:$0xf]
        %v1249 = vld [vmem:[#allocation13 + $0x60] sm:$0xff]
        %v1250 = vld [vmem:[#allocation13 + $0x68] sm:$0xf]
        %v1251 = vld [vmem:[#allocation13 + $0x6c] sm:$0xff]
        %v1252 = vld [vmem:[#allocation13 + $0x74] sm:$0xf]
        %v1253 = vld [vmem:[#allocation13 + $0x78] sm:$0xff]
        %v1254 = vld [vmem:[#allocation13 + $0x80] sm:$0xf]
        %v1255 = vld [vmem:[#allocation13 + $0x84] sm:$0xff]
        %v1256 = vld [vmem:[#allocation13 + $0x8c] sm:$0xf]
        %v1257 = vld [vmem:[#allocation13 + $0x90] sm:$0xff]
        %v1258 = vld [vmem:[#allocation13 + $0x98] sm:$0xf]
        %v1259 = vld [vmem:[#allocation13 + $0x9c] sm:$0xff]
        %v1260 = vld [vmem:[#allocation13 + $0xa4] sm:$0xf]
        %v1261 = vld [vmem:[#allocation13 + $0xa8] sm:$0xff]
        %v1262 = vld [vmem:[#allocation13 + $0xb0] sm:$0xf]
        %v1263 = vld [vmem:[#allocation13 + $0xb4] sm:$0xff]
        %v1264 = vld [vmem:[#allocation13 + $0xbc] sm:$0xf]
        %v1297 = vunpack.c.l.b16 %v1233
        %v1298 = vunpack.c.h.b16 %v1233
        %v1299 = vunpack.c.l.b16 %v1234
        %v1300 = vunpack.c.l.b16 %v1235
        %v1301 = vunpack.c.h.b16 %v1235
        %v1302 = vunpack.c.l.b16 %v1236
        %v1303 = vunpack.c.l.b16 %v1237
        %v1304 = vunpack.c.h.b16 %v1237
        %v1305 = vunpack.c.l.b16 %v1238
        %v1306 = vunpack.c.l.b16 %v1239
        %v1307 = vunpack.c.h.b16 %v1239
        %v1308 = vunpack.c.l.b16 %v1240
        %v1309 = vunpack.c.l.b16 %v1241
        %v1310 = vunpack.c.h.b16 %v1241
        %v1311 = vunpack.c.l.b16 %v1242
        %v1312 = vunpack.c.l.b16 %v1243
        %v1313 = vunpack.c.h.b16 %v1243
        %v1314 = vunpack.c.l.b16 %v1244
        %v1315 = vunpack.c.l.b16 %v1245
        %v1316 = vunpack.c.h.b16 %v1245
        %v1317 = vunpack.c.l.b16 %v1246
        %v1318 = vunpack.c.l.b16 %v1247
        %v1319 = vunpack.c.h.b16 %v1247
        %v1320 = vunpack.c.l.b16 %v1248
        %v1321 = vunpack.c.l.b16 %v1249
        %v1322 = vunpack.c.h.b16 %v1249
        %v1323 = vunpack.c.l.b16 %v1250
        %v1324 = vunpack.c.l.b16 %v1251
        %v1325 = vunpack.c.h.b16 %v1251
        %v1326 = vunpack.c.l.b16 %v1252
        %v1327 = vunpack.c.l.b16 %v1253
        %v1328 = vunpack.c.h.b16 %v1253
        %v1329 = vunpack.c.l.b16 %v1254
        %v1330 = vunpack.c.l.b16 %v1255
        %v1331 = vunpack.c.h.b16 %v1255
        %v1332 = vunpack.c.l.b16 %v1256
        %v1333 = vunpack.c.l.b16 %v1257
        %v1334 = vunpack.c.h.b16 %v1257
        %v1335 = vunpack.c.l.b16 %v1258
        %v1336 = vunpack.c.l.b16 %v1259
        %v1337 = vunpack.c.h.b16 %v1259
        %v1338 = vunpack.c.l.b16 %v1260
        %v1339 = vunpack.c.l.b16 %v1261
        %v1340 = vunpack.c.h.b16 %v1261
        %v1341 = vunpack.c.l.b16 %v1262
        %v1342 = vunpack.c.l.b16 %v1263
        %v1343 = vunpack.c.h.b16 %v1263
        %v1344 = vunpack.c.l.b16 %v1264
        %v1345 = vpack.c.b16 %v1300, %v1297
        %v1346 = vpack.c.b16 %v1301, %v1298
        %v1347 = vpack.c.b16 %v1302, %v1299
        %v1348 = vpack.c.b16 %v1306, %v1303
        %v1349 = vpack.c.b16 %v1307, %v1304
        %v1350 = vpack.c.b16 %v1308, %v1305
        %v1351 = vpack.c.b16 %v1312, %v1309
        %v1352 = vpack.c.b16 %v1313, %v1310
        %v1353 = vpack.c.b16 %v1314, %v1311
        %v1354 = vpack.c.b16 %v1318, %v1315
        %v1355 = vpack.c.b16 %v1319, %v1316
        %v1356 = vpack.c.b16 %v1320, %v1317
        %v1357 = vpack.c.b16 %v1324, %v1321
        %v1358 = vpack.c.b16 %v1325, %v1322
        %v1359 = vpack.c.b16 %v1326, %v1323
        %v1360 = vpack.c.b16 %v1330, %v1327
        %v1361 = vpack.c.b16 %v1331, %v1328
        %v1362 = vpack.c.b16 %v1332, %v1329
        %v1363 = vpack.c.b16 %v1336, %v1333
        %v1364 = vpack.c.b16 %v1337, %v1334
        %v1365 = vpack.c.b16 %v1338, %v1335
        %v1366 = vpack.c.b16 %v1342, %v1339
        %v1367 = vpack.c.b16 %v1343, %v1340
        %v1368 = vpack.c.b16 %v1344, %v1341
        %1393 = vmatprep.subr.bf16.mxu0 %v1346
        %1394 = vmatpush1.bf16.msra.mxu0 %v1345
        %1395 = vmatprep.subr.bf16.mxu0 %v1349
        %1396 = vmatpush1.bf16.msra.mxu0 %v1348
        %1397 = vmatprep.subr.bf16.mxu0 %v1352
        %1398 = vmatpush1.bf16.msra.mxu0 %v1351
        %1399 = vmatprep.subr.bf16.mxu0 %v1355
        %1400 = vmatpush1.bf16.msra.mxu0 %v1354
        %1401 = vmatprep.subr.bf16.mxu0 %v1358
        %1402 = vmatpush1.bf16.msra.mxu0 %v1357
        %1403 = vmatprep.subr.bf16.mxu0 %v1361
        %1404 = vmatpush1.bf16.msra.mxu0 %v1360
        %1405 = vmatprep.subr.bf16.mxu0 %v1364
        %1406 = vmatpush1.bf16.msra.mxu0 %v1363
        %1407 = vmatprep.subr.bf16.mxu0 %v1367
        %1408 = vmatpush1.bf16.msra.mxu0 %v1366
        %1409 = vmatprep.subr.bf16.mxu0 0
        %1410 = vmatpush1.bf16.msra.mxu0 0
        %1411 = vmatprep.subr.bf16.mxu0 0
        %1412 = vmatpush1.bf16.msra.mxu0 0
        %1413 = vmatprep.subr.bf16.mxu0 0
        %1414 = vmatpush1.bf16.msra.mxu0 0
        %1415 = vmatprep.subr.bf16.mxu0 0
        %1416 = vmatpush1.bf16.msra.mxu0 0
        %1417 = vmatprep.subr.bf16.mxu0 0
        %1418 = vmatpush1.bf16.msra.mxu0 0
        %1419 = vmatprep.subr.bf16.mxu0 0
        %1420 = vmatpush1.bf16.msra.mxu0 0
        %1421 = vmatprep.subr.bf16.mxu0 0
        %1422 = vmatpush1.bf16.msra.mxu0 0
        %1423 = vmatprep.subr.bf16.mxu0 0
        %1424 = vmatpush1.bf16.msra.mxu0 0
        %1425 = vmatprep.mubr.bf16.mxu0 0
        %1426 = vmatmul.mubr.bf16.gmra.mrb[0].mxu0 %v1232
        %v1427 = vpop.f32.mrb[0].mxu0
        %v1428 = vadd.f32 0.0, %v1427
        %v1429 = vpop.f32.mrb[0].mxu0
        %v1430 = vadd.f32 0.0, %v1429
        %v1431 = vpop.f32.mrb[0].mxu0
        %v1432 = vpop.f32.mrb[0].mxu0
        %1433 = vdwg.mxu0
        %1434 = vmatprep.subr.bf16.mxu0 0
        %1435 = vmatpush1.bf16.msra.mxu0 %v1347
        %1436 = vmatprep.subr.bf16.mxu0 0
        %1437 = vmatpush1.bf16.msra.mxu0 %v1350
        %1438 = vmatprep.subr.bf16.mxu0 0
        %1439 = vmatpush1.bf16.msra.mxu0 %v1353
        %1440 = vmatprep.subr.bf16.mxu0 0
        %1441 = vmatpush1.bf16.msra.mxu0 %v1356
        %1442 = vmatprep.subr.bf16.mxu0 0
        %1443 = vmatpush1.bf16.msra.mxu0 %v1359
        %1444 = vmatprep.subr.bf16.mxu0 0
        %1445 = vmatpush1.bf16.msra.mxu0 %v1362
        %1446 = vmatprep.subr.bf16.mxu0 0
        %1447 = vmatpush1.bf16.msra.mxu0 %v1365
        %1448 = vmatprep.subr.bf16.mxu0 0
        %1449 = vmatpush1.bf16.msra.mxu0 %v1368
        %1450 = vmatprep.subr.bf16.mxu0 0
        %1451 = vmatpush1.bf16.msra.mxu0 0
        %1452 = vmatprep.subr.bf16.mxu0 0
        %1453 = vmatpush1.bf16.msra.mxu0 0
        %1454 = vmatprep.subr.bf16.mxu0 0
        %1455 = vmatpush1.bf16.msra.mxu0 0
        %1456 = vmatprep.subr.bf16.mxu0 0
        %1457 = vmatpush1.bf16.msra.mxu0 0
        %1458 = vmatprep.subr.bf16.mxu0 0
        %1459 = vmatpush1.bf16.msra.mxu0 0
        %1460 = vmatprep.subr.bf16.mxu0 0
        %1461 = vmatpush1.bf16.msra.mxu0 0
        %1462 = vmatprep.subr.bf16.mxu0 0
        %1463 = vmatpush1.bf16.msra.mxu0 0
        %1464 = vmatprep.subr.bf16.mxu0 0
        %1465 = vmatpush1.bf16.msra.mxu0 0
        %1466 = vmatprep.mubr.bf16.mxu0 0
        %1467 = vmatmul.mubr.bf16.gmra.mrb[0].mxu0 %v1232
        %v1468 = vpop.f32.mrb[0].mxu0
        %v1469 = vadd.f32 0.0, %v1468
        %v1470 = vpop.f32.mrb[0].mxu0
        %v1471 = vpop.f32.mrb[0].mxu0
        %v1472 = vpop.f32.mrb[0].mxu0
        %1473 = vdwg.mxu0
        %v1474 = vpack.c.bf16 %v1428, %v1428
        %v1475 = vpack.c.bf16 %v1430, %v1430
        %v1476 = vpack.c.bf16 %v1469, %v1469
        %s1477 = sld [smem:[#allocation6]]
        %s1478 = sld [smem:[#allocation6 + $0x8]]
        %v1479 = vstv %s1478
        %v1480 = vstv %s1477
        %v1481 = vsel %vm1081, %v1479, %v1480
        %s1482 = sld [smem:[#allocation6 + $0x10]]
        %v1483 = vstv %s1482
        %v1484 = vsel %vm1082, %v1483, %v1481
        %s1485 = sld [smem:[#allocation6 + $0x18]]
        %v1486 = vstv %s1485
        %v1487 = vsel %vm1083, %v1486, %v1484
        %s1488 = sld [smem:[#allocation6 + $0x20]]
        %v1489 = vstv %s1488
        %v1490 = vsel %vm1084, %v1489, %v1487
        %s1491 = sld [smem:[#allocation6 + $0x28]]
        %v1492 = vstv %s1491
        %v1493 = vsel %vm1085, %v1492, %v1490
        %s1494 = sld [smem:[#allocation6 + $0x30]]
        %v1495 = vstv %s1494
        %v1496 = vsel %vm1086, %v1495, %v1493
        %s1497 = sld [smem:[#allocation6 + $0x38]]
        %v1498 = vstv %s1497
        %v1499 = vsel %vm1087, %v1498, %v1496
        %v1500 = vadd.f32 %v671, %v1499
        %vm1501 = vcmask 130048
        %v1503 = vsel %vm1501, %v1474, 0
        %v1506 = vsel %vm1501, %v1475, 0
        %1508 = vmatprep.subr.bf16.mxu0 0
        %1509 = vmatpush1.bf16.xpose.msra.mxu0 %v1506
        %1510 = vmatprep.subr.bf16.mxu0 0
        %1511 = vmatpush1.bf16.xpose.msra.mxu0 0
        %1512 = vmatprep.subr.bf16.mxu0 0
        %1513 = vmatpush1.bf16.xpose.msra.mxu0 0
        %1514 = vmatprep.subr.bf16.mxu0 0
        %1515 = vmatpush1.bf16.xpose.msra.mxu0 0
        %1516 = vmatprep.subr.bf16.mxu0 0
        %1517 = vmatpush1.bf16.xpose.msra.mxu0 0
        %1518 = vmatprep.subr.bf16.mxu0 0
        %1519 = vmatpush1.bf16.xpose.msra.mxu0 0
        %1520 = vmatprep.subr.bf16.mxu0 0
        %1521 = vmatpush1.bf16.xpose.msra.mxu0 0
        %1522 = vmatprep.subr.bf16.mxu0 0
        %1523 = vmatpush1.bf16.xpose.msra.mxu0 0
        %1524 = vmatprep.subr.bf16.mxu0 0
        %1525 = vmatpush1.bf16.xpose.msra.mxu0 0
        %1526 = vmatprep.subr.bf16.mxu0 0
        %1527 = vmatpush1.bf16.xpose.msra.mxu0 0
        %1528 = vmatprep.subr.bf16.mxu0 0
        %1529 = vmatpush1.bf16.xpose.msra.mxu0 0
        %1530 = vmatprep.subr.bf16.mxu0 0
        %1531 = vmatpush1.bf16.xpose.msra.mxu0 0
        %1532 = vmatprep.subr.bf16.mxu0 0
        %1533 = vmatpush1.bf16.xpose.msra.mxu0 0
        %1534 = vmatprep.subr.bf16.mxu0 0
        %1535 = vmatpush1.bf16.xpose.msra.mxu0 0
        %1536 = vmatprep.subr.bf16.mxu0 0
        %1537 = vmatpush1.bf16.xpose.msra.mxu0 0
        %1538 = vmatprep.subr.bf16.mxu0 0
        %1539 = vmatpush1.bf16.xpose.msra.mxu0 0
        %1540 = vmatprep.mubr.bf16.mxu0 0
        %1541 = vmatmul.mubr.bf16.gmra.mrb[0].mxu0 %v1503
        %v1542 = vpop.f32.mrb[0].mxu0
        %v1543 = vadd.f32 %v1500, %v1542
        %v1544 = vpop.f32.mrb[0].mxu0
        %v1545 = vpop.f32.mrb[0].mxu0
        %v1546 = vpop.f32.mrb[0].mxu0
        %1547 = vdwg.mxu0
        %v1548 = vsel %vm1068, %v1543, -inf
        %1549 = vmax.xlane.f32.xlu0 %v1548
        %v1550 = vpop.xlane.xlu0 %1549
        %v1551 = vsub.f32 %v1543, %v1550
        %v1552 = vmul.f32 %v1551, 1.442695
        %v1553 = vpow.pop %v1552
        %v1554 = vsel %vm1068, %v1553, 0.0
        %1555 = vadd.xlane.f32.xlu0 %v1554
        %v1556 = vpop.xlane.xlu0 %1555
        %v1557 = vrcp.pop %v1556
        %v1558 = vmul.f32 %v1553, %v1557
        %v1559 = vmul.f32 %v1558, %v1079
        %v1560 = vpack.c.bf16 %v1559, %v1559
        %v1562 = vsel %vm1068, %v1560, 0
        %v1565 = vsel %vm975, %v1476, 0
        %1567 = vmatprep.subr.bf16.mxu0 0
        %1568 = vmatpush1.bf16.msra.mxu0 %v1565
        %1569 = vmatprep.subr.bf16.mxu0 0
        %1570 = vmatpush1.bf16.msra.mxu0 0
        %1571 = vmatprep.subr.bf16.mxu0 0
        %1572 = vmatpush1.bf16.msra.mxu0 0
        %1573 = vmatprep.subr.bf16.mxu0 0
        %1574 = vmatpush1.bf16.msra.mxu0 0
        %1575 = vmatprep.subr.bf16.mxu0 0
        %1576 = vmatpush1.bf16.msra.mxu0 0
        %1577 = vmatprep.subr.bf16.mxu0 0
        %1578 = vmatpush1.bf16.msra.mxu0 0
        %1579 = vmatprep.subr.bf16.mxu0 0
        %1580 = vmatpush1.bf16.msra.mxu0 0
        %1581 = vmatprep.subr.bf16.mxu0 0
        %1582 = vmatpush1.bf16.msra.mxu0 0
        %1583 = vmatprep.subr.bf16.mxu0 0
        %1584 = vmatpush1.bf16.msra.mxu0 0
        %1585 = vmatprep.subr.bf16.mxu0 0
        %1586 = vmatpush1.bf16.msra.mxu0 0
        %1587 = vmatprep.subr.bf16.mxu0 0
        %1588 = vmatpush1.bf16.msra.mxu0 0
        %1589 = vmatprep.subr.bf16.mxu0 0
        %1590 = vmatpush1.bf16.msra.mxu0 0
        %1591 = vmatprep.subr.bf16.mxu0 0
        %1592 = vmatpush1.bf16.msra.mxu0 0
        %1593 = vmatprep.subr.bf16.mxu0 0
        %1594 = vmatpush1.bf16.msra.mxu0 0
        %1595 = vmatprep.subr.bf16.mxu0 0
        %1596 = vmatpush1.bf16.msra.mxu0 0
        %1597 = vmatprep.subr.bf16.mxu0 0
        %1598 = vmatpush1.bf16.msra.mxu0 0
        %1599 = vmatprep.mubr.bf16.mxu0 0
        %1600 = vmatmul.mubr.bf16.gmra.mrb[0].mxu0 %v1562
        %v1601 = vpop.f32.mrb[0].mxu0
        %v1602 = vadd.f32 0.0, %v1601
        %v1603 = vpop.f32.mrb[0].mxu0
        %v1604 = vpop.f32.mrb[0].mxu0
        %v1605 = vpop.f32.mrb[0].mxu0
        %1606 = vdwg.mxu0
        %s1607 = sld [smem:[#allocation6 + $0x1]]
        %s1608 = sld [smem:[#allocation6 + $0x9]]
        %v1609 = vstv %s1608
        %v1610 = vstv %s1607
        %v1611 = vsel %vm1081, %v1609, %v1610
        %s1612 = sld [smem:[#allocation6 + $0x11]]
        %v1613 = vstv %s1612
        %v1614 = vsel %vm1082, %v1613, %v1611
        %s1615 = sld [smem:[#allocation6 + $0x19]]
        %v1616 = vstv %s1615
        %v1617 = vsel %vm1083, %v1616, %v1614
        %s1618 = sld [smem:[#allocation6 + $0x21]]
        %v1619 = vstv %s1618
        %v1620 = vsel %vm1084, %v1619, %v1617
        %s1621 = sld [smem:[#allocation6 + $0x29]]
        %v1622 = vstv %s1621
        %v1623 = vsel %vm1085, %v1622, %v1620
        %s1624 = sld [smem:[#allocation6 + $0x31]]
        %v1625 = vstv %s1624
        %v1626 = vsel %vm1086, %v1625, %v1623
        %s1627 = sld [smem:[#allocation6 + $0x39]]
        %v1628 = vstv %s1627
        %v1629 = vsel %vm1087, %v1628, %v1626
        %v1630 = vadd.f32 %v671, %v1629
        %1632 = vrot.lane.b32.xlu0 %v1474, 112
        %v1633 = vpop.permute.xlu0 %1632
        %1635 = vrot.lane.b32.xlu0 %v1475, 112
        %v1636 = vpop.permute.xlu0 %1635
        %v1638 = vsel %vm1501, %v1633, 0
        %v1641 = vsel %vm1501, %v1636, 0
        %1643 = vmatprep.subr.bf16.mxu0 0
        %1644 = vmatpush1.bf16.xpose.msra.mxu0 %v1641
        %1645 = vmatprep.subr.bf16.mxu0 0
        %1646 = vmatpush1.bf16.xpose.msra.mxu0 0
        %1647 = vmatprep.subr.bf16.mxu0 0
        %1648 = vmatpush1.bf16.xpose.msra.mxu0 0
        %1649 = vmatprep.subr.bf16.mxu0 0
        %1650 = vmatpush1.bf16.xpose.msra.mxu0 0
        %1651 = vmatprep.subr.bf16.mxu0 0
        %1652 = vmatpush1.bf16.xpose.msra.mxu0 0
        %1653 = vmatprep.subr.bf16.mxu0 0
        %1654 = vmatpush1.bf16.xpose.msra.mxu0 0
        %1655 = vmatprep.subr.bf16.mxu0 0
        %1656 = vmatpush1.bf16.xpose.msra.mxu0 0
        %1657 = vmatprep.subr.bf16.mxu0 0
        %1658 = vmatpush1.bf16.xpose.msra.mxu0 0
        %1659 = vmatprep.subr.bf16.mxu0 0
        %1660 = vmatpush1.bf16.xpose.msra.mxu0 0
        %1661 = vmatprep.subr.bf16.mxu0 0
        %1662 = vmatpush1.bf16.xpose.msra.mxu0 0
        %1663 = vmatprep.subr.bf16.mxu0 0
        %1664 = vmatpush1.bf16.xpose.msra.mxu0 0
        %1665 = vmatprep.subr.bf16.mxu0 0
        %1666 = vmatpush1.bf16.xpose.msra.mxu0 0
        %1667 = vmatprep.subr.bf16.mxu0 0
        %1668 = vmatpush1.bf16.xpose.msra.mxu0 0
        %1669 = vmatprep.subr.bf16.mxu0 0
        %1670 = vmatpush1.bf16.xpose.msra.mxu0 0
        %1671 = vmatprep.subr.bf16.mxu0 0
        %1672 = vmatpush1.bf16.xpose.msra.mxu0 0
        %1673 = vmatprep.subr.bf16.mxu0 0
        %1674 = vmatpush1.bf16.xpose.msra.mxu0 0
        %1675 = vmatprep.mubr.bf16.mxu0 0
        %1676 = vmatmul.mubr.bf16.gmra.mrb[0].mxu0 %v1638
        %v1677 = vpop.f32.mrb[0].mxu0
        %v1678 = vadd.f32 %v1630, %v1677
        %v1679 = vpop.f32.mrb[0].mxu0
        %v1680 = vpop.f32.mrb[0].mxu0
        %v1681 = vpop.f32.mrb[0].mxu0
        %1682 = vdwg.mxu0
        %v1683 = vsel %vm1068, %v1678, -inf
        %1684 = vmax.xlane.f32.xlu0 %v1683
        %v1685 = vpop.xlane.xlu0 %1684
        %v1686 = vsub.f32 %v1678, %v1685
        %v1687 = vmul.f32 %v1686, 1.442695
        %v1688 = vpow.pop %v1687
        %v1689 = vsel %vm1068, %v1688, 0.0
        %1690 = vadd.xlane.f32.xlu0 %v1689
        %v1691 = vpop.xlane.xlu0 %1690
        %v1692 = vrcp.pop %v1691
        %v1693 = vmul.f32 %v1688, %v1692
        %v1694 = vmul.f32 %v1693, %v1079
        %v1695 = vpack.c.bf16 %v1694, %v1694
        %1697 = vrot.lane.b32.xlu0 %v1476, 112
        %v1698 = vpop.permute.xlu0 %1697
        %v1700 = vsel %vm1068, %v1695, 0
        %v1703 = vsel %vm975, %v1698, 0
        %1705 = vmatprep.subr.bf16.mxu0 0
        %1706 = vmatpush1.bf16.msra.mxu0 %v1703
        %1707 = vmatprep.subr.bf16.mxu0 0
        %1708 = vmatpush1.bf16.msra.mxu0 0
        %1709 = vmatprep.subr.bf16.mxu0 0
        %1710 = vmatpush1.bf16.msra.mxu0 0
        %1711 = vmatprep.subr.bf16.mxu0 0
        %1712 = vmatpush1.bf16.msra.mxu0 0
        %1713 = vmatprep.subr.bf16.mxu0 0
        %1714 = vmatpush1.bf16.msra.mxu0 0
        %1715 = vmatprep.subr.bf16.mxu0 0
        %1716 = vmatpush1.bf16.msra.mxu0 0
        %1717 = vmatprep.subr.bf16.mxu0 0
        %1718 = vmatpush1.bf16.msra.mxu0 0
        %1719 = vmatprep.subr.bf16.mxu0 0
        %1720 = vmatpush1.bf16.msra.mxu0 0
        %1721 = vmatprep.subr.bf16.mxu0 0
        %1722 = vmatpush1.bf16.msra.mxu0 0
        %1723 = vmatprep.subr.bf16.mxu0 0
        %1724 = vmatpush1.bf16.msra.mxu0 0
        %1725 = vmatprep.subr.bf16.mxu0 0
        %1726 = vmatpush1.bf16.msra.mxu0 0
        %1727 = vmatprep.subr.bf16.mxu0 0
        %1728 = vmatpush1.bf16.msra.mxu0 0
        %1729 = vmatprep.subr.bf16.mxu0 0
        %1730 = vmatpush1.bf16.msra.mxu0 0
        %1731 = vmatprep.subr.bf16.mxu0 0
        %1732 = vmatpush1.bf16.msra.mxu0 0
        %1733 = vmatprep.subr.bf16.mxu0 0
        %1734 = vmatpush1.bf16.msra.mxu0 0
        %1735 = vmatprep.subr.bf16.mxu0 0
        %1736 = vmatpush1.bf16.msra.mxu0 0
        %1737 = vmatprep.mubr.bf16.mxu0 0
        %1738 = vmatmul.mubr.bf16.gmra.mrb[0].mxu0 %v1700
        %v1739 = vpop.f32.mrb[0].mxu0
        %v1740 = vadd.f32 0.0, %v1739
        %v1741 = vpop.f32.mrb[0].mxu0
        %v1742 = vpop.f32.mrb[0].mxu0
        %v1743 = vpop.f32.mrb[0].mxu0
        %1744 = vdwg.mxu0
        %s1745 = sld [smem:[#allocation6 + $0x2]]
        %s1746 = sld [smem:[#allocation6 + $0xa]]
        %v1747 = vstv %s1746
        %v1748 = vstv %s1745
        %v1749 = vsel %vm1081, %v1747, %v1748
        %s1750 = sld [smem:[#allocation6 + $0x12]]
        %v1751 = vstv %s1750
        %v1752 = vsel %vm1082, %v1751, %v1749
        %s1753 = sld [smem:[#allocation6 + $0x1a]]
        %v1754 = vstv %s1753
        %v1755 = vsel %vm1083, %v1754, %v1752
        %s1756 = sld [smem:[#allocation6 + $0x22]]
        %v1757 = vstv %s1756
        %v1758 = vsel %vm1084, %v1757, %v1755
        %s1759 = sld [smem:[#allocation6 + $0x2a]]
        %v1760 = vstv %s1759
        %v1761 = vsel %vm1085, %v1760, %v1758
        %s1762 = sld [smem:[#allocation6 + $0x32]]
        %v1763 = vstv %s1762
        %v1764 = vsel %vm1086, %v1763, %v1761
        %s1765 = sld [smem:[#allocation6 + $0x3a]]
        %v1766 = vstv %s1765
        %v1767 = vsel %vm1087, %v1766, %v1764
        %v1768 = vadd.f32 %v671, %v1767
        %1769 = vrot.lane.b32.xlu0 %v1474, 96
        %v1770 = vpop.permute.xlu0 %1769
        %1771 = vrot.lane.b32.xlu0 %v1475, 96
        %v1772 = vpop.permute.xlu0 %1771
        %v1774 = vsel %vm1501, %v1770, 0
        %v1777 = vsel %vm1501, %v1772, 0
        %1779 = vmatprep.subr.bf16.mxu0 0
        %1780 = vmatpush1.bf16.xpose.msra.mxu0 %v1777
        %1781 = vmatprep.subr.bf16.mxu0 0
        %1782 = vmatpush1.bf16.xpose.msra.mxu0 0
        %1783 = vmatprep.subr.bf16.mxu0 0
        %1784 = vmatpush1.bf16.xpose.msra.mxu0 0
        %1785 = vmatprep.subr.bf16.mxu0 0
        %1786 = vmatpush1.bf16.xpose.msra.mxu0 0
        %1787 = vmatprep.subr.bf16.mxu0 0
        %1788 = vmatpush1.bf16.xpose.msra.mxu0 0
        %1789 = vmatprep.subr.bf16.mxu0 0
        %1790 = vmatpush1.bf16.xpose.msra.mxu0 0
        %1791 = vmatprep.subr.bf16.mxu0 0
        %1792 = vmatpush1.bf16.xpose.msra.mxu0 0
        %1793 = vmatprep.subr.bf16.mxu0 0
        %1794 = vmatpush1.bf16.xpose.msra.mxu0 0
        %1795 = vmatprep.subr.bf16.mxu0 0
        %1796 = vmatpush1.bf16.xpose.msra.mxu0 0
        %1797 = vmatprep.subr.bf16.mxu0 0
        %1798 = vmatpush1.bf16.xpose.msra.mxu0 0
        %1799 = vmatprep.subr.bf16.mxu0 0
        %1800 = vmatpush1.bf16.xpose.msra.mxu0 0
        %1801 = vmatprep.subr.bf16.mxu0 0
        %1802 = vmatpush1.bf16.xpose.msra.mxu0 0
        %1803 = vmatprep.subr.bf16.mxu0 0
        %1804 = vmatpush1.bf16.xpose.msra.mxu0 0
        %1805 = vmatprep.subr.bf16.mxu0 0
        %1806 = vmatpush1.bf16.xpose.msra.mxu0 0
        %1807 = vmatprep.subr.bf16.mxu0 0
        %1808 = vmatpush1.bf16.xpose.msra.mxu0 0
        %1809 = vmatprep.subr.bf16.mxu0 0
        %1810 = vmatpush1.bf16.xpose.msra.mxu0 0
        %1811 = vmatprep.mubr.bf16.mxu0 0
        %1812 = vmatmul.mubr.bf16.gmra.mrb[0].mxu0 %v1774
        %v1813 = vpop.f32.mrb[0].mxu0
        %v1814 = vadd.f32 %v1768, %v1813
        %v1815 = vpop.f32.mrb[0].mxu0
        %v1816 = vpop.f32.mrb[0].mxu0
        %v1817 = vpop.f32.mrb[0].mxu0
        %1818 = vdwg.mxu0
        %v1819 = vsel %vm1068, %v1814, -inf
        %1820 = vmax.xlane.f32.xlu0 %v1819
        %v1821 = vpop.xlane.xlu0 %1820
        %v1822 = vsub.f32 %v1814, %v1821
        %v1823 = vmul.f32 %v1822, 1.442695
        %v1824 = vpow.pop %v1823
        %v1825 = vsel %vm1068, %v1824, 0.0
        %1826 = vadd.xlane.f32.xlu0 %v1825
        %v1827 = vpop.xlane.xlu0 %1826
        %v1828 = vrcp.pop %v1827
        %v1829 = vmul.f32 %v1824, %v1828
        %v1830 = vmul.f32 %v1829, %v1079
        %v1831 = vpack.c.bf16 %v1830, %v1830
        %1832 = vrot.lane.b32.xlu0 %v1476, 96
        %v1833 = vpop.permute.xlu0 %1832
        %v1835 = vsel %vm1068, %v1831, 0
        %v1838 = vsel %vm975, %v1833, 0
        %1840 = vmatprep.subr.bf16.mxu0 0
        %1841 = vmatpush1.bf16.msra.mxu0 %v1838
        %1842 = vmatprep.subr.bf16.mxu0 0
        %1843 = vmatpush1.bf16.msra.mxu0 0
        %1844 = vmatprep.subr.bf16.mxu0 0
        %1845 = vmatpush1.bf16.msra.mxu0 0
        %1846 = vmatprep.subr.bf16.mxu0 0
        %1847 = vmatpush1.bf16.msra.mxu0 0
        %1848 = vmatprep.subr.bf16.mxu0 0
        %1849 = vmatpush1.bf16.msra.mxu0 0
        %1850 = vmatprep.subr.bf16.mxu0 0
        %1851 = vmatpush1.bf16.msra.mxu0 0
        %1852 = vmatprep.subr.bf16.mxu0 0
        %1853 = vmatpush1.bf16.msra.mxu0 0
        %1854 = vmatprep.subr.bf16.mxu0 0
        %1855 = vmatpush1.bf16.msra.mxu0 0
        %1856 = vmatprep.subr.bf16.mxu0 0
        %1857 = vmatpush1.bf16.msra.mxu0 0
        %1858 = vmatprep.subr.bf16.mxu0 0
        %1859 = vmatpush1.bf16.msra.mxu0 0
        %1860 = vmatprep.subr.bf16.mxu0 0
        %1861 = vmatpush1.bf16.msra.mxu0 0
        %1862 = vmatprep.subr.bf16.mxu0 0
        %1863 = vmatpush1.bf16.msra.mxu0 0
        %1864 = vmatprep.subr.bf16.mxu0 0
        %1865 = vmatpush1.bf16.msra.mxu0 0
        %1866 = vmatprep.subr.bf16.mxu0 0
        %1867 = vmatpush1.bf16.msra.mxu0 0
        %1868 = vmatprep.subr.bf16.mxu0 0
        %1869 = vmatpush1.bf16.msra.mxu0 0
        %1870 = vmatprep.subr.bf16.mxu0 0
        %1871 = vmatpush1.bf16.msra.mxu0 0
        %1872 = vmatprep.mubr.bf16.mxu0 0
        %1873 = vmatmul.mubr.bf16.gmra.mrb[0].mxu0 %v1835
        %v1874 = vpop.f32.mrb[0].mxu0
        %v1875 = vadd.f32 0.0, %v1874
        %v1876 = vpop.f32.mrb[0].mxu0
        %v1877 = vpop.f32.mrb[0].mxu0
        %v1878 = vpop.f32.mrb[0].mxu0
        %1879 = vdwg.mxu0
        %s1880 = sld [smem:[#allocation6 + $0x3]]
        %s1881 = sld [smem:[#allocation6 + $0xb]]
        %v1882 = vstv %s1881
        %v1883 = vstv %s1880
        %v1884 = vsel %vm1081, %v1882, %v1883
        %s1885 = sld [smem:[#allocation6 + $0x13]]
        %v1886 = vstv %s1885
        %v1887 = vsel %vm1082, %v1886, %v1884
        %s1888 = sld [smem:[#allocation6 + $0x1b]]
        %v1889 = vstv %s1888
        %v1890 = vsel %vm1083, %v1889, %v1887
        %s1891 = sld [smem:[#allocation6 + $0x23]]
        %v1892 = vstv %s1891
        %v1893 = vsel %vm1084, %v1892, %v1890
        %s1894 = sld [smem:[#allocation6 + $0x2b]]
        %v1895 = vstv %s1894
        %v1896 = vsel %vm1085, %v1895, %v1893
        %s1897 = sld [smem:[#allocation6 + $0x33]]
        %v1898 = vstv %s1897
        %v1899 = vsel %vm1086, %v1898, %v1896
        %s1900 = sld [smem:[#allocation6 + $0x3b]]
        %v1901 = vstv %s1900
        %v1902 = vsel %vm1087, %v1901, %v1899
        %v1903 = vadd.f32 %v671, %v1902
        %1904 = vrot.lane.b32.xlu0 %v1474, 80
        %v1905 = vpop.permute.xlu0 %1904
        %1906 = vrot.lane.b32.xlu0 %v1475, 80
        %v1907 = vpop.permute.xlu0 %1906
        %v1909 = vsel %vm1501, %v1905, 0
        %v1912 = vsel %vm1501, %v1907, 0
        %1914 = vmatprep.subr.bf16.mxu0 0
        %1915 = vmatpush1.bf16.xpose.msra.mxu0 %v1912
        %1916 = vmatprep.subr.bf16.mxu0 0
        %1917 = vmatpush1.bf16.xpose.msra.mxu0 0
        %1918 = vmatprep.subr.bf16.mxu0 0
        %1919 = vmatpush1.bf16.xpose.msra.mxu0 0
        %1920 = vmatprep.subr.bf16.mxu0 0
        %1921 = vmatpush1.bf16.xpose.msra.mxu0 0
        %1922 = vmatprep.subr.bf16.mxu0 0
        %1923 = vmatpush1.bf16.xpose.msra.mxu0 0
        %1924 = vmatprep.subr.bf16.mxu0 0
        %1925 = vmatpush1.bf16.xpose.msra.mxu0 0
        %1926 = vmatprep.subr.bf16.mxu0 0
        %1927 = vmatpush1.bf16.xpose.msra.mxu0 0
        %1928 = vmatprep.subr.bf16.mxu0 0
        %1929 = vmatpush1.bf16.xpose.msra.mxu0 0
        %1930 = vmatprep.subr.bf16.mxu0 0
        %1931 = vmatpush1.bf16.xpose.msra.mxu0 0
        %1932 = vmatprep.subr.bf16.mxu0 0
        %1933 = vmatpush1.bf16.xpose.msra.mxu0 0
        %1934 = vmatprep.subr.bf16.mxu0 0
        %1935 = vmatpush1.bf16.xpose.msra.mxu0 0
        %1936 = vmatprep.subr.bf16.mxu0 0
        %1937 = vmatpush1.bf16.xpose.msra.mxu0 0
        %1938 = vmatprep.subr.bf16.mxu0 0
        %1939 = vmatpush1.bf16.xpose.msra.mxu0 0
        %1940 = vmatprep.subr.bf16.mxu0 0
        %1941 = vmatpush1.bf16.xpose.msra.mxu0 0
        %1942 = vmatprep.subr.bf16.mxu0 0
        %1943 = vmatpush1.bf16.xpose.msra.mxu0 0
        %1944 = vmatprep.subr.bf16.mxu0 0
        %1945 = vmatpush1.bf16.xpose.msra.mxu0 0
        %1946 = vmatprep.mubr.bf16.mxu0 0
        %1947 = vmatmul.mubr.bf16.gmra.mrb[0].mxu0 %v1909
        %v1948 = vpop.f32.mrb[0].mxu0
        %v1949 = vadd.f32 %v1903, %v1948
        %v1950 = vpop.f32.mrb[0].mxu0
        %v1951 = vpop.f32.mrb[0].mxu0
        %v1952 = vpop.f32.mrb[0].mxu0
        %1953 = vdwg.mxu0
        %v1954 = vsel %vm1068, %v1949, -inf
        %1955 = vmax.xlane.f32.xlu0 %v1954
        %v1956 = vpop.xlane.xlu0 %1955
        %v1957 = vsub.f32 %v1949, %v1956
        %v1958 = vmul.f32 %v1957, 1.442695
        %v1959 = vpow.pop %v1958
        %v1960 = vsel %vm1068, %v1959, 0.0
        %1961 = vadd.xlane.f32.xlu0 %v1960
        %v1962 = vpop.xlane.xlu0 %1961
        %v1963 = vrcp.pop %v1962
        %v1964 = vmul.f32 %v1959, %v1963
        %v1965 = vmul.f32 %v1964, %v1079
        %v1966 = vpack.c.bf16 %v1965, %v1965
        %1967 = vrot.lane.b32.xlu0 %v1476, 80
        %v1968 = vpop.permute.xlu0 %1967
        %v1970 = vsel %vm1068, %v1966, 0
        %v1973 = vsel %vm975, %v1968, 0
        %1975 = vmatprep.subr.bf16.mxu0 0
        %1976 = vmatpush1.bf16.msra.mxu0 %v1973
        %1977 = vmatprep.subr.bf16.mxu0 0
        %1978 = vmatpush1.bf16.msra.mxu0 0
        %1979 = vmatprep.subr.bf16.mxu0 0
        %1980 = vmatpush1.bf16.msra.mxu0 0
        %1981 = vmatprep.subr.bf16.mxu0 0
        %1982 = vmatpush1.bf16.msra.mxu0 0
        %1983 = vmatprep.subr.bf16.mxu0 0
        %1984 = vmatpush1.bf16.msra.mxu0 0
        %1985 = vmatprep.subr.bf16.mxu0 0
        %1986 = vmatpush1.bf16.msra.mxu0 0
        %1987 = vmatprep.subr.bf16.mxu0 0
        %1988 = vmatpush1.bf16.msra.mxu0 0
        %1989 = vmatprep.subr.bf16.mxu0 0
        %1990 = vmatpush1.bf16.msra.mxu0 0
        %1991 = vmatprep.subr.bf16.mxu0 0
        %1992 = vmatpush1.bf16.msra.mxu0 0
        %1993 = vmatprep.subr.bf16.mxu0 0
        %1994 = vmatpush1.bf16.msra.mxu0 0
        %1995 = vmatprep.subr.bf16.mxu0 0
        %1996 = vmatpush1.bf16.msra.mxu0 0
        %1997 = vmatprep.subr.bf16.mxu0 0
        %1998 = vmatpush1.bf16.msra.mxu0 0
        %1999 = vmatprep.subr.bf16.mxu0 0
        %2000 = vmatpush1.bf16.msra.mxu0 0
        %2001 = vmatprep.subr.bf16.mxu0 0
        %2002 = vmatpush1.bf16.msra.mxu0 0
        %2003 = vmatprep.subr.bf16.mxu0 0
        %2004 = vmatpush1.bf16.msra.mxu0 0
        %2005 = vmatprep.subr.bf16.mxu0 0
        %2006 = vmatpush1.bf16.msra.mxu0 0
        %2007 = vmatprep.mubr.bf16.mxu0 0
        %2008 = vmatmul.mubr.bf16.gmra.mrb[0].mxu0 %v1970
        %v2009 = vpop.f32.mrb[0].mxu0
        %v2010 = vadd.f32 0.0, %v2009
        %v2011 = vpop.f32.mrb[0].mxu0
        %v2012 = vpop.f32.mrb[0].mxu0
        %v2013 = vpop.f32.mrb[0].mxu0
        %2014 = vdwg.mxu0
        %s2015 = sld [smem:[#allocation6 + $0x4]]
        %s2016 = sld [smem:[#allocation6 + $0xc]]
        %v2017 = vstv %s2016
        %v2018 = vstv %s2015
        %v2019 = vsel %vm1081, %v2017, %v2018
        %s2020 = sld [smem:[#allocation6 + $0x14]]
        %v2021 = vstv %s2020
        %v2022 = vsel %vm1082, %v2021, %v2019
        %s2023 = sld [smem:[#allocation6 + $0x1c]]
        %v2024 = vstv %s2023
        %v2025 = vsel %vm1083, %v2024, %v2022
        %s2026 = sld [smem:[#allocation6 + $0x24]]
        %v2027 = vstv %s2026
        %v2028 = vsel %vm1084, %v2027, %v2025
        %s2029 = sld [smem:[#allocation6 + $0x2c]]
        %v2030 = vstv %s2029
        %v2031 = vsel %vm1085, %v2030, %v2028
        %s2032 = sld [smem:[#allocation6 + $0x34]]
        %v2033 = vstv %s2032
        %v2034 = vsel %vm1086, %v2033, %v2031
        %s2035 = sld [smem:[#allocation6 + $0x3c]]
        %v2036 = vstv %s2035
        %v2037 = vsel %vm1087, %v2036, %v2034
        %v2038 = vadd.f32 %v671, %v2037
        %2039 = vrot.lane.b32.xlu0 %v1474, 64
        %v2040 = vpop.permute.xlu0 %2039
        %2041 = vrot.lane.b32.xlu0 %v1475, 64
        %v2042 = vpop.permute.xlu0 %2041
        %v2044 = vsel %vm1501, %v2040, 0
        %v2047 = vsel %vm1501, %v2042, 0
        %2049 = vmatprep.subr.bf16.mxu0 0
        %2050 = vmatpush1.bf16.xpose.msra.mxu0 %v2047
        %2051 = vmatprep.subr.bf16.mxu0 0
        %2052 = vmatpush1.bf16.xpose.msra.mxu0 0
        %2053 = vmatprep.subr.bf16.mxu0 0
        %2054 = vmatpush1.bf16.xpose.msra.mxu0 0
        %2055 = vmatprep.subr.bf16.mxu0 0
        %2056 = vmatpush1.bf16.xpose.msra.mxu0 0
        %2057 = vmatprep.subr.bf16.mxu0 0
        %2058 = vmatpush1.bf16.xpose.msra.mxu0 0
        %2059 = vmatprep.subr.bf16.mxu0 0
        %2060 = vmatpush1.bf16.xpose.msra.mxu0 0
        %2061 = vmatprep.subr.bf16.mxu0 0
        %2062 = vmatpush1.bf16.xpose.msra.mxu0 0
        %2063 = vmatprep.subr.bf16.mxu0 0
        %2064 = vmatpush1.bf16.xpose.msra.mxu0 0
        %2065 = vmatprep.subr.bf16.mxu0 0
        %2066 = vmatpush1.bf16.xpose.msra.mxu0 0
        %2067 = vmatprep.subr.bf16.mxu0 0
        %2068 = vmatpush1.bf16.xpose.msra.mxu0 0
        %2069 = vmatprep.subr.bf16.mxu0 0
        %2070 = vmatpush1.bf16.xpose.msra.mxu0 0
        %2071 = vmatprep.subr.bf16.mxu0 0
        %2072 = vmatpush1.bf16.xpose.msra.mxu0 0
        %2073 = vmatprep.subr.bf16.mxu0 0
        %2074 = vmatpush1.bf16.xpose.msra.mxu0 0
        %2075 = vmatprep.subr.bf16.mxu0 0
        %2076 = vmatpush1.bf16.xpose.msra.mxu0 0
        %2077 = vmatprep.subr.bf16.mxu0 0
        %2078 = vmatpush1.bf16.xpose.msra.mxu0 0
        %2079 = vmatprep.subr.bf16.mxu0 0
        %2080 = vmatpush1.bf16.xpose.msra.mxu0 0
        %2081 = vmatprep.mubr.bf16.mxu0 0
        %2082 = vmatmul.mubr.bf16.gmra.mrb[0].mxu0 %v2044
        %v2083 = vpop.f32.mrb[0].mxu0
        %v2084 = vadd.f32 %v2038, %v2083
        %v2085 = vpop.f32.mrb[0].mxu0
        %v2086 = vpop.f32.mrb[0].mxu0
        %v2087 = vpop.f32.mrb[0].mxu0
        %2088 = vdwg.mxu0
        %v2089 = vsel %vm1068, %v2084, -inf
        %2090 = vmax.xlane.f32.xlu0 %v2089
        %v2091 = vpop.xlane.xlu0 %2090
        %v2092 = vsub.f32 %v2084, %v2091
        %v2093 = vmul.f32 %v2092, 1.442695
        %v2094 = vpow.pop %v2093
        %v2095 = vsel %vm1068, %v2094, 0.0
        %2096 = vadd.xlane.f32.xlu0 %v2095
        %v2097 = vpop.xlane.xlu0 %2096
        %v2098 = vrcp.pop %v2097
        %v2099 = vmul.f32 %v2094, %v2098
        %v2100 = vmul.f32 %v2099, %v1079
        %v2101 = vpack.c.bf16 %v2100, %v2100
        %2102 = vrot.lane.b32.xlu0 %v1476, 64
        %v2103 = vpop.permute.xlu0 %2102
        %v2105 = vsel %vm1068, %v2101, 0
        %v2108 = vsel %vm975, %v2103, 0
        %2110 = vmatprep.subr.bf16.mxu0 0
        %2111 = vmatpush1.bf16.msra.mxu0 %v2108
        %2112 = vmatprep.subr.bf16.mxu0 0
        %2113 = vmatpush1.bf16.msra.mxu0 0
        %2114 = vmatprep.subr.bf16.mxu0 0
        %2115 = vmatpush1.bf16.msra.mxu0 0
        %2116 = vmatprep.subr.bf16.mxu0 0
        %2117 = vmatpush1.bf16.msra.mxu0 0
        %2118 = vmatprep.subr.bf16.mxu0 0
        %2119 = vmatpush1.bf16.msra.mxu0 0
        %2120 = vmatprep.subr.bf16.mxu0 0
        %2121 = vmatpush1.bf16.msra.mxu0 0
        %2122 = vmatprep.subr.bf16.mxu0 0
        %2123 = vmatpush1.bf16.msra.mxu0 0
        %2124 = vmatprep.subr.bf16.mxu0 0
        %2125 = vmatpush1.bf16.msra.mxu0 0
        %2126 = vmatprep.subr.bf16.mxu0 0
        %2127 = vmatpush1.bf16.msra.mxu0 0
        %2128 = vmatprep.subr.bf16.mxu0 0
        %2129 = vmatpush1.bf16.msra.mxu0 0
        %2130 = vmatprep.subr.bf16.mxu0 0
        %2131 = vmatpush1.bf16.msra.mxu0 0
        %2132 = vmatprep.subr.bf16.mxu0 0
        %2133 = vmatpush1.bf16.msra.mxu0 0
        %2134 = vmatprep.subr.bf16.mxu0 0
        %2135 = vmatpush1.bf16.msra.mxu0 0
        %2136 = vmatprep.subr.bf16.mxu0 0
        %2137 = vmatpush1.bf16.msra.mxu0 0
        %2138 = vmatprep.subr.bf16.mxu0 0
        %2139 = vmatpush1.bf16.msra.mxu0 0
        %2140 = vmatprep.subr.bf16.mxu0 0
        %2141 = vmatpush1.bf16.msra.mxu0 0
        %2142 = vmatprep.mubr.bf16.mxu0 0
        %2143 = vmatmul.mubr.bf16.gmra.mrb[0].mxu0 %v2105
        %v2144 = vpop.f32.mrb[0].mxu0
        %v2145 = vadd.f32 0.0, %v2144
        %v2146 = vpop.f32.mrb[0].mxu0
        %v2147 = vpop.f32.mrb[0].mxu0
        %v2148 = vpop.f32.mrb[0].mxu0
        %2149 = vdwg.mxu0
        %s2150 = sld [smem:[#allocation6 + $0x5]]
        %s2151 = sld [smem:[#allocation6 + $0xd]]
        %v2152 = vstv %s2151
        %v2153 = vstv %s2150
        %v2154 = vsel %vm1081, %v2152, %v2153
        %s2155 = sld [smem:[#allocation6 + $0x15]]
        %v2156 = vstv %s2155
        %v2157 = vsel %vm1082, %v2156, %v2154
        %s2158 = sld [smem:[#allocation6 + $0x1d]]
        %v2159 = vstv %s2158
        %v2160 = vsel %vm1083, %v2159, %v2157
        %s2161 = sld [smem:[#allocation6 + $0x25]]
        %v2162 = vstv %s2161
        %v2163 = vsel %vm1084, %v2162, %v2160
        %s2164 = sld [smem:[#allocation6 + $0x2d]]
        %v2165 = vstv %s2164
        %v2166 = vsel %vm1085, %v2165, %v2163
        %s2167 = sld [smem:[#allocation6 + $0x35]]
        %v2168 = vstv %s2167
        %v2169 = vsel %vm1086, %v2168, %v2166
        %s2170 = sld [smem:[#allocation6 + $0x3d]]
        %v2171 = vstv %s2170
        %v2172 = vsel %vm1087, %v2171, %v2169
        %v2173 = vadd.f32 %v671, %v2172
        %2174 = vrot.lane.b32.xlu0 %v1474, 48
        %v2175 = vpop.permute.xlu0 %2174
        %2176 = vrot.lane.b32.xlu0 %v1475, 48
        %v2177 = vpop.permute.xlu0 %2176
        %v2179 = vsel %vm1501, %v2175, 0
        %v2182 = vsel %vm1501, %v2177, 0
        %2184 = vmatprep.subr.bf16.mxu0 0
        %2185 = vmatpush1.bf16.xpose.msra.mxu0 %v2182
        %2186 = vmatprep.subr.bf16.mxu0 0
        %2187 = vmatpush1.bf16.xpose.msra.mxu0 0
        %2188 = vmatprep.subr.bf16.mxu0 0
        %2189 = vmatpush1.bf16.xpose.msra.mxu0 0
        %2190 = vmatprep.subr.bf16.mxu0 0
        %2191 = vmatpush1.bf16.xpose.msra.mxu0 0
        %2192 = vmatprep.subr.bf16.mxu0 0
        %2193 = vmatpush1.bf16.xpose.msra.mxu0 0
        %2194 = vmatprep.subr.bf16.mxu0 0
        %2195 = vmatpush1.bf16.xpose.msra.mxu0 0
        %2196 = vmatprep.subr.bf16.mxu0 0
        %2197 = vmatpush1.bf16.xpose.msra.mxu0 0
        %2198 = vmatprep.subr.bf16.mxu0 0
        %2199 = vmatpush1.bf16.xpose.msra.mxu0 0
        %2200 = vmatprep.subr.bf16.mxu0 0
        %2201 = vmatpush1.bf16.xpose.msra.mxu0 0
        %2202 = vmatprep.subr.bf16.mxu0 0
        %2203 = vmatpush1.bf16.xpose.msra.mxu0 0
        %2204 = vmatprep.subr.bf16.mxu0 0
        %2205 = vmatpush1.bf16.xpose.msra.mxu0 0
        %2206 = vmatprep.subr.bf16.mxu0 0
        %2207 = vmatpush1.bf16.xpose.msra.mxu0 0
        %2208 = vmatprep.subr.bf16.mxu0 0
        %2209 = vmatpush1.bf16.xpose.msra.mxu0 0
        %2210 = vmatprep.subr.bf16.mxu0 0
        %2211 = vmatpush1.bf16.xpose.msra.mxu0 0
        %2212 = vmatprep.subr.bf16.mxu0 0
        %2213 = vmatpush1.bf16.xpose.msra.mxu0 0
        %2214 = vmatprep.subr.bf16.mxu0 0
        %2215 = vmatpush1.bf16.xpose.msra.mxu0 0
        %2216 = vmatprep.mubr.bf16.mxu0 0
        %2217 = vmatmul.mubr.bf16.gmra.mrb[0].mxu0 %v2179
        %v2218 = vpop.f32.mrb[0].mxu0
        %v2219 = vadd.f32 %v2173, %v2218
        %v2220 = vpop.f32.mrb[0].mxu0
        %v2221 = vpop.f32.mrb[0].mxu0
        %v2222 = vpop.f32.mrb[0].mxu0
        %2223 = vdwg.mxu0
        %v2224 = vsel %vm1068, %v2219, -inf
        %2225 = vmax.xlane.f32.xlu0 %v2224
        %v2226 = vpop.xlane.xlu0 %2225
        %v2227 = vsub.f32 %v2219, %v2226
        %v2228 = vmul.f32 %v2227, 1.442695
        %v2229 = vpow.pop %v2228
        %v2230 = vsel %vm1068, %v2229, 0.0
        %2231 = vadd.xlane.f32.xlu0 %v2230
        %v2232 = vpop.xlane.xlu0 %2231
        %v2233 = vrcp.pop %v2232
        %v2234 = vmul.f32 %v2229, %v2233
        %v2235 = vmul.f32 %v2234, %v1079
        %v2236 = vpack.c.bf16 %v2235, %v2235
        %2237 = vrot.lane.b32.xlu0 %v1476, 48
        %v2238 = vpop.permute.xlu0 %2237
        %v2240 = vsel %vm1068, %v2236, 0
        %v2243 = vsel %vm975, %v2238, 0
        %2245 = vmatprep.subr.bf16.mxu0 0
        %2246 = vmatpush1.bf16.msra.mxu0 %v2243
        %2247 = vmatprep.subr.bf16.mxu0 0
        %2248 = vmatpush1.bf16.msra.mxu0 0
        %2249 = vmatprep.subr.bf16.mxu0 0
        %2250 = vmatpush1.bf16.msra.mxu0 0
        %2251 = vmatprep.subr.bf16.mxu0 0
        %2252 = vmatpush1.bf16.msra.mxu0 0
        %2253 = vmatprep.subr.bf16.mxu0 0
        %2254 = vmatpush1.bf16.msra.mxu0 0
        %2255 = vmatprep.subr.bf16.mxu0 0
        %2256 = vmatpush1.bf16.msra.mxu0 0
        %2257 = vmatprep.subr.bf16.mxu0 0
        %2258 = vmatpush1.bf16.msra.mxu0 0
        %2259 = vmatprep.subr.bf16.mxu0 0
        %2260 = vmatpush1.bf16.msra.mxu0 0
        %2261 = vmatprep.subr.bf16.mxu0 0
        %2262 = vmatpush1.bf16.msra.mxu0 0
        %2263 = vmatprep.subr.bf16.mxu0 0
        %2264 = vmatpush1.bf16.msra.mxu0 0
        %2265 = vmatprep.subr.bf16.mxu0 0
        %2266 = vmatpush1.bf16.msra.mxu0 0
        %2267 = vmatprep.subr.bf16.mxu0 0
        %2268 = vmatpush1.bf16.msra.mxu0 0
        %2269 = vmatprep.subr.bf16.mxu0 0
        %2270 = vmatpush1.bf16.msra.mxu0 0
        %2271 = vmatprep.subr.bf16.mxu0 0
        %2272 = vmatpush1.bf16.msra.mxu0 0
        %2273 = vmatprep.subr.bf16.mxu0 0
        %2274 = vmatpush1.bf16.msra.mxu0 0
        %2275 = vmatprep.subr.bf16.mxu0 0
        %2276 = vmatpush1.bf16.msra.mxu0 0
        %2277 = vmatprep.mubr.bf16.mxu0 0
        %2278 = vmatmul.mubr.bf16.gmra.mrb[0].mxu0 %v2240
        %v2279 = vpop.f32.mrb[0].mxu0
        %v2280 = vadd.f32 0.0, %v2279
        %v2281 = vpop.f32.mrb[0].mxu0
        %v2282 = vpop.f32.mrb[0].mxu0
        %v2283 = vpop.f32.mrb[0].mxu0
        %2284 = vdwg.mxu0
        %s2285 = sld [smem:[#allocation6 + $0x6]]
        %s2286 = sld [smem:[#allocation6 + $0xe]]
        %v2287 = vstv %s2286
        %v2288 = vstv %s2285
        %v2289 = vsel %vm1081, %v2287, %v2288
        %s2290 = sld [smem:[#allocation6 + $0x16]]
        %v2291 = vstv %s2290
        %v2292 = vsel %vm1082, %v2291, %v2289
        %s2293 = sld [smem:[#allocation6 + $0x1e]]
        %v2294 = vstv %s2293
        %v2295 = vsel %vm1083, %v2294, %v2292
        %s2296 = sld [smem:[#allocation6 + $0x26]]
        %v2297 = vstv %s2296
        %v2298 = vsel %vm1084, %v2297, %v2295
        %s2299 = sld [smem:[#allocation6 + $0x2e]]
        %v2300 = vstv %s2299
        %v2301 = vsel %vm1085, %v2300, %v2298
        %s2302 = sld [smem:[#allocation6 + $0x36]]
        %v2303 = vstv %s2302
        %v2304 = vsel %vm1086, %v2303, %v2301
        %s2305 = sld [smem:[#allocation6 + $0x3e]]
        %v2306 = vstv %s2305
        %v2307 = vsel %vm1087, %v2306, %v2304
        %v2308 = vadd.f32 %v671, %v2307
        %2309 = vrot.lane.b32.xlu0 %v1474, 32
        %v2310 = vpop.permute.xlu0 %2309
        %2311 = vrot.lane.b32.xlu0 %v1475, 32
        %v2312 = vpop.permute.xlu0 %2311
        %v2314 = vsel %vm1501, %v2310, 0
        %v2317 = vsel %vm1501, %v2312, 0
        %2319 = vmatprep.subr.bf16.mxu0 0
        %2320 = vmatpush1.bf16.xpose.msra.mxu0 %v2317
        %2321 = vmatprep.subr.bf16.mxu0 0
        %2322 = vmatpush1.bf16.xpose.msra.mxu0 0
        %2323 = vmatprep.subr.bf16.mxu0 0
        %2324 = vmatpush1.bf16.xpose.msra.mxu0 0
        %2325 = vmatprep.subr.bf16.mxu0 0
        %2326 = vmatpush1.bf16.xpose.msra.mxu0 0
        %2327 = vmatprep.subr.bf16.mxu0 0
        %2328 = vmatpush1.bf16.xpose.msra.mxu0 0
        %2329 = vmatprep.subr.bf16.mxu0 0
        %2330 = vmatpush1.bf16.xpose.msra.mxu0 0
        %2331 = vmatprep.subr.bf16.mxu0 0
        %2332 = vmatpush1.bf16.xpose.msra.mxu0 0
        %2333 = vmatprep.subr.bf16.mxu0 0
        %2334 = vmatpush1.bf16.xpose.msra.mxu0 0
        %2335 = vmatprep.subr.bf16.mxu0 0
        %2336 = vmatpush1.bf16.xpose.msra.mxu0 0
        %2337 = vmatprep.subr.bf16.mxu0 0
        %2338 = vmatpush1.bf16.xpose.msra.mxu0 0
        %2339 = vmatprep.subr.bf16.mxu0 0
        %2340 = vmatpush1.bf16.xpose.msra.mxu0 0
        %2341 = vmatprep.subr.bf16.mxu0 0
        %2342 = vmatpush1.bf16.xpose.msra.mxu0 0
        %2343 = vmatprep.subr.bf16.mxu0 0
        %2344 = vmatpush1.bf16.xpose.msra.mxu0 0
        %2345 = vmatprep.subr.bf16.mxu0 0
        %2346 = vmatpush1.bf16.xpose.msra.mxu0 0
        %2347 = vmatprep.subr.bf16.mxu0 0
        %2348 = vmatpush1.bf16.xpose.msra.mxu0 0
        %2349 = vmatprep.subr.bf16.mxu0 0
        %2350 = vmatpush1.bf16.xpose.msra.mxu0 0
        %2351 = vmatprep.mubr.bf16.mxu0 0
        %2352 = vmatmul.mubr.bf16.gmra.mrb[0].mxu0 %v2314
        %v2353 = vpop.f32.mrb[0].mxu0
        %v2354 = vadd.f32 %v2308, %v2353
        %v2355 = vpop.f32.mrb[0].mxu0
        %v2356 = vpop.f32.mrb[0].mxu0
        %v2357 = vpop.f32.mrb[0].mxu0
        %2358 = vdwg.mxu0
        %v2359 = vsel %vm1068, %v2354, -inf
        %2360 = vmax.xlane.f32.xlu0 %v2359
        %v2361 = vpop.xlane.xlu0 %2360
        %v2362 = vsub.f32 %v2354, %v2361
        %v2363 = vmul.f32 %v2362, 1.442695
        %v2364 = vpow.pop %v2363
        %v2365 = vsel %vm1068, %v2364, 0.0
        %2366 = vadd.xlane.f32.xlu0 %v2365
        %v2367 = vpop.xlane.xlu0 %2366
        %v2368 = vrcp.pop %v2367
        %v2369 = vmul.f32 %v2364, %v2368
        %v2370 = vmul.f32 %v2369, %v1079
        %v2371 = vpack.c.bf16 %v2370, %v2370
        %2372 = vrot.lane.b32.xlu0 %v1476, 32
        %v2373 = vpop.permute.xlu0 %2372
        %v2375 = vsel %vm1068, %v2371, 0
        %v2378 = vsel %vm975, %v2373, 0
        %2380 = vmatprep.subr.bf16.mxu0 0
        %2381 = vmatpush1.bf16.msra.mxu0 %v2378
        %2382 = vmatprep.subr.bf16.mxu0 0
        %2383 = vmatpush1.bf16.msra.mxu0 0
        %2384 = vmatprep.subr.bf16.mxu0 0
        %2385 = vmatpush1.bf16.msra.mxu0 0
        %2386 = vmatprep.subr.bf16.mxu0 0
        %2387 = vmatpush1.bf16.msra.mxu0 0
        %2388 = vmatprep.subr.bf16.mxu0 0
        %2389 = vmatpush1.bf16.msra.mxu0 0
        %2390 = vmatprep.subr.bf16.mxu0 0
        %2391 = vmatpush1.bf16.msra.mxu0 0
        %2392 = vmatprep.subr.bf16.mxu0 0
        %2393 = vmatpush1.bf16.msra.mxu0 0
        %2394 = vmatprep.subr.bf16.mxu0 0
        %2395 = vmatpush1.bf16.msra.mxu0 0
        %2396 = vmatprep.subr.bf16.mxu0 0
        %2397 = vmatpush1.bf16.msra.mxu0 0
        %2398 = vmatprep.subr.bf16.mxu0 0
        %2399 = vmatpush1.bf16.msra.mxu0 0
        %2400 = vmatprep.subr.bf16.mxu0 0
        %2401 = vmatpush1.bf16.msra.mxu0 0
        %2402 = vmatprep.subr.bf16.mxu0 0
        %2403 = vmatpush1.bf16.msra.mxu0 0
        %2404 = vmatprep.subr.bf16.mxu0 0
        %2405 = vmatpush1.bf16.msra.mxu0 0
        %2406 = vmatprep.subr.bf16.mxu0 0
        %2407 = vmatpush1.bf16.msra.mxu0 0
        %2408 = vmatprep.subr.bf16.mxu0 0
        %2409 = vmatpush1.bf16.msra.mxu0 0
        %2410 = vmatprep.subr.bf16.mxu0 0
        %2411 = vmatpush1.bf16.msra.mxu0 0
        %2412 = vmatprep.mubr.bf16.mxu0 0
        %2413 = vmatmul.mubr.bf16.gmra.mrb[0].mxu0 %v2375
        %v2414 = vpop.f32.mrb[0].mxu0
        %v2415 = vadd.f32 0.0, %v2414
        %v2416 = vpop.f32.mrb[0].mxu0
        %v2417 = vpop.f32.mrb[0].mxu0
        %v2418 = vpop.f32.mrb[0].mxu0
        %2419 = vdwg.mxu0
        %s2420 = sld [smem:[#allocation6 + $0x7]]
        %s2421 = sld [smem:[#allocation6 + $0xf]]
        %v2422 = vstv %s2421
        %v2423 = vstv %s2420
        %v2424 = vsel %vm1081, %v2422, %v2423
        %s2425 = sld [smem:[#allocation6 + $0x17]]
        %v2426 = vstv %s2425
        %v2427 = vsel %vm1082, %v2426, %v2424
        %s2428 = sld [smem:[#allocation6 + $0x1f]]
        %v2429 = vstv %s2428
        %v2430 = vsel %vm1083, %v2429, %v2427
        %s2431 = sld [smem:[#allocation6 + $0x27]]
        %v2432 = vstv %s2431
        %v2433 = vsel %vm1084, %v2432, %v2430
        %s2434 = sld [smem:[#allocation6 + $0x2f]]
        %v2435 = vstv %s2434
        %v2436 = vsel %vm1085, %v2435, %v2433
        %s2437 = sld [smem:[#allocation6 + $0x37]]
        %v2438 = vstv %s2437
        %v2439 = vsel %vm1086, %v2438, %v2436
        %s2440 = sld [smem:[#allocation6 + $0x3f]]
        %v2441 = vstv %s2440
        %v2442 = vsel %vm1087, %v2441, %v2439
        %v2443 = vadd.f32 %v671, %v2442
        %2444 = vrot.lane.b32.xlu0 %v1474, 16
        %v2445 = vpop.permute.xlu0 %2444
        %2446 = vrot.lane.b32.xlu0 %v1475, 16
        %v2447 = vpop.permute.xlu0 %2446
        %v2449 = vsel %vm1501, %v2445, 0
        %v2452 = vsel %vm1501, %v2447, 0
        %2454 = vmatprep.subr.bf16.mxu0 0
        %2455 = vmatpush1.bf16.xpose.msra.mxu0 %v2452
        %2456 = vmatprep.subr.bf16.mxu0 0
        %2457 = vmatpush1.bf16.xpose.msra.mxu0 0
        %2458 = vmatprep.subr.bf16.mxu0 0
        %2459 = vmatpush1.bf16.xpose.msra.mxu0 0
        %2460 = vmatprep.subr.bf16.mxu0 0
        %2461 = vmatpush1.bf16.xpose.msra.mxu0 0
        %2462 = vmatprep.subr.bf16.mxu0 0
        %2463 = vmatpush1.bf16.xpose.msra.mxu0 0
        %2464 = vmatprep.subr.bf16.mxu0 0
        %2465 = vmatpush1.bf16.xpose.msra.mxu0 0
        %2466 = vmatprep.subr.bf16.mxu0 0
        %2467 = vmatpush1.bf16.xpose.msra.mxu0 0
        %2468 = vmatprep.subr.bf16.mxu0 0
        %2469 = vmatpush1.bf16.xpose.msra.mxu0 0
        %2470 = vmatprep.subr.bf16.mxu0 0
        %2471 = vmatpush1.bf16.xpose.msra.mxu0 0
        %2472 = vmatprep.subr.bf16.mxu0 0
        %2473 = vmatpush1.bf16.xpose.msra.mxu0 0
        %2474 = vmatprep.subr.bf16.mxu0 0
        %2475 = vmatpush1.bf16.xpose.msra.mxu0 0
        %2476 = vmatprep.subr.bf16.mxu0 0
        %2477 = vmatpush1.bf16.xpose.msra.mxu0 0
        %2478 = vmatprep.subr.bf16.mxu0 0
        %2479 = vmatpush1.bf16.xpose.msra.mxu0 0
        %2480 = vmatprep.subr.bf16.mxu0 0
        %2481 = vmatpush1.bf16.xpose.msra.mxu0 0
        %2482 = vmatprep.subr.bf16.mxu0 0
        %2483 = vmatpush1.bf16.xpose.msra.mxu0 0
        %2484 = vmatprep.subr.bf16.mxu0 0
        %2485 = vmatpush1.bf16.xpose.msra.mxu0 0
        %2486 = vmatprep.mubr.bf16.mxu0 0
        %2487 = vmatmul.mubr.bf16.gmra.mrb[0].mxu0 %v2449
        %v2488 = vpop.f32.mrb[0].mxu0
        %v2489 = vadd.f32 %v2443, %v2488
        %v2490 = vpop.f32.mrb[0].mxu0
        %v2491 = vpop.f32.mrb[0].mxu0
        %v2492 = vpop.f32.mrb[0].mxu0
        %2493 = vdwg.mxu0
        %v2494 = vsel %vm1068, %v2489, -inf
        %2495 = vmax.xlane.f32.xlu0 %v2494
        %v2496 = vpop.xlane.xlu0 %2495
        %v2497 = vsub.f32 %v2489, %v2496
        %v2498 = vmul.f32 %v2497, 1.442695
        %v2499 = vpow.pop %v2498
        %v2500 = vsel %vm1068, %v2499, 0.0
        %2501 = vadd.xlane.f32.xlu0 %v2500
        %v2502 = vpop.xlane.xlu0 %2501
        %v2503 = vrcp.pop %v2502
        %v2504 = vmul.f32 %v2499, %v2503
        %v2505 = vmul.f32 %v2504, %v1079
        %v2506 = vpack.c.bf16 %v2505, %v2505
        %2507 = vrot.lane.b32.xlu0 %v1476, 16
        %v2508 = vpop.permute.xlu0 %2507
        %v2510 = vsel %vm1068, %v2506, 0
        %v2513 = vsel %vm975, %v2508, 0
        %2515 = vmatprep.subr.bf16.mxu0 0
        %2516 = vmatpush1.bf16.msra.mxu0 %v2513
        %2517 = vmatprep.subr.bf16.mxu0 0
        %2518 = vmatpush1.bf16.msra.mxu0 0
        %2519 = vmatprep.subr.bf16.mxu0 0
        %2520 = vmatpush1.bf16.msra.mxu0 0
        %2521 = vmatprep.subr.bf16.mxu0 0
        %2522 = vmatpush1.bf16.msra.mxu0 0
        %2523 = vmatprep.subr.bf16.mxu0 0
        %2524 = vmatpush1.bf16.msra.mxu0 0
        %2525 = vmatprep.subr.bf16.mxu0 0
        %2526 = vmatpush1.bf16.msra.mxu0 0
        %2527 = vmatprep.subr.bf16.mxu0 0
        %2528 = vmatpush1.bf16.msra.mxu0 0
        %2529 = vmatprep.subr.bf16.mxu0 0
        %2530 = vmatpush1.bf16.msra.mxu0 0
        %2531 = vmatprep.subr.bf16.mxu0 0
        %2532 = vmatpush1.bf16.msra.mxu0 0
        %2533 = vmatprep.subr.bf16.mxu0 0
        %2534 = vmatpush1.bf16.msra.mxu0 0
        %2535 = vmatprep.subr.bf16.mxu0 0
        %2536 = vmatpush1.bf16.msra.mxu0 0
        %2537 = vmatprep.subr.bf16.mxu0 0
        %2538 = vmatpush1.bf16.msra.mxu0 0
        %2539 = vmatprep.subr.bf16.mxu0 0
        %2540 = vmatpush1.bf16.msra.mxu0 0
        %2541 = vmatprep.subr.bf16.mxu0 0
        %2542 = vmatpush1.bf16.msra.mxu0 0
        %2543 = vmatprep.subr.bf16.mxu0 0
        %2544 = vmatpush1.bf16.msra.mxu0 0
        %2545 = vmatprep.subr.bf16.mxu0 0
        %2546 = vmatpush1.bf16.msra.mxu0 0
        %2547 = vmatprep.mubr.bf16.mxu0 0
        %2548 = vmatmul.mubr.bf16.gmra.mrb[0].mxu0 %v2510
        %v2549 = vpop.f32.mrb[0].mxu0
        %v2550 = vadd.f32 0.0, %v2549
        %v2551 = vpop.f32.mrb[0].mxu0
        %v2552 = vpop.f32.mrb[0].mxu0
        %v2553 = vpop.f32.mrb[0].mxu0
        %2554 = vdwg.mxu0
        %2556 = vrot.lane.b32.xlu0 %v1740, 16
        %v2557 = vpop.permute.xlu0 %2556
        %2560 = vrot.lane.b32.xlu0 %v1875, 32
        %v2561 = vpop.permute.xlu0 %2560
        %2564 = vrot.lane.b32.xlu0 %v2010, 48
        %v2565 = vpop.permute.xlu0 %2564
        %2568 = vrot.lane.b32.xlu0 %v2145, 64
        %v2569 = vpop.permute.xlu0 %2568
        %2572 = vrot.lane.b32.xlu0 %v2280, 80
        %v2573 = vpop.permute.xlu0 %2572
        %2576 = vrot.lane.b32.xlu0 %v2415, 96
        %v2577 = vpop.permute.xlu0 %2576
        %2580 = vrot.lane.b32.xlu0 %v2550, 112
        %v2581 = vpop.permute.xlu0 %2580
        %v2583 = vsel %vm1501, %v1602, %v2557
        %vm2584 = vcmask 261120
        %v2585 = vsel %vm2584, %v2583, %v2561
        %vm2586 = vcmask 392192
        %v2587 = vsel %vm2586, %v2585, %v2565
        %vm2588 = vcmask 523264
        %v2589 = vsel %vm2588, %v2587, %v2569
        %vm2590 = vcmask 654336
        %v2591 = vsel %vm2590, %v2589, %v2573
        %vm2592 = vcmask 785408
        %v2593 = vsel %vm2592, %v2591, %v2577
        %vm2594 = vcmask 916480
        %v2595 = vsel %vm2594, %v2593, %v2581
        %v2596 = vpack.c.bf16 %v2595, %v2595
        %v2597 = vld [vmem:[%s10] sm:$0xf]
        %v2598 = vld [vmem:[%s10 + $0x4] sm:$0xf]
        %v2599 = vld [vmem:[%s10 + $0x8] sm:$0xf]
        %v2600 = vld [vmem:[%s10 + $0xc] sm:$0xf]
        %v2601 = vld [vmem:[%s10 + $0x10] sm:$0xf]
        %v2602 = vld [vmem:[%s10 + $0x14] sm:$0xf]
        %v2603 = vld [vmem:[%s10 + $0x18] sm:$0xf]
        %v2604 = vld [vmem:[%s10 + $0x1c] sm:$0xf]
        %v2605 = vld [vmem:[%s10 + $0x20] sm:$0xf]
        %v2606 = vld [vmem:[%s10 + $0x24] sm:$0xf]
        %v2607 = vld [vmem:[%s10 + $0x28] sm:$0xf]
        %v2608 = vld [vmem:[%s10 + $0x2c] sm:$0xf]
        %v2609 = vld [vmem:[%s10 + $0x30] sm:$0xf]
        %v2610 = vld [vmem:[%s10 + $0x34] sm:$0xf]
        %v2611 = vld [vmem:[%s10 + $0x38] sm:$0xf]
        %v2612 = vld [vmem:[%s10 + $0x3c] sm:$0xf]
        %v2629 = vunpack.c.l.b16 %v2597
        %v2630 = vunpack.c.l.b16 %v2598
        %v2631 = vunpack.c.l.b16 %v2599
        %v2632 = vunpack.c.l.b16 %v2600
        %v2633 = vunpack.c.l.b16 %v2601
        %v2634 = vunpack.c.l.b16 %v2602
        %v2635 = vunpack.c.l.b16 %v2603
        %v2636 = vunpack.c.l.b16 %v2604
        %v2637 = vunpack.c.l.b16 %v2605
        %v2638 = vunpack.c.l.b16 %v2606
        %v2639 = vunpack.c.l.b16 %v2607
        %v2640 = vunpack.c.l.b16 %v2608
        %v2641 = vunpack.c.l.b16 %v2609
        %v2642 = vunpack.c.l.b16 %v2610
        %v2643 = vunpack.c.l.b16 %v2611
        %v2644 = vunpack.c.l.b16 %v2612
        %v2645 = vpack.c.b16 %v2630, %v2629
        %v2646 = vpack.c.b16 %v2632, %v2631
        %v2647 = vpack.c.b16 %v2634, %v2633
        %v2648 = vpack.c.b16 %v2636, %v2635
        %v2649 = vpack.c.b16 %v2638, %v2637
        %v2650 = vpack.c.b16 %v2640, %v2639
        %v2651 = vpack.c.b16 %v2642, %v2641
        %v2652 = vpack.c.b16 %v2644, %v2643
        %2661 = vmatprep.subr.bf16.mxu0 0
        %2662 = vmatpush1.bf16.msra.mxu0 %v2645
        %2663 = vmatprep.subr.bf16.mxu0 0
        %2664 = vmatpush1.bf16.msra.mxu0 %v2646
        %2665 = vmatprep.subr.bf16.mxu0 0
        %2666 = vmatpush1.bf16.msra.mxu0 %v2647
        %2667 = vmatprep.subr.bf16.mxu0 0
        %2668 = vmatpush1.bf16.msra.mxu0 %v2648
        %2669 = vmatprep.subr.bf16.mxu0 0
        %2670 = vmatpush1.bf16.msra.mxu0 %v2649
        %2671 = vmatprep.subr.bf16.mxu0 0
        %2672 = vmatpush1.bf16.msra.mxu0 %v2650
        %2673 = vmatprep.subr.bf16.mxu0 0
        %2674 = vmatpush1.bf16.msra.mxu0 %v2651
        %2675 = vmatprep.subr.bf16.mxu0 0
        %2676 = vmatpush1.bf16.msra.mxu0 %v2652
        %2677 = vmatprep.subr.bf16.mxu0 0
        %2678 = vmatpush1.bf16.msra.mxu0 0
        %2679 = vmatprep.subr.bf16.mxu0 0
        %2680 = vmatpush1.bf16.msra.mxu0 0
        %2681 = vmatprep.subr.bf16.mxu0 0
        %2682 = vmatpush1.bf16.msra.mxu0 0
        %2683 = vmatprep.subr.bf16.mxu0 0
        %2684 = vmatpush1.bf16.msra.mxu0 0
        %2685 = vmatprep.subr.bf16.mxu0 0
        %2686 = vmatpush1.bf16.msra.mxu0 0
        %2687 = vmatprep.subr.bf16.mxu0 0
        %2688 = vmatpush1.bf16.msra.mxu0 0
        %2689 = vmatprep.subr.bf16.mxu0 0
        %2690 = vmatpush1.bf16.msra.mxu0 0
        %2691 = vmatprep.subr.bf16.mxu0 0
        %2692 = vmatpush1.bf16.msra.mxu0 0
        %2693 = vmatprep.mubr.bf16.mxu0 0
        %2694 = vmatmul.mubr.bf16.gmra.mrb[0].mxu0 %v2596
        %v2695 = vpop.f32.mrb[0].mxu0
        %v2696 = vadd.f32 0.0, %v2695
        %v2697 = vpop.f32.mrb[0].mxu0
        %v2698 = vpop.f32.mrb[0].mxu0
        %v2699 = vpop.f32.mrb[0].mxu0
        %2700 = vdwg.mxu0
        %v2701 = vadd.f32 %v1227, %v2696
        %v2702 = vmax.f32 %v2701, 0.0
        %v2703 = vpack.c.bf16 %v2702, %v2702
        %s2704 = scalar_lea.vmem [#allocation13], 192
        %v2705 = vld [vmem:[%s2704] sm:$0xff]
        %v2706 = vld [vmem:[%s2704 + $0x8] sm:$0xf]
        %v2707 = vld [vmem:[%s2704 + $0xc] sm:$0xff]
        %v2708 = vld [vmem:[%s2704 + $0x14] sm:$0xf]
        %v2709 = vld [vmem:[%s2704 + $0x18] sm:$0xff]
        %v2710 = vld [vmem:[%s2704 + $0x20] sm:$0xf]
        %v2711 = vld [vmem:[%s2704 + $0x24] sm:$0xff]
        %v2712 = vld [vmem:[%s2704 + $0x2c] sm:$0xf]
        %v2713 = vld [vmem:[%s2704 + $0x30] sm:$0xff]
        %v2714 = vld [vmem:[%s2704 + $0x38] sm:$0xf]
        %v2715 = vld [vmem:[%s2704 + $0x3c] sm:$0xff]
        %v2716 = vld [vmem:[%s2704 + $0x44] sm:$0xf]
        %v2717 = vld [vmem:[%s2704 + $0x48] sm:$0xff]
        %v2718 = vld [vmem:[%s2704 + $0x50] sm:$0xf]
        %v2719 = vld [vmem:[%s2704 + $0x54] sm:$0xff]
        %v2720 = vld [vmem:[%s2704 + $0x5c] sm:$0xf]
        %v2721 = vld [vmem:[%s2704 + $0x60] sm:$0xff]
        %v2722 = vld [vmem:[%s2704 + $0x68] sm:$0xf]
        %v2723 = vld [vmem:[%s2704 + $0x6c] sm:$0xff]
        %v2724 = vld [vmem:[%s2704 + $0x74] sm:$0xf]
        %v2725 = vld [vmem:[%s2704 + $0x78] sm:$0xff]
        %v2726 = vld [vmem:[%s2704 + $0x80] sm:$0xf]
        %v2727 = vld [vmem:[%s2704 + $0x84] sm:$0xff]
        %v2728 = vld [vmem:[%s2704 + $0x8c] sm:$0xf]
        %v2729 = vld [vmem:[%s2704 + $0x90] sm:$0xff]
        %v2730 = vld [vmem:[%s2704 + $0x98] sm:$0xf]
        %v2731 = vld [vmem:[%s2704 + $0x9c] sm:$0xff]
        %v2732 = vld [vmem:[%s2704 + $0xa4] sm:$0xf]
        %v2733 = vld [vmem:[%s2704 + $0xa8] sm:$0xff]
        %v2734 = vld [vmem:[%s2704 + $0xb0] sm:$0xf]
        %v2735 = vld [vmem:[%s2704 + $0xb4] sm:$0xff]
        %v2736 = vld [vmem:[%s2704 + $0xbc] sm:$0xf]
        %v2769 = vunpack.c.l.b16 %v2705
        %v2770 = vunpack.c.h.b16 %v2705
        %v2771 = vunpack.c.l.b16 %v2706
        %v2772 = vunpack.c.l.b16 %v2707
        %v2773 = vunpack.c.h.b16 %v2707
        %v2774 = vunpack.c.l.b16 %v2708
        %v2775 = vunpack.c.l.b16 %v2709
        %v2776 = vunpack.c.h.b16 %v2709
        %v2777 = vunpack.c.l.b16 %v2710
        %v2778 = vunpack.c.l.b16 %v2711
        %v2779 = vunpack.c.h.b16 %v2711
        %v2780 = vunpack.c.l.b16 %v2712
        %v2781 = vunpack.c.l.b16 %v2713
        %v2782 = vunpack.c.h.b16 %v2713
        %v2783 = vunpack.c.l.b16 %v2714
        %v2784 = vunpack.c.l.b16 %v2715
        %v2785 = vunpack.c.h.b16 %v2715
        %v2786 = vunpack.c.l.b16 %v2716
        %v2787 = vunpack.c.l.b16 %v2717
        %v2788 = vunpack.c.h.b16 %v2717
        %v2789 = vunpack.c.l.b16 %v2718
        %v2790 = vunpack.c.l.b16 %v2719
        %v2791 = vunpack.c.h.b16 %v2719
        %v2792 = vunpack.c.l.b16 %v2720
        %v2793 = vunpack.c.l.b16 %v2721
        %v2794 = vunpack.c.h.b16 %v2721
        %v2795 = vunpack.c.l.b16 %v2722
        %v2796 = vunpack.c.l.b16 %v2723
        %v2797 = vunpack.c.h.b16 %v2723
        %v2798 = vunpack.c.l.b16 %v2724
        %v2799 = vunpack.c.l.b16 %v2725
        %v2800 = vunpack.c.h.b16 %v2725
        %v2801 = vunpack.c.l.b16 %v2726
        %v2802 = vunpack.c.l.b16 %v2727
        %v2803 = vunpack.c.h.b16 %v2727
        %v2804 = vunpack.c.l.b16 %v2728
        %v2805 = vunpack.c.l.b16 %v2729
        %v2806 = vunpack.c.h.b16 %v2729
        %v2807 = vunpack.c.l.b16 %v2730
        %v2808 = vunpack.c.l.b16 %v2731
        %v2809 = vunpack.c.h.b16 %v2731
        %v2810 = vunpack.c.l.b16 %v2732
        %v2811 = vunpack.c.l.b16 %v2733
        %v2812 = vunpack.c.h.b16 %v2733
        %v2813 = vunpack.c.l.b16 %v2734
        %v2814 = vunpack.c.l.b16 %v2735
        %v2815 = vunpack.c.h.b16 %v2735
        %v2816 = vunpack.c.l.b16 %v2736
        %v2817 = vpack.c.b16 %v2772, %v2769
        %v2818 = vpack.c.b16 %v2773, %v2770
        %v2819 = vpack.c.b16 %v2774, %v2771
        %v2820 = vpack.c.b16 %v2778, %v2775
        %v2821 = vpack.c.b16 %v2779, %v2776
        %v2822 = vpack.c.b16 %v2780, %v2777
        %v2823 = vpack.c.b16 %v2784, %v2781
        %v2824 = vpack.c.b16 %v2785, %v2782
        %v2825 = vpack.c.b16 %v2786, %v2783
        %v2826 = vpack.c.b16 %v2790, %v2787
        %v2827 = vpack.c.b16 %v2791, %v2788
        %v2828 = vpack.c.b16 %v2792, %v2789
        %v2829 = vpack.c.b16 %v2796, %v2793
        %v2830 = vpack.c.b16 %v2797, %v2794
        %v2831 = vpack.c.b16 %v2798, %v2795
        %v2832 = vpack.c.b16 %v2802, %v2799
        %v2833 = vpack.c.b16 %v2803, %v2800
        %v2834 = vpack.c.b16 %v2804, %v2801
        %v2835 = vpack.c.b16 %v2808, %v2805
        %v2836 = vpack.c.b16 %v2809, %v2806
        %v2837 = vpack.c.b16 %v2810, %v2807
        %v2838 = vpack.c.b16 %v2814, %v2811
        %v2839 = vpack.c.b16 %v2815, %v2812
        %v2840 = vpack.c.b16 %v2816, %v2813
        %2865 = vmatprep.subr.bf16.mxu0 %v2818
        %2866 = vmatpush1.bf16.msra.mxu0 %v2817
        %2867 = vmatprep.subr.bf16.mxu0 %v2821
        %2868 = vmatpush1.bf16.msra.mxu0 %v2820
        %2869 = vmatprep.subr.bf16.mxu0 %v2824
        %2870 = vmatpush1.bf16.msra.mxu0 %v2823
        %2871 = vmatprep.subr.bf16.mxu0 %v2827
        %2872 = vmatpush1.bf16.msra.mxu0 %v2826
        %2873 = vmatprep.subr.bf16.mxu0 %v2830
        %2874 = vmatpush1.bf16.msra.mxu0 %v2829
        %2875 = vmatprep.subr.bf16.mxu0 %v2833
        %2876 = vmatpush1.bf16.msra.mxu0 %v2832
        %2877 = vmatprep.subr.bf16.mxu0 %v2836
        %2878 = vmatpush1.bf16.msra.mxu0 %v2835
        %2879 = vmatprep.subr.bf16.mxu0 %v2839
        %2880 = vmatpush1.bf16.msra.mxu0 %v2838
        %2881 = vmatprep.subr.bf16.mxu0 0
        %2882 = vmatpush1.bf16.msra.mxu0 0
        %2883 = vmatprep.subr.bf16.mxu0 0
        %2884 = vmatpush1.bf16.msra.mxu0 0
        %2885 = vmatprep.subr.bf16.mxu0 0
        %2886 = vmatpush1.bf16.msra.mxu0 0
        %2887 = vmatprep.subr.bf16.mxu0 0
        %2888 = vmatpush1.bf16.msra.mxu0 0
        %2889 = vmatprep.subr.bf16.mxu0 0
        %2890 = vmatpush1.bf16.msra.mxu0 0
        %2891 = vmatprep.subr.bf16.mxu0 0
        %2892 = vmatpush1.bf16.msra.mxu0 0
        %2893 = vmatprep.subr.bf16.mxu0 0
        %2894 = vmatpush1.bf16.msra.mxu0 0
        %2895 = vmatprep.subr.bf16.mxu0 0
        %2896 = vmatpush1.bf16.msra.mxu0 0
        %2897 = vmatprep.mubr.bf16.mxu0 0
        %2898 = vmatmul.mubr.bf16.gmra.mrb[0].mxu0 %v2703
        %v2899 = vpop.f32.mrb[0].mxu0
        %v2900 = vadd.f32 0.0, %v2899
        %v2901 = vpop.f32.mrb[0].mxu0
        %v2902 = vadd.f32 0.0, %v2901
        %v2903 = vpop.f32.mrb[0].mxu0
        %v2904 = vpop.f32.mrb[0].mxu0
        %2905 = vdwg.mxu0
        %2906 = vmatprep.subr.bf16.mxu0 0
        %2907 = vmatpush1.bf16.msra.mxu0 %v2819
        %2908 = vmatprep.subr.bf16.mxu0 0
        %2909 = vmatpush1.bf16.msra.mxu0 %v2822
        %2910 = vmatprep.subr.bf16.mxu0 0
        %2911 = vmatpush1.bf16.msra.mxu0 %v2825
        %2912 = vmatprep.subr.bf16.mxu0 0
        %2913 = vmatpush1.bf16.msra.mxu0 %v2828
        %2914 = vmatprep.subr.bf16.mxu0 0
        %2915 = vmatpush1.bf16.msra.mxu0 %v2831
        %2916 = vmatprep.subr.bf16.mxu0 0
        %2917 = vmatpush1.bf16.msra.mxu0 %v2834
        %2918 = vmatprep.subr.bf16.mxu0 0
        %2919 = vmatpush1.bf16.msra.mxu0 %v2837
        %2920 = vmatprep.subr.bf16.mxu0 0
        %2921 = vmatpush1.bf16.msra.mxu0 %v2840
        %2922 = vmatprep.subr.bf16.mxu0 0
        %2923 = vmatpush1.bf16.msra.mxu0 0
        %2924 = vmatprep.subr.bf16.mxu0 0
        %2925 = vmatpush1.bf16.msra.mxu0 0
        %2926 = vmatprep.subr.bf16.mxu0 0
        %2927 = vmatpush1.bf16.msra.mxu0 0
        %2928 = vmatprep.subr.bf16.mxu0 0
        %2929 = vmatpush1.bf16.msra.mxu0 0
        %2930 = vmatprep.subr.bf16.mxu0 0
        %2931 = vmatpush1.bf16.msra.mxu0 0
        %2932 = vmatprep.subr.bf16.mxu0 0
        %2933 = vmatpush1.bf16.msra.mxu0 0
        %2934 = vmatprep.subr.bf16.mxu0 0
        %2935 = vmatpush1.bf16.msra.mxu0 0
        %2936 = vmatprep.subr.bf16.mxu0 0
        %2937 = vmatpush1.bf16.msra.mxu0 0
        %2938 = vmatprep.mubr.bf16.mxu0 0
        %2939 = vmatmul.mubr.bf16.gmra.mrb[0].mxu0 %v2703
        %v2940 = vpop.f32.mrb[0].mxu0
        %v2941 = vadd.f32 0.0, %v2940
        %v2942 = vpop.f32.mrb[0].mxu0
        %v2943 = vpop.f32.mrb[0].mxu0
        %v2944 = vpop.f32.mrb[0].mxu0
        %2945 = vdwg.mxu0
        %v2946 = vpack.c.bf16 %v2900, %v2900
        %v2947 = vpack.c.bf16 %v2902, %v2902
        %v2948 = vpack.c.bf16 %v2941, %v2941
        %s2949 = sld [smem:[#allocation6 + $0x40]]
        %s2950 = sld [smem:[#allocation6 + $0x48]]
        %v2951 = vstv %s2950
        %v2952 = vstv %s2949
        %v2953 = vsel %vm1081, %v2951, %v2952
        %s2954 = sld [smem:[#allocation6 + $0x50]]
        %v2955 = vstv %s2954
        %v2956 = vsel %vm1082, %v2955, %v2953
        %s2957 = sld [smem:[#allocation6 + $0x58]]
        %v2958 = vstv %s2957
        %v2959 = vsel %vm1083, %v2958, %v2956
        %s2960 = sld [smem:[#allocation6 + $0x60]]
        %v2961 = vstv %s2960
        %v2962 = vsel %vm1084, %v2961, %v2959
        %s2963 = sld [smem:[#allocation6 + $0x68]]
        %v2964 = vstv %s2963
        %v2965 = vsel %vm1085, %v2964, %v2962
        %s2966 = sld [smem:[#allocation6 + $0x70]]
        %v2967 = vstv %s2966
        %v2968 = vsel %vm1086, %v2967, %v2965
        %s2969 = sld [smem:[#allocation6 + $0x78]]
        %v2970 = vstv %s2969
        %v2971 = vsel %vm1087, %v2970, %v2968
        %v2972 = vadd.f32 %v671, %v2971
        %v2974 = vsel %vm1501, %v2946, 0
        %v2977 = vsel %vm1501, %v2947, 0
        %2979 = vmatprep.subr.bf16.mxu0 0
        %2980 = vmatpush1.bf16.xpose.msra.mxu0 %v2977
        %2981 = vmatprep.subr.bf16.mxu0 0
        %2982 = vmatpush1.bf16.xpose.msra.mxu0 0
        %2983 = vmatprep.subr.bf16.mxu0 0
        %2984 = vmatpush1.bf16.xpose.msra.mxu0 0
        %2985 = vmatprep.subr.bf16.mxu0 0
        %2986 = vmatpush1.bf16.xpose.msra.mxu0 0
        %2987 = vmatprep.subr.bf16.mxu0 0
        %2988 = vmatpush1.bf16.xpose.msra.mxu0 0
        %2989 = vmatprep.subr.bf16.mxu0 0
        %2990 = vmatpush1.bf16.xpose.msra.mxu0 0
        %2991 = vmatprep.subr.bf16.mxu0 0
        %2992 = vmatpush1.bf16.xpose.msra.mxu0 0
        %2993 = vmatprep.subr.bf16.mxu0 0
        %2994 = vmatpush1.bf16.xpose.msra.mxu0 0
        %2995 = vmatprep.subr.bf16.mxu0 0
        %2996 = vmatpush1.bf16.xpose.msra.mxu0 0
        %2997 = vmatprep.subr.bf16.mxu0 0
        %2998 = vmatpush1.bf16.xpose.msra.mxu0 0
        %2999 = vmatprep.subr.bf16.mxu0 0
        %3000 = vmatpush1.bf16.xpose.msra.mxu0 0
        %3001 = vmatprep.subr.bf16.mxu0 0
        %3002 = vmatpush1.bf16.xpose.msra.mxu0 0
        %3003 = vmatprep.subr.bf16.mxu0 0
        %3004 = vmatpush1.bf16.xpose.msra.mxu0 0
        %3005 = vmatprep.subr.bf16.mxu0 0
        %3006 = vmatpush1.bf16.xpose.msra.mxu0 0
        %3007 = vmatprep.subr.bf16.mxu0 0
        %3008 = vmatpush1.bf16.xpose.msra.mxu0 0
        %3009 = vmatprep.subr.bf16.mxu0 0
        %3010 = vmatpush1.bf16.xpose.msra.mxu0 0
        %3011 = vmatprep.mubr.bf16.mxu0 0
        %3012 = vmatmul.mubr.bf16.gmra.mrb[0].mxu0 %v2974
        %v3013 = vpop.f32.mrb[0].mxu0
        %v3014 = vadd.f32 %v2972, %v3013
        %v3015 = vpop.f32.mrb[0].mxu0
        %v3016 = vpop.f32.mrb[0].mxu0
        %v3017 = vpop.f32.mrb[0].mxu0
        %3018 = vdwg.mxu0
        %v3019 = vsel %vm1068, %v3014, -inf
        %3020 = vmax.xlane.f32.xlu0 %v3019
        %v3021 = vpop.xlane.xlu0 %3020
        %v3022 = vsub.f32 %v3014, %v3021
        %v3023 = vmul.f32 %v3022, 1.442695
        %v3024 = vpow.pop %v3023
        %v3025 = vsel %vm1068, %v3024, 0.0
        %3026 = vadd.xlane.f32.xlu0 %v3025
        %v3027 = vpop.xlane.xlu0 %3026
        %v3028 = vrcp.pop %v3027
        %v3029 = vmul.f32 %v3024, %v3028
        %v3030 = vmul.f32 %v3029, %v1079
        %v3031 = vpack.c.bf16 %v3030, %v3030
        %v3033 = vsel %vm1068, %v3031, 0
        %v3036 = vsel %vm975, %v2948, 0
        %3038 = vmatprep.subr.bf16.mxu0 0
        %3039 = vmatpush1.bf16.msra.mxu0 %v3036
        %3040 = vmatprep.subr.bf16.mxu0 0
        %3041 = vmatpush1.bf16.msra.mxu0 0
        %3042 = vmatprep.subr.bf16.mxu0 0
        %3043 = vmatpush1.bf16.msra.mxu0 0
        %3044 = vmatprep.subr.bf16.mxu0 0
        %3045 = vmatpush1.bf16.msra.mxu0 0
        %3046 = vmatprep.subr.bf16.mxu0 0
        %3047 = vmatpush1.bf16.msra.mxu0 0
        %3048 = vmatprep.subr.bf16.mxu0 0
        %3049 = vmatpush1.bf16.msra.mxu0 0
        %3050 = vmatprep.subr.bf16.mxu0 0
        %3051 = vmatpush1.bf16.msra.mxu0 0
        %3052 = vmatprep.subr.bf16.mxu0 0
        %3053 = vmatpush1.bf16.msra.mxu0 0
        %3054 = vmatprep.subr.bf16.mxu0 0
        %3055 = vmatpush1.bf16.msra.mxu0 0
        %3056 = vmatprep.subr.bf16.mxu0 0
        %3057 = vmatpush1.bf16.msra.mxu0 0
        %3058 = vmatprep.subr.bf16.mxu0 0
        %3059 = vmatpush1.bf16.msra.mxu0 0
        %3060 = vmatprep.subr.bf16.mxu0 0
        %3061 = vmatpush1.bf16.msra.mxu0 0
        %3062 = vmatprep.subr.bf16.mxu0 0
        %3063 = vmatpush1.bf16.msra.mxu0 0
        %3064 = vmatprep.subr.bf16.mxu0 0
        %3065 = vmatpush1.bf16.msra.mxu0 0
        %3066 = vmatprep.subr.bf16.mxu0 0
        %3067 = vmatpush1.bf16.msra.mxu0 0
        %3068 = vmatprep.subr.bf16.mxu0 0
        %3069 = vmatpush1.bf16.msra.mxu0 0
        %3070 = vmatprep.mubr.bf16.mxu0 0
        %3071 = vmatmul.mubr.bf16.gmra.mrb[0].mxu0 %v3033
        %v3072 = vpop.f32.mrb[0].mxu0
        %v3073 = vadd.f32 0.0, %v3072
        %v3074 = vpop.f32.mrb[0].mxu0
        %v3075 = vpop.f32.mrb[0].mxu0
        %v3076 = vpop.f32.mrb[0].mxu0
        %3077 = vdwg.mxu0
        %s3078 = sld [smem:[#allocation6 + $0x41]]
        %s3079 = sld [smem:[#allocation6 + $0x49]]
        %v3080 = vstv %s3079
        %v3081 = vstv %s3078
        %v3082 = vsel %vm1081, %v3080, %v3081
        %s3083 = sld [smem:[#allocation6 + $0x51]]
        %v3084 = vstv %s3083
        %v3085 = vsel %vm1082, %v3084, %v3082
        %s3086 = sld [smem:[#allocation6 + $0x59]]
        %v3087 = vstv %s3086
        %v3088 = vsel %vm1083, %v3087, %v3085
        %s3089 = sld [smem:[#allocation6 + $0x61]]
        %v3090 = vstv %s3089
        %v3091 = vsel %vm1084, %v3090, %v3088
        %s3092 = sld [smem:[#allocation6 + $0x69]]
        %v3093 = vstv %s3092
        %v3094 = vsel %vm1085, %v3093, %v3091
        %s3095 = sld [smem:[#allocation6 + $0x71]]
        %v3096 = vstv %s3095
        %v3097 = vsel %vm1086, %v3096, %v3094
        %s3098 = sld [smem:[#allocation6 + $0x79]]
        %v3099 = vstv %s3098
        %v3100 = vsel %vm1087, %v3099, %v3097
        %v3101 = vadd.f32 %v671, %v3100
        %3103 = vrot.lane.b32.xlu0 %v2946, 112
        %v3104 = vpop.permute.xlu0 %3103
        %3106 = vrot.lane.b32.xlu0 %v2947, 112
        %v3107 = vpop.permute.xlu0 %3106
        %v3109 = vsel %vm1501, %v3104, 0
        %v3112 = vsel %vm1501, %v3107, 0
        %3114 = vmatprep.subr.bf16.mxu0 0
        %3115 = vmatpush1.bf16.xpose.msra.mxu0 %v3112
        %3116 = vmatprep.subr.bf16.mxu0 0
        %3117 = vmatpush1.bf16.xpose.msra.mxu0 0
        %3118 = vmatprep.subr.bf16.mxu0 0
        %3119 = vmatpush1.bf16.xpose.msra.mxu0 0
        %3120 = vmatprep.subr.bf16.mxu0 0
        %3121 = vmatpush1.bf16.xpose.msra.mxu0 0
        %3122 = vmatprep.subr.bf16.mxu0 0
        %3123 = vmatpush1.bf16.xpose.msra.mxu0 0
        %3124 = vmatprep.subr.bf16.mxu0 0
        %3125 = vmatpush1.bf16.xpose.msra.mxu0 0
        %3126 = vmatprep.subr.bf16.mxu0 0
        %3127 = vmatpush1.bf16.xpose.msra.mxu0 0
        %3128 = vmatprep.subr.bf16.mxu0 0
        %3129 = vmatpush1.bf16.xpose.msra.mxu0 0
        %3130 = vmatprep.subr.bf16.mxu0 0
        %3131 = vmatpush1.bf16.xpose.msra.mxu0 0
        %3132 = vmatprep.subr.bf16.mxu0 0
        %3133 = vmatpush1.bf16.xpose.msra.mxu0 0
        %3134 = vmatprep.subr.bf16.mxu0 0
        %3135 = vmatpush1.bf16.xpose.msra.mxu0 0
        %3136 = vmatprep.subr.bf16.mxu0 0
        %3137 = vmatpush1.bf16.xpose.msra.mxu0 0
        %3138 = vmatprep.subr.bf16.mxu0 0
        %3139 = vmatpush1.bf16.xpose.msra.mxu0 0
        %3140 = vmatprep.subr.bf16.mxu0 0
        %3141 = vmatpush1.bf16.xpose.msra.mxu0 0
        %3142 = vmatprep.subr.bf16.mxu0 0
        %3143 = vmatpush1.bf16.xpose.msra.mxu0 0
        %3144 = vmatprep.subr.bf16.mxu0 0
        %3145 = vmatpush1.bf16.xpose.msra.mxu0 0
        %3146 = vmatprep.mubr.bf16.mxu0 0
        %3147 = vmatmul.mubr.bf16.gmra.mrb[0].mxu0 %v3109
        %v3148 = vpop.f32.mrb[0].mxu0
        %v3149 = vadd.f32 %v3101, %v3148
        %v3150 = vpop.f32.mrb[0].mxu0
        %v3151 = vpop.f32.mrb[0].mxu0
        %v3152 = vpop.f32.mrb[0].mxu0
        %3153 = vdwg.mxu0
        %v3154 = vsel %vm1068, %v3149, -inf
        %3155 = vmax.xlane.f32.xlu0 %v3154
        %v3156 = vpop.xlane.xlu0 %3155
        %v3157 = vsub.f32 %v3149, %v3156
        %v3158 = vmul.f32 %v3157, 1.442695
        %v3159 = vpow.pop %v3158
        %v3160 = vsel %vm1068, %v3159, 0.0
        %3161 = vadd.xlane.f32.xlu0 %v3160
        %v3162 = vpop.xlane.xlu0 %3161
        %v3163 = vrcp.pop %v3162
        %v3164 = vmul.f32 %v3159, %v3163
        %v3165 = vmul.f32 %v3164, %v1079
        %v3166 = vpack.c.bf16 %v3165, %v3165
        %3168 = vrot.lane.b32.xlu0 %v2948, 112
        %v3169 = vpop.permute.xlu0 %3168
        %v3171 = vsel %vm1068, %v3166, 0
        %v3174 = vsel %vm975, %v3169, 0
        %3176 = vmatprep.subr.bf16.mxu0 0
        %3177 = vmatpush1.bf16.msra.mxu0 %v3174
        %3178 = vmatprep.subr.bf16.mxu0 0
        %3179 = vmatpush1.bf16.msra.mxu0 0
        %3180 = vmatprep.subr.bf16.mxu0 0
        %3181 = vmatpush1.bf16.msra.mxu0 0
        %3182 = vmatprep.subr.bf16.mxu0 0
        %3183 = vmatpush1.bf16.msra.mxu0 0
        %3184 = vmatprep.subr.bf16.mxu0 0
        %3185 = vmatpush1.bf16.msra.mxu0 0
        %3186 = vmatprep.subr.bf16.mxu0 0
        %3187 = vmatpush1.bf16.msra.mxu0 0
        %3188 = vmatprep.subr.bf16.mxu0 0
        %3189 = vmatpush1.bf16.msra.mxu0 0
        %3190 = vmatprep.subr.bf16.mxu0 0
        %3191 = vmatpush1.bf16.msra.mxu0 0
        %3192 = vmatprep.subr.bf16.mxu0 0
        %3193 = vmatpush1.bf16.msra.mxu0 0
        %3194 = vmatprep.subr.bf16.mxu0 0
        %3195 = vmatpush1.bf16.msra.mxu0 0
        %3196 = vmatprep.subr.bf16.mxu0 0
        %3197 = vmatpush1.bf16.msra.mxu0 0
        %3198 = vmatprep.subr.bf16.mxu0 0
        %3199 = vmatpush1.bf16.msra.mxu0 0
        %3200 = vmatprep.subr.bf16.mxu0 0
        %3201 = vmatpush1.bf16.msra.mxu0 0
        %3202 = vmatprep.subr.bf16.mxu0 0
        %3203 = vmatpush1.bf16.msra.mxu0 0
        %3204 = vmatprep.subr.bf16.mxu0 0
        %3205 = vmatpush1.bf16.msra.mxu0 0
        %3206 = vmatprep.subr.bf16.mxu0 0
        %3207 = vmatpush1.bf16.msra.mxu0 0
        %3208 = vmatprep.mubr.bf16.mxu0 0
        %3209 = vmatmul.mubr.bf16.gmra.mrb[0].mxu0 %v3171
        %v3210 = vpop.f32.mrb[0].mxu0
        %v3211 = vadd.f32 0.0, %v3210
        %v3212 = vpop.f32.mrb[0].mxu0
        %v3213 = vpop.f32.mrb[0].mxu0
        %v3214 = vpop.f32.mrb[0].mxu0
        %3215 = vdwg.mxu0
        %s3216 = sld [smem:[#allocation6 + $0x42]]
        %s3217 = sld [smem:[#allocation6 + $0x4a]]
        %v3218 = vstv %s3217
        %v3219 = vstv %s3216
        %v3220 = vsel %vm1081, %v3218, %v3219
        %s3221 = sld [smem:[#allocation6 + $0x52]]
        %v3222 = vstv %s3221
        %v3223 = vsel %vm1082, %v3222, %v3220
        %s3224 = sld [smem:[#allocation6 + $0x5a]]
        %v3225 = vstv %s3224
        %v3226 = vsel %vm1083, %v3225, %v3223
        %s3227 = sld [smem:[#allocation6 + $0x62]]
        %v3228 = vstv %s3227
        %v3229 = vsel %vm1084, %v3228, %v3226
        %s3230 = sld [smem:[#allocation6 + $0x6a]]
        %v3231 = vstv %s3230
        %v3232 = vsel %vm1085, %v3231, %v3229
        %s3233 = sld [smem:[#allocation6 + $0x72]]
        %v3234 = vstv %s3233
        %v3235 = vsel %vm1086, %v3234, %v3232
        %s3236 = sld [smem:[#allocation6 + $0x7a]]
        %v3237 = vstv %s3236
        %v3238 = vsel %vm1087, %v3237, %v3235
        %v3239 = vadd.f32 %v671, %v3238
        %3240 = vrot.lane.b32.xlu0 %v2946, 96
        %v3241 = vpop.permute.xlu0 %3240
        %3242 = vrot.lane.b32.xlu0 %v2947, 96
        %v3243 = vpop.permute.xlu0 %3242
        %v3245 = vsel %vm1501, %v3241, 0
        %v3248 = vsel %vm1501, %v3243, 0
        %3250 = vmatprep.subr.bf16.mxu0 0
        %3251 = vmatpush1.bf16.xpose.msra.mxu0 %v3248
        %3252 = vmatprep.subr.bf16.mxu0 0
        %3253 = vmatpush1.bf16.xpose.msra.mxu0 0
        %3254 = vmatprep.subr.bf16.mxu0 0
        %3255 = vmatpush1.bf16.xpose.msra.mxu0 0
        %3256 = vmatprep.subr.bf16.mxu0 0
        %3257 = vmatpush1.bf16.xpose.msra.mxu0 0
        %3258 = vmatprep.subr.bf16.mxu0 0
        %3259 = vmatpush1.bf16.xpose.msra.mxu0 0
        %3260 = vmatprep.subr.bf16.mxu0 0
        %3261 = vmatpush1.bf16.xpose.msra.mxu0 0
        %3262 = vmatprep.subr.bf16.mxu0 0
        %3263 = vmatpush1.bf16.xpose.msra.mxu0 0
        %3264 = vmatprep.subr.bf16.mxu0 0
        %3265 = vmatpush1.bf16.xpose.msra.mxu0 0
        %3266 = vmatprep.subr.bf16.mxu0 0
        %3267 = vmatpush1.bf16.xpose.msra.mxu0 0
        %3268 = vmatprep.subr.bf16.mxu0 0
        %3269 = vmatpush1.bf16.xpose.msra.mxu0 0
        %3270 = vmatprep.subr.bf16.mxu0 0
        %3271 = vmatpush1.bf16.xpose.msra.mxu0 0
        %3272 = vmatprep.subr.bf16.mxu0 0
        %3273 = vmatpush1.bf16.xpose.msra.mxu0 0
        %3274 = vmatprep.subr.bf16.mxu0 0
        %3275 = vmatpush1.bf16.xpose.msra.mxu0 0
        %3276 = vmatprep.subr.bf16.mxu0 0
        %3277 = vmatpush1.bf16.xpose.msra.mxu0 0
        %3278 = vmatprep.subr.bf16.mxu0 0
        %3279 = vmatpush1.bf16.xpose.msra.mxu0 0
        %3280 = vmatprep.subr.bf16.mxu0 0
        %3281 = vmatpush1.bf16.xpose.msra.mxu0 0
        %3282 = vmatprep.mubr.bf16.mxu0 0
        %3283 = vmatmul.mubr.bf16.gmra.mrb[0].mxu0 %v3245
        %v3284 = vpop.f32.mrb[0].mxu0
        %v3285 = vadd.f32 %v3239, %v3284
        %v3286 = vpop.f32.mrb[0].mxu0
        %v3287 = vpop.f32.mrb[0].mxu0
        %v3288 = vpop.f32.mrb[0].mxu0
        %3289 = vdwg.mxu0
        %v3290 = vsel %vm1068, %v3285, -inf
        %3291 = vmax.xlane.f32.xlu0 %v3290
        %v3292 = vpop.xlane.xlu0 %3291
        %v3293 = vsub.f32 %v3285, %v3292
        %v3294 = vmul.f32 %v3293, 1.442695
        %v3295 = vpow.pop %v3294
        %v3296 = vsel %vm1068, %v3295, 0.0
        %3297 = vadd.xlane.f32.xlu0 %v3296
        %v3298 = vpop.xlane.xlu0 %3297
        %v3299 = vrcp.pop %v3298
        %v3300 = vmul.f32 %v3295, %v3299
        %v3301 = vmul.f32 %v3300, %v1079
        %v3302 = vpack.c.bf16 %v3301, %v3301
        %3303 = vrot.lane.b32.xlu0 %v2948, 96
        %v3304 = vpop.permute.xlu0 %3303
        %v3306 = vsel %vm1068, %v3302, 0
        %v3309 = vsel %vm975, %v3304, 0
        %3311 = vmatprep.subr.bf16.mxu0 0
        %3312 = vmatpush1.bf16.msra.mxu0 %v3309
        %3313 = vmatprep.subr.bf16.mxu0 0
        %3314 = vmatpush1.bf16.msra.mxu0 0
        %3315 = vmatprep.subr.bf16.mxu0 0
        %3316 = vmatpush1.bf16.msra.mxu0 0
        %3317 = vmatprep.subr.bf16.mxu0 0
        %3318 = vmatpush1.bf16.msra.mxu0 0
        %3319 = vmatprep.subr.bf16.mxu0 0
        %3320 = vmatpush1.bf16.msra.mxu0 0
        %3321 = vmatprep.subr.bf16.mxu0 0
        %3322 = vmatpush1.bf16.msra.mxu0 0
        %3323 = vmatprep.subr.bf16.mxu0 0
        %3324 = vmatpush1.bf16.msra.mxu0 0
        %3325 = vmatprep.subr.bf16.mxu0 0
        %3326 = vmatpush1.bf16.msra.mxu0 0
        %3327 = vmatprep.subr.bf16.mxu0 0
        %3328 = vmatpush1.bf16.msra.mxu0 0
        %3329 = vmatprep.subr.bf16.mxu0 0
        %3330 = vmatpush1.bf16.msra.mxu0 0
        %3331 = vmatprep.subr.bf16.mxu0 0
        %3332 = vmatpush1.bf16.msra.mxu0 0
        %3333 = vmatprep.subr.bf16.mxu0 0
        %3334 = vmatpush1.bf16.msra.mxu0 0
        %3335 = vmatprep.subr.bf16.mxu0 0
        %3336 = vmatpush1.bf16.msra.mxu0 0
        %3337 = vmatprep.subr.bf16.mxu0 0
        %3338 = vmatpush1.bf16.msra.mxu0 0
        %3339 = vmatprep.subr.bf16.mxu0 0
        %3340 = vmatpush1.bf16.msra.mxu0 0
        %3341 = vmatprep.subr.bf16.mxu0 0
        %3342 = vmatpush1.bf16.msra.mxu0 0
        %3343 = vmatprep.mubr.bf16.mxu0 0
        %3344 = vmatmul.mubr.bf16.gmra.mrb[0].mxu0 %v3306
        %v3345 = vpop.f32.mrb[0].mxu0
        %v3346 = vadd.f32 0.0, %v3345
        %v3347 = vpop.f32.mrb[0].mxu0
        %v3348 = vpop.f32.mrb[0].mxu0
        %v3349 = vpop.f32.mrb[0].mxu0
        %3350 = vdwg.mxu0
        %s3351 = sld [smem:[#allocation6 + $0x43]]
        %s3352 = sld [smem:[#allocation6 + $0x4b]]
        %v3353 = vstv %s3352
        %v3354 = vstv %s3351
        %v3355 = vsel %vm1081, %v3353, %v3354
        %s3356 = sld [smem:[#allocation6 + $0x53]]
        %v3357 = vstv %s3356
        %v3358 = vsel %vm1082, %v3357, %v3355
        %s3359 = sld [smem:[#allocation6 + $0x5b]]
        %v3360 = vstv %s3359
        %v3361 = vsel %vm1083, %v3360, %v3358
        %s3362 = sld [smem:[#allocation6 + $0x63]]
        %v3363 = vstv %s3362
        %v3364 = vsel %vm1084, %v3363, %v3361
        %s3365 = sld [smem:[#allocation6 + $0x6b]]
        %v3366 = vstv %s3365
        %v3367 = vsel %vm1085, %v3366, %v3364
        %s3368 = sld [smem:[#allocation6 + $0x73]]
        %v3369 = vstv %s3368
        %v3370 = vsel %vm1086, %v3369, %v3367
        %s3371 = sld [smem:[#allocation6 + $0x7b]]
        %v3372 = vstv %s3371
        %v3373 = vsel %vm1087, %v3372, %v3370
        %v3374 = vadd.f32 %v671, %v3373
        %3375 = vrot.lane.b32.xlu0 %v2946, 80
        %v3376 = vpop.permute.xlu0 %3375
        %3377 = vrot.lane.b32.xlu0 %v2947, 80
        %v3378 = vpop.permute.xlu0 %3377
        %v3380 = vsel %vm1501, %v3376, 0
        %v3383 = vsel %vm1501, %v3378, 0
        %3385 = vmatprep.subr.bf16.mxu0 0
        %3386 = vmatpush1.bf16.xpose.msra.mxu0 %v3383
        %3387 = vmatprep.subr.bf16.mxu0 0
        %3388 = vmatpush1.bf16.xpose.msra.mxu0 0
        %3389 = vmatprep.subr.bf16.mxu0 0
        %3390 = vmatpush1.bf16.xpose.msra.mxu0 0
        %3391 = vmatprep.subr.bf16.mxu0 0
        %3392 = vmatpush1.bf16.xpose.msra.mxu0 0
        %3393 = vmatprep.subr.bf16.mxu0 0
        %3394 = vmatpush1.bf16.xpose.msra.mxu0 0
        %3395 = vmatprep.subr.bf16.mxu0 0
        %3396 = vmatpush1.bf16.xpose.msra.mxu0 0
        %3397 = vmatprep.subr.bf16.mxu0 0
        %3398 = vmatpush1.bf16.xpose.msra.mxu0 0
        %3399 = vmatprep.subr.bf16.mxu0 0
        %3400 = vmatpush1.bf16.xpose.msra.mxu0 0
        %3401 = vmatprep.subr.bf16.mxu0 0
        %3402 = vmatpush1.bf16.xpose.msra.mxu0 0
        %3403 = vmatprep.subr.bf16.mxu0 0
        %3404 = vmatpush1.bf16.xpose.msra.mxu0 0
        %3405 = vmatprep.subr.bf16.mxu0 0
        %3406 = vmatpush1.bf16.xpose.msra.mxu0 0
        %3407 = vmatprep.subr.bf16.mxu0 0
        %3408 = vmatpush1.bf16.xpose.msra.mxu0 0
        %3409 = vmatprep.subr.bf16.mxu0 0
        %3410 = vmatpush1.bf16.xpose.msra.mxu0 0
        %3411 = vmatprep.subr.bf16.mxu0 0
        %3412 = vmatpush1.bf16.xpose.msra.mxu0 0
        %3413 = vmatprep.subr.bf16.mxu0 0
        %3414 = vmatpush1.bf16.xpose.msra.mxu0 0
        %3415 = vmatprep.subr.bf16.mxu0 0
        %3416 = vmatpush1.bf16.xpose.msra.mxu0 0
        %3417 = vmatprep.mubr.bf16.mxu0 0
        %3418 = vmatmul.mubr.bf16.gmra.mrb[0].mxu0 %v3380
        %v3419 = vpop.f32.mrb[0].mxu0
        %v3420 = vadd.f32 %v3374, %v3419
        %v3421 = vpop.f32.mrb[0].mxu0
        %v3422 = vpop.f32.mrb[0].mxu0
        %v3423 = vpop.f32.mrb[0].mxu0
        %3424 = vdwg.mxu0
        %v3425 = vsel %vm1068, %v3420, -inf
        %3426 = vmax.xlane.f32.xlu0 %v3425
        %v3427 = vpop.xlane.xlu0 %3426
        %v3428 = vsub.f32 %v3420, %v3427
        %v3429 = vmul.f32 %v3428, 1.442695
        %v3430 = vpow.pop %v3429
        %v3431 = vsel %vm1068, %v3430, 0.0
        %3432 = vadd.xlane.f32.xlu0 %v3431
        %v3433 = vpop.xlane.xlu0 %3432
        %v3434 = vrcp.pop %v3433
        %v3435 = vmul.f32 %v3430, %v3434
        %v3436 = vmul.f32 %v3435, %v1079
        %v3437 = vpack.c.bf16 %v3436, %v3436
        %3438 = vrot.lane.b32.xlu0 %v2948, 80
        %v3439 = vpop.permute.xlu0 %3438
        %v3441 = vsel %vm1068, %v3437, 0
        %v3444 = vsel %vm975, %v3439, 0
        %3446 = vmatprep.subr.bf16.mxu0 0
        %3447 = vmatpush1.bf16.msra.mxu0 %v3444
        %3448 = vmatprep.subr.bf16.mxu0 0
        %3449 = vmatpush1.bf16.msra.mxu0 0
        %3450 = vmatprep.subr.bf16.mxu0 0
        %3451 = vmatpush1.bf16.msra.mxu0 0
        %3452 = vmatprep.subr.bf16.mxu0 0
        %3453 = vmatpush1.bf16.msra.mxu0 0
        %3454 = vmatprep.subr.bf16.mxu0 0
        %3455 = vmatpush1.bf16.msra.mxu0 0
        %3456 = vmatprep.subr.bf16.mxu0 0
        %3457 = vmatpush1.bf16.msra.mxu0 0
        %3458 = vmatprep.subr.bf16.mxu0 0
        %3459 = vmatpush1.bf16.msra.mxu0 0
        %3460 = vmatprep.subr.bf16.mxu0 0
        %3461 = vmatpush1.bf16.msra.mxu0 0
        %3462 = vmatprep.subr.bf16.mxu0 0
        %3463 = vmatpush1.bf16.msra.mxu0 0
        %3464 = vmatprep.subr.bf16.mxu0 0
        %3465 = vmatpush1.bf16.msra.mxu0 0
        %3466 = vmatprep.subr.bf16.mxu0 0
        %3467 = vmatpush1.bf16.msra.mxu0 0
        %3468 = vmatprep.subr.bf16.mxu0 0
        %3469 = vmatpush1.bf16.msra.mxu0 0
        %3470 = vmatprep.subr.bf16.mxu0 0
        %3471 = vmatpush1.bf16.msra.mxu0 0
        %3472 = vmatprep.subr.bf16.mxu0 0
        %3473 = vmatpush1.bf16.msra.mxu0 0
        %3474 = vmatprep.subr.bf16.mxu0 0
        %3475 = vmatpush1.bf16.msra.mxu0 0
        %3476 = vmatprep.subr.bf16.mxu0 0
        %3477 = vmatpush1.bf16.msra.mxu0 0
        %3478 = vmatprep.mubr.bf16.mxu0 0
        %3479 = vmatmul.mubr.bf16.gmra.mrb[0].mxu0 %v3441
        %v3480 = vpop.f32.mrb[0].mxu0
        %v3481 = vadd.f32 0.0, %v3480
        %v3482 = vpop.f32.mrb[0].mxu0
        %v3483 = vpop.f32.mrb[0].mxu0
        %v3484 = vpop.f32.mrb[0].mxu0
        %3485 = vdwg.mxu0
        %s3486 = sld [smem:[#allocation6 + $0x44]]
        %s3487 = sld [smem:[#allocation6 + $0x4c]]
        %v3488 = vstv %s3487
        %v3489 = vstv %s3486
        %v3490 = vsel %vm1081, %v3488, %v3489
        %s3491 = sld [smem:[#allocation6 + $0x54]]
        %v3492 = vstv %s3491
        %v3493 = vsel %vm1082, %v3492, %v3490
        %s3494 = sld [smem:[#allocation6 + $0x5c]]
        %v3495 = vstv %s3494
        %v3496 = vsel %vm1083, %v3495, %v3493
        %s3497 = sld [smem:[#allocation6 + $0x64]]
        %v3498 = vstv %s3497
        %v3499 = vsel %vm1084, %v3498, %v3496
        %s3500 = sld [smem:[#allocation6 + $0x6c]]
        %v3501 = vstv %s3500
        %v3502 = vsel %vm1085, %v3501, %v3499
        %s3503 = sld [smem:[#allocation6 + $0x74]]
        %v3504 = vstv %s3503
        %v3505 = vsel %vm1086, %v3504, %v3502
        %s3506 = sld [smem:[#allocation6 + $0x7c]]
        %v3507 = vstv %s3506
        %v3508 = vsel %vm1087, %v3507, %v3505
        %v3509 = vadd.f32 %v671, %v3508
        %3510 = vrot.lane.b32.xlu0 %v2946, 64
        %v3511 = vpop.permute.xlu0 %3510
        %3512 = vrot.lane.b32.xlu0 %v2947, 64
        %v3513 = vpop.permute.xlu0 %3512
        %v3515 = vsel %vm1501, %v3511, 0
        %v3518 = vsel %vm1501, %v3513, 0
        %3520 = vmatprep.subr.bf16.mxu0 0
        %3521 = vmatpush1.bf16.xpose.msra.mxu0 %v3518
        %3522 = vmatprep.subr.bf16.mxu0 0
        %3523 = vmatpush1.bf16.xpose.msra.mxu0 0
        %3524 = vmatprep.subr.bf16.mxu0 0
        %3525 = vmatpush1.bf16.xpose.msra.mxu0 0
        %3526 = vmatprep.subr.bf16.mxu0 0
        %3527 = vmatpush1.bf16.xpose.msra.mxu0 0
        %3528 = vmatprep.subr.bf16.mxu0 0
        %3529 = vmatpush1.bf16.xpose.msra.mxu0 0
        %3530 = vmatprep.subr.bf16.mxu0 0
        %3531 = vmatpush1.bf16.xpose.msra.mxu0 0
        %3532 = vmatprep.subr.bf16.mxu0 0
        %3533 = vmatpush1.bf16.xpose.msra.mxu0 0
        %3534 = vmatprep.subr.bf16.mxu0 0
        %3535 = vmatpush1.bf16.xpose.msra.mxu0 0
        %3536 = vmatprep.subr.bf16.mxu0 0
        %3537 = vmatpush1.bf16.xpose.msra.mxu0 0
        %3538 = vmatprep.subr.bf16.mxu0 0
        %3539 = vmatpush1.bf16.xpose.msra.mxu0 0
        %3540 = vmatprep.subr.bf16.mxu0 0
        %3541 = vmatpush1.bf16.xpose.msra.mxu0 0
        %3542 = vmatprep.subr.bf16.mxu0 0
        %3543 = vmatpush1.bf16.xpose.msra.mxu0 0
        %3544 = vmatprep.subr.bf16.mxu0 0
        %3545 = vmatpush1.bf16.xpose.msra.mxu0 0
        %3546 = vmatprep.subr.bf16.mxu0 0
        %3547 = vmatpush1.bf16.xpose.msra.mxu0 0
        %3548 = vmatprep.subr.bf16.mxu0 0
        %3549 = vmatpush1.bf16.xpose.msra.mxu0 0
        %3550 = vmatprep.subr.bf16.mxu0 0
        %3551 = vmatpush1.bf16.xpose.msra.mxu0 0
        %3552 = vmatprep.mubr.bf16.mxu0 0
        %3553 = vmatmul.mubr.bf16.gmra.mrb[0].mxu0 %v3515
        %v3554 = vpop.f32.mrb[0].mxu0
        %v3555 = vadd.f32 %v3509, %v3554
        %v3556 = vpop.f32.mrb[0].mxu0
        %v3557 = vpop.f32.mrb[0].mxu0
        %v3558 = vpop.f32.mrb[0].mxu0
        %3559 = vdwg.mxu0
        %v3560 = vsel %vm1068, %v3555, -inf
        %3561 = vmax.xlane.f32.xlu0 %v3560
        %v3562 = vpop.xlane.xlu0 %3561
        %v3563 = vsub.f32 %v3555, %v3562
        %v3564 = vmul.f32 %v3563, 1.442695
        %v3565 = vpow.pop %v3564
        %v3566 = vsel %vm1068, %v3565, 0.0
        %3567 = vadd.xlane.f32.xlu0 %v3566
        %v3568 = vpop.xlane.xlu0 %3567
        %v3569 = vrcp.pop %v3568
        %v3570 = vmul.f32 %v3565, %v3569
        %v3571 = vmul.f32 %v3570, %v1079
        %v3572 = vpack.c.bf16 %v3571, %v3571
        %3573 = vrot.lane.b32.xlu0 %v2948, 64
        %v3574 = vpop.permute.xlu0 %3573
        %v3576 = vsel %vm1068, %v3572, 0
        %v3579 = vsel %vm975, %v3574, 0
        %3581 = vmatprep.subr.bf16.mxu0 0
        %3582 = vmatpush1.bf16.msra.mxu0 %v3579
        %3583 = vmatprep.subr.bf16.mxu0 0
        %3584 = vmatpush1.bf16.msra.mxu0 0
        %3585 = vmatprep.subr.bf16.mxu0 0
        %3586 = vmatpush1.bf16.msra.mxu0 0
        %3587 = vmatprep.subr.bf16.mxu0 0
        %3588 = vmatpush1.bf16.msra.mxu0 0
        %3589 = vmatprep.subr.bf16.mxu0 0
        %3590 = vmatpush1.bf16.msra.mxu0 0
        %3591 = vmatprep.subr.bf16.mxu0 0
        %3592 = vmatpush1.bf16.msra.mxu0 0
        %3593 = vmatprep.subr.bf16.mxu0 0
        %3594 = vmatpush1.bf16.msra.mxu0 0
        %3595 = vmatprep.subr.bf16.mxu0 0
        %3596 = vmatpush1.bf16.msra.mxu0 0
        %3597 = vmatprep.subr.bf16.mxu0 0
        %3598 = vmatpush1.bf16.msra.mxu0 0
        %3599 = vmatprep.subr.bf16.mxu0 0
        %3600 = vmatpush1.bf16.msra.mxu0 0
        %3601 = vmatprep.subr.bf16.mxu0 0
        %3602 = vmatpush1.bf16.msra.mxu0 0
        %3603 = vmatprep.subr.bf16.mxu0 0
        %3604 = vmatpush1.bf16.msra.mxu0 0
        %3605 = vmatprep.subr.bf16.mxu0 0
        %3606 = vmatpush1.bf16.msra.mxu0 0
        %3607 = vmatprep.subr.bf16.mxu0 0
        %3608 = vmatpush1.bf16.msra.mxu0 0
        %3609 = vmatprep.subr.bf16.mxu0 0
        %3610 = vmatpush1.bf16.msra.mxu0 0
        %3611 = vmatprep.subr.bf16.mxu0 0
        %3612 = vmatpush1.bf16.msra.mxu0 0
        %3613 = vmatprep.mubr.bf16.mxu0 0
        %3614 = vmatmul.mubr.bf16.gmra.mrb[0].mxu0 %v3576
        %v3615 = vpop.f32.mrb[0].mxu0
        %v3616 = vadd.f32 0.0, %v3615
        %v3617 = vpop.f32.mrb[0].mxu0
        %v3618 = vpop.f32.mrb[0].mxu0
        %v3619 = vpop.f32.mrb[0].mxu0
        %3620 = vdwg.mxu0
        %s3621 = sld [smem:[#allocation6 + $0x45]]
        %s3622 = sld [smem:[#allocation6 + $0x4d]]
        %v3623 = vstv %s3622
        %v3624 = vstv %s3621
        %v3625 = vsel %vm1081, %v3623, %v3624
        %s3626 = sld [smem:[#allocation6 + $0x55]]
        %v3627 = vstv %s3626
        %v3628 = vsel %vm1082, %v3627, %v3625
        %s3629 = sld [smem:[#allocation6 + $0x5d]]
        %v3630 = vstv %s3629
        %v3631 = vsel %vm1083, %v3630, %v3628
        %s3632 = sld [smem:[#allocation6 + $0x65]]
        %v3633 = vstv %s3632
        %v3634 = vsel %vm1084, %v3633, %v3631
        %s3635 = sld [smem:[#allocation6 + $0x6d]]
        %v3636 = vstv %s3635
        %v3637 = vsel %vm1085, %v3636, %v3634
        %s3638 = sld [smem:[#allocation6 + $0x75]]
        %v3639 = vstv %s3638
        %v3640 = vsel %vm1086, %v3639, %v3637
        %s3641 = sld [smem:[#allocation6 + $0x7d]]
        %v3642 = vstv %s3641
        %v3643 = vsel %vm1087, %v3642, %v3640
        %v3644 = vadd.f32 %v671, %v3643
        %3645 = vrot.lane.b32.xlu0 %v2946, 48
        %v3646 = vpop.permute.xlu0 %3645
        %3647 = vrot.lane.b32.xlu0 %v2947, 48
        %v3648 = vpop.permute.xlu0 %3647
        %v3650 = vsel %vm1501, %v3646, 0
        %v3653 = vsel %vm1501, %v3648, 0
        %3655 = vmatprep.subr.bf16.mxu0 0
        %3656 = vmatpush1.bf16.xpose.msra.mxu0 %v3653
        %3657 = vmatprep.subr.bf16.mxu0 0
        %3658 = vmatpush1.bf16.xpose.msra.mxu0 0
        %3659 = vmatprep.subr.bf16.mxu0 0
        %3660 = vmatpush1.bf16.xpose.msra.mxu0 0
        %3661 = vmatprep.subr.bf16.mxu0 0
        %3662 = vmatpush1.bf16.xpose.msra.mxu0 0
        %3663 = vmatprep.subr.bf16.mxu0 0
        %3664 = vmatpush1.bf16.xpose.msra.mxu0 0
        %3665 = vmatprep.subr.bf16.mxu0 0
        %3666 = vmatpush1.bf16.xpose.msra.mxu0 0
        %3667 = vmatprep.subr.bf16.mxu0 0
        %3668 = vmatpush1.bf16.xpose.msra.mxu0 0
        %3669 = vmatprep.subr.bf16.mxu0 0
        %3670 = vmatpush1.bf16.xpose.msra.mxu0 0
        %3671 = vmatprep.subr.bf16.mxu0 0
        %3672 = vmatpush1.bf16.xpose.msra.mxu0 0
        %3673 = vmatprep.subr.bf16.mxu0 0
        %3674 = vmatpush1.bf16.xpose.msra.mxu0 0
        %3675 = vmatprep.subr.bf16.mxu0 0
        %3676 = vmatpush1.bf16.xpose.msra.mxu0 0
        %3677 = vmatprep.subr.bf16.mxu0 0
        %3678 = vmatpush1.bf16.xpose.msra.mxu0 0
        %3679 = vmatprep.subr.bf16.mxu0 0
        %3680 = vmatpush1.bf16.xpose.msra.mxu0 0
        %3681 = vmatprep.subr.bf16.mxu0 0
        %3682 = vmatpush1.bf16.xpose.msra.mxu0 0
        %3683 = vmatprep.subr.bf16.mxu0 0
        %3684 = vmatpush1.bf16.xpose.msra.mxu0 0
        %3685 = vmatprep.subr.bf16.mxu0 0
        %3686 = vmatpush1.bf16.xpose.msra.mxu0 0
        %3687 = vmatprep.mubr.bf16.mxu0 0
        %3688 = vmatmul.mubr.bf16.gmra.mrb[0].mxu0 %v3650
        %v3689 = vpop.f32.mrb[0].mxu0
        %v3690 = vadd.f32 %v3644, %v3689
        %v3691 = vpop.f32.mrb[0].mxu0
        %v3692 = vpop.f32.mrb[0].mxu0
        %v3693 = vpop.f32.mrb[0].mxu0
        %3694 = vdwg.mxu0
        %v3695 = vsel %vm1068, %v3690, -inf
        %3696 = vmax.xlane.f32.xlu0 %v3695
        %v3697 = vpop.xlane.xlu0 %3696
        %v3698 = vsub.f32 %v3690, %v3697
        %v3699 = vmul.f32 %v3698, 1.442695
        %v3700 = vpow.pop %v3699
        %v3701 = vsel %vm1068, %v3700, 0.0
        %3702 = vadd.xlane.f32.xlu0 %v3701
        %v3703 = vpop.xlane.xlu0 %3702
        %v3704 = vrcp.pop %v3703
        %v3705 = vmul.f32 %v3700, %v3704
        %v3706 = vmul.f32 %v3705, %v1079
        %v3707 = vpack.c.bf16 %v3706, %v3706
        %3708 = vrot.lane.b32.xlu0 %v2948, 48
        %v3709 = vpop.permute.xlu0 %3708
        %v3711 = vsel %vm1068, %v3707, 0
        %v3714 = vsel %vm975, %v3709, 0
        %3716 = vmatprep.subr.bf16.mxu0 0
        %3717 = vmatpush1.bf16.msra.mxu0 %v3714
        %3718 = vmatprep.subr.bf16.mxu0 0
        %3719 = vmatpush1.bf16.msra.mxu0 0
        %3720 = vmatprep.subr.bf16.mxu0 0
        %3721 = vmatpush1.bf16.msra.mxu0 0
        %3722 = vmatprep.subr.bf16.mxu0 0
        %3723 = vmatpush1.bf16.msra.mxu0 0
        %3724 = vmatprep.subr.bf16.mxu0 0
        %3725 = vmatpush1.bf16.msra.mxu0 0
        %3726 = vmatprep.subr.bf16.mxu0 0
        %3727 = vmatpush1.bf16.msra.mxu0 0
        %3728 = vmatprep.subr.bf16.mxu0 0
        %3729 = vmatpush1.bf16.msra.mxu0 0
        %3730 = vmatprep.subr.bf16.mxu0 0
        %3731 = vmatpush1.bf16.msra.mxu0 0
        %3732 = vmatprep.subr.bf16.mxu0 0
        %3733 = vmatpush1.bf16.msra.mxu0 0
        %3734 = vmatprep.subr.bf16.mxu0 0
        %3735 = vmatpush1.bf16.msra.mxu0 0
        %3736 = vmatprep.subr.bf16.mxu0 0
        %3737 = vmatpush1.bf16.msra.mxu0 0
        %3738 = vmatprep.subr.bf16.mxu0 0
        %3739 = vmatpush1.bf16.msra.mxu0 0
        %3740 = vmatprep.subr.bf16.mxu0 0
        %3741 = vmatpush1.bf16.msra.mxu0 0
        %3742 = vmatprep.subr.bf16.mxu0 0
        %3743 = vmatpush1.bf16.msra.mxu0 0
        %3744 = vmatprep.subr.bf16.mxu0 0
        %3745 = vmatpush1.bf16.msra.mxu0 0
        %3746 = vmatprep.subr.bf16.mxu0 0
        %3747 = vmatpush1.bf16.msra.mxu0 0
        %3748 = vmatprep.mubr.bf16.mxu0 0
        %3749 = vmatmul.mubr.bf16.gmra.mrb[0].mxu0 %v3711
        %v3750 = vpop.f32.mrb[0].mxu0
        %v3751 = vadd.f32 0.0, %v3750
        %v3752 = vpop.f32.mrb[0].mxu0
        %v3753 = vpop.f32.mrb[0].mxu0
        %v3754 = vpop.f32.mrb[0].mxu0
        %3755 = vdwg.mxu0
        %s3756 = sld [smem:[#allocation6 + $0x46]]
        %s3757 = sld [smem:[#allocation6 + $0x4e]]
        %v3758 = vstv %s3757
        %v3759 = vstv %s3756
        %v3760 = vsel %vm1081, %v3758, %v3759
        %s3761 = sld [smem:[#allocation6 + $0x56]]
        %v3762 = vstv %s3761
        %v3763 = vsel %vm1082, %v3762, %v3760
        %s3764 = sld [smem:[#allocation6 + $0x5e]]
        %v3765 = vstv %s3764
        %v3766 = vsel %vm1083, %v3765, %v3763
        %s3767 = sld [smem:[#allocation6 + $0x66]]
        %v3768 = vstv %s3767
        %v3769 = vsel %vm1084, %v3768, %v3766
        %s3770 = sld [smem:[#allocation6 + $0x6e]]
        %v3771 = vstv %s3770
        %v3772 = vsel %vm1085, %v3771, %v3769
        %s3773 = sld [smem:[#allocation6 + $0x76]]
        %v3774 = vstv %s3773
        %v3775 = vsel %vm1086, %v3774, %v3772
        %s3776 = sld [smem:[#allocation6 + $0x7e]]
        %v3777 = vstv %s3776
        %v3778 = vsel %vm1087, %v3777, %v3775
        %v3779 = vadd.f32 %v671, %v3778
        %3780 = vrot.lane.b32.xlu0 %v2946, 32
        %v3781 = vpop.permute.xlu0 %3780
        %3782 = vrot.lane.b32.xlu0 %v2947, 32
        %v3783 = vpop.permute.xlu0 %3782
        %v3785 = vsel %vm1501, %v3781, 0
        %v3788 = vsel %vm1501, %v3783, 0
        %3790 = vmatprep.subr.bf16.mxu0 0
        %3791 = vmatpush1.bf16.xpose.msra.mxu0 %v3788
        %3792 = vmatprep.subr.bf16.mxu0 0
        %3793 = vmatpush1.bf16.xpose.msra.mxu0 0
        %3794 = vmatprep.subr.bf16.mxu0 0
        %3795 = vmatpush1.bf16.xpose.msra.mxu0 0
        %3796 = vmatprep.subr.bf16.mxu0 0
        %3797 = vmatpush1.bf16.xpose.msra.mxu0 0
        %3798 = vmatprep.subr.bf16.mxu0 0
        %3799 = vmatpush1.bf16.xpose.msra.mxu0 0
        %3800 = vmatprep.subr.bf16.mxu0 0
        %3801 = vmatpush1.bf16.xpose.msra.mxu0 0
        %3802 = vmatprep.subr.bf16.mxu0 0
        %3803 = vmatpush1.bf16.xpose.msra.mxu0 0
        %3804 = vmatprep.subr.bf16.mxu0 0
        %3805 = vmatpush1.bf16.xpose.msra.mxu0 0
        %3806 = vmatprep.subr.bf16.mxu0 0
        %3807 = vmatpush1.bf16.xpose.msra.mxu0 0
        %3808 = vmatprep.subr.bf16.mxu0 0
        %3809 = vmatpush1.bf16.xpose.msra.mxu0 0
        %3810 = vmatprep.subr.bf16.mxu0 0
        %3811 = vmatpush1.bf16.xpose.msra.mxu0 0
        %3812 = vmatprep.subr.bf16.mxu0 0
        %3813 = vmatpush1.bf16.xpose.msra.mxu0 0
        %3814 = vmatprep.subr.bf16.mxu0 0
        %3815 = vmatpush1.bf16.xpose.msra.mxu0 0
        %3816 = vmatprep.subr.bf16.mxu0 0
        %3817 = vmatpush1.bf16.xpose.msra.mxu0 0
        %3818 = vmatprep.subr.bf16.mxu0 0
        %3819 = vmatpush1.bf16.xpose.msra.mxu0 0
        %3820 = vmatprep.subr.bf16.mxu0 0
        %3821 = vmatpush1.bf16.xpose.msra.mxu0 0
        %3822 = vmatprep.mubr.bf16.mxu0 0
        %3823 = vmatmul.mubr.bf16.gmra.mrb[0].mxu0 %v3785
        %v3824 = vpop.f32.mrb[0].mxu0
        %v3825 = vadd.f32 %v3779, %v3824
        %v3826 = vpop.f32.mrb[0].mxu0
        %v3827 = vpop.f32.mrb[0].mxu0
        %v3828 = vpop.f32.mrb[0].mxu0
        %3829 = vdwg.mxu0
        %v3830 = vsel %vm1068, %v3825, -inf
        %3831 = vmax.xlane.f32.xlu0 %v3830
        %v3832 = vpop.xlane.xlu0 %3831
        %v3833 = vsub.f32 %v3825, %v3832
        %v3834 = vmul.f32 %v3833, 1.442695
        %v3835 = vpow.pop %v3834
        %v3836 = vsel %vm1068, %v3835, 0.0
        %3837 = vadd.xlane.f32.xlu0 %v3836
        %v3838 = vpop.xlane.xlu0 %3837
        %v3839 = vrcp.pop %v3838
        %v3840 = vmul.f32 %v3835, %v3839
        %v3841 = vmul.f32 %v3840, %v1079
        %v3842 = vpack.c.bf16 %v3841, %v3841
        %3843 = vrot.lane.b32.xlu0 %v2948, 32
        %v3844 = vpop.permute.xlu0 %3843
        %v3846 = vsel %vm1068, %v3842, 0
        %v3849 = vsel %vm975, %v3844, 0
        %3851 = vmatprep.subr.bf16.mxu0 0
        %3852 = vmatpush1.bf16.msra.mxu0 %v3849
        %3853 = vmatprep.subr.bf16.mxu0 0
        %3854 = vmatpush1.bf16.msra.mxu0 0
        %3855 = vmatprep.subr.bf16.mxu0 0
        %3856 = vmatpush1.bf16.msra.mxu0 0
        %3857 = vmatprep.subr.bf16.mxu0 0
        %3858 = vmatpush1.bf16.msra.mxu0 0
        %3859 = vmatprep.subr.bf16.mxu0 0
        %3860 = vmatpush1.bf16.msra.mxu0 0
        %3861 = vmatprep.subr.bf16.mxu0 0
        %3862 = vmatpush1.bf16.msra.mxu0 0
        %3863 = vmatprep.subr.bf16.mxu0 0
        %3864 = vmatpush1.bf16.msra.mxu0 0
        %3865 = vmatprep.subr.bf16.mxu0 0
        %3866 = vmatpush1.bf16.msra.mxu0 0
        %3867 = vmatprep.subr.bf16.mxu0 0
        %3868 = vmatpush1.bf16.msra.mxu0 0
        %3869 = vmatprep.subr.bf16.mxu0 0
        %3870 = vmatpush1.bf16.msra.mxu0 0
        %3871 = vmatprep.subr.bf16.mxu0 0
        %3872 = vmatpush1.bf16.msra.mxu0 0
        %3873 = vmatprep.subr.bf16.mxu0 0
        %3874 = vmatpush1.bf16.msra.mxu0 0
        %3875 = vmatprep.subr.bf16.mxu0 0
        %3876 = vmatpush1.bf16.msra.mxu0 0
        %3877 = vmatprep.subr.bf16.mxu0 0
        %3878 = vmatpush1.bf16.msra.mxu0 0
        %3879 = vmatprep.subr.bf16.mxu0 0
        %3880 = vmatpush1.bf16.msra.mxu0 0
        %3881 = vmatprep.subr.bf16.mxu0 0
        %3882 = vmatpush1.bf16.msra.mxu0 0
        %3883 = vmatprep.mubr.bf16.mxu0 0
        %3884 = vmatmul.mubr.bf16.gmra.mrb[0].mxu0 %v3846
        %v3885 = vpop.f32.mrb[0].mxu0
        %v3886 = vadd.f32 0.0, %v3885
        %v3887 = vpop.f32.mrb[0].mxu0
        %v3888 = vpop.f32.mrb[0].mxu0
        %v3889 = vpop.f32.mrb[0].mxu0
        %3890 = vdwg.mxu0
        %s3891 = sld [smem:[#allocation6 + $0x47]]
        %s3892 = sld [smem:[#allocation6 + $0x4f]]
        %v3893 = vstv %s3892
        %v3894 = vstv %s3891
        %v3895 = vsel %vm1081, %v3893, %v3894
        %s3896 = sld [smem:[#allocation6 + $0x57]]
        %v3897 = vstv %s3896
        %v3898 = vsel %vm1082, %v3897, %v3895
        %s3899 = sld [smem:[#allocation6 + $0x5f]]
        %v3900 = vstv %s3899
        %v3901 = vsel %vm1083, %v3900, %v3898
        %s3902 = sld [smem:[#allocation6 + $0x67]]
        %v3903 = vstv %s3902
        %v3904 = vsel %vm1084, %v3903, %v3901
        %s3905 = sld [smem:[#allocation6 + $0x6f]]
        %v3906 = vstv %s3905
        %v3907 = vsel %vm1085, %v3906, %v3904
        %s3908 = sld [smem:[#allocation6 + $0x77]]
        %v3909 = vstv %s3908
        %v3910 = vsel %vm1086, %v3909, %v3907
        %s3911 = sld [smem:[#allocation6 + $0x7f]]
        %v3912 = vstv %s3911
        %v3913 = vsel %vm1087, %v3912, %v3910
        %v3914 = vadd.f32 %v671, %v3913
        %3915 = vrot.lane.b32.xlu0 %v2946, 16
        %v3916 = vpop.permute.xlu0 %3915
        %3917 = vrot.lane.b32.xlu0 %v2947, 16
        %v3918 = vpop.permute.xlu0 %3917
        %v3920 = vsel %vm1501, %v3916, 0
        %v3923 = vsel %vm1501, %v3918, 0
        %3925 = vmatprep.subr.bf16.mxu0 0
        %3926 = vmatpush1.bf16.xpose.msra.mxu0 %v3923
        %3927 = vmatprep.subr.bf16.mxu0 0
        %3928 = vmatpush1.bf16.xpose.msra.mxu0 0
        %3929 = vmatprep.subr.bf16.mxu0 0
        %3930 = vmatpush1.bf16.xpose.msra.mxu0 0
        %3931 = vmatprep.subr.bf16.mxu0 0
        %3932 = vmatpush1.bf16.xpose.msra.mxu0 0
        %3933 = vmatprep.subr.bf16.mxu0 0
        %3934 = vmatpush1.bf16.xpose.msra.mxu0 0
        %3935 = vmatprep.subr.bf16.mxu0 0
        %3936 = vmatpush1.bf16.xpose.msra.mxu0 0
        %3937 = vmatprep.subr.bf16.mxu0 0
        %3938 = vmatpush1.bf16.xpose.msra.mxu0 0
        %3939 = vmatprep.subr.bf16.mxu0 0
        %3940 = vmatpush1.bf16.xpose.msra.mxu0 0
        %3941 = vmatprep.subr.bf16.mxu0 0
        %3942 = vmatpush1.bf16.xpose.msra.mxu0 0
        %3943 = vmatprep.subr.bf16.mxu0 0
        %3944 = vmatpush1.bf16.xpose.msra.mxu0 0
        %3945 = vmatprep.subr.bf16.mxu0 0
        %3946 = vmatpush1.bf16.xpose.msra.mxu0 0
        %3947 = vmatprep.subr.bf16.mxu0 0
        %3948 = vmatpush1.bf16.xpose.msra.mxu0 0
        %3949 = vmatprep.subr.bf16.mxu0 0
        %3950 = vmatpush1.bf16.xpose.msra.mxu0 0
        %3951 = vmatprep.subr.bf16.mxu0 0
        %3952 = vmatpush1.bf16.xpose.msra.mxu0 0
        %3953 = vmatprep.subr.bf16.mxu0 0
        %3954 = vmatpush1.bf16.xpose.msra.mxu0 0
        %3955 = vmatprep.subr.bf16.mxu0 0
        %3956 = vmatpush1.bf16.xpose.msra.mxu0 0
        %3957 = vmatprep.mubr.bf16.mxu0 0
        %3958 = vmatmul.mubr.bf16.gmra.mrb[0].mxu0 %v3920
        %v3959 = vpop.f32.mrb[0].mxu0
        %v3960 = vadd.f32 %v3914, %v3959
        %v3961 = vpop.f32.mrb[0].mxu0
        %v3962 = vpop.f32.mrb[0].mxu0
        %v3963 = vpop.f32.mrb[0].mxu0
        %3964 = vdwg.mxu0
        %v3965 = vsel %vm1068, %v3960, -inf
        %3966 = vmax.xlane.f32.xlu0 %v3965
        %v3967 = vpop.xlane.xlu0 %3966
        %v3968 = vsub.f32 %v3960, %v3967
        %v3969 = vmul.f32 %v3968, 1.442695
        %v3970 = vpow.pop %v3969
        %v3971 = vsel %vm1068, %v3970, 0.0
        %3972 = vadd.xlane.f32.xlu0 %v3971
        %v3973 = vpop.xlane.xlu0 %3972
        %v3974 = vrcp.pop %v3973
        %v3975 = vmul.f32 %v3970, %v3974
        %v3976 = vmul.f32 %v3975, %v1079
        %v3977 = vpack.c.bf16 %v3976, %v3976
        %3978 = vrot.lane.b32.xlu0 %v2948, 16
        %v3979 = vpop.permute.xlu0 %3978
        %v3981 = vsel %vm1068, %v3977, 0
        %v3984 = vsel %vm975, %v3979, 0
        %3986 = vmatprep.subr.bf16.mxu0 0
        %3987 = vmatpush1.bf16.msra.mxu0 %v3984
        %3988 = vmatprep.subr.bf16.mxu0 0
        %3989 = vmatpush1.bf16.msra.mxu0 0
        %3990 = vmatprep.subr.bf16.mxu0 0
        %3991 = vmatpush1.bf16.msra.mxu0 0
        %3992 = vmatprep.subr.bf16.mxu0 0
        %3993 = vmatpush1.bf16.msra.mxu0 0
        %3994 = vmatprep.subr.bf16.mxu0 0
        %3995 = vmatpush1.bf16.msra.mxu0 0
        %3996 = vmatprep.subr.bf16.mxu0 0
        %3997 = vmatpush1.bf16.msra.mxu0 0
        %3998 = vmatprep.subr.bf16.mxu0 0
        %3999 = vmatpush1.bf16.msra.mxu0 0
        %4000 = vmatprep.subr.bf16.mxu0 0
        %4001 = vmatpush1.bf16.msra.mxu0 0
        %4002 = vmatprep.subr.bf16.mxu0 0
        %4003 = vmatpush1.bf16.msra.mxu0 0
        %4004 = vmatprep.subr.bf16.mxu0 0
        %4005 = vmatpush1.bf16.msra.mxu0 0
        %4006 = vmatprep.subr.bf16.mxu0 0
        %4007 = vmatpush1.bf16.msra.mxu0 0
        %4008 = vmatprep.subr.bf16.mxu0 0
        %4009 = vmatpush1.bf16.msra.mxu0 0
        %4010 = vmatprep.subr.bf16.mxu0 0
        %4011 = vmatpush1.bf16.msra.mxu0 0
        %4012 = vmatprep.subr.bf16.mxu0 0
        %4013 = vmatpush1.bf16.msra.mxu0 0
        %4014 = vmatprep.subr.bf16.mxu0 0
        %4015 = vmatpush1.bf16.msra.mxu0 0
        %4016 = vmatprep.subr.bf16.mxu0 0
        %4017 = vmatpush1.bf16.msra.mxu0 0
        %4018 = vmatprep.mubr.bf16.mxu0 0
        %4019 = vmatmul.mubr.bf16.gmra.mrb[0].mxu0 %v3981
        %v4020 = vpop.f32.mrb[0].mxu0
        %v4021 = vadd.f32 0.0, %v4020
        %v4022 = vpop.f32.mrb[0].mxu0
        %v4023 = vpop.f32.mrb[0].mxu0
        %v4024 = vpop.f32.mrb[0].mxu0
        %4025 = vdwg.mxu0
        %4027 = vrot.lane.b32.xlu0 %v3211, 16
        %v4028 = vpop.permute.xlu0 %4027
        %4031 = vrot.lane.b32.xlu0 %v3346, 32
        %v4032 = vpop.permute.xlu0 %4031
        %4035 = vrot.lane.b32.xlu0 %v3481, 48
        %v4036 = vpop.permute.xlu0 %4035
        %4039 = vrot.lane.b32.xlu0 %v3616, 64
        %v4040 = vpop.permute.xlu0 %4039
        %4043 = vrot.lane.b32.xlu0 %v3751, 80
        %v4044 = vpop.permute.xlu0 %4043
        %4047 = vrot.lane.b32.xlu0 %v3886, 96
        %v4048 = vpop.permute.xlu0 %4047
        %4051 = vrot.lane.b32.xlu0 %v4021, 112
        %v4052 = vpop.permute.xlu0 %4051
        %v4054 = vsel %vm1501, %v3073, %v4028
        %v4055 = vsel %vm2584, %v4054, %v4032
        %v4056 = vsel %vm2586, %v4055, %v4036
        %v4057 = vsel %vm2588, %v4056, %v4040
        %v4058 = vsel %vm2590, %v4057, %v4044
        %v4059 = vsel %vm2592, %v4058, %v4048
        %v4060 = vsel %vm2594, %v4059, %v4052
        %v4061 = vpack.c.bf16 %v4060, %v4060
        %s4062 = scalar_lea.vmem %s10, 64
        %v4063 = vld [vmem:[%s4062] sm:$0xf]
        %v4064 = vld [vmem:[%s4062 + $0x4] sm:$0xf]
        %v4065 = vld [vmem:[%s4062 + $0x8] sm:$0xf]
        %v4066 = vld [vmem:[%s4062 + $0xc] sm:$0xf]
        %v4067 = vld [vmem:[%s4062 + $0x10] sm:$0xf]
        %v4068 = vld [vmem:[%s4062 + $0x14] sm:$0xf]
        %v4069 = vld [vmem:[%s4062 + $0x18] sm:$0xf]
        %v4070 = vld [vmem:[%s4062 + $0x1c] sm:$0xf]
        %v4071 = vld [vmem:[%s4062 + $0x20] sm:$0xf]
        %v4072 = vld [vmem:[%s4062 + $0x24] sm:$0xf]
        %v4073 = vld [vmem:[%s4062 + $0x28] sm:$0xf]
        %v4074 = vld [vmem:[%s4062 + $0x2c] sm:$0xf]
        %v4075 = vld [vmem:[%s4062 + $0x30] sm:$0xf]
        %v4076 = vld [vmem:[%s4062 + $0x34] sm:$0xf]
        %v4077 = vld [vmem:[%s4062 + $0x38] sm:$0xf]
        %v4078 = vld [vmem:[%s4062 + $0x3c] sm:$0xf]
        %v4095 = vunpack.c.l.b16 %v4063
        %v4096 = vunpack.c.l.b16 %v4064
        %v4097 = vunpack.c.l.b16 %v4065
        %v4098 = vunpack.c.l.b16 %v4066
        %v4099 = vunpack.c.l.b16 %v4067
        %v4100 = vunpack.c.l.b16 %v4068
        %v4101 = vunpack.c.l.b16 %v4069
        %v4102 = vunpack.c.l.b16 %v4070
        %v4103 = vunpack.c.l.b16 %v4071
        %v4104 = vunpack.c.l.b16 %v4072
        %v4105 = vunpack.c.l.b16 %v4073
        %v4106 = vunpack.c.l.b16 %v4074
        %v4107 = vunpack.c.l.b16 %v4075
        %v4108 = vunpack.c.l.b16 %v4076
        %v4109 = vunpack.c.l.b16 %v4077
        %v4110 = vunpack.c.l.b16 %v4078
        %v4111 = vpack.c.b16 %v4096, %v4095
        %v4112 = vpack.c.b16 %v4098, %v4097
        %v4113 = vpack.c.b16 %v4100, %v4099
        %v4114 = vpack.c.b16 %v4102, %v4101
        %v4115 = vpack.c.b16 %v4104, %v4103
        %v4116 = vpack.c.b16 %v4106, %v4105
        %v4117 = vpack.c.b16 %v4108, %v4107
        %v4118 = vpack.c.b16 %v4110, %v4109
        %4127 = vmatprep.subr.bf16.mxu0 0
        %4128 = vmatpush1.bf16.msra.mxu0 %v4111
        %4129 = vmatprep.subr.bf16.mxu0 0
        %4130 = vmatpush1.bf16.msra.mxu0 %v4112
        %4131 = vmatprep.subr.bf16.mxu0 0
        %4132 = vmatpush1.bf16.msra.mxu0 %v4113
        %4133 = vmatprep.subr.bf16.mxu0 0
        %4134 = vmatpush1.bf16.msra.mxu0 %v4114
        %4135 = vmatprep.subr.bf16.mxu0 0
        %4136 = vmatpush1.bf16.msra.mxu0 %v4115
        %4137 = vmatprep.subr.bf16.mxu0 0
        %4138 = vmatpush1.bf16.msra.mxu0 %v4116
        %4139 = vmatprep.subr.bf16.mxu0 0
        %4140 = vmatpush1.bf16.msra.mxu0 %v4117
        %4141 = vmatprep.subr.bf16.mxu0 0
        %4142 = vmatpush1.bf16.msra.mxu0 %v4118
        %4143 = vmatprep.subr.bf16.mxu0 0
        %4144 = vmatpush1.bf16.msra.mxu0 0
        %4145 = vmatprep.subr.bf16.mxu0 0
        %4146 = vmatpush1.bf16.msra.mxu0 0
        %4147 = vmatprep.subr.bf16.mxu0 0
        %4148 = vmatpush1.bf16.msra.mxu0 0
        %4149 = vmatprep.subr.bf16.mxu0 0
        %4150 = vmatpush1.bf16.msra.mxu0 0
        %4151 = vmatprep.subr.bf16.mxu0 0
        %4152 = vmatpush1.bf16.msra.mxu0 0
        %4153 = vmatprep.subr.bf16.mxu0 0
        %4154 = vmatpush1.bf16.msra.mxu0 0
        %4155 = vmatprep.subr.bf16.mxu0 0
        %4156 = vmatpush1.bf16.msra.mxu0 0
        %4157 = vmatprep.subr.bf16.mxu0 0
        %4158 = vmatpush1.bf16.msra.mxu0 0
        %4159 = vmatprep.mubr.bf16.mxu0 0
        %4160 = vmatmul.mubr.bf16.gmra.mrb[0].mxu0 %v4061
        %v4161 = vpop.f32.mrb[0].mxu0
        %v4162 = vadd.f32 0.0, %v4161
        %v4163 = vpop.f32.mrb[0].mxu0
        %v4164 = vpop.f32.mrb[0].mxu0
        %v4165 = vpop.f32.mrb[0].mxu0
        %4166 = vdwg.mxu0
        %v4167 = vadd.f32 %v2702, %v4162
        %v4168 = vmax.f32 %v4167, 0.0
        %v4169 = vpack.c.bf16 %v4168, %v4168
        %s4170 = scalar_lea.vmem [#allocation13], 384
        %v4171 = vld [vmem:[%s4170] sm:$0xff]
        %v4172 = vld [vmem:[%s4170 + $0x8] sm:$0xf]
        %v4173 = vld [vmem:[%s4170 + $0xc] sm:$0xff]
        %v4174 = vld [vmem:[%s4170 + $0x14] sm:$0xf]
        %v4175 = vld [vmem:[%s4170 + $0x18] sm:$0xff]
        %v4176 = vld [vmem:[%s4170 + $0x20] sm:$0xf]
        %v4177 = vld [vmem:[%s4170 + $0x24] sm:$0xff]
        %v4178 = vld [vmem:[%s4170 + $0x2c] sm:$0xf]
        %v4179 = vld [vmem:[%s4170 + $0x30] sm:$0xff]
        %v4180 = vld [vmem:[%s4170 + $0x38] sm:$0xf]
        %v4181 = vld [vmem:[%s4170 + $0x3c] sm:$0xff]
        %v4182 = vld [vmem:[%s4170 + $0x44] sm:$0xf]
        %v4183 = vld [vmem:[%s4170 + $0x48] sm:$0xff]
        %v4184 = vld [vmem:[%s4170 + $0x50] sm:$0xf]
        %v4185 = vld [vmem:[%s4170 + $0x54] sm:$0xff]
        %v4186 = vld [vmem:[%s4170 + $0x5c] sm:$0xf]
        %v4187 = vld [vmem:[%s4170 + $0x60] sm:$0xff]
        %v4188 = vld [vmem:[%s4170 + $0x68] sm:$0xf]
        %v4189 = vld [vmem:[%s4170 + $0x6c] sm:$0xff]
        %v4190 = vld [vmem:[%s4170 + $0x74] sm:$0xf]
        %v4191 = vld [vmem:[%s4170 + $0x78] sm:$0xff]
        %v4192 = vld [vmem:[%s4170 + $0x80] sm:$0xf]
        %v4193 = vld [vmem:[%s4170 + $0x84] sm:$0xff]
        %v4194 = vld [vmem:[%s4170 + $0x8c] sm:$0xf]
        %v4195 = vld [vmem:[%s4170 + $0x90] sm:$0xff]
        %v4196 = vld [vmem:[%s4170 + $0x98] sm:$0xf]
        %v4197 = vld [vmem:[%s4170 + $0x9c] sm:$0xff]
        %v4198 = vld [vmem:[%s4170 + $0xa4] sm:$0xf]
        %v4199 = vld [vmem:[%s4170 + $0xa8] sm:$0xff]
        %v4200 = vld [vmem:[%s4170 + $0xb0] sm:$0xf]
        %v4201 = vld [vmem:[%s4170 + $0xb4] sm:$0xff]
        %v4202 = vld [vmem:[%s4170 + $0xbc] sm:$0xf]
        %v4235 = vunpack.c.l.b16 %v4171
        %v4236 = vunpack.c.h.b16 %v4171
        %v4237 = vunpack.c.l.b16 %v4172
        %v4238 = vunpack.c.l.b16 %v4173
        %v4239 = vunpack.c.h.b16 %v4173
        %v4240 = vunpack.c.l.b16 %v4174
        %v4241 = vunpack.c.l.b16 %v4175
        %v4242 = vunpack.c.h.b16 %v4175
        %v4243 = vunpack.c.l.b16 %v4176
        %v4244 = vunpack.c.l.b16 %v4177
        %v4245 = vunpack.c.h.b16 %v4177
        %v4246 = vunpack.c.l.b16 %v4178
        %v4247 = vunpack.c.l.b16 %v4179
        %v4248 = vunpack.c.h.b16 %v4179
        %v4249 = vunpack.c.l.b16 %v4180
        %v4250 = vunpack.c.l.b16 %v4181
        %v4251 = vunpack.c.h.b16 %v4181
        %v4252 = vunpack.c.l.b16 %v4182
        %v4253 = vunpack.c.l.b16 %v4183
        %v4254 = vunpack.c.h.b16 %v4183
        %v4255 = vunpack.c.l.b16 %v4184
        %v4256 = vunpack.c.l.b16 %v4185
        %v4257 = vunpack.c.h.b16 %v4185
        %v4258 = vunpack.c.l.b16 %v4186
        %v4259 = vunpack.c.l.b16 %v4187
        %v4260 = vunpack.c.h.b16 %v4187
        %v4261 = vunpack.c.l.b16 %v4188
        %v4262 = vunpack.c.l.b16 %v4189
        %v4263 = vunpack.c.h.b16 %v4189
        %v4264 = vunpack.c.l.b16 %v4190
        %v4265 = vunpack.c.l.b16 %v4191
        %v4266 = vunpack.c.h.b16 %v4191
        %v4267 = vunpack.c.l.b16 %v4192
        %v4268 = vunpack.c.l.b16 %v4193
        %v4269 = vunpack.c.h.b16 %v4193
        %v4270 = vunpack.c.l.b16 %v4194
        %v4271 = vunpack.c.l.b16 %v4195
        %v4272 = vunpack.c.h.b16 %v4195
        %v4273 = vunpack.c.l.b16 %v4196
        %v4274 = vunpack.c.l.b16 %v4197
        %v4275 = vunpack.c.h.b16 %v4197
        %v4276 = vunpack.c.l.b16 %v4198
        %v4277 = vunpack.c.l.b16 %v4199
        %v4278 = vunpack.c.h.b16 %v4199
        %v4279 = vunpack.c.l.b16 %v4200
        %v4280 = vunpack.c.l.b16 %v4201
        %v4281 = vunpack.c.h.b16 %v4201
        %v4282 = vunpack.c.l.b16 %v4202
        %v4283 = vpack.c.b16 %v4238, %v4235
        %v4284 = vpack.c.b16 %v4239, %v4236
        %v4285 = vpack.c.b16 %v4240, %v4237
        %v4286 = vpack.c.b16 %v4244, %v4241
        %v4287 = vpack.c.b16 %v4245, %v4242
        %v4288 = vpack.c.b16 %v4246, %v4243
        %v4289 = vpack.c.b16 %v4250, %v4247
        %v4290 = vpack.c.b16 %v4251, %v4248
        %v4291 = vpack.c.b16 %v4252, %v4249
        %v4292 = vpack.c.b16 %v4256, %v4253
        %v4293 = vpack.c.b16 %v4257, %v4254
        %v4294 = vpack.c.b16 %v4258, %v4255
        %v4295 = vpack.c.b16 %v4262, %v4259
        %v4296 = vpack.c.b16 %v4263, %v4260
        %v4297 = vpack.c.b16 %v4264, %v4261
        %v4298 = vpack.c.b16 %v4268, %v4265
        %v4299 = vpack.c.b16 %v4269, %v4266
        %v4300 = vpack.c.b16 %v4270, %v4267
        %v4301 = vpack.c.b16 %v4274, %v4271
        %v4302 = vpack.c.b16 %v4275, %v4272
        %v4303 = vpack.c.b16 %v4276, %v4273
        %v4304 = vpack.c.b16 %v4280, %v4277
        %v4305 = vpack.c.b16 %v4281, %v4278
        %v4306 = vpack.c.b16 %v4282, %v4279
        %4331 = vmatprep.subr.bf16.mxu0 %v4284
        %4332 = vmatpush1.bf16.msra.mxu0 %v4283
        %4333 = vmatprep.subr.bf16.mxu0 %v4287
        %4334 = vmatpush1.bf16.msra.mxu0 %v4286
        %4335 = vmatprep.subr.bf16.mxu0 %v4290
        %4336 = vmatpush1.bf16.msra.mxu0 %v4289
        %4337 = vmatprep.subr.bf16.mxu0 %v4293
        %4338 = vmatpush1.bf16.msra.mxu0 %v4292
        %4339 = vmatprep.subr.bf16.mxu0 %v4296
        %4340 = vmatpush1.bf16.msra.mxu0 %v4295
        %4341 = vmatprep.subr.bf16.mxu0 %v4299
        %4342 = vmatpush1.bf16.msra.mxu0 %v4298
        %4343 = vmatprep.subr.bf16.mxu0 %v4302
        %4344 = vmatpush1.bf16.msra.mxu0 %v4301
        %4345 = vmatprep.subr.bf16.mxu0 %v4305
        %4346 = vmatpush1.bf16.msra.mxu0 %v4304
        %4347 = vmatprep.subr.bf16.mxu0 0
        %4348 = vmatpush1.bf16.msra.mxu0 0
        %4349 = vmatprep.subr.bf16.mxu0 0
        %4350 = vmatpush1.bf16.msra.mxu0 0
        %4351 = vmatprep.subr.bf16.mxu0 0
        %4352 = vmatpush1.bf16.msra.mxu0 0
        %4353 = vmatprep.subr.bf16.mxu0 0
        %4354 = vmatpush1.bf16.msra.mxu0 0
        %4355 = vmatprep.subr.bf16.mxu0 0
        %4356 = vmatpush1.bf16.msra.mxu0 0
        %4357 = vmatprep.subr.bf16.mxu0 0
        %4358 = vmatpush1.bf16.msra.mxu0 0
        %4359 = vmatprep.subr.bf16.mxu0 0
        %4360 = vmatpush1.bf16.msra.mxu0 0
        %4361 = vmatprep.subr.bf16.mxu0 0
        %4362 = vmatpush1.bf16.msra.mxu0 0
        %4363 = vmatprep.mubr.bf16.mxu0 0
        %4364 = vmatmul.mubr.bf16.gmra.mrb[0].mxu0 %v4169
        %v4365 = vpop.f32.mrb[0].mxu0
        %v4366 = vadd.f32 0.0, %v4365
        %v4367 = vpop.f32.mrb[0].mxu0
        %v4368 = vadd.f32 0.0, %v4367
        %v4369 = vpop.f32.mrb[0].mxu0
        %v4370 = vpop.f32.mrb[0].mxu0
        %4371 = vdwg.mxu0
        %4372 = vmatprep.subr.bf16.mxu0 0
        %4373 = vmatpush1.bf16.msra.mxu0 %v4285
        %4374 = vmatprep.subr.bf16.mxu0 0
        %4375 = vmatpush1.bf16.msra.mxu0 %v4288
        %4376 = vmatprep.subr.bf16.mxu0 0
        %4377 = vmatpush1.bf16.msra.mxu0 %v4291
        %4378 = vmatprep.subr.bf16.mxu0 0
        %4379 = vmatpush1.bf16.msra.mxu0 %v4294
        %4380 = vmatprep.subr.bf16.mxu0 0
        %4381 = vmatpush1.bf16.msra.mxu0 %v4297
        %4382 = vmatprep.subr.bf16.mxu0 0
        %4383 = vmatpush1.bf16.msra.mxu0 %v4300
        %4384 = vmatprep.subr.bf16.mxu0 0
        %4385 = vmatpush1.bf16.msra.mxu0 %v4303
        %4386 = vmatprep.subr.bf16.mxu0 0
        %4387 = vmatpush1.bf16.msra.mxu0 %v4306
        %4388 = vmatprep.subr.bf16.mxu0 0
        %4389 = vmatpush1.bf16.msra.mxu0 0
        %4390 = vmatprep.subr.bf16.mxu0 0
        %4391 = vmatpush1.bf16.msra.mxu0 0
        %4392 = vmatprep.subr.bf16.mxu0 0
        %4393 = vmatpush1.bf16.msra.mxu0 0
        %4394 = vmatprep.subr.bf16.mxu0 0
        %4395 = vmatpush1.bf16.msra.mxu0 0
        %4396 = vmatprep.subr.bf16.mxu0 0
        %4397 = vmatpush1.bf16.msra.mxu0 0
        %4398 = vmatprep.subr.bf16.mxu0 0
        %4399 = vmatpush1.bf16.msra.mxu0 0
        %4400 = vmatprep.subr.bf16.mxu0 0
        %4401 = vmatpush1.bf16.msra.mxu0 0
        %4402 = vmatprep.subr.bf16.mxu0 0
        %4403 = vmatpush1.bf16.msra.mxu0 0
        %4404 = vmatprep.mubr.bf16.mxu0 0
        %4405 = vmatmul.mubr.bf16.gmra.mrb[0].mxu0 %v4169
        %v4406 = vpop.f32.mrb[0].mxu0
        %v4407 = vadd.f32 0.0, %v4406
        %v4408 = vpop.f32.mrb[0].mxu0
        %v4409 = vpop.f32.mrb[0].mxu0
        %v4410 = vpop.f32.mrb[0].mxu0
        %4411 = vdwg.mxu0
        %v4412 = vpack.c.bf16 %v4366, %v4366
        %v4413 = vpack.c.bf16 %v4368, %v4368
        %v4414 = vpack.c.bf16 %v4407, %v4407
        %s4415 = sld [smem:[#allocation6 + $0x80]]
        %s4416 = sld [smem:[#allocation6 + $0x88]]
        %v4417 = vstv %s4416
        %v4418 = vstv %s4415
        %v4419 = vsel %vm1081, %v4417, %v4418
        %s4420 = sld [smem:[#allocation6 + $0x90]]
        %v4421 = vstv %s4420
        %v4422 = vsel %vm1082, %v4421, %v4419
        %s4423 = sld [smem:[#allocation6 + $0x98]]
        %v4424 = vstv %s4423
        %v4425 = vsel %vm1083, %v4424, %v4422
        %s4426 = sld [smem:[#allocation6 + $0xa0]]
        %v4427 = vstv %s4426
        %v4428 = vsel %vm1084, %v4427, %v4425
        %s4429 = sld [smem:[#allocation6 + $0xa8]]
        %v4430 = vstv %s4429
        %v4431 = vsel %vm1085, %v4430, %v4428
        %s4432 = sld [smem:[#allocation6 + $0xb0]]
        %v4433 = vstv %s4432
        %v4434 = vsel %vm1086, %v4433, %v4431
        %s4435 = sld [smem:[#allocation6 + $0xb8]]
        %v4436 = vstv %s4435
        %v4437 = vsel %vm1087, %v4436, %v4434
        %v4438 = vadd.f32 %v671, %v4437
        %v4440 = vsel %vm1501, %v4412, 0
        %v4443 = vsel %vm1501, %v4413, 0
        %4445 = vmatprep.subr.bf16.mxu0 0
        %4446 = vmatpush1.bf16.xpose.msra.mxu0 %v4443
        %4447 = vmatprep.subr.bf16.mxu0 0
        %4448 = vmatpush1.bf16.xpose.msra.mxu0 0
        %4449 = vmatprep.subr.bf16.mxu0 0
        %4450 = vmatpush1.bf16.xpose.msra.mxu0 0
        %4451 = vmatprep.subr.bf16.mxu0 0
        %4452 = vmatpush1.bf16.xpose.msra.mxu0 0
        %4453 = vmatprep.subr.bf16.mxu0 0
        %4454 = vmatpush1.bf16.xpose.msra.mxu0 0
        %4455 = vmatprep.subr.bf16.mxu0 0
        %4456 = vmatpush1.bf16.xpose.msra.mxu0 0
        %4457 = vmatprep.subr.bf16.mxu0 0
        %4458 = vmatpush1.bf16.xpose.msra.mxu0 0
        %4459 = vmatprep.subr.bf16.mxu0 0
        %4460 = vmatpush1.bf16.xpose.msra.mxu0 0
        %4461 = vmatprep.subr.bf16.mxu0 0
        %4462 = vmatpush1.bf16.xpose.msra.mxu0 0
        %4463 = vmatprep.subr.bf16.mxu0 0
        %4464 = vmatpush1.bf16.xpose.msra.mxu0 0
        %4465 = vmatprep.subr.bf16.mxu0 0
        %4466 = vmatpush1.bf16.xpose.msra.mxu0 0
        %4467 = vmatprep.subr.bf16.mxu0 0
        %4468 = vmatpush1.bf16.xpose.msra.mxu0 0
        %4469 = vmatprep.subr.bf16.mxu0 0
        %4470 = vmatpush1.bf16.xpose.msra.mxu0 0
        %4471 = vmatprep.subr.bf16.mxu0 0
        %4472 = vmatpush1.bf16.xpose.msra.mxu0 0
        %4473 = vmatprep.subr.bf16.mxu0 0
        %4474 = vmatpush1.bf16.xpose.msra.mxu0 0
        %4475 = vmatprep.subr.bf16.mxu0 0
        %4476 = vmatpush1.bf16.xpose.msra.mxu0 0
        %4477 = vmatprep.mubr.bf16.mxu0 0
        %4478 = vmatmul.mubr.bf16.gmra.mrb[0].mxu0 %v4440
        %v4479 = vpop.f32.mrb[0].mxu0
        %v4480 = vadd.f32 %v4438, %v4479
        %v4481 = vpop.f32.mrb[0].mxu0
        %v4482 = vpop.f32.mrb[0].mxu0
        %v4483 = vpop.f32.mrb[0].mxu0
        %4484 = vdwg.mxu0
        %v4485 = vsel %vm1068, %v4480, -inf
        %4486 = vmax.xlane.f32.xlu0 %v4485
        %v4487 = vpop.xlane.xlu0 %4486
        %v4488 = vsub.f32 %v4480, %v4487
        %v4489 = vmul.f32 %v4488, 1.442695
        %v4490 = vpow.pop %v4489
        %v4491 = vsel %vm1068, %v4490, 0.0
        %4492 = vadd.xlane.f32.xlu0 %v4491
        %v4493 = vpop.xlane.xlu0 %4492
        %v4494 = vrcp.pop %v4493
        %v4495 = vmul.f32 %v4490, %v4494
        %v4496 = vmul.f32 %v4495, %v1079
        %v4497 = vpack.c.bf16 %v4496, %v4496
        %v4499 = vsel %vm1068, %v4497, 0
        %v4502 = vsel %vm975, %v4414, 0
        %4504 = vmatprep.subr.bf16.mxu0 0
        %4505 = vmatpush1.bf16.msra.mxu0 %v4502
        %4506 = vmatprep.subr.bf16.mxu0 0
        %4507 = vmatpush1.bf16.msra.mxu0 0
        %4508 = vmatprep.subr.bf16.mxu0 0
        %4509 = vmatpush1.bf16.msra.mxu0 0
        %4510 = vmatprep.subr.bf16.mxu0 0
        %4511 = vmatpush1.bf16.msra.mxu0 0
        %4512 = vmatprep.subr.bf16.mxu0 0
        %4513 = vmatpush1.bf16.msra.mxu0 0
        %4514 = vmatprep.subr.bf16.mxu0 0
        %4515 = vmatpush1.bf16.msra.mxu0 0
        %4516 = vmatprep.subr.bf16.mxu0 0
        %4517 = vmatpush1.bf16.msra.mxu0 0
        %4518 = vmatprep.subr.bf16.mxu0 0
        %4519 = vmatpush1.bf16.msra.mxu0 0
        %4520 = vmatprep.subr.bf16.mxu0 0
        %4521 = vmatpush1.bf16.msra.mxu0 0
        %4522 = vmatprep.subr.bf16.mxu0 0
        %4523 = vmatpush1.bf16.msra.mxu0 0
        %4524 = vmatprep.subr.bf16.mxu0 0
        %4525 = vmatpush1.bf16.msra.mxu0 0
        %4526 = vmatprep.subr.bf16.mxu0 0
        %4527 = vmatpush1.bf16.msra.mxu0 0
        %4528 = vmatprep.subr.bf16.mxu0 0
        %4529 = vmatpush1.bf16.msra.mxu0 0
        %4530 = vmatprep.subr.bf16.mxu0 0
        %4531 = vmatpush1.bf16.msra.mxu0 0
        %4532 = vmatprep.subr.bf16.mxu0 0
        %4533 = vmatpush1.bf16.msra.mxu0 0
        %4534 = vmatprep.subr.bf16.mxu0 0
        %4535 = vmatpush1.bf16.msra.mxu0 0
        %4536 = vmatprep.mubr.bf16.mxu0 0
        %4537 = vmatmul.mubr.bf16.gmra.mrb[0].mxu0 %v4499
        %v4538 = vpop.f32.mrb[0].mxu0
        %v4539 = vadd.f32 0.0, %v4538
        %v4540 = vpop.f32.mrb[0].mxu0
        %v4541 = vpop.f32.mrb[0].mxu0
        %v4542 = vpop.f32.mrb[0].mxu0
        %4543 = vdwg.mxu0
        %s4544 = sld [smem:[#allocation6 + $0x81]]
        %s4545 = sld [smem:[#allocation6 + $0x89]]
        %v4546 = vstv %s4545
        %v4547 = vstv %s4544
        %v4548 = vsel %vm1081, %v4546, %v4547
        %s4549 = sld [smem:[#allocation6 + $0x91]]
        %v4550 = vstv %s4549
        %v4551 = vsel %vm1082, %v4550, %v4548
        %s4552 = sld [smem:[#allocation6 + $0x99]]
        %v4553 = vstv %s4552
        %v4554 = vsel %vm1083, %v4553, %v4551
        %s4555 = sld [smem:[#allocation6 + $0xa1]]
        %v4556 = vstv %s4555
        %v4557 = vsel %vm1084, %v4556, %v4554
        %s4558 = sld [smem:[#allocation6 + $0xa9]]
        %v4559 = vstv %s4558
        %v4560 = vsel %vm1085, %v4559, %v4557
        %s4561 = sld [smem:[#allocation6 + $0xb1]]
        %v4562 = vstv %s4561
        %v4563 = vsel %vm1086, %v4562, %v4560
        %s4564 = sld [smem:[#allocation6 + $0xb9]]
        %v4565 = vstv %s4564
        %v4566 = vsel %vm1087, %v4565, %v4563
        %v4567 = vadd.f32 %v671, %v4566
        %4569 = vrot.lane.b32.xlu0 %v4412, 112
        %v4570 = vpop.permute.xlu0 %4569
        %4572 = vrot.lane.b32.xlu0 %v4413, 112
        %v4573 = vpop.permute.xlu0 %4572
        %v4575 = vsel %vm1501, %v4570, 0
        %v4578 = vsel %vm1501, %v4573, 0
        %4580 = vmatprep.subr.bf16.mxu0 0
        %4581 = vmatpush1.bf16.xpose.msra.mxu0 %v4578
        %4582 = vmatprep.subr.bf16.mxu0 0
        %4583 = vmatpush1.bf16.xpose.msra.mxu0 0
        %4584 = vmatprep.subr.bf16.mxu0 0
        %4585 = vmatpush1.bf16.xpose.msra.mxu0 0
        %4586 = vmatprep.subr.bf16.mxu0 0
        %4587 = vmatpush1.bf16.xpose.msra.mxu0 0
        %4588 = vmatprep.subr.bf16.mxu0 0
        %4589 = vmatpush1.bf16.xpose.msra.mxu0 0
        %4590 = vmatprep.subr.bf16.mxu0 0
        %4591 = vmatpush1.bf16.xpose.msra.mxu0 0
        %4592 = vmatprep.subr.bf16.mxu0 0
        %4593 = vmatpush1.bf16.xpose.msra.mxu0 0
        %4594 = vmatprep.subr.bf16.mxu0 0
        %4595 = vmatpush1.bf16.xpose.msra.mxu0 0
        %4596 = vmatprep.subr.bf16.mxu0 0
        %4597 = vmatpush1.bf16.xpose.msra.mxu0 0
        %4598 = vmatprep.subr.bf16.mxu0 0
        %4599 = vmatpush1.bf16.xpose.msra.mxu0 0
        %4600 = vmatprep.subr.bf16.mxu0 0
        %4601 = vmatpush1.bf16.xpose.msra.mxu0 0
        %4602 = vmatprep.subr.bf16.mxu0 0
        %4603 = vmatpush1.bf16.xpose.msra.mxu0 0
        %4604 = vmatprep.subr.bf16.mxu0 0
        %4605 = vmatpush1.bf16.xpose.msra.mxu0 0
        %4606 = vmatprep.subr.bf16.mxu0 0
        %4607 = vmatpush1.bf16.xpose.msra.mxu0 0
        %4608 = vmatprep.subr.bf16.mxu0 0
        %4609 = vmatpush1.bf16.xpose.msra.mxu0 0
        %4610 = vmatprep.subr.bf16.mxu0 0
        %4611 = vmatpush1.bf16.xpose.msra.mxu0 0
        %4612 = vmatprep.mubr.bf16.mxu0 0
        %4613 = vmatmul.mubr.bf16.gmra.mrb[0].mxu0 %v4575
        %v4614 = vpop.f32.mrb[0].mxu0
        %v4615 = vadd.f32 %v4567, %v4614
        %v4616 = vpop.f32.mrb[0].mxu0
        %v4617 = vpop.f32.mrb[0].mxu0
        %v4618 = vpop.f32.mrb[0].mxu0
        %4619 = vdwg.mxu0
        %v4620 = vsel %vm1068, %v4615, -inf
        %4621 = vmax.xlane.f32.xlu0 %v4620
        %v4622 = vpop.xlane.xlu0 %4621
        %v4623 = vsub.f32 %v4615, %v4622
        %v4624 = vmul.f32 %v4623, 1.442695
        %v4625 = vpow.pop %v4624
        %v4626 = vsel %vm1068, %v4625, 0.0
        %4627 = vadd.xlane.f32.xlu0 %v4626
        %v4628 = vpop.xlane.xlu0 %4627
        %v4629 = vrcp.pop %v4628
        %v4630 = vmul.f32 %v4625, %v4629
        %v4631 = vmul.f32 %v4630, %v1079
        %v4632 = vpack.c.bf16 %v4631, %v4631
        %4634 = vrot.lane.b32.xlu0 %v4414, 112
        %v4635 = vpop.permute.xlu0 %4634
        %v4637 = vsel %vm1068, %v4632, 0
        %v4640 = vsel %vm975, %v4635, 0
        %4642 = vmatprep.subr.bf16.mxu0 0
        %4643 = vmatpush1.bf16.msra.mxu0 %v4640
        %4644 = vmatprep.subr.bf16.mxu0 0
        %4645 = vmatpush1.bf16.msra.mxu0 0
        %4646 = vmatprep.subr.bf16.mxu0 0
        %4647 = vmatpush1.bf16.msra.mxu0 0
        %4648 = vmatprep.subr.bf16.mxu0 0
        %4649 = vmatpush1.bf16.msra.mxu0 0
        %4650 = vmatprep.subr.bf16.mxu0 0
        %4651 = vmatpush1.bf16.msra.mxu0 0
        %4652 = vmatprep.subr.bf16.mxu0 0
        %4653 = vmatpush1.bf16.msra.mxu0 0
        %4654 = vmatprep.subr.bf16.mxu0 0
        %4655 = vmatpush1.bf16.msra.mxu0 0
        %4656 = vmatprep.subr.bf16.mxu0 0
        %4657 = vmatpush1.bf16.msra.mxu0 0
        %4658 = vmatprep.subr.bf16.mxu0 0
        %4659 = vmatpush1.bf16.msra.mxu0 0
        %4660 = vmatprep.subr.bf16.mxu0 0
        %4661 = vmatpush1.bf16.msra.mxu0 0
        %4662 = vmatprep.subr.bf16.mxu0 0
        %4663 = vmatpush1.bf16.msra.mxu0 0
        %4664 = vmatprep.subr.bf16.mxu0 0
        %4665 = vmatpush1.bf16.msra.mxu0 0
        %4666 = vmatprep.subr.bf16.mxu0 0
        %4667 = vmatpush1.bf16.msra.mxu0 0
        %4668 = vmatprep.subr.bf16.mxu0 0
        %4669 = vmatpush1.bf16.msra.mxu0 0
        %4670 = vmatprep.subr.bf16.mxu0 0
        %4671 = vmatpush1.bf16.msra.mxu0 0
        %4672 = vmatprep.subr.bf16.mxu0 0
        %4673 = vmatpush1.bf16.msra.mxu0 0
        %4674 = vmatprep.mubr.bf16.mxu0 0
        %4675 = vmatmul.mubr.bf16.gmra.mrb[0].mxu0 %v4637
        %v4676 = vpop.f32.mrb[0].mxu0
        %v4677 = vadd.f32 0.0, %v4676
        %v4678 = vpop.f32.mrb[0].mxu0
        %v4679 = vpop.f32.mrb[0].mxu0
        %v4680 = vpop.f32.mrb[0].mxu0
        %4681 = vdwg.mxu0
        %s4682 = sld [smem:[#allocation6 + $0x82]]
        %s4683 = sld [smem:[#allocation6 + $0x8a]]
        %v4684 = vstv %s4683
        %v4685 = vstv %s4682
        %v4686 = vsel %vm1081, %v4684, %v4685
        %s4687 = sld [smem:[#allocation6 + $0x92]]
        %v4688 = vstv %s4687
        %v4689 = vsel %vm1082, %v4688, %v4686
        %s4690 = sld [smem:[#allocation6 + $0x9a]]
        %v4691 = vstv %s4690
        %v4692 = vsel %vm1083, %v4691, %v4689
        %s4693 = sld [smem:[#allocation6 + $0xa2]]
        %v4694 = vstv %s4693
        %v4695 = vsel %vm1084, %v4694, %v4692
        %s4696 = sld [smem:[#allocation6 + $0xaa]]
        %v4697 = vstv %s4696
        %v4698 = vsel %vm1085, %v4697, %v4695
        %s4699 = sld [smem:[#allocation6 + $0xb2]]
        %v4700 = vstv %s4699
        %v4701 = vsel %vm1086, %v4700, %v4698
        %s4702 = sld [smem:[#allocation6 + $0xba]]
        %v4703 = vstv %s4702
        %v4704 = vsel %vm1087, %v4703, %v4701
        %v4705 = vadd.f32 %v671, %v4704
        %4706 = vrot.lane.b32.xlu0 %v4412, 96
        %v4707 = vpop.permute.xlu0 %4706
        %4708 = vrot.lane.b32.xlu0 %v4413, 96
        %v4709 = vpop.permute.xlu0 %4708
        %v4711 = vsel %vm1501, %v4707, 0
        %v4714 = vsel %vm1501, %v4709, 0
        %4716 = vmatprep.subr.bf16.mxu0 0
        %4717 = vmatpush1.bf16.xpose.msra.mxu0 %v4714
        %4718 = vmatprep.subr.bf16.mxu0 0
        %4719 = vmatpush1.bf16.xpose.msra.mxu0 0
        %4720 = vmatprep.subr.bf16.mxu0 0
        %4721 = vmatpush1.bf16.xpose.msra.mxu0 0
        %4722 = vmatprep.subr.bf16.mxu0 0
        %4723 = vmatpush1.bf16.xpose.msra.mxu0 0
        %4724 = vmatprep.subr.bf16.mxu0 0
        %4725 = vmatpush1.bf16.xpose.msra.mxu0 0
        %4726 = vmatprep.subr.bf16.mxu0 0
        %4727 = vmatpush1.bf16.xpose.msra.mxu0 0
        %4728 = vmatprep.subr.bf16.mxu0 0
        %4729 = vmatpush1.bf16.xpose.msra.mxu0 0
        %4730 = vmatprep.subr.bf16.mxu0 0
        %4731 = vmatpush1.bf16.xpose.msra.mxu0 0
        %4732 = vmatprep.subr.bf16.mxu0 0
        %4733 = vmatpush1.bf16.xpose.msra.mxu0 0
        %4734 = vmatprep.subr.bf16.mxu0 0
        %4735 = vmatpush1.bf16.xpose.msra.mxu0 0
        %4736 = vmatprep.subr.bf16.mxu0 0
        %4737 = vmatpush1.bf16.xpose.msra.mxu0 0
        %4738 = vmatprep.subr.bf16.mxu0 0
        %4739 = vmatpush1.bf16.xpose.msra.mxu0 0
        %4740 = vmatprep.subr.bf16.mxu0 0
        %4741 = vmatpush1.bf16.xpose.msra.mxu0 0
        %4742 = vmatprep.subr.bf16.mxu0 0
        %4743 = vmatpush1.bf16.xpose.msra.mxu0 0
        %4744 = vmatprep.subr.bf16.mxu0 0
        %4745 = vmatpush1.bf16.xpose.msra.mxu0 0
        %4746 = vmatprep.subr.bf16.mxu0 0
        %4747 = vmatpush1.bf16.xpose.msra.mxu0 0
        %4748 = vmatprep.mubr.bf16.mxu0 0
        %4749 = vmatmul.mubr.bf16.gmra.mrb[0].mxu0 %v4711
        %v4750 = vpop.f32.mrb[0].mxu0
        %v4751 = vadd.f32 %v4705, %v4750
        %v4752 = vpop.f32.mrb[0].mxu0
        %v4753 = vpop.f32.mrb[0].mxu0
        %v4754 = vpop.f32.mrb[0].mxu0
        %4755 = vdwg.mxu0
        %v4756 = vsel %vm1068, %v4751, -inf
        %4757 = vmax.xlane.f32.xlu0 %v4756
        %v4758 = vpop.xlane.xlu0 %4757
        %v4759 = vsub.f32 %v4751, %v4758
        %v4760 = vmul.f32 %v4759, 1.442695
        %v4761 = vpow.pop %v4760
        %v4762 = vsel %vm1068, %v4761, 0.0
        %4763 = vadd.xlane.f32.xlu0 %v4762
        %v4764 = vpop.xlane.xlu0 %4763
        %v4765 = vrcp.pop %v4764
        %v4766 = vmul.f32 %v4761, %v4765
        %v4767 = vmul.f32 %v4766, %v1079
        %v4768 = vpack.c.bf16 %v4767, %v4767
        %4769 = vrot.lane.b32.xlu0 %v4414, 96
        %v4770 = vpop.permute.xlu0 %4769
        %v4772 = vsel %vm1068, %v4768, 0
        %v4775 = vsel %vm975, %v4770, 0
        %4777 = vmatprep.subr.bf16.mxu0 0
        %4778 = vmatpush1.bf16.msra.mxu0 %v4775
        %4779 = vmatprep.subr.bf16.mxu0 0
        %4780 = vmatpush1.bf16.msra.mxu0 0
        %4781 = vmatprep.subr.bf16.mxu0 0
        %4782 = vmatpush1.bf16.msra.mxu0 0
        %4783 = vmatprep.subr.bf16.mxu0 0
        %4784 = vmatpush1.bf16.msra.mxu0 0
        %4785 = vmatprep.subr.bf16.mxu0 0
        %4786 = vmatpush1.bf16.msra.mxu0 0
        %4787 = vmatprep.subr.bf16.mxu0 0
        %4788 = vmatpush1.bf16.msra.mxu0 0
        %4789 = vmatprep.subr.bf16.mxu0 0
        %4790 = vmatpush1.bf16.msra.mxu0 0
        %4791 = vmatprep.subr.bf16.mxu0 0
        %4792 = vmatpush1.bf16.msra.mxu0 0
        %4793 = vmatprep.subr.bf16.mxu0 0
        %4794 = vmatpush1.bf16.msra.mxu0 0
        %4795 = vmatprep.subr.bf16.mxu0 0
        %4796 = vmatpush1.bf16.msra.mxu0 0
        %4797 = vmatprep.subr.bf16.mxu0 0
        %4798 = vmatpush1.bf16.msra.mxu0 0
        %4799 = vmatprep.subr.bf16.mxu0 0
        %4800 = vmatpush1.bf16.msra.mxu0 0
        %4801 = vmatprep.subr.bf16.mxu0 0
        %4802 = vmatpush1.bf16.msra.mxu0 0
        %4803 = vmatprep.subr.bf16.mxu0 0
        %4804 = vmatpush1.bf16.msra.mxu0 0
        %4805 = vmatprep.subr.bf16.mxu0 0
        %4806 = vmatpush1.bf16.msra.mxu0 0
        %4807 = vmatprep.subr.bf16.mxu0 0
        %4808 = vmatpush1.bf16.msra.mxu0 0
        %4809 = vmatprep.mubr.bf16.mxu0 0
        %4810 = vmatmul.mubr.bf16.gmra.mrb[0].mxu0 %v4772
        %v4811 = vpop.f32.mrb[0].mxu0
        %v4812 = vadd.f32 0.0, %v4811
        %v4813 = vpop.f32.mrb[0].mxu0
        %v4814 = vpop.f32.mrb[0].mxu0
        %v4815 = vpop.f32.mrb[0].mxu0
        %4816 = vdwg.mxu0
        %s4817 = sld [smem:[#allocation6 + $0x83]]
        %s4818 = sld [smem:[#allocation6 + $0x8b]]
        %v4819 = vstv %s4818
        %v4820 = vstv %s4817
        %v4821 = vsel %vm1081, %v4819, %v4820
        %s4822 = sld [smem:[#allocation6 + $0x93]]
        %v4823 = vstv %s4822
        %v4824 = vsel %vm1082, %v4823, %v4821
        %s4825 = sld [smem:[#allocation6 + $0x9b]]
        %v4826 = vstv %s4825
        %v4827 = vsel %vm1083, %v4826, %v4824
        %s4828 = sld [smem:[#allocation6 + $0xa3]]
        %v4829 = vstv %s4828
        %v4830 = vsel %vm1084, %v4829, %v4827
        %s4831 = sld [smem:[#allocation6 + $0xab]]
        %v4832 = vstv %s4831
        %v4833 = vsel %vm1085, %v4832, %v4830
        %s4834 = sld [smem:[#allocation6 + $0xb3]]
        %v4835 = vstv %s4834
        %v4836 = vsel %vm1086, %v4835, %v4833
        %s4837 = sld [smem:[#allocation6 + $0xbb]]
        %v4838 = vstv %s4837
        %v4839 = vsel %vm1087, %v4838, %v4836
        %v4840 = vadd.f32 %v671, %v4839
        %4841 = vrot.lane.b32.xlu0 %v4412, 80
        %v4842 = vpop.permute.xlu0 %4841
        %4843 = vrot.lane.b32.xlu0 %v4413, 80
        %v4844 = vpop.permute.xlu0 %4843
        %v4846 = vsel %vm1501, %v4842, 0
        %v4849 = vsel %vm1501, %v4844, 0
        %4851 = vmatprep.subr.bf16.mxu0 0
        %4852 = vmatpush1.bf16.xpose.msra.mxu0 %v4849
        %4853 = vmatprep.subr.bf16.mxu0 0
        %4854 = vmatpush1.bf16.xpose.msra.mxu0 0
        %4855 = vmatprep.subr.bf16.mxu0 0
        %4856 = vmatpush1.bf16.xpose.msra.mxu0 0
        %4857 = vmatprep.subr.bf16.mxu0 0
        %4858 = vmatpush1.bf16.xpose.msra.mxu0 0
        %4859 = vmatprep.subr.bf16.mxu0 0
        %4860 = vmatpush1.bf16.xpose.msra.mxu0 0
        %4861 = vmatprep.subr.bf16.mxu0 0
        %4862 = vmatpush1.bf16.xpose.msra.mxu0 0
        %4863 = vmatprep.subr.bf16.mxu0 0
        %4864 = vmatpush1.bf16.xpose.msra.mxu0 0
        %4865 = vmatprep.subr.bf16.mxu0 0
        %4866 = vmatpush1.bf16.xpose.msra.mxu0 0
        %4867 = vmatprep.subr.bf16.mxu0 0
        %4868 = vmatpush1.bf16.xpose.msra.mxu0 0
        %4869 = vmatprep.subr.bf16.mxu0 0
        %4870 = vmatpush1.bf16.xpose.msra.mxu0 0
        %4871 = vmatprep.subr.bf16.mxu0 0
        %4872 = vmatpush1.bf16.xpose.msra.mxu0 0
        %4873 = vmatprep.subr.bf16.mxu0 0
        %4874 = vmatpush1.bf16.xpose.msra.mxu0 0
        %4875 = vmatprep.subr.bf16.mxu0 0
        %4876 = vmatpush1.bf16.xpose.msra.mxu0 0
        %4877 = vmatprep.subr.bf16.mxu0 0
        %4878 = vmatpush1.bf16.xpose.msra.mxu0 0
        %4879 = vmatprep.subr.bf16.mxu0 0
        %4880 = vmatpush1.bf16.xpose.msra.mxu0 0
        %4881 = vmatprep.subr.bf16.mxu0 0
        %4882 = vmatpush1.bf16.xpose.msra.mxu0 0
        %4883 = vmatprep.mubr.bf16.mxu0 0
        %4884 = vmatmul.mubr.bf16.gmra.mrb[0].mxu0 %v4846
        %v4885 = vpop.f32.mrb[0].mxu0
        %v4886 = vadd.f32 %v4840, %v4885
        %v4887 = vpop.f32.mrb[0].mxu0
        %v4888 = vpop.f32.mrb[0].mxu0
        %v4889 = vpop.f32.mrb[0].mxu0
        %4890 = vdwg.mxu0
        %v4891 = vsel %vm1068, %v4886, -inf
        %4892 = vmax.xlane.f32.xlu0 %v4891
        %v4893 = vpop.xlane.xlu0 %4892
        %v4894 = vsub.f32 %v4886, %v4893
        %v4895 = vmul.f32 %v4894, 1.442695
        %v4896 = vpow.pop %v4895
        %v4897 = vsel %vm1068, %v4896, 0.0
        %4898 = vadd.xlane.f32.xlu0 %v4897
        %v4899 = vpop.xlane.xlu0 %4898
        %v4900 = vrcp.pop %v4899
        %v4901 = vmul.f32 %v4896, %v4900
        %v4902 = vmul.f32 %v4901, %v1079
        %v4903 = vpack.c.bf16 %v4902, %v4902
        %4904 = vrot.lane.b32.xlu0 %v4414, 80
        %v4905 = vpop.permute.xlu0 %4904
        %v4907 = vsel %vm1068, %v4903, 0
        %v4910 = vsel %vm975, %v4905, 0
        %4912 = vmatprep.subr.bf16.mxu0 0
        %4913 = vmatpush1.bf16.msra.mxu0 %v4910
        %4914 = vmatprep.subr.bf16.mxu0 0
        %4915 = vmatpush1.bf16.msra.mxu0 0
        %4916 = vmatprep.subr.bf16.mxu0 0
        %4917 = vmatpush1.bf16.msra.mxu0 0
        %4918 = vmatprep.subr.bf16.mxu0 0
        %4919 = vmatpush1.bf16.msra.mxu0 0
        %4920 = vmatprep.subr.bf16.mxu0 0
        %4921 = vmatpush1.bf16.msra.mxu0 0
        %4922 = vmatprep.subr.bf16.mxu0 0
        %4923 = vmatpush1.bf16.msra.mxu0 0
        %4924 = vmatprep.subr.bf16.mxu0 0
        %4925 = vmatpush1.bf16.msra.mxu0 0
        %4926 = vmatprep.subr.bf16.mxu0 0
        %4927 = vmatpush1.bf16.msra.mxu0 0
        %4928 = vmatprep.subr.bf16.mxu0 0
        %4929 = vmatpush1.bf16.msra.mxu0 0
        %4930 = vmatprep.subr.bf16.mxu0 0
        %4931 = vmatpush1.bf16.msra.mxu0 0
        %4932 = vmatprep.subr.bf16.mxu0 0
        %4933 = vmatpush1.bf16.msra.mxu0 0
        %4934 = vmatprep.subr.bf16.mxu0 0
        %4935 = vmatpush1.bf16.msra.mxu0 0
        %4936 = vmatprep.subr.bf16.mxu0 0
        %4937 = vmatpush1.bf16.msra.mxu0 0
        %4938 = vmatprep.subr.bf16.mxu0 0
        %4939 = vmatpush1.bf16.msra.mxu0 0
        %4940 = vmatprep.subr.bf16.mxu0 0
        %4941 = vmatpush1.bf16.msra.mxu0 0
        %4942 = vmatprep.subr.bf16.mxu0 0
        %4943 = vmatpush1.bf16.msra.mxu0 0
        %4944 = vmatprep.mubr.bf16.mxu0 0
        %4945 = vmatmul.mubr.bf16.gmra.mrb[0].mxu0 %v4907
        %v4946 = vpop.f32.mrb[0].mxu0
        %v4947 = vadd.f32 0.0, %v4946
        %v4948 = vpop.f32.mrb[0].mxu0
        %v4949 = vpop.f32.mrb[0].mxu0
        %v4950 = vpop.f32.mrb[0].mxu0
        %4951 = vdwg.mxu0
        %s4952 = sld [smem:[#allocation6 + $0x84]]
        %s4953 = sld [smem:[#allocation6 + $0x8c]]
        %v4954 = vstv %s4953
        %v4955 = vstv %s4952
        %v4956 = vsel %vm1081, %v4954, %v4955
        %s4957 = sld [smem:[#allocation6 + $0x94]]
        %v4958 = vstv %s4957
        %v4959 = vsel %vm1082, %v4958, %v4956
        %s4960 = sld [smem:[#allocation6 + $0x9c]]
        %v4961 = vstv %s4960
        %v4962 = vsel %vm1083, %v4961, %v4959
        %s4963 = sld [smem:[#allocation6 + $0xa4]]
        %v4964 = vstv %s4963
        %v4965 = vsel %vm1084, %v4964, %v4962
        %s4966 = sld [smem:[#allocation6 + $0xac]]
        %v4967 = vstv %s4966
        %v4968 = vsel %vm1085, %v4967, %v4965
        %s4969 = sld [smem:[#allocation6 + $0xb4]]
        %v4970 = vstv %s4969
        %v4971 = vsel %vm1086, %v4970, %v4968
        %s4972 = sld [smem:[#allocation6 + $0xbc]]
        %v4973 = vstv %s4972
        %v4974 = vsel %vm1087, %v4973, %v4971
        %v4975 = vadd.f32 %v671, %v4974
        %4976 = vrot.lane.b32.xlu0 %v4412, 64
        %v4977 = vpop.permute.xlu0 %4976
        %4978 = vrot.lane.b32.xlu0 %v4413, 64
        %v4979 = vpop.permute.xlu0 %4978
        %v4981 = vsel %vm1501, %v4977, 0
        %v4984 = vsel %vm1501, %v4979, 0
        %4986 = vmatprep.subr.bf16.mxu0 0
        %4987 = vmatpush1.bf16.xpose.msra.mxu0 %v4984
        %4988 = vmatprep.subr.bf16.mxu0 0
        %4989 = vmatpush1.bf16.xpose.msra.mxu0 0
        %4990 = vmatprep.subr.bf16.mxu0 0
        %4991 = vmatpush1.bf16.xpose.msra.mxu0 0
        %4992 = vmatprep.subr.bf16.mxu0 0
        %4993 = vmatpush1.bf16.xpose.msra.mxu0 0
        %4994 = vmatprep.subr.bf16.mxu0 0
        %4995 = vmatpush1.bf16.xpose.msra.mxu0 0
        %4996 = vmatprep.subr.bf16.mxu0 0
        %4997 = vmatpush1.bf16.xpose.msra.mxu0 0
        %4998 = vmatprep.subr.bf16.mxu0 0
        %4999 = vmatpush1.bf16.xpose.msra.mxu0 0
        %5000 = vmatprep.subr.bf16.mxu0 0
        %5001 = vmatpush1.bf16.xpose.msra.mxu0 0
        %5002 = vmatprep.subr.bf16.mxu0 0
        %5003 = vmatpush1.bf16.xpose.msra.mxu0 0
        %5004 = vmatprep.subr.bf16.mxu0 0
        %5005 = vmatpush1.bf16.xpose.msra.mxu0 0
        %5006 = vmatprep.subr.bf16.mxu0 0
        %5007 = vmatpush1.bf16.xpose.msra.mxu0 0
        %5008 = vmatprep.subr.bf16.mxu0 0
        %5009 = vmatpush1.bf16.xpose.msra.mxu0 0
        %5010 = vmatprep.subr.bf16.mxu0 0
        %5011 = vmatpush1.bf16.xpose.msra.mxu0 0
        %5012 = vmatprep.subr.bf16.mxu0 0
        %5013 = vmatpush1.bf16.xpose.msra.mxu0 0
        %5014 = vmatprep.subr.bf16.mxu0 0
        %5015 = vmatpush1.bf16.xpose.msra.mxu0 0
        %5016 = vmatprep.subr.bf16.mxu0 0
        %5017 = vmatpush1.bf16.xpose.msra.mxu0 0
        %5018 = vmatprep.mubr.bf16.mxu0 0
        %5019 = vmatmul.mubr.bf16.gmra.mrb[0].mxu0 %v4981
        %v5020 = vpop.f32.mrb[0].mxu0
        %v5021 = vadd.f32 %v4975, %v5020
        %v5022 = vpop.f32.mrb[0].mxu0
        %v5023 = vpop.f32.mrb[0].mxu0
        %v5024 = vpop.f32.mrb[0].mxu0
        %5025 = vdwg.mxu0
        %v5026 = vsel %vm1068, %v5021, -inf
        %5027 = vmax.xlane.f32.xlu0 %v5026
        %v5028 = vpop.xlane.xlu0 %5027
        %v5029 = vsub.f32 %v5021, %v5028
        %v5030 = vmul.f32 %v5029, 1.442695
        %v5031 = vpow.pop %v5030
        %v5032 = vsel %vm1068, %v5031, 0.0
        %5033 = vadd.xlane.f32.xlu0 %v5032
        %v5034 = vpop.xlane.xlu0 %5033
        %v5035 = vrcp.pop %v5034
        %v5036 = vmul.f32 %v5031, %v5035
        %v5037 = vmul.f32 %v5036, %v1079
        %v5038 = vpack.c.bf16 %v5037, %v5037
        %5039 = vrot.lane.b32.xlu0 %v4414, 64
        %v5040 = vpop.permute.xlu0 %5039
        %v5042 = vsel %vm1068, %v5038, 0
        %v5045 = vsel %vm975, %v5040, 0
        %5047 = vmatprep.subr.bf16.mxu0 0
        %5048 = vmatpush1.bf16.msra.mxu0 %v5045
        %5049 = vmatprep.subr.bf16.mxu0 0
        %5050 = vmatpush1.bf16.msra.mxu0 0
        %5051 = vmatprep.subr.bf16.mxu0 0
        %5052 = vmatpush1.bf16.msra.mxu0 0
        %5053 = vmatprep.subr.bf16.mxu0 0
        %5054 = vmatpush1.bf16.msra.mxu0 0
        %5055 = vmatprep.subr.bf16.mxu0 0
        %5056 = vmatpush1.bf16.msra.mxu0 0
        %5057 = vmatprep.subr.bf16.mxu0 0
        %5058 = vmatpush1.bf16.msra.mxu0 0
        %5059 = vmatprep.subr.bf16.mxu0 0
        %5060 = vmatpush1.bf16.msra.mxu0 0
        %5061 = vmatprep.subr.bf16.mxu0 0
        %5062 = vmatpush1.bf16.msra.mxu0 0
        %5063 = vmatprep.subr.bf16.mxu0 0
        %5064 = vmatpush1.bf16.msra.mxu0 0
        %5065 = vmatprep.subr.bf16.mxu0 0
        %5066 = vmatpush1.bf16.msra.mxu0 0
        %5067 = vmatprep.subr.bf16.mxu0 0
        %5068 = vmatpush1.bf16.msra.mxu0 0
        %5069 = vmatprep.subr.bf16.mxu0 0
        %5070 = vmatpush1.bf16.msra.mxu0 0
        %5071 = vmatprep.subr.bf16.mxu0 0
        %5072 = vmatpush1.bf16.msra.mxu0 0
        %5073 = vmatprep.subr.bf16.mxu0 0
        %5074 = vmatpush1.bf16.msra.mxu0 0
        %5075 = vmatprep.subr.bf16.mxu0 0
        %5076 = vmatpush1.bf16.msra.mxu0 0
        %5077 = vmatprep.subr.bf16.mxu0 0
        %5078 = vmatpush1.bf16.msra.mxu0 0
        %5079 = vmatprep.mubr.bf16.mxu0 0
        %5080 = vmatmul.mubr.bf16.gmra.mrb[0].mxu0 %v5042
        %v5081 = vpop.f32.mrb[0].mxu0
        %v5082 = vadd.f32 0.0, %v5081
        %v5083 = vpop.f32.mrb[0].mxu0
        %v5084 = vpop.f32.mrb[0].mxu0
        %v5085 = vpop.f32.mrb[0].mxu0
        %5086 = vdwg.mxu0
        %s5087 = sld [smem:[#allocation6 + $0x85]]
        %s5088 = sld [smem:[#allocation6 + $0x8d]]
        %v5089 = vstv %s5088
        %v5090 = vstv %s5087
        %v5091 = vsel %vm1081, %v5089, %v5090
        %s5092 = sld [smem:[#allocation6 + $0x95]]
        %v5093 = vstv %s5092
        %v5094 = vsel %vm1082, %v5093, %v5091
        %s5095 = sld [smem:[#allocation6 + $0x9d]]
        %v5096 = vstv %s5095
        %v5097 = vsel %vm1083, %v5096, %v5094
        %s5098 = sld [smem:[#allocation6 + $0xa5]]
        %v5099 = vstv %s5098
        %v5100 = vsel %vm1084, %v5099, %v5097
        %s5101 = sld [smem:[#allocation6 + $0xad]]
        %v5102 = vstv %s5101
        %v5103 = vsel %vm1085, %v5102, %v5100
        %s5104 = sld [smem:[#allocation6 + $0xb5]]
        %v5105 = vstv %s5104
        %v5106 = vsel %vm1086, %v5105, %v5103
        %s5107 = sld [smem:[#allocation6 + $0xbd]]
        %v5108 = vstv %s5107
        %v5109 = vsel %vm1087, %v5108, %v5106
        %v5110 = vadd.f32 %v671, %v5109
        %5111 = vrot.lane.b32.xlu0 %v4412, 48
        %v5112 = vpop.permute.xlu0 %5111
        %5113 = vrot.lane.b32.xlu0 %v4413, 48
        %v5114 = vpop.permute.xlu0 %5113
        %v5116 = vsel %vm1501, %v5112, 0
        %v5119 = vsel %vm1501, %v5114, 0
        %5121 = vmatprep.subr.bf16.mxu0 0
        %5122 = vmatpush1.bf16.xpose.msra.mxu0 %v5119
        %5123 = vmatprep.subr.bf16.mxu0 0
        %5124 = vmatpush1.bf16.xpose.msra.mxu0 0
        %5125 = vmatprep.subr.bf16.mxu0 0
        %5126 = vmatpush1.bf16.xpose.msra.mxu0 0
        %5127 = vmatprep.subr.bf16.mxu0 0
        %5128 = vmatpush1.bf16.xpose.msra.mxu0 0
        %5129 = vmatprep.subr.bf16.mxu0 0
        %5130 = vmatpush1.bf16.xpose.msra.mxu0 0
        %5131 = vmatprep.subr.bf16.mxu0 0
        %5132 = vmatpush1.bf16.xpose.msra.mxu0 0
        %5133 = vmatprep.subr.bf16.mxu0 0
        %5134 = vmatpush1.bf16.xpose.msra.mxu0 0
        %5135 = vmatprep.subr.bf16.mxu0 0
        %5136 = vmatpush1.bf16.xpose.msra.mxu0 0
        %5137 = vmatprep.subr.bf16.mxu0 0
        %5138 = vmatpush1.bf16.xpose.msra.mxu0 0
        %5139 = vmatprep.subr.bf16.mxu0 0
        %5140 = vmatpush1.bf16.xpose.msra.mxu0 0
        %5141 = vmatprep.subr.bf16.mxu0 0
        %5142 = vmatpush1.bf16.xpose.msra.mxu0 0
        %5143 = vmatprep.subr.bf16.mxu0 0
        %5144 = vmatpush1.bf16.xpose.msra.mxu0 0
        %5145 = vmatprep.subr.bf16.mxu0 0
        %5146 = vmatpush1.bf16.xpose.msra.mxu0 0
        %5147 = vmatprep.subr.bf16.mxu0 0
        %5148 = vmatpush1.bf16.xpose.msra.mxu0 0
        %5149 = vmatprep.subr.bf16.mxu0 0
        %5150 = vmatpush1.bf16.xpose.msra.mxu0 0
        %5151 = vmatprep.subr.bf16.mxu0 0
        %5152 = vmatpush1.bf16.xpose.msra.mxu0 0
        %5153 = vmatprep.mubr.bf16.mxu0 0
        %5154 = vmatmul.mubr.bf16.gmra.mrb[0].mxu0 %v5116
        %v5155 = vpop.f32.mrb[0].mxu0
        %v5156 = vadd.f32 %v5110, %v5155
        %v5157 = vpop.f32.mrb[0].mxu0
        %v5158 = vpop.f32.mrb[0].mxu0
        %v5159 = vpop.f32.mrb[0].mxu0
        %5160 = vdwg.mxu0
        %v5161 = vsel %vm1068, %v5156, -inf
        %5162 = vmax.xlane.f32.xlu0 %v5161
        %v5163 = vpop.xlane.xlu0 %5162
        %v5164 = vsub.f32 %v5156, %v5163
        %v5165 = vmul.f32 %v5164, 1.442695
        %v5166 = vpow.pop %v5165
        %v5167 = vsel %vm1068, %v5166, 0.0
        %5168 = vadd.xlane.f32.xlu0 %v5167
        %v5169 = vpop.xlane.xlu0 %5168
        %v5170 = vrcp.pop %v5169
        %v5171 = vmul.f32 %v5166, %v5170
        %v5172 = vmul.f32 %v5171, %v1079
        %v5173 = vpack.c.bf16 %v5172, %v5172
        %5174 = vrot.lane.b32.xlu0 %v4414, 48
        %v5175 = vpop.permute.xlu0 %5174
        %v5177 = vsel %vm1068, %v5173, 0
        %v5180 = vsel %vm975, %v5175, 0
        %5182 = vmatprep.subr.bf16.mxu0 0
        %5183 = vmatpush1.bf16.msra.mxu0 %v5180
        %5184 = vmatprep.subr.bf16.mxu0 0
        %5185 = vmatpush1.bf16.msra.mxu0 0
        %5186 = vmatprep.subr.bf16.mxu0 0
        %5187 = vmatpush1.bf16.msra.mxu0 0
        %5188 = vmatprep.subr.bf16.mxu0 0
        %5189 = vmatpush1.bf16.msra.mxu0 0
        %5190 = vmatprep.subr.bf16.mxu0 0
        %5191 = vmatpush1.bf16.msra.mxu0 0
        %5192 = vmatprep.subr.bf16.mxu0 0
        %5193 = vmatpush1.bf16.msra.mxu0 0
        %5194 = vmatprep.subr.bf16.mxu0 0
        %5195 = vmatpush1.bf16.msra.mxu0 0
        %5196 = vmatprep.subr.bf16.mxu0 0
        %5197 = vmatpush1.bf16.msra.mxu0 0
        %5198 = vmatprep.subr.bf16.mxu0 0
        %5199 = vmatpush1.bf16.msra.mxu0 0
        %5200 = vmatprep.subr.bf16.mxu0 0
        %5201 = vmatpush1.bf16.msra.mxu0 0
        %5202 = vmatprep.subr.bf16.mxu0 0
        %5203 = vmatpush1.bf16.msra.mxu0 0
        %5204 = vmatprep.subr.bf16.mxu0 0
        %5205 = vmatpush1.bf16.msra.mxu0 0
        %5206 = vmatprep.subr.bf16.mxu0 0
        %5207 = vmatpush1.bf16.msra.mxu0 0
        %5208 = vmatprep.subr.bf16.mxu0 0
        %5209 = vmatpush1.bf16.msra.mxu0 0
        %5210 = vmatprep.subr.bf16.mxu0 0
        %5211 = vmatpush1.bf16.msra.mxu0 0
        %5212 = vmatprep.subr.bf16.mxu0 0
        %5213 = vmatpush1.bf16.msra.mxu0 0
        %5214 = vmatprep.mubr.bf16.mxu0 0
        %5215 = vmatmul.mubr.bf16.gmra.mrb[0].mxu0 %v5177
        %v5216 = vpop.f32.mrb[0].mxu0
        %v5217 = vadd.f32 0.0, %v5216
        %v5218 = vpop.f32.mrb[0].mxu0
        %v5219 = vpop.f32.mrb[0].mxu0
        %v5220 = vpop.f32.mrb[0].mxu0
        %5221 = vdwg.mxu0
        %s5222 = sld [smem:[#allocation6 + $0x86]]
        %s5223 = sld [smem:[#allocation6 + $0x8e]]
        %v5224 = vstv %s5223
        %v5225 = vstv %s5222
        %v5226 = vsel %vm1081, %v5224, %v5225
        %s5227 = sld [smem:[#allocation6 + $0x96]]
        %v5228 = vstv %s5227
        %v5229 = vsel %vm1082, %v5228, %v5226
        %s5230 = sld [smem:[#allocation6 + $0x9e]]
        %v5231 = vstv %s5230
        %v5232 = vsel %vm1083, %v5231, %v5229
        %s5233 = sld [smem:[#allocation6 + $0xa6]]
        %v5234 = vstv %s5233
        %v5235 = vsel %vm1084, %v5234, %v5232
        %s5236 = sld [smem:[#allocation6 + $0xae]]
        %v5237 = vstv %s5236
        %v5238 = vsel %vm1085, %v5237, %v5235
        %s5239 = sld [smem:[#allocation6 + $0xb6]]
        %v5240 = vstv %s5239
        %v5241 = vsel %vm1086, %v5240, %v5238
        %s5242 = sld [smem:[#allocation6 + $0xbe]]
        %v5243 = vstv %s5242
        %v5244 = vsel %vm1087, %v5243, %v5241
        %v5245 = vadd.f32 %v671, %v5244
        %5246 = vrot.lane.b32.xlu0 %v4412, 32
        %v5247 = vpop.permute.xlu0 %5246
        %5248 = vrot.lane.b32.xlu0 %v4413, 32
        %v5249 = vpop.permute.xlu0 %5248
        %v5251 = vsel %vm1501, %v5247, 0
        %v5254 = vsel %vm1501, %v5249, 0
        %5256 = vmatprep.subr.bf16.mxu0 0
        %5257 = vmatpush1.bf16.xpose.msra.mxu0 %v5254
        %5258 = vmatprep.subr.bf16.mxu0 0
        %5259 = vmatpush1.bf16.xpose.msra.mxu0 0
        %5260 = vmatprep.subr.bf16.mxu0 0
        %5261 = vmatpush1.bf16.xpose.msra.mxu0 0
        %5262 = vmatprep.subr.bf16.mxu0 0
        %5263 = vmatpush1.bf16.xpose.msra.mxu0 0
        %5264 = vmatprep.subr.bf16.mxu0 0
        %5265 = vmatpush1.bf16.xpose.msra.mxu0 0
        %5266 = vmatprep.subr.bf16.mxu0 0
        %5267 = vmatpush1.bf16.xpose.msra.mxu0 0
        %5268 = vmatprep.subr.bf16.mxu0 0
        %5269 = vmatpush1.bf16.xpose.msra.mxu0 0
        %5270 = vmatprep.subr.bf16.mxu0 0
        %5271 = vmatpush1.bf16.xpose.msra.mxu0 0
        %5272 = vmatprep.subr.bf16.mxu0 0
        %5273 = vmatpush1.bf16.xpose.msra.mxu0 0
        %5274 = vmatprep.subr.bf16.mxu0 0
        %5275 = vmatpush1.bf16.xpose.msra.mxu0 0
        %5276 = vmatprep.subr.bf16.mxu0 0
        %5277 = vmatpush1.bf16.xpose.msra.mxu0 0
        %5278 = vmatprep.subr.bf16.mxu0 0
        %5279 = vmatpush1.bf16.xpose.msra.mxu0 0
        %5280 = vmatprep.subr.bf16.mxu0 0
        %5281 = vmatpush1.bf16.xpose.msra.mxu0 0
        %5282 = vmatprep.subr.bf16.mxu0 0
        %5283 = vmatpush1.bf16.xpose.msra.mxu0 0
        %5284 = vmatprep.subr.bf16.mxu0 0
        %5285 = vmatpush1.bf16.xpose.msra.mxu0 0
        %5286 = vmatprep.subr.bf16.mxu0 0
        %5287 = vmatpush1.bf16.xpose.msra.mxu0 0
        %5288 = vmatprep.mubr.bf16.mxu0 0
        %5289 = vmatmul.mubr.bf16.gmra.mrb[0].mxu0 %v5251
        %v5290 = vpop.f32.mrb[0].mxu0
        %v5291 = vadd.f32 %v5245, %v5290
        %v5292 = vpop.f32.mrb[0].mxu0
        %v5293 = vpop.f32.mrb[0].mxu0
        %v5294 = vpop.f32.mrb[0].mxu0
        %5295 = vdwg.mxu0
        %v5296 = vsel %vm1068, %v5291, -inf
        %5297 = vmax.xlane.f32.xlu0 %v5296
        %v5298 = vpop.xlane.xlu0 %5297
        %v5299 = vsub.f32 %v5291, %v5298
        %v5300 = vmul.f32 %v5299, 1.442695
        %v5301 = vpow.pop %v5300
        %v5302 = vsel %vm1068, %v5301, 0.0
        %5303 = vadd.xlane.f32.xlu0 %v5302
        %v5304 = vpop.xlane.xlu0 %5303
        %v5305 = vrcp.pop %v5304
        %v5306 = vmul.f32 %v5301, %v5305
        %v5307 = vmul.f32 %v5306, %v1079
        %v5308 = vpack.c.bf16 %v5307, %v5307
        %5309 = vrot.lane.b32.xlu0 %v4414, 32
        %v5310 = vpop.permute.xlu0 %5309
        %v5312 = vsel %vm1068, %v5308, 0
        %v5315 = vsel %vm975, %v5310, 0
        %5317 = vmatprep.subr.bf16.mxu0 0
        %5318 = vmatpush1.bf16.msra.mxu0 %v5315
        %5319 = vmatprep.subr.bf16.mxu0 0
        %5320 = vmatpush1.bf16.msra.mxu0 0
        %5321 = vmatprep.subr.bf16.mxu0 0
        %5322 = vmatpush1.bf16.msra.mxu0 0
        %5323 = vmatprep.subr.bf16.mxu0 0
        %5324 = vmatpush1.bf16.msra.mxu0 0
        %5325 = vmatprep.subr.bf16.mxu0 0
        %5326 = vmatpush1.bf16.msra.mxu0 0
        %5327 = vmatprep.subr.bf16.mxu0 0
        %5328 = vmatpush1.bf16.msra.mxu0 0
        %5329 = vmatprep.subr.bf16.mxu0 0
        %5330 = vmatpush1.bf16.msra.mxu0 0
        %5331 = vmatprep.subr.bf16.mxu0 0
        %5332 = vmatpush1.bf16.msra.mxu0 0
        %5333 = vmatprep.subr.bf16.mxu0 0
        %5334 = vmatpush1.bf16.msra.mxu0 0
        %5335 = vmatprep.subr.bf16.mxu0 0
        %5336 = vmatpush1.bf16.msra.mxu0 0
        %5337 = vmatprep.subr.bf16.mxu0 0
        %5338 = vmatpush1.bf16.msra.mxu0 0
        %5339 = vmatprep.subr.bf16.mxu0 0
        %5340 = vmatpush1.bf16.msra.mxu0 0
        %5341 = vmatprep.subr.bf16.mxu0 0
        %5342 = vmatpush1.bf16.msra.mxu0 0
        %5343 = vmatprep.subr.bf16.mxu0 0
        %5344 = vmatpush1.bf16.msra.mxu0 0
        %5345 = vmatprep.subr.bf16.mxu0 0
        %5346 = vmatpush1.bf16.msra.mxu0 0
        %5347 = vmatprep.subr.bf16.mxu0 0
        %5348 = vmatpush1.bf16.msra.mxu0 0
        %5349 = vmatprep.mubr.bf16.mxu0 0
        %5350 = vmatmul.mubr.bf16.gmra.mrb[0].mxu0 %v5312
        %v5351 = vpop.f32.mrb[0].mxu0
        %v5352 = vadd.f32 0.0, %v5351
        %v5353 = vpop.f32.mrb[0].mxu0
        %v5354 = vpop.f32.mrb[0].mxu0
        %v5355 = vpop.f32.mrb[0].mxu0
        %5356 = vdwg.mxu0
        %s5357 = sld [smem:[#allocation6 + $0x87]]
        %s5358 = sld [smem:[#allocation6 + $0x8f]]
        %v5359 = vstv %s5358
        %v5360 = vstv %s5357
        %v5361 = vsel %vm1081, %v5359, %v5360
        %s5362 = sld [smem:[#allocation6 + $0x97]]
        %v5363 = vstv %s5362
        %v5364 = vsel %vm1082, %v5363, %v5361
        %s5365 = sld [smem:[#allocation6 + $0x9f]]
        %v5366 = vstv %s5365
        %v5367 = vsel %vm1083, %v5366, %v5364
        %s5368 = sld [smem:[#allocation6 + $0xa7]]
        %v5369 = vstv %s5368
        %v5370 = vsel %vm1084, %v5369, %v5367
        %s5371 = sld [smem:[#allocation6 + $0xaf]]
        %v5372 = vstv %s5371
        %v5373 = vsel %vm1085, %v5372, %v5370
        %s5374 = sld [smem:[#allocation6 + $0xb7]]
        %v5375 = vstv %s5374
        %v5376 = vsel %vm1086, %v5375, %v5373
        %s5377 = sld [smem:[#allocation6 + $0xbf]]
        %v5378 = vstv %s5377
        %v5379 = vsel %vm1087, %v5378, %v5376
        %v5380 = vadd.f32 %v671, %v5379
        %5381 = vrot.lane.b32.xlu0 %v4412, 16
        %v5382 = vpop.permute.xlu0 %5381
        %5383 = vrot.lane.b32.xlu0 %v4413, 16
        %v5384 = vpop.permute.xlu0 %5383
        %v5386 = vsel %vm1501, %v5382, 0
        %v5389 = vsel %vm1501, %v5384, 0
        %5391 = vmatprep.subr.bf16.mxu0 0
        %5392 = vmatpush1.bf16.xpose.msra.mxu0 %v5389
        %5393 = vmatprep.subr.bf16.mxu0 0
        %5394 = vmatpush1.bf16.xpose.msra.mxu0 0
        %5395 = vmatprep.subr.bf16.mxu0 0
        %5396 = vmatpush1.bf16.xpose.msra.mxu0 0
        %5397 = vmatprep.subr.bf16.mxu0 0
        %5398 = vmatpush1.bf16.xpose.msra.mxu0 0
        %5399 = vmatprep.subr.bf16.mxu0 0
        %5400 = vmatpush1.bf16.xpose.msra.mxu0 0
        %5401 = vmatprep.subr.bf16.mxu0 0
        %5402 = vmatpush1.bf16.xpose.msra.mxu0 0
        %5403 = vmatprep.subr.bf16.mxu0 0
        %5404 = vmatpush1.bf16.xpose.msra.mxu0 0
        %5405 = vmatprep.subr.bf16.mxu0 0
        %5406 = vmatpush1.bf16.xpose.msra.mxu0 0
        %5407 = vmatprep.subr.bf16.mxu0 0
        %5408 = vmatpush1.bf16.xpose.msra.mxu0 0
        %5409 = vmatprep.subr.bf16.mxu0 0
        %5410 = vmatpush1.bf16.xpose.msra.mxu0 0
        %5411 = vmatprep.subr.bf16.mxu0 0
        %5412 = vmatpush1.bf16.xpose.msra.mxu0 0
        %5413 = vmatprep.subr.bf16.mxu0 0
        %5414 = vmatpush1.bf16.xpose.msra.mxu0 0
        %5415 = vmatprep.subr.bf16.mxu0 0
        %5416 = vmatpush1.bf16.xpose.msra.mxu0 0
        %5417 = vmatprep.subr.bf16.mxu0 0
        %5418 = vmatpush1.bf16.xpose.msra.mxu0 0
        %5419 = vmatprep.subr.bf16.mxu0 0
        %5420 = vmatpush1.bf16.xpose.msra.mxu0 0
        %5421 = vmatprep.subr.bf16.mxu0 0
        %5422 = vmatpush1.bf16.xpose.msra.mxu0 0
        %5423 = vmatprep.mubr.bf16.mxu0 0
        %5424 = vmatmul.mubr.bf16.gmra.mrb[0].mxu0 %v5386
        %v5425 = vpop.f32.mrb[0].mxu0
        %v5426 = vadd.f32 %v5380, %v5425
        %v5427 = vpop.f32.mrb[0].mxu0
        %v5428 = vpop.f32.mrb[0].mxu0
        %v5429 = vpop.f32.mrb[0].mxu0
        %5430 = vdwg.mxu0
        %v5431 = vsel %vm1068, %v5426, -inf
        %5432 = vmax.xlane.f32.xlu0 %v5431
        %v5433 = vpop.xlane.xlu0 %5432
        %v5434 = vsub.f32 %v5426, %v5433
        %v5435 = vmul.f32 %v5434, 1.442695
        %v5436 = vpow.pop %v5435
        %v5437 = vsel %vm1068, %v5436, 0.0
        %5438 = vadd.xlane.f32.xlu0 %v5437
        %v5439 = vpop.xlane.xlu0 %5438
        %v5440 = vrcp.pop %v5439
        %v5441 = vmul.f32 %v5436, %v5440
        %v5442 = vmul.f32 %v5441, %v1079
        %v5443 = vpack.c.bf16 %v5442, %v5442
        %5444 = vrot.lane.b32.xlu0 %v4414, 16
        %v5445 = vpop.permute.xlu0 %5444
        %v5447 = vsel %vm1068, %v5443, 0
        %v5450 = vsel %vm975, %v5445, 0
        %5452 = vmatprep.subr.bf16.mxu0 0
        %5453 = vmatpush1.bf16.msra.mxu0 %v5450
        %5454 = vmatprep.subr.bf16.mxu0 0
        %5455 = vmatpush1.bf16.msra.mxu0 0
        %5456 = vmatprep.subr.bf16.mxu0 0
        %5457 = vmatpush1.bf16.msra.mxu0 0
        %5458 = vmatprep.subr.bf16.mxu0 0
        %5459 = vmatpush1.bf16.msra.mxu0 0
        %5460 = vmatprep.subr.bf16.mxu0 0
        %5461 = vmatpush1.bf16.msra.mxu0 0
        %5462 = vmatprep.subr.bf16.mxu0 0
        %5463 = vmatpush1.bf16.msra.mxu0 0
        %5464 = vmatprep.subr.bf16.mxu0 0
        %5465 = vmatpush1.bf16.msra.mxu0 0
        %5466 = vmatprep.subr.bf16.mxu0 0
        %5467 = vmatpush1.bf16.msra.mxu0 0
        %5468 = vmatprep.subr.bf16.mxu0 0
        %5469 = vmatpush1.bf16.msra.mxu0 0
        %5470 = vmatprep.subr.bf16.mxu0 0
        %5471 = vmatpush1.bf16.msra.mxu0 0
        %5472 = vmatprep.subr.bf16.mxu0 0
        %5473 = vmatpush1.bf16.msra.mxu0 0
        %5474 = vmatprep.subr.bf16.mxu0 0
        %5475 = vmatpush1.bf16.msra.mxu0 0
        %5476 = vmatprep.subr.bf16.mxu0 0
        %5477 = vmatpush1.bf16.msra.mxu0 0
        %5478 = vmatprep.subr.bf16.mxu0 0
        %5479 = vmatpush1.bf16.msra.mxu0 0
        %5480 = vmatprep.subr.bf16.mxu0 0
        %5481 = vmatpush1.bf16.msra.mxu0 0
        %5482 = vmatprep.subr.bf16.mxu0 0
        %5483 = vmatpush1.bf16.msra.mxu0 0
        %5484 = vmatprep.mubr.bf16.mxu0 0
        %5485 = vmatmul.mubr.bf16.gmra.mrb[0].mxu0 %v5447
        %v5486 = vpop.f32.mrb[0].mxu0
        %v5487 = vadd.f32 0.0, %v5486
        %v5488 = vpop.f32.mrb[0].mxu0
        %v5489 = vpop.f32.mrb[0].mxu0
        %v5490 = vpop.f32.mrb[0].mxu0
        %5491 = vdwg.mxu0
        %5493 = vrot.lane.b32.xlu0 %v4677, 16
        %v5494 = vpop.permute.xlu0 %5493
        %5497 = vrot.lane.b32.xlu0 %v4812, 32
        %v5498 = vpop.permute.xlu0 %5497
        %5501 = vrot.lane.b32.xlu0 %v4947, 48
        %v5502 = vpop.permute.xlu0 %5501
        %5505 = vrot.lane.b32.xlu0 %v5082, 64
        %v5506 = vpop.permute.xlu0 %5505
        %5509 = vrot.lane.b32.xlu0 %v5217, 80
        %v5510 = vpop.permute.xlu0 %5509
        %5513 = vrot.lane.b32.xlu0 %v5352, 96
        %v5514 = vpop.permute.xlu0 %5513
        %5517 = vrot.lane.b32.xlu0 %v5487, 112
        %v5518 = vpop.permute.xlu0 %5517
        %v5520 = vsel %vm1501, %v4539, %v5494
        %v5521 = vsel %vm2584, %v5520, %v5498
        %v5522 = vsel %vm2586, %v5521, %v5502
        %v5523 = vsel %vm2588, %v5522, %v5506
        %v5524 = vsel %vm2590, %v5523, %v5510
        %v5525 = vsel %vm2592, %v5524, %v5514
        %v5526 = vsel %vm2594, %v5525, %v5518
        %v5527 = vpack.c.bf16 %v5526, %v5526
        %s5528 = scalar_lea.vmem %s10, 128
        %v5529 = vld [vmem:[%s5528] sm:$0xf]
        %v5530 = vld [vmem:[%s5528 + $0x4] sm:$0xf]
        %v5531 = vld [vmem:[%s5528 + $0x8] sm:$0xf]
        %v5532 = vld [vmem:[%s5528 + $0xc] sm:$0xf]
        %v5533 = vld [vmem:[%s5528 + $0x10] sm:$0xf]
        %v5534 = vld [vmem:[%s5528 + $0x14] sm:$0xf]
        %v5535 = vld [vmem:[%s5528 + $0x18] sm:$0xf]
        %v5536 = vld [vmem:[%s5528 + $0x1c] sm:$0xf]
        %v5537 = vld [vmem:[%s5528 + $0x20] sm:$0xf]
        %v5538 = vld [vmem:[%s5528 + $0x24] sm:$0xf]
        %v5539 = vld [vmem:[%s5528 + $0x28] sm:$0xf]
        %v5540 = vld [vmem:[%s5528 + $0x2c] sm:$0xf]
        %v5541 = vld [vmem:[%s5528 + $0x30] sm:$0xf]
        %v5542 = vld [vmem:[%s5528 + $0x34] sm:$0xf]
        %v5543 = vld [vmem:[%s5528 + $0x38] sm:$0xf]
        %v5544 = vld [vmem:[%s5528 + $0x3c] sm:$0xf]
        %v5561 = vunpack.c.l.b16 %v5529
        %v5562 = vunpack.c.l.b16 %v5530
        %v5563 = vunpack.c.l.b16 %v5531
        %v5564 = vunpack.c.l.b16 %v5532
        %v5565 = vunpack.c.l.b16 %v5533
        %v5566 = vunpack.c.l.b16 %v5534
        %v5567 = vunpack.c.l.b16 %v5535
        %v5568 = vunpack.c.l.b16 %v5536
        %v5569 = vunpack.c.l.b16 %v5537
        %v5570 = vunpack.c.l.b16 %v5538
        %v5571 = vunpack.c.l.b16 %v5539
        %v5572 = vunpack.c.l.b16 %v5540
        %v5573 = vunpack.c.l.b16 %v5541
        %v5574 = vunpack.c.l.b16 %v5542
        %v5575 = vunpack.c.l.b16 %v5543
        %v5576 = vunpack.c.l.b16 %v5544
        %v5577 = vpack.c.b16 %v5562, %v5561
        %v5578 = vpack.c.b16 %v5564, %v5563
        %v5579 = vpack.c.b16 %v5566, %v5565
        %v5580 = vpack.c.b16 %v5568, %v5567
        %v5581 = vpack.c.b16 %v5570, %v5569
        %v5582 = vpack.c.b16 %v5572, %v5571
        %v5583 = vpack.c.b16 %v5574, %v5573
        %v5584 = vpack.c.b16 %v5576, %v5575
        %5593 = vmatprep.subr.bf16.mxu0 0
        %5594 = vmatpush1.bf16.msra.mxu0 %v5577
        %5595 = vmatprep.subr.bf16.mxu0 0
        %5596 = vmatpush1.bf16.msra.mxu0 %v5578
        %5597 = vmatprep.subr.bf16.mxu0 0
        %5598 = vmatpush1.bf16.msra.mxu0 %v5579
        %5599 = vmatprep.subr.bf16.mxu0 0
        %5600 = vmatpush1.bf16.msra.mxu0 %v5580
        %5601 = vmatprep.subr.bf16.mxu0 0
        %5602 = vmatpush1.bf16.msra.mxu0 %v5581
        %5603 = vmatprep.subr.bf16.mxu0 0
        %5604 = vmatpush1.bf16.msra.mxu0 %v5582
        %5605 = vmatprep.subr.bf16.mxu0 0
        %5606 = vmatpush1.bf16.msra.mxu0 %v5583
        %5607 = vmatprep.subr.bf16.mxu0 0
        %5608 = vmatpush1.bf16.msra.mxu0 %v5584
        %5609 = vmatprep.subr.bf16.mxu0 0
        %5610 = vmatpush1.bf16.msra.mxu0 0
        %5611 = vmatprep.subr.bf16.mxu0 0
        %5612 = vmatpush1.bf16.msra.mxu0 0
        %5613 = vmatprep.subr.bf16.mxu0 0
        %5614 = vmatpush1.bf16.msra.mxu0 0
        %5615 = vmatprep.subr.bf16.mxu0 0
        %5616 = vmatpush1.bf16.msra.mxu0 0
        %5617 = vmatprep.subr.bf16.mxu0 0
        %5618 = vmatpush1.bf16.msra.mxu0 0
        %5619 = vmatprep.subr.bf16.mxu0 0
        %5620 = vmatpush1.bf16.msra.mxu0 0
        %5621 = vmatprep.subr.bf16.mxu0 0
        %5622 = vmatpush1.bf16.msra.mxu0 0
        %5623 = vmatprep.subr.bf16.mxu0 0
        %5624 = vmatpush1.bf16.msra.mxu0 0
        %5625 = vmatprep.mubr.bf16.mxu0 0
        %5626 = vmatmul.mubr.bf16.gmra.mrb[0].mxu0 %v5527
        %v5627 = vpop.f32.mrb[0].mxu0
        %v5628 = vadd.f32 0.0, %v5627
        %v5629 = vpop.f32.mrb[0].mxu0
        %v5630 = vpop.f32.mrb[0].mxu0
        %v5631 = vpop.f32.mrb[0].mxu0
        %5632 = vdwg.mxu0
        %v5633 = vadd.f32 %v4168, %v5628
        %v5634 = vmax.f32 %v5633, 0.0
        %v5635 = vmul.f32 %v817, %v673
        %v5636 = vmul.f32 %v818, %v673
        %v5637 = vpack.c.bf16 %v5635, %v5635
        %v5638 = vpack.c.bf16 %v5636, %v5636
        %v5639 = vmul.f32 %v5634, %v673
        %v5640 = vpack.c.bf16 %v5639, %v5639
        %v5641 = vld [vmem:[#allocation14] sm:$0xf]
        %v5642 = vld [vmem:[#allocation14 + $0x4] sm:$0xf]
        %v5643 = vld [vmem:[#allocation14 + $0x8] sm:$0xf]
        %v5644 = vld [vmem:[#allocation14 + $0xc] sm:$0xf]
        %v5645 = vld [vmem:[#allocation14 + $0x10] sm:$0xf]
        %v5646 = vld [vmem:[#allocation14 + $0x14] sm:$0xf]
        %v5647 = vld [vmem:[#allocation14 + $0x18] sm:$0xf]
        %v5648 = vld [vmem:[#allocation14 + $0x1c] sm:$0xf]
        %v5649 = vld [vmem:[#allocation14 + $0x20] sm:$0xf]
        %v5650 = vld [vmem:[#allocation14 + $0x24] sm:$0xf]
        %v5651 = vld [vmem:[#allocation14 + $0x28] sm:$0xf]
        %v5652 = vld [vmem:[#allocation14 + $0x2c] sm:$0xf]
        %v5653 = vld [vmem:[#allocation14 + $0x30] sm:$0xf]
        %v5654 = vld [vmem:[#allocation14 + $0x34] sm:$0xf]
        %v5655 = vld [vmem:[#allocation14 + $0x38] sm:$0xf]
        %v5656 = vld [vmem:[#allocation14 + $0x3c] sm:$0xf]
        %v5657 = vld [vmem:[#allocation14 + $0x40] sm:$0xf]
        %v5658 = vld [vmem:[#allocation14 + $0x44] sm:$0xf]
        %v5659 = vld [vmem:[#allocation14 + $0x48] sm:$0xf]
        %v5660 = vld [vmem:[#allocation14 + $0x4c] sm:$0xf]
        %v5661 = vld [vmem:[#allocation14 + $0x50] sm:$0xf]
        %v5662 = vld [vmem:[#allocation14 + $0x54] sm:$0xf]
        %v5663 = vld [vmem:[#allocation14 + $0x58] sm:$0xf]
        %v5664 = vld [vmem:[#allocation14 + $0x5c] sm:$0xf]
        %v5665 = vld [vmem:[#allocation14 + $0x60] sm:$0xf]
        %v5666 = vld [vmem:[%s12] sm:$0xf]
        %v5667 = vld [vmem:[%s12 + $0x4] sm:$0xf]
        %v5668 = vld [vmem:[%s12 + $0x8] sm:$0xf]
        %v5669 = vld [vmem:[%s12 + $0xc] sm:$0xf]
        %v5670 = vld [vmem:[%s12 + $0x10] sm:$0xf]
        %v5671 = vld [vmem:[%s12 + $0x14] sm:$0xf]
        %v5672 = vld [vmem:[%s12 + $0x18] sm:$0xf]
        %v5673 = vld [vmem:[%s12 + $0x1c] sm:$0xf]
        %v5674 = vld [vmem:[%s12 + $0x20] sm:$0xf]
        %v5675 = vld [vmem:[%s12 + $0x24] sm:$0xf]
        %v5676 = vld [vmem:[%s12 + $0x28] sm:$0xf]
        %v5677 = vld [vmem:[%s12 + $0x2c] sm:$0xf]
        %v5678 = vld [vmem:[%s12 + $0x30] sm:$0xf]
        %v5679 = vld [vmem:[%s12 + $0x34] sm:$0xf]
        %v5680 = vld [vmem:[%s12 + $0x38] sm:$0xf]
        %v5681 = vld [vmem:[%s12 + $0x3c] sm:$0xf]
        %v5698 = vunpack.c.l.b16 %v5666
        %v5699 = vunpack.c.l.b16 %v5667
        %v5700 = vunpack.c.l.b16 %v5668
        %v5701 = vunpack.c.l.b16 %v5669
        %v5702 = vunpack.c.l.b16 %v5670
        %v5703 = vunpack.c.l.b16 %v5671
        %v5704 = vunpack.c.l.b16 %v5672
        %v5705 = vunpack.c.l.b16 %v5673
        %v5706 = vunpack.c.l.b16 %v5674
        %v5707 = vunpack.c.l.b16 %v5675
        %v5708 = vunpack.c.l.b16 %v5676
        %v5709 = vunpack.c.l.b16 %v5677
        %v5710 = vunpack.c.l.b16 %v5678
        %v5711 = vunpack.c.l.b16 %v5679
        %v5712 = vunpack.c.l.b16 %v5680
        %v5713 = vunpack.c.l.b16 %v5681
        %v5714 = vpack.c.b16 %v5699, %v5698
        %v5715 = vpack.c.b16 %v5701, %v5700
        %v5716 = vpack.c.b16 %v5703, %v5702
        %v5717 = vpack.c.b16 %v5705, %v5704
        %v5718 = vpack.c.b16 %v5707, %v5706
        %v5719 = vpack.c.b16 %v5709, %v5708
        %v5720 = vpack.c.b16 %v5711, %v5710
        %v5721 = vpack.c.b16 %v5713, %v5712
        %5730 = vmatprep.subr.bf16.mxu0 0
        %5731 = vmatpush1.bf16.msra.mxu0 %v5714
        %5732 = vmatprep.subr.bf16.mxu0 0
        %5733 = vmatpush1.bf16.msra.mxu0 %v5715
        %5734 = vmatprep.subr.bf16.mxu0 0
        %5735 = vmatpush1.bf16.msra.mxu0 %v5716
        %5736 = vmatprep.subr.bf16.mxu0 0
        %5737 = vmatpush1.bf16.msra.mxu0 %v5717
        %5738 = vmatprep.subr.bf16.mxu0 0
        %5739 = vmatpush1.bf16.msra.mxu0 %v5718
        %5740 = vmatprep.subr.bf16.mxu0 0
        %5741 = vmatpush1.bf16.msra.mxu0 %v5719
        %5742 = vmatprep.subr.bf16.mxu0 0
        %5743 = vmatpush1.bf16.msra.mxu0 %v5720
        %5744 = vmatprep.subr.bf16.mxu0 0
        %5745 = vmatpush1.bf16.msra.mxu0 %v5721
        %5746 = vmatprep.subr.bf16.mxu0 0
        %5747 = vmatpush1.bf16.msra.mxu0 0
        %5748 = vmatprep.subr.bf16.mxu0 0
        %5749 = vmatpush1.bf16.msra.mxu0 0
        %5750 = vmatprep.subr.bf16.mxu0 0
        %5751 = vmatpush1.bf16.msra.mxu0 0
        %5752 = vmatprep.subr.bf16.mxu0 0
        %5753 = vmatpush1.bf16.msra.mxu0 0
        %5754 = vmatprep.subr.bf16.mxu0 0
        %5755 = vmatpush1.bf16.msra.mxu0 0
        %5756 = vmatprep.subr.bf16.mxu0 0
        %5757 = vmatpush1.bf16.msra.mxu0 0
        %5758 = vmatprep.subr.bf16.mxu0 0
        %5759 = vmatpush1.bf16.msra.mxu0 0
        %5760 = vmatprep.subr.bf16.mxu0 0
        %5761 = vmatpush1.bf16.msra.mxu0 0
        %5762 = vmatprep.mubr.bf16.mxu0 0
        %5763 = vmatmul.mubr.bf16.gmra.mrb[0].mxu0 %v5640
        %v5764 = vpop.f32.mrb[0].mxu0
        %v5765 = vadd.f32 0.0, %v5764
        %v5766 = vpop.f32.mrb[0].mxu0
        %v5767 = vpop.f32.mrb[0].mxu0
        %v5768 = vpop.f32.mrb[0].mxu0
        %5769 = vdwg.mxu0
        %v5795 = vunpack.c.l.b16 %v5641
        %v5796 = vunpack.c.l.b16 %v5642
        %v5797 = vunpack.c.l.b16 %v5643
        %v5798 = vunpack.c.l.b16 %v5644
        %v5799 = vunpack.c.l.b16 %v5645
        %v5800 = vunpack.c.l.b16 %v5646
        %v5801 = vunpack.c.l.b16 %v5647
        %v5802 = vunpack.c.l.b16 %v5648
        %v5803 = vunpack.c.l.b16 %v5649
        %v5804 = vunpack.c.l.b16 %v5650
        %v5805 = vunpack.c.l.b16 %v5651
        %v5806 = vunpack.c.l.b16 %v5652
        %v5807 = vunpack.c.l.b16 %v5653
        %v5808 = vunpack.c.l.b16 %v5654
        %v5809 = vunpack.c.l.b16 %v5655
        %v5810 = vunpack.c.l.b16 %v5656
        %v5811 = vunpack.c.l.b16 %v5657
        %v5812 = vunpack.c.l.b16 %v5658
        %v5813 = vunpack.c.l.b16 %v5659
        %v5814 = vunpack.c.l.b16 %v5660
        %v5815 = vunpack.c.l.b16 %v5661
        %v5816 = vunpack.c.l.b16 %v5662
        %v5817 = vunpack.c.l.b16 %v5663
        %v5818 = vunpack.c.l.b16 %v5664
        %v5819 = vunpack.c.l.b16 %v5665
        %v5820 = vpack.c.b16 %v5796, %v5795
        %v5821 = vpack.c.b16 %v5798, %v5797
        %v5822 = vpack.c.b16 %v5800, %v5799
        %v5823 = vpack.c.b16 %v5802, %v5801
        %v5824 = vpack.c.b16 %v5804, %v5803
        %v5825 = vpack.c.b16 %v5806, %v5805
        %v5826 = vpack.c.b16 %v5808, %v5807
        %v5827 = vpack.c.b16 %v5810, %v5809
        %v5828 = vpack.c.b16 %v5812, %v5811
        %v5829 = vpack.c.b16 %v5814, %v5813
        %v5830 = vpack.c.b16 %v5816, %v5815
        %v5831 = vpack.c.b16 %v5818, %v5817
        %v5832 = vpack.c.b16 %v5819, %v5819
        %v5846 = vsel %vm971, %v5638, 0
        %v5849 = vsel %vm975, %v5832, 0
        %5851 = vmatprep.subr.bf16.mxu0 0
        %5852 = vmatpush1.bf16.msra.mxu0 %v5820
        %5853 = vmatprep.subr.bf16.mxu0 0
        %5854 = vmatpush1.bf16.msra.mxu0 %v5821
        %5855 = vmatprep.subr.bf16.mxu0 0
        %5856 = vmatpush1.bf16.msra.mxu0 %v5822
        %5857 = vmatprep.subr.bf16.mxu0 0
        %5858 = vmatpush1.bf16.msra.mxu0 %v5823
        %5859 = vmatprep.subr.bf16.mxu0 0
        %5860 = vmatpush1.bf16.msra.mxu0 %v5824
        %5861 = vmatprep.subr.bf16.mxu0 0
        %5862 = vmatpush1.bf16.msra.mxu0 %v5825
        %5863 = vmatprep.subr.bf16.mxu0 0
        %5864 = vmatpush1.bf16.msra.mxu0 %v5826
        %5865 = vmatprep.subr.bf16.mxu0 0
        %5866 = vmatpush1.bf16.msra.mxu0 %v5827
        %5867 = vmatprep.subr.bf16.mxu0 0
        %5868 = vmatpush1.bf16.msra.mxu0 %v5828
        %5869 = vmatprep.subr.bf16.mxu0 0
        %5870 = vmatpush1.bf16.msra.mxu0 %v5829
        %5871 = vmatprep.subr.bf16.mxu0 0
        %5872 = vmatpush1.bf16.msra.mxu0 %v5830
        %5873 = vmatprep.subr.bf16.mxu0 0
        %5874 = vmatpush1.bf16.msra.mxu0 %v5831
        %5875 = vmatprep.subr.bf16.mxu0 0
        %5876 = vmatpush1.bf16.msra.mxu0 %v5849
        %5877 = vmatprep.subr.bf16.mxu0 0
        %5878 = vmatpush1.bf16.msra.mxu0 0
        %5879 = vmatprep.subr.bf16.mxu0 0
        %5880 = vmatpush1.bf16.msra.mxu0 0
        %5881 = vmatprep.subr.bf16.mxu0 0
        %5882 = vmatpush1.bf16.msra.mxu0 0
        %5883 = vmatprep.mubr.bf16.mxu0 %v5846
        %5884 = vmatmul.mubr.bf16.gmra.mrb[0].mxu0 %v5637
        %v5885 = vpop.f32.mrb[0].mxu0
        %v5886 = vadd.f32 %v5765, %v5885
        %v5887 = vpop.f32.mrb[0].mxu0
        %v5888 = vpop.f32.mrb[0].mxu0
        %v5889 = vpop.f32.mrb[0].mxu0
        %5890 = vdwg.mxu0
        %v5891 = vld [vmem:[%s13] sm:$0x1]
        %v5893 = vlaneseq
        %v5894 = vshrl.u32 %v5893, 7
        %v5895 = vsub.s32 0, %v5894
        %v5896 = vrot.slane %v5891, %v5895
        %v5898 = vadd.f32 %v5886, %v5896
        %v5899 = vmax.f32 %v5898, 0.0
        %v5900 = vpack.c.bf16 %v5899, %v5899
        %v5901 = vld [vmem:[%s14] sm:$0xf]
        %v5902 = vld [vmem:[%s14 + $0x4] sm:$0xf]
        %v5903 = vld [vmem:[%s14 + $0x8] sm:$0xf]
        %v5904 = vld [vmem:[%s14 + $0xc] sm:$0xf]
        %v5905 = vld [vmem:[%s14 + $0x10] sm:$0xf]
        %v5906 = vld [vmem:[%s14 + $0x14] sm:$0xf]
        %v5907 = vld [vmem:[%s14 + $0x18] sm:$0xf]
        %v5908 = vld [vmem:[%s14 + $0x1c] sm:$0xf]
        %v5909 = vld [vmem:[%s14 + $0x20] sm:$0xf]
        %v5910 = vld [vmem:[%s14 + $0x24] sm:$0xf]
        %v5911 = vld [vmem:[%s14 + $0x28] sm:$0xf]
        %v5912 = vld [vmem:[%s14 + $0x2c] sm:$0xf]
        %v5913 = vld [vmem:[%s14 + $0x30] sm:$0x3]
        %v5914 = vld [vmem:[%s15] sm:$0x1]
        %v5916 = vlaneseq
        %v5917 = vshrl.u32 %v5916, 7
        %v5918 = vsub.s32 0, %v5917
        %v5919 = vrot.slane %v5914, %v5918
        %v5934 = vunpack.c.l.b16 %v5901
        %v5935 = vunpack.c.l.b16 %v5902
        %v5936 = vunpack.c.l.b16 %v5903
        %v5937 = vunpack.c.l.b16 %v5904
        %v5938 = vunpack.c.l.b16 %v5905
        %v5939 = vunpack.c.l.b16 %v5906
        %v5940 = vunpack.c.l.b16 %v5907
        %v5941 = vunpack.c.l.b16 %v5908
        %v5942 = vunpack.c.l.b16 %v5909
        %v5943 = vunpack.c.l.b16 %v5910
        %v5944 = vunpack.c.l.b16 %v5911
        %v5945 = vunpack.c.l.b16 %v5912
        %v5946 = vunpack.c.l.b16 %v5913
        %v5947 = vpack.c.b16 %v5935, %v5934
        %v5948 = vpack.c.b16 %v5937, %v5936
        %v5949 = vpack.c.b16 %v5939, %v5938
        %v5950 = vpack.c.b16 %v5941, %v5940
        %v5951 = vpack.c.b16 %v5943, %v5942
        %v5952 = vpack.c.b16 %v5945, %v5944
        %v5953 = vpack.c.b16 %v5946, %v5946
        %v5961 = vsel %vm765, %v5900, 0
        %v5964 = vsel %vm769, %v5953, 0
        %5966 = vmatprep.subr.bf16.mxu0 0
        %5967 = vmatpush1.bf16.msra.mxu0 %v5947
        %5968 = vmatprep.subr.bf16.mxu0 0
        %5969 = vmatpush1.bf16.msra.mxu0 %v5948
        %5970 = vmatprep.subr.bf16.mxu0 0
        %5971 = vmatpush1.bf16.msra.mxu0 %v5949
        %5972 = vmatprep.subr.bf16.mxu0 0
        %5973 = vmatpush1.bf16.msra.mxu0 %v5950
        %5974 = vmatprep.subr.bf16.mxu0 0
        %5975 = vmatpush1.bf16.msra.mxu0 %v5951
        %5976 = vmatprep.subr.bf16.mxu0 0
        %5977 = vmatpush1.bf16.msra.mxu0 %v5952
        %5978 = vmatprep.subr.bf16.mxu0 0
        %5979 = vmatpush1.bf16.msra.mxu0 %v5964
        %5980 = vmatprep.subr.bf16.mxu0 0
        %5981 = vmatpush1.bf16.msra.mxu0 0
        %5982 = vmatprep.subr.bf16.mxu0 0
        %5983 = vmatpush1.bf16.msra.mxu0 0
        %5984 = vmatprep.subr.bf16.mxu0 0
        %5985 = vmatpush1.bf16.msra.mxu0 0
        %5986 = vmatprep.subr.bf16.mxu0 0
        %5987 = vmatpush1.bf16.msra.mxu0 0
        %5988 = vmatprep.subr.bf16.mxu0 0
        %5989 = vmatpush1.bf16.msra.mxu0 0
        %5990 = vmatprep.subr.bf16.mxu0 0
        %5991 = vmatpush1.bf16.msra.mxu0 0
        %5992 = vmatprep.subr.bf16.mxu0 0
        %5993 = vmatpush1.bf16.msra.mxu0 0
        %5994 = vmatprep.subr.bf16.mxu0 0
        %5995 = vmatpush1.bf16.msra.mxu0 0
        %5996 = vmatprep.subr.bf16.mxu0 0
        %5997 = vmatpush1.bf16.msra.mxu0 0
        %5998 = vmatprep.mubr.bf16.mxu0 0
        %5999 = vmatmul.mubr.bf16.gmra.mrb[0].mxu0 %v5961
        %v6000 = vpop.f32.mrb[0].mxu0
        %v6001 = vadd.f32 %v5919, %v6000
        %v6002 = vpop.f32.mrb[0].mxu0
        %v6003 = vpop.f32.mrb[0].mxu0
        %v6004 = vpop.f32.mrb[0].mxu0
        %6005 = vdwg.mxu0
        %vm6006 = vcmask 48128
        %v6007 = vsel %vm6006, %v6001, -inf
        %6008 = vmax.xlane.f32.xlu0 %v6007
        %v6009 = vpop.xlane.xlu0 %6008
        %v6010 = vsub.f32 %v6001, %v6009
        %v6011 = vmul.f32 %v6010, 1.442695
        %v6012 = vpow.pop %v6011
        %v6013 = vsel %vm6006, %v6012, 0.0
        %6014 = vadd.xlane.f32.xlu0 %v6013
        %v6015 = vpop.xlane.xlu0 %6014
        %v6016 = vlog2.pop %v6015
        %v6017 = vmul.f32 %v6016, 0.6931472
        %v6018 = vadd.f32 %v6009, %v6017
        %v6019 = vsub.f32 %v6001, %v6018
        %6020 = vst.msk [vmem:[%s654] sm:$0xff] %vm6006, %v6019
        %p6021 = scmp.lt.s32.totalorder %s37, 1
        %s6022 = scalar_select %p6021, %s37, 1
        %s6023 = smul.addr %s6022, 8
        %s6024 = scalar_lea.vmem %s16, %s6023
        // Predicated region
        $region117: #{tpu_custom_call.1} parent=83 // pred_check
          %p6025 = pneg %p401
        $region118: #{tpu_custom_call.1} parent=83 // pred_check_branch
          %6027 = sbr.rel (%p6025) target = $region120
        $region119: #{tpu_custom_call.1} parent=83 // pred_region
          _
        $region120: #{tpu_custom_call.1} parent=83 // pred_fallthru
          _
      $region84: #{tpu_custom_call.1} parent=5 // pred_fallthru
        _
      %p6028 = scmp.le.s32.totalorder 2, %s32
      // Predicated region
      $region121: #{tpu_custom_call.1} parent=5 // pred_check
        %p6029 = pneg %p6028
      $region122: #{tpu_custom_call.1} parent=5 // pred_check_branch
        %6031 = sbr.rel (%p6029) target = $region124
      $region123: #{tpu_custom_call.1} parent=5 // pred_region
        %s6032 = ssub.s32 %s32, 2
        // Predicated region
        $region125: #{tpu_custom_call.1} parent=123 // pred_check
          %p6033 = pneg %p407
        $region126: #{tpu_custom_call.1} parent=123 // pred_check_branch
          %6035 = sbr.rel (%p6033) target = $region128
        $region127: #{tpu_custom_call.1} parent=123 // pred_region
          %p6036 = scmp.lt.s32.totalorder %s38, 1
          %s6037 = scalar_select %p6036, %s38, 1
          %s6038 = smul.addr %s6037, 8
          %s6039 = scalar_lea.vmem %s16, %s6038
        $region128: #{tpu_custom_call.1} parent=123 // pred_fallthru
          _
      $region124: #{tpu_custom_call.1} parent=5 // pred_fallthru
        _
    $region6: #{tpu_custom_call.1} parent=1 // loop_footer
      %s36 = sadd.s32 1, %s32
    $region7: #{tpu_custom_call.1} parent=1 // loop_footer_branch
      %31 = sbr.rel target = $region3
    $region8: #{tpu_custom_call.1} parent=1 // loop_exit
      _
    %6040 = vsyncpa [#allocation3], 1
    %s6041 = scalar_lea.sflag [#allocation3], 1
    %6042 = vsyncpa %s6041, 1
    %6043 = vsyncpa [#allocation9], 1
    %s6044 = scalar_lea.sflag [#allocation9], 1
    %6045 = vsyncpa %s6044, 1
    %6046 = vsyncpa [#allocation12], 1
    %6047 = vsyncpa [#allocation15], 1
    %6048 = vsyncpa [#allocation4], 1
    %s6049 = scalar_lea.sflag [#allocation4], 1
    %6050 = vsyncpa %s6049, 1
    %6051 = vsyncpa [#allocation5], 1
    %s6052 = scalar_lea.sflag [#allocation5], 1
    %6053 = vsyncpa %s6052, 1

</llo_original>
